<compile_context>
chip_gen: v5e
topology: v5e:2x2
jax: 0.10.0
libtpu: 0.0.40
codegen_flags: <defaults>
</compile_context>

<pallas_src>
import functools
import math

import jax
import jax.numpy as jnp
import numpy as np
from jax import lax
from jax.experimental import pallas as pl
from jax.experimental.pallas import tpu as pltpu


_SQRT_2_OVER_PI = math.sqrt(2.0 / math.pi)


def _gelu_tanh(x):
    # tanh-approx GELU (== jax.nn.gelu(approximate=True)); tanh goes to the EUP slot,
    # cutting the VALU chain on the (Bb*S, 4C) tensor vs the erf polynomial.
    return 0.5 * x * (1.0 + jnp.tanh(_SQRT_2_OVER_PI * (x + 0.044715 * (x * x * x))))


def _instance_norm_seq(x):
    # InstanceNorm1d over the sequence axis (axis=1) of (Bb, S, C), matching
    # torch: (x - mean) / (std(unbiased=False) + 1e-8).
    # One-pass moments (var = E[x^2] - mean^2) halve the cross-sublane reduction passes;
    # lax.rsqrt stays on the EUP.  eps is inside the sqrt here (see header note).
    mean = jnp.mean(x, axis=1, keepdims=True)
    msq = jnp.mean(x * x, axis=1, keepdims=True)
    var = jnp.maximum(msq - mean * mean, 0.0)
    return (x - mean) * lax.rsqrt(var + 1e-12)


def _recip_refined(x):
    # EUP approx reciprocal + one Newton step (~2^-24 rel err) on a tiny (..,1) tensor.
    r = pl.reciprocal(x, approx=True)
    return r * (2.0 - x * r)


def _softmax_last(x):
    m = jnp.max(x, axis=-1, keepdims=True)
    e = jnp.exp(x - m)
    return e * _recip_refined(jnp.sum(e, axis=-1, keepdims=True))


def _block_kernel(x_ref, st_ref,
                  wqkv_ref, bqkv_ref, wo_ref, bo_ref,
                  wfc_ref, bfc_ref, wmlp_ref, bmlp_ref,
                  o_ref, *, heads: int):
    Bb, S, C = x_ref.shape
    ch = C // heads

    x = x_ref[...].astype(jnp.float32)            # (Bb, S, C)
    st = st_ref[...].astype(jnp.float32)          # (Bb, 6, C) hoisted style projections
    gamma1, beta1, ls1 = st[:, 0:1, :], st[:, 1:2, :], st[:, 2:3, :]
    gamma2, beta2, ls2 = st[:, 3:4, :], st[:, 4:5, :], st[:, 5:6, :]

    # ---- attention branch: x = x + attn(ln_1(x, w)) * ls_1(w) ----
    h1 = (_instance_norm_seq(x) * gamma1 + beta1).astype(jnp.bfloat16)
    # one wide fused QKV matmul over all Bb samples (M = Bb*S); q/k scale already folded
    # into the packed weights + biases.
    qkv = (jnp.dot(h1.reshape(Bb * S, C), wqkv_ref[...],
                   preferred_element_type=jnp.float32)
           + bqkv_ref[...]).reshape(Bb, S, 3 * C)                 # f32
    q_all = qkv[:, :, :C].astype(jnp.bfloat16)
    k_all = qkv[:, :, C:2 * C].astype(jnp.bfloat16)
    v_all = qkv[:, :, 2 * C:].astype(jnp.bfloat16)

    head_outs = []
    for h in range(heads):                        # static unroll (small head count)
        lo, hi = h * ch, (h + 1) * ch
        q = q_all[:, :, lo:hi]
        k = k_all[:, :, lo:hi]
        v = v_all[:, :, lo:hi]
        logits = jnp.einsum('bqc,bkc->bqk', q, k,
                            preferred_element_type=jnp.float32)   # (Bb, S, S)
        probs = _softmax_last(logits)
        ho = jnp.einsum('bqk,bkc->bqc', probs.astype(jnp.bfloat16), v,
                        preferred_element_type=jnp.float32)       # (Bb, S, ch)
        head_outs.append(ho.astype(jnp.bfloat16))
    # in-register head concat (torch head-major order) -> one lane-dense bf16 MXU operand
    attn_cat = jnp.concatenate(head_outs, axis=-1)                # (Bb, S, C) bf16
    attn = (jnp.dot(attn_cat.reshape(Bb * S, C), wo_ref[...],
                    preferred_element_type=jnp.float32)
            + bo_ref[...]).reshape(Bb, S, C)
    x = x + attn * ls1

    # ---- MLP branch: x = x + mlp(ln_2(x, w)) * ls_2(w) ----
    h2 = (_instance_norm_seq(x) * gamma2 + beta2).astype(jnp.bfloat16)
    fc = (jnp.dot(h2.reshape(Bb * S, C), wfc_ref[...],
                  preferred_element_type=jnp.float32) + bfc_ref[...])     # (Bb*S, 4C)
    fc = _gelu_tanh(fc)                           # sqrt(2) is folded into wmlp
    mlp = (jnp.dot(fc.astype(jnp.bfloat16), wmlp_ref[...],
                   preferred_element_type=jnp.float32)
           + bmlp_ref[...]).reshape(Bb, S, C)
    x = x + mlp * ls2

    o_ref[...] = x.astype(o_ref.dtype)


def init_params(key, width, heads, w_dim):
    """Deterministic synthetic parameters mirroring FullyConnectedLayer semantics
    (effective weight = randn(out, in).T * weight_init / sqrt(in), bias = bias_init)."""
    C, Dw = width, w_dim
    keys = jax.random.split(key, 10)

    def fc_w(k, fan_in, fan_out, weight_init=1.0):
        return jax.random.normal(k, (fan_in, fan_out), jnp.float32) * (weight_init / np.sqrt(fan_in))

    return {
        # MultiheadAttention
        "qkv_w": fc_w(keys[0], C, 3 * C), "qkv_b": jnp.zeros((3 * C,), jnp.float32),
        "attn_proj_w": fc_w(keys[1], C, C), "attn_proj_b": jnp.zeros((C,), jnp.float32),
        # MLP
        "fc_w": fc_w(keys[2], C, 4 * C), "fc_b": jnp.zeros((4 * C,), jnp.float32),
        "mlp_proj_w": fc_w(keys[3], 4 * C, C), "mlp_proj_b": jnp.zeros((C,), jnp.float32),
        # AdaptiveNorm ln_1 / ln_2 (gamma bias_init=1.0, beta bias_init=0.0)
        "g1_w": fc_w(keys[4], Dw, C), "g1_b": jnp.ones((C,), jnp.float32),
        "b1_w": fc_w(keys[5], Dw, C), "b1_b": jnp.zeros((C,), jnp.float32),
        "g2_w": fc_w(keys[6], Dw, C), "g2_b": jnp.ones((C,), jnp.float32),
        "b2_w": fc_w(keys[7], Dw, C), "b2_b": jnp.zeros((C,), jnp.float32),
        # ls_1 / ls_2: the module uses weight_init=0.0 (block starts as identity); use small
        # non-zero weights here so the residual branches are actually exercised.
        "l1_w": fc_w(keys[8], Dw, C, weight_init=0.1), "l1_b": jnp.zeros((C,), jnp.float32),
        "l2_w": fc_w(keys[9], Dw, C, weight_init=0.1), "l2_b": jnp.zeros((C,), jnp.float32),
    }


def pack_params(p, heads):
    """ONE-TIME repack of canonical (torch-layout) params for the kernel (hoisted out of
    the per-forward path, per review):
       - QKV columns regrouped to [Q_allheads | K_allheads | V_allheads], head-major within
         each group (torch layout is [h0: q|k|v, h1: q|k|v, ...]).
       - q/k scale folded into weights AND biases; sqrt(2) folded into wmlp (not bmlp).
       - matmul weights stored bf16, biases f32.
       - the six style() projections are packed into one (Dw, 6C) weight / (1, 6C) bias."""
    C = p["attn_proj_w"].shape[0]
    ch = C // heads
    scale = 1.0 / math.sqrt(math.sqrt(ch))

    qkv_w = p["qkv_w"].reshape(C, heads, 3, ch)            # (C, H, 3, ch)
    qkv_b = p["qkv_b"].reshape(heads, 3, ch)               # (H, 3, ch)
    wq = qkv_w[:, :, 0, :].reshape(C, C) * scale
    wk = qkv_w[:, :, 1, :].reshape(C, C) * scale
    wv = qkv_w[:, :, 2, :].reshape(C, C)
    wqkv = jnp.concatenate([wq, wk, wv], axis=1).astype(jnp.bfloat16)       # (C, 3C)
    bqkv = jnp.concatenate([qkv_b[:, 0, :].reshape(-1) * scale,
                            qkv_b[:, 1, :].reshape(-1) * scale,
                            qkv_b[:, 2, :].reshape(-1)]).reshape(1, 3 * C)  # (1, 3C) f32

    # style projections packed in the order [gamma1, beta1, ls1, gamma2, beta2, ls2]
    style_w = jnp.concatenate([p["g1_w"], p["b1_w"], p["l1_w"],
                               p["g2_w"], p["b2_w"], p["l2_w"]], axis=1)    # (Dw, 6C)
    style_b = jnp.concatenate([p["g1_b"], p["b1_b"], p["l1_b"],
                               p["g2_b"], p["b2_b"], p["l2_b"]]).reshape(1, 6 * C)

    return dict(
        wqkv=wqkv, bqkv=bqkv,
        wo=p["attn_proj_w"].astype(jnp.bfloat16), bo=p["attn_proj_b"].reshape(1, C),
        wfc=p["fc_w"].astype(jnp.bfloat16), bfc=p["fc_b"].reshape(1, -1),
        wmlp=(p["mlp_proj_w"] * np.sqrt(2.0)).astype(jnp.bfloat16),
        bmlp=p["mlp_proj_b"].reshape(1, -1),
        style_w=style_w, style_b=style_b,
    )


def _physical_vmem_bytes():
    # Generation-aware physical VMEM (128 MiB on v5e/v6e, 64 MiB per TC on v7x); fall back
    # to the smallest (v7x) value if the query API is unavailable.
    try:
        return int(pltpu.get_tpu_info().vmem_capacity_bytes)
    except Exception:
        return 64 << 20


def _pick_batch_block(B, S, C, vmem_budget):
    """Largest divisor of B that (a) keeps >= 2 grid steps whenever B >= 2 (so v7x megacore
    still has parallel work) and (b) keeps the per-step activation footprint well inside
    the VMEM budget.  Amortizes the ~0.35 us fixed per-grid-step overhead at small shapes."""
    act_per_sample = (12 * S * C + 2 * S * S) * 4          # rough f32 live-intermediate bound
    best = 1
    for bb in range(1, B + 1):
        if B % bb:
            continue
        if B >= 2 and B // bb < 2:
            continue
        if bb * act_per_sample <= max(vmem_budget // 3, act_per_sample):
            best = bb
    return best


def residual_attention_block(x, w, packed, *, heads, batch_block=None, alias_input=False):
    """Fused forward of ResidualAttentionBlock.  `packed` = pack_params(params, heads)
    (precomputed once).  Per forward, only the tiny (B,Dw)@(Dw,6C) style matmul runs in
    XLA before the single Pallas kernel launch."""
    B, S, C = x.shape
    styles = (w.astype(jnp.float32) @ packed["style_w"] + packed["style_b"]).reshape(B, 6, C)

    operands = [packed[k] for k in
                ("wqkv", "bqkv", "wo", "bo", "wfc", "bfc", "wmlp", "bmlp")]

    phys_vmem = _physical_vmem_bytes()
    Bb = batch_block if batch_block is not None else _pick_batch_block(B, S, C, phys_vmem)
    assert B % Bb == 0, (B, Bb)

    # Generation-aware VMEM budget derived from the actual footprint (no fixed clamps):
    # weights (x2 covers the double-buffered fallback), double-buffered x/styles/out blocks,
    # a generous bound on in-kernel f32 intermediates, plus compiler/internal-scratch margin.
    weight_bytes = sum(int(a.size) * a.dtype.itemsize for a in operands)
    io_block_bytes = (2 * Bb * S * C + Bb * 6 * C) * 4
    interm_bytes = Bb * (12 * S * C + 2 * S * S) * 4
    vmem_limit = int(min(phys_vmem * 3 // 4,
                         2 * weight_bytes + 2 * io_block_bytes + 2 * interm_bytes + (16 << 20)))

    # alias_input writes the residual stream in place (input 0 -> output 0); only worthwhile
    # when the caller donates x, otherwise XLA inserts a defensive copy — default off here.
    io_aliases = {0: 0} if alias_input else {}

    def _build(single_buffer_weights):
        def const_spec(a):
            n = a.ndim
            idx = lambda b, n=n: (0,) * n
            if single_buffer_weights:
                # grid-invariant weights: a single VMEM buffer is enough (block index never
                # changes), halving their footprint vs default double-buffering.
                return pl.BlockSpec(a.shape, idx, pipeline_mode=pl.Buffered(1))
            return pl.BlockSpec(a.shape, idx)

        grid_spec = pltpu.PrefetchScalarGridSpec(
            num_scalar_prefetch=0,
            grid=(B // Bb,),
            in_specs=[pl.BlockSpec((Bb, S, C), lambda b: (b, 0, 0)),
                      pl.BlockSpec((Bb, 6, C), lambda b: (b, 0, 0))]
                     + [const_spec(a) for a in operands],
            out_specs=pl.BlockSpec((Bb, S, C), lambda b: (b, 0, 0)),
        )
        return pl.pallas_call(
            functools.partial(_block_kernel, heads=heads),
            out_shape=jax.ShapeDtypeStruct((B, S, C), x.dtype),
            grid_spec=grid_spec,
            input_output_aliases=io_aliases,
            compiler_params=pltpu.CompilerParams(
                dimension_semantics=("parallel",),
                vmem_limit_bytes=vmem_limit),
        )

    try:
        out = _build(single_buffer_weights=True)(x, styles, *operands)
        # Force compile+run here so any rejection of pipeline_mode=Buffered(1) by this
        # jax/Mosaic build is caught and the double-buffered fallback triggers cleanly.
        return jax.block_until_ready(out)
    except Exception:
        return _build(single_buffer_weights=False)(x, styles, *operands)


def reference(x, w, p, heads):
    """Plain-JAX mirror of the PyTorch forward (wiring sanity check, exact GELU)."""
    B, S, C = x.shape
    ch = C // heads
    scale = 1.0 / math.sqrt(math.sqrt(ch))

    def inorm(v):
        m = v.mean(1, keepdims=True)
        s = jnp.sqrt(((v - m) ** 2).mean(1, keepdims=True))
        return (v - m) / (s + 1e-8)

    def fc(v, wn, bn):
        return v @ p[wn] + p[bn]

    gamma1, beta1, ls1 = (fc(w, "g1_w", "g1_b")[:, None, :],
                          fc(w, "b1_w", "b1_b")[:, None, :],
                          fc(w, "l1_w", "l1_b")[:, None, :])
    gamma2, beta2, ls2 = (fc(w, "g2_w", "g2_b")[:, None, :],
                          fc(w, "b2_w", "b2_b")[:, None, :],
                          fc(w, "l2_w", "l2_b")[:, None, :])

    h1 = inorm(x) * gamma1 + beta1
    qkv = (h1 @ p["qkv_w"] + p["qkv_b"]).reshape(B, S, heads, 3 * ch)
    q, k, v = qkv[..., :ch], qkv[..., ch:2 * ch], qkv[..., 2 * ch:]
    logits = jnp.einsum("bthc,bshc->bhts", q * scale, k * scale)
    probs = jax.nn.softmax(logits, axis=-1)
    attn = jnp.einsum("bhts,bshc->bthc", probs, v).reshape(B, S, C)
    attn = attn @ p["attn_proj_w"] + p["attn_proj_b"]
    x = x + attn * ls1

    h2 = inorm(x) * gamma2 + beta2
    fcv = h2 @ p["fc_w"] + p["fc_b"]
    fcv = jax.nn.gelu(fcv, approximate=False) * np.sqrt(2)
    mlp = fcv @ p["mlp_proj_w"] + p["mlp_proj_b"]
    x = x + mlp * ls2
    return x


if __name__ == "__main__":
    # Lane/sublane-dense small shapes: C and 4C multiples of 128, S fills the MXU M dim.
    # Note: C=128 is a perfect fit for v5e's 4x128x128 MXU but only half-fills v6e/v7x's
    # 256-wide MXU — that ceiling is a model-width choice, not a kernel issue.
    B, S, C, H, Dw = 2, 128, 128, 4, 32   # batch, n_ctx, width, heads, w_dim
    key = jax.random.PRNGKey(0)
    kx, kw, kp = jax.random.split(key, 3)
    x = jax.random.normal(kx, (B, S, C), jnp.float32)
    w = jax.random.normal(kw, (B, Dw), jnp.float32)
    params = init_params(kp, C, H, Dw)

    packed = pack_params(params, H)       # one-time packing, outside the per-forward path

    out = jax.block_until_ready(residual_attention_block(x, w, packed, heads=H))

    with jax.default_matmul_precision("highest"):
        ref = reference(x, w, params, H)

    assert out.shape == (B, S, C)
    assert bool(jnp.all(jnp.isfinite(out)))
    max_err = float(jnp.max(jnp.abs(out - ref)))
    assert bool(jnp.allclose(out, ref, atol=3e-2, rtol=3e-2)), f"max abs err {max_err}"
    print("KERNEL_OK")
</pallas_src>

<mosaic_0001>
module attributes {stable_mosaic.version = 11 : i64} {
  func.func @_block_kernel(%arg0: i32, %arg1: memref<1x128x128xf32, #tpu.memory_space<vmem>>, %arg2: memref<1x6x128xf32, #tpu.memory_space<vmem>>, %arg3: memref<128x384xbf16, #tpu.memory_space<vmem>>, %arg4: memref<1x384xf32, #tpu.memory_space<vmem>>, %arg5: memref<128x128xbf16, #tpu.memory_space<vmem>>, %arg6: memref<1x128xf32, #tpu.memory_space<vmem>>, %arg7: memref<128x512xbf16, #tpu.memory_space<vmem>>, %arg8: memref<1x512xf32, #tpu.memory_space<vmem>>, %arg9: memref<512x128xbf16, #tpu.memory_space<vmem>>, %arg10: memref<1x128xf32, #tpu.memory_space<vmem>>, %arg11: memref<1x128x128xf32, #tpu.memory_space<vmem>>) attributes {dimension_semantics = [#tpu.dimension_semantics<parallel>], iteration_bounds = array<i64: 2>, scalar_prefetch = 0 : i64, scratch_operands = 0 : i64, tpu.core_type = #tpu.core_type<tc>, window_params = [{transform_indices = @transform_0, window_bounds = array<i64: 1, 128, 128>}, {transform_indices = @transform_1, window_bounds = array<i64: 1, 6, 128>}, {pipeline_mode = #tpu.pipeline_mode<synchronous>, transform_indices = @transform_2, window_bounds = array<i64: 128, 384>}, {pipeline_mode = #tpu.pipeline_mode<synchronous>, transform_indices = @transform_3, window_bounds = array<i64: 1, 384>}, {pipeline_mode = #tpu.pipeline_mode<synchronous>, transform_indices = @transform_4, window_bounds = array<i64: 128, 128>}, {pipeline_mode = #tpu.pipeline_mode<synchronous>, transform_indices = @transform_5, window_bounds = array<i64: 1, 128>}, {pipeline_mode = #tpu.pipeline_mode<synchronous>, transform_indices = @transform_6, window_bounds = array<i64: 128, 512>}, {pipeline_mode = #tpu.pipeline_mode<synchronous>, transform_indices = @transform_7, window_bounds = array<i64: 1, 512>}, {pipeline_mode = #tpu.pipeline_mode<synchronous>, transform_indices = @transform_8, window_bounds = array<i64: 512, 128>}, {pipeline_mode = #tpu.pipeline_mode<synchronous>, transform_indices = @transform_9, window_bounds = array<i64: 1, 128>}, {transform_indices = @transform_10, window_bounds = array<i64: 1, 128, 128>}]} {
    %c0 = arith.constant 0 : index
    %c0_0 = arith.constant 0 : index
    %c0_1 = arith.constant 0 : index
    %0 = vector.load %arg1[%c0, %c0_0, %c0_1] : memref<1x128x128xf32, #tpu.memory_space<vmem>>, vector<1x128x128xf32>
    %c0_2 = arith.constant 0 : index
    %c0_3 = arith.constant 0 : index
    %c0_4 = arith.constant 0 : index
    %1 = vector.load %arg2[%c0_2, %c0_3, %c0_4] : memref<1x6x128xf32, #tpu.memory_space<vmem>>, vector<1x6x128xf32>
    %2 = vector.extract_strided_slice %1 {offsets = [0, 0, 0], sizes = [1, 1, 128], strides = [1, 1, 1]} : vector<1x6x128xf32> to vector<1x1x128xf32>
    %3 = vector.extract_strided_slice %1 {offsets = [0, 1, 0], sizes = [1, 1, 128], strides = [1, 1, 1]} : vector<1x6x128xf32> to vector<1x1x128xf32>
    %4 = vector.extract_strided_slice %1 {offsets = [0, 2, 0], sizes = [1, 1, 128], strides = [1, 1, 1]} : vector<1x6x128xf32> to vector<1x1x128xf32>
    %5 = vector.extract_strided_slice %1 {offsets = [0, 3, 0], sizes = [1, 1, 128], strides = [1, 1, 1]} : vector<1x6x128xf32> to vector<1x1x128xf32>
    %6 = vector.extract_strided_slice %1 {offsets = [0, 4, 0], sizes = [1, 1, 128], strides = [1, 1, 1]} : vector<1x6x128xf32> to vector<1x1x128xf32>
    %7 = vector.extract_strided_slice %1 {offsets = [0, 5, 0], sizes = [1, 1, 128], strides = [1, 1, 1]} : vector<1x6x128xf32> to vector<1x1x128xf32>
    %cst = arith.constant dense<0.000000e+00> : vector<1x128xf32>
    %8 = vector.multi_reduction <add>, %0, %cst [1] : vector<1x128x128xf32> to vector<1x128xf32>
    %9 = vector.shape_cast %8 : vector<1x128xf32> to vector<1x1x128xf32>
    %cst_5 = arith.constant 1.280000e+02 : f32
    %10 = vector.broadcast %cst_5 : f32 to vector<1x1x128xf32>
    %11 = arith.divf %9, %10 : vector<1x1x128xf32>
    %12 = arith.mulf %0, %0 : vector<1x128x128xf32>
    %cst_6 = arith.constant dense<0.000000e+00> : vector<1x128xf32>
    %13 = vector.multi_reduction <add>, %12, %cst_6 [1] : vector<1x128x128xf32> to vector<1x128xf32>
    %14 = vector.shape_cast %13 : vector<1x128xf32> to vector<1x1x128xf32>
    %cst_7 = arith.constant 1.280000e+02 : f32
    %15 = vector.broadcast %cst_7 : f32 to vector<1x1x128xf32>
    %16 = arith.divf %14, %15 : vector<1x1x128xf32>
    %17 = arith.mulf %11, %11 : vector<1x1x128xf32>
    %18 = arith.subf %16, %17 : vector<1x1x128xf32>
    %cst_8 = arith.constant 0.000000e+00 : f32
    %19 = vector.broadcast %cst_8 : f32 to vector<1x1x128xf32>
    %20 = arith.maximumf %18, %19 : vector<1x1x128xf32>
    %21 = vector.broadcast %11 : vector<1x1x128xf32> to vector<1x128x128xf32>
    %22 = arith.subf %0, %21 : vector<1x128x128xf32>
    %cst_9 = arith.constant 9.99999996E-13 : f32
    %23 = vector.broadcast %cst_9 : f32 to vector<1x1x128xf32>
    %24 = arith.addf %20, %23 : vector<1x1x128xf32>
    %25 = math.rsqrt %24 : vector<1x1x128xf32>
    %26 = vector.broadcast %25 : vector<1x1x128xf32> to vector<1x128x128xf32>
    %27 = arith.mulf %22, %26 : vector<1x128x128xf32>
    %28 = vector.broadcast %2 : vector<1x1x128xf32> to vector<1x128x128xf32>
    %29 = arith.mulf %27, %28 : vector<1x128x128xf32>
    %30 = vector.broadcast %3 : vector<1x1x128xf32> to vector<1x128x128xf32>
    %31 = arith.addf %29, %30 : vector<1x128x128xf32>
    %32 = arith.truncf %31 : vector<1x128x128xf32> to vector<1x128x128xbf16>
    %33 = vector.shape_cast %32 : vector<1x128x128xbf16> to vector<128x128xbf16>
    %c0_10 = arith.constant 0 : index
    %c0_11 = arith.constant 0 : index
    %34 = vector.load %arg3[%c0_10, %c0_11] : memref<128x384xbf16, #tpu.memory_space<vmem>>, vector<128x384xbf16>
    %cst_12 = arith.constant dense<0.000000e+00> : vector<128x384xf32>
    %35 = tpu.matmul %33, %34, %cst_12 {dimension_numbers = #tpu.dot_dimension_numbers<[1], [0], [0], [1], [0, 0, 1, 1], [], []>} : vector<128x128xbf16>, vector<128x384xbf16>, vector<128x384xf32> -> vector<128x384xf32>
    %c0_13 = arith.constant 0 : index
    %c0_14 = arith.constant 0 : index
    %36 = vector.load %arg4[%c0_13, %c0_14] : memref<1x384xf32, #tpu.memory_space<vmem>>, vector<1x384xf32>
    %37 = vector.broadcast %36 : vector<1x384xf32> to vector<128x384xf32>
    %38 = arith.addf %35, %37 : vector<128x384xf32>
    %39 = vector.shape_cast %38 : vector<128x384xf32> to vector<1x128x384xf32>
    %40 = vector.extract_strided_slice %39 {offsets = [0, 0, 0], sizes = [1, 128, 128], strides = [1, 1, 1]} : vector<1x128x384xf32> to vector<1x128x128xf32>
    %41 = arith.truncf %40 : vector<1x128x128xf32> to vector<1x128x128xbf16>
    %42 = vector.extract_strided_slice %39 {offsets = [0, 0, 128], sizes = [1, 128, 128], strides = [1, 1, 1]} : vector<1x128x384xf32> to vector<1x128x128xf32>
    %43 = arith.truncf %42 : vector<1x128x128xf32> to vector<1x128x128xbf16>
    %44 = vector.extract_strided_slice %39 {offsets = [0, 0, 256], sizes = [1, 128, 128], strides = [1, 1, 1]} : vector<1x128x384xf32> to vector<1x128x128xf32>
    %45 = arith.truncf %44 : vector<1x128x128xf32> to vector<1x128x128xbf16>
    %46 = vector.extract_strided_slice %41 {offsets = [0, 0, 0], sizes = [1, 128, 32], strides = [1, 1, 1]} : vector<1x128x128xbf16> to vector<1x128x32xbf16>
    %47 = vector.extract_strided_slice %43 {offsets = [0, 0, 0], sizes = [1, 128, 32], strides = [1, 1, 1]} : vector<1x128x128xbf16> to vector<1x128x32xbf16>
    %48 = vector.extract_strided_slice %45 {offsets = [0, 0, 0], sizes = [1, 128, 32], strides = [1, 1, 1]} : vector<1x128x128xbf16> to vector<1x128x32xbf16>
    "tpu.trace_start"() <{level = 10 : i32, message = "bqc,bkc->bqk"}> : () -> ()
    %cst_15 = arith.constant dense<0.000000e+00> : vector<1x128x128xf32>
    %49 = tpu.matmul %46, %47, %cst_15 {dimension_numbers = #tpu.dot_dimension_numbers<[2], [2], [1], [1], [0, 0, 0, 1, 1, 1], [0], [0]>} : vector<1x128x32xbf16>, vector<1x128x32xbf16>, vector<1x128x128xf32> -> vector<1x128x128xf32>
    "tpu.trace_stop"() : () -> ()
    %cst_16 = arith.constant dense<0xFF800000> : vector<1x128xf32>
    %50 = vector.multi_reduction <maximumf>, %49, %cst_16 [2] : vector<1x128x128xf32> to vector<1x128xf32>
    %51 = vector.shape_cast %50 : vector<1x128xf32> to vector<1x128x1xf32>
    %52 = vector.broadcast %51 : vector<1x128x1xf32> to vector<1x128x128xf32>
    %53 = arith.subf %49, %52 : vector<1x128x128xf32>
    %54 = math.exp %53 : vector<1x128x128xf32>
    %cst_17 = arith.constant dense<0.000000e+00> : vector<1x128xf32>
    %55 = vector.multi_reduction <add>, %54, %cst_17 [2] : vector<1x128x128xf32> to vector<1x128xf32>
    %56 = vector.shape_cast %55 : vector<1x128xf32> to vector<1x128x1xf32>
    %57 = tpu.reciprocal %56 {approx = true} : vector<1x128x1xf32> -> vector<1x128x1xf32>
    %58 = arith.mulf %56, %57 : vector<1x128x1xf32>
    %cst_18 = arith.constant 2.000000e+00 : f32
    %59 = vector.broadcast %cst_18 : f32 to vector<1x128x1xf32>
    %60 = arith.subf %59, %58 : vector<1x128x1xf32>
    %61 = arith.mulf %57, %60 : vector<1x128x1xf32>
    %62 = vector.broadcast %61 : vector<1x128x1xf32> to vector<1x128x128xf32>
    %63 = arith.mulf %54, %62 : vector<1x128x128xf32>
    %64 = arith.truncf %63 : vector<1x128x128xf32> to vector<1x128x128xbf16>
    "tpu.trace_start"() <{level = 10 : i32, message = "bqk,bkc->bqc"}> : () -> ()
    %cst_19 = arith.constant dense<0.000000e+00> : vector<1x128x32xf32>
    %65 = tpu.matmul %64, %48, %cst_19 {dimension_numbers = #tpu.dot_dimension_numbers<[2], [1], [1], [2], [0, 0, 0, 1, 1, 2], [0], [0]>} : vector<1x128x128xbf16>, vector<1x128x32xbf16>, vector<1x128x32xf32> -> vector<1x128x32xf32>
    "tpu.trace_stop"() : () -> ()
    %66 = arith.truncf %65 : vector<1x128x32xf32> to vector<1x128x32xbf16>
    %67 = vector.extract_strided_slice %41 {offsets = [0, 0, 32], sizes = [1, 128, 32], strides = [1, 1, 1]} : vector<1x128x128xbf16> to vector<1x128x32xbf16>
    %68 = vector.extract_strided_slice %43 {offsets = [0, 0, 32], sizes = [1, 128, 32], strides = [1, 1, 1]} : vector<1x128x128xbf16> to vector<1x128x32xbf16>
    %69 = vector.extract_strided_slice %45 {offsets = [0, 0, 32], sizes = [1, 128, 32], strides = [1, 1, 1]} : vector<1x128x128xbf16> to vector<1x128x32xbf16>
    "tpu.trace_start"() <{level = 10 : i32, message = "bqc,bkc->bqk"}> : () -> ()
    %cst_20 = arith.constant dense<0.000000e+00> : vector<1x128x128xf32>
    %70 = tpu.matmul %67, %68, %cst_20 {dimension_numbers = #tpu.dot_dimension_numbers<[2], [2], [1], [1], [0, 0, 0, 1, 1, 1], [0], [0]>} : vector<1x128x32xbf16>, vector<1x128x32xbf16>, vector<1x128x128xf32> -> vector<1x128x128xf32>
    "tpu.trace_stop"() : () -> ()
    %cst_21 = arith.constant dense<0xFF800000> : vector<1x128xf32>
    %71 = vector.multi_reduction <maximumf>, %70, %cst_21 [2] : vector<1x128x128xf32> to vector<1x128xf32>
    %72 = vector.shape_cast %71 : vector<1x128xf32> to vector<1x128x1xf32>
    %73 = vector.broadcast %72 : vector<1x128x1xf32> to vector<1x128x128xf32>
    %74 = arith.subf %70, %73 : vector<1x128x128xf32>
    %75 = math.exp %74 : vector<1x128x128xf32>
    %cst_22 = arith.constant dense<0.000000e+00> : vector<1x128xf32>
    %76 = vector.multi_reduction <add>, %75, %cst_22 [2] : vector<1x128x128xf32> to vector<1x128xf32>
    %77 = vector.shape_cast %76 : vector<1x128xf32> to vector<1x128x1xf32>
    %78 = tpu.reciprocal %77 {approx = true} : vector<1x128x1xf32> -> vector<1x128x1xf32>
    %79 = arith.mulf %77, %78 : vector<1x128x1xf32>
    %cst_23 = arith.constant 2.000000e+00 : f32
    %80 = vector.broadcast %cst_23 : f32 to vector<1x128x1xf32>
    %81 = arith.subf %80, %79 : vector<1x128x1xf32>
    %82 = arith.mulf %78, %81 : vector<1x128x1xf32>
    %83 = vector.broadcast %82 : vector<1x128x1xf32> to vector<1x128x128xf32>
    %84 = arith.mulf %75, %83 : vector<1x128x128xf32>
    %85 = arith.truncf %84 : vector<1x128x128xf32> to vector<1x128x128xbf16>
    "tpu.trace_start"() <{level = 10 : i32, message = "bqk,bkc->bqc"}> : () -> ()
    %cst_24 = arith.constant dense<0.000000e+00> : vector<1x128x32xf32>
    %86 = tpu.matmul %85, %69, %cst_24 {dimension_numbers = #tpu.dot_dimension_numbers<[2], [1], [1], [2], [0, 0, 0, 1, 1, 2], [0], [0]>} : vector<1x128x128xbf16>, vector<1x128x32xbf16>, vector<1x128x32xf32> -> vector<1x128x32xf32>
    "tpu.trace_stop"() : () -> ()
    %87 = arith.truncf %86 : vector<1x128x32xf32> to vector<1x128x32xbf16>
    %88 = vector.extract_strided_slice %41 {offsets = [0, 0, 64], sizes = [1, 128, 32], strides = [1, 1, 1]} : vector<1x128x128xbf16> to vector<1x128x32xbf16>
    %89 = vector.extract_strided_slice %43 {offsets = [0, 0, 64], sizes = [1, 128, 32], strides = [1, 1, 1]} : vector<1x128x128xbf16> to vector<1x128x32xbf16>
    %90 = vector.extract_strided_slice %45 {offsets = [0, 0, 64], sizes = [1, 128, 32], strides = [1, 1, 1]} : vector<1x128x128xbf16> to vector<1x128x32xbf16>
    "tpu.trace_start"() <{level = 10 : i32, message = "bqc,bkc->bqk"}> : () -> ()
    %cst_25 = arith.constant dense<0.000000e+00> : vector<1x128x128xf32>
    %91 = tpu.matmul %88, %89, %cst_25 {dimension_numbers = #tpu.dot_dimension_numbers<[2], [2], [1], [1], [0, 0, 0, 1, 1, 1], [0], [0]>} : vector<1x128x32xbf16>, vector<1x128x32xbf16>, vector<1x128x128xf32> -> vector<1x128x128xf32>
    "tpu.trace_stop"() : () -> ()
    %cst_26 = arith.constant dense<0xFF800000> : vector<1x128xf32>
    %92 = vector.multi_reduction <maximumf>, %91, %cst_26 [2] : vector<1x128x128xf32> to vector<1x128xf32>
    %93 = vector.shape_cast %92 : vector<1x128xf32> to vector<1x128x1xf32>
    %94 = vector.broadcast %93 : vector<1x128x1xf32> to vector<1x128x128xf32>
    %95 = arith.subf %91, %94 : vector<1x128x128xf32>
    %96 = math.exp %95 : vector<1x128x128xf32>
    %cst_27 = arith.constant dense<0.000000e+00> : vector<1x128xf32>
    %97 = vector.multi_reduction <add>, %96, %cst_27 [2] : vector<1x128x128xf32> to vector<1x128xf32>
    %98 = vector.shape_cast %97 : vector<1x128xf32> to vector<1x128x1xf32>
    %99 = tpu.reciprocal %98 {approx = true} : vector<1x128x1xf32> -> vector<1x128x1xf32>
    %100 = arith.mulf %98, %99 : vector<1x128x1xf32>
    %cst_28 = arith.constant 2.000000e+00 : f32
    %101 = vector.broadcast %cst_28 : f32 to vector<1x128x1xf32>
    %102 = arith.subf %101, %100 : vector<1x128x1xf32>
    %103 = arith.mulf %99, %102 : vector<1x128x1xf32>
    %104 = vector.broadcast %103 : vector<1x128x1xf32> to vector<1x128x128xf32>
    %105 = arith.mulf %96, %104 : vector<1x128x128xf32>
    %106 = arith.truncf %105 : vector<1x128x128xf32> to vector<1x128x128xbf16>
    "tpu.trace_start"() <{level = 10 : i32, message = "bqk,bkc->bqc"}> : () -> ()
    %cst_29 = arith.constant dense<0.000000e+00> : vector<1x128x32xf32>
    %107 = tpu.matmul %106, %90, %cst_29 {dimension_numbers = #tpu.dot_dimension_numbers<[2], [1], [1], [2], [0, 0, 0, 1, 1, 2], [0], [0]>} : vector<1x128x128xbf16>, vector<1x128x32xbf16>, vector<1x128x32xf32> -> vector<1x128x32xf32>
    "tpu.trace_stop"() : () -> ()
    %108 = arith.truncf %107 : vector<1x128x32xf32> to vector<1x128x32xbf16>
    %109 = vector.extract_strided_slice %41 {offsets = [0, 0, 96], sizes = [1, 128, 32], strides = [1, 1, 1]} : vector<1x128x128xbf16> to vector<1x128x32xbf16>
    %110 = vector.extract_strided_slice %43 {offsets = [0, 0, 96], sizes = [1, 128, 32], strides = [1, 1, 1]} : vector<1x128x128xbf16> to vector<1x128x32xbf16>
    %111 = vector.extract_strided_slice %45 {offsets = [0, 0, 96], sizes = [1, 128, 32], strides = [1, 1, 1]} : vector<1x128x128xbf16> to vector<1x128x32xbf16>
    "tpu.trace_start"() <{level = 10 : i32, message = "bqc,bkc->bqk"}> : () -> ()
    %cst_30 = arith.constant dense<0.000000e+00> : vector<1x128x128xf32>
    %112 = tpu.matmul %109, %110, %cst_30 {dimension_numbers = #tpu.dot_dimension_numbers<[2], [2], [1], [1], [0, 0, 0, 1, 1, 1], [0], [0]>} : vector<1x128x32xbf16>, vector<1x128x32xbf16>, vector<1x128x128xf32> -> vector<1x128x128xf32>
    "tpu.trace_stop"() : () -> ()
    %cst_31 = arith.constant dense<0xFF800000> : vector<1x128xf32>
    %113 = vector.multi_reduction <maximumf>, %112, %cst_31 [2] : vector<1x128x128xf32> to vector<1x128xf32>
    %114 = vector.shape_cast %113 : vector<1x128xf32> to vector<1x128x1xf32>
    %115 = vector.broadcast %114 : vector<1x128x1xf32> to vector<1x128x128xf32>
    %116 = arith.subf %112, %115 : vector<1x128x128xf32>
    %117 = math.exp %116 : vector<1x128x128xf32>
    %cst_32 = arith.constant dense<0.000000e+00> : vector<1x128xf32>
    %118 = vector.multi_reduction <add>, %117, %cst_32 [2] : vector<1x128x128xf32> to vector<1x128xf32>
    %119 = vector.shape_cast %118 : vector<1x128xf32> to vector<1x128x1xf32>
    %120 = tpu.reciprocal %119 {approx = true} : vector<1x128x1xf32> -> vector<1x128x1xf32>
    %121 = arith.mulf %119, %120 : vector<1x128x1xf32>
    %cst_33 = arith.constant 2.000000e+00 : f32
    %122 = vector.broadcast %cst_33 : f32 to vector<1x128x1xf32>
    %123 = arith.subf %122, %121 : vector<1x128x1xf32>
    %124 = arith.mulf %120, %123 : vector<1x128x1xf32>
    %125 = vector.broadcast %124 : vector<1x128x1xf32> to vector<1x128x128xf32>
    %126 = arith.mulf %117, %125 : vector<1x128x128xf32>
    %127 = arith.truncf %126 : vector<1x128x128xf32> to vector<1x128x128xbf16>
    "tpu.trace_start"() <{level = 10 : i32, message = "bqk,bkc->bqc"}> : () -> ()
    %cst_34 = arith.constant dense<0.000000e+00> : vector<1x128x32xf32>
    %128 = tpu.matmul %127, %111, %cst_34 {dimension_numbers = #tpu.dot_dimension_numbers<[2], [1], [1], [2], [0, 0, 0, 1, 1, 2], [0], [0]>} : vector<1x128x128xbf16>, vector<1x128x32xbf16>, vector<1x128x32xf32> -> vector<1x128x32xf32>
    "tpu.trace_stop"() : () -> ()
    %129 = arith.truncf %128 : vector<1x128x32xf32> to vector<1x128x32xbf16>
    %130 = tpu.concatenate %66, %87, %108, %129 in 2 : vector<1x128x32xbf16>, vector<1x128x32xbf16>, vector<1x128x32xbf16>, vector<1x128x32xbf16> -> vector<1x128x128xbf16>
    %131 = vector.shape_cast %130 : vector<1x128x128xbf16> to vector<128x128xbf16>
    %c0_35 = arith.constant 0 : index
    %c0_36 = arith.constant 0 : index
    %132 = vector.load %arg5[%c0_35, %c0_36] : memref<128x128xbf16, #tpu.memory_space<vmem>>, vector<128x128xbf16>
    %cst_37 = arith.constant dense<0.000000e+00> : vector<128x128xf32>
    %133 = tpu.matmul %131, %132, %cst_37 {dimension_numbers = #tpu.dot_dimension_numbers<[1], [0], [0], [1], [0, 0, 1, 1], [], []>} : vector<128x128xbf16>, vector<128x128xbf16>, vector<128x128xf32> -> vector<128x128xf32>
    %c0_38 = arith.constant 0 : index
    %c0_39 = arith.constant 0 : index
    %134 = vector.load %arg6[%c0_38, %c0_39] : memref<1x128xf32, #tpu.memory_space<vmem>>, vector<1x128xf32>
    %135 = vector.broadcast %134 : vector<1x128xf32> to vector<128x128xf32>
    %136 = arith.addf %133, %135 : vector<128x128xf32>
    %137 = vector.shape_cast %136 : vector<128x128xf32> to vector<1x128x128xf32>
    %138 = vector.broadcast %4 : vector<1x1x128xf32> to vector<1x128x128xf32>
    %139 = arith.mulf %137, %138 : vector<1x128x128xf32>
    %140 = arith.addf %0, %139 : vector<1x128x128xf32>
    %cst_40 = arith.constant dense<0.000000e+00> : vector<1x128xf32>
    %141 = vector.multi_reduction <add>, %140, %cst_40 [1] : vector<1x128x128xf32> to vector<1x128xf32>
    %142 = vector.shape_cast %141 : vector<1x128xf32> to vector<1x1x128xf32>
    %cst_41 = arith.constant 1.280000e+02 : f32
    %143 = vector.broadcast %cst_41 : f32 to vector<1x1x128xf32>
    %144 = arith.divf %142, %143 : vector<1x1x128xf32>
    %145 = arith.mulf %140, %140 : vector<1x128x128xf32>
    %cst_42 = arith.constant dense<0.000000e+00> : vector<1x128xf32>
    %146 = vector.multi_reduction <add>, %145, %cst_42 [1] : vector<1x128x128xf32> to vector<1x128xf32>
    %147 = vector.shape_cast %146 : vector<1x128xf32> to vector<1x1x128xf32>
    %cst_43 = arith.constant 1.280000e+02 : f32
    %148 = vector.broadcast %cst_43 : f32 to vector<1x1x128xf32>
    %149 = arith.divf %147, %148 : vector<1x1x128xf32>
    %150 = arith.mulf %144, %144 : vector<1x1x128xf32>
    %151 = arith.subf %149, %150 : vector<1x1x128xf32>
    %cst_44 = arith.constant 0.000000e+00 : f32
    %152 = vector.broadcast %cst_44 : f32 to vector<1x1x128xf32>
    %153 = arith.maximumf %151, %152 : vector<1x1x128xf32>
    %154 = vector.broadcast %144 : vector<1x1x128xf32> to vector<1x128x128xf32>
    %155 = arith.subf %140, %154 : vector<1x128x128xf32>
    %cst_45 = arith.constant 9.99999996E-13 : f32
    %156 = vector.broadcast %cst_45 : f32 to vector<1x1x128xf32>
    %157 = arith.addf %153, %156 : vector<1x1x128xf32>
    %158 = math.rsqrt %157 : vector<1x1x128xf32>
    %159 = vector.broadcast %158 : vector<1x1x128xf32> to vector<1x128x128xf32>
    %160 = arith.mulf %155, %159 : vector<1x128x128xf32>
    %161 = vector.broadcast %5 : vector<1x1x128xf32> to vector<1x128x128xf32>
    %162 = arith.mulf %160, %161 : vector<1x128x128xf32>
    %163 = vector.broadcast %6 : vector<1x1x128xf32> to vector<1x128x128xf32>
    %164 = arith.addf %162, %163 : vector<1x128x128xf32>
    %165 = arith.truncf %164 : vector<1x128x128xf32> to vector<1x128x128xbf16>
    %166 = vector.shape_cast %165 : vector<1x128x128xbf16> to vector<128x128xbf16>
    %c0_46 = arith.constant 0 : index
    %c0_47 = arith.constant 0 : index
    %167 = vector.load %arg7[%c0_46, %c0_47] : memref<128x512xbf16, #tpu.memory_space<vmem>>, vector<128x512xbf16>
    %cst_48 = arith.constant dense<0.000000e+00> : vector<128x512xf32>
    %168 = tpu.matmul %166, %167, %cst_48 {dimension_numbers = #tpu.dot_dimension_numbers<[1], [0], [0], [1], [0, 0, 1, 1], [], []>} : vector<128x128xbf16>, vector<128x512xbf16>, vector<128x512xf32> -> vector<128x512xf32>
    %c0_49 = arith.constant 0 : index
    %c0_50 = arith.constant 0 : index
    %169 = vector.load %arg8[%c0_49, %c0_50] : memref<1x512xf32, #tpu.memory_space<vmem>>, vector<1x512xf32>
    %170 = vector.broadcast %169 : vector<1x512xf32> to vector<128x512xf32>
    %171 = arith.addf %168, %170 : vector<128x512xf32>
    %cst_51 = arith.constant 5.000000e-01 : f32
    %172 = vector.broadcast %cst_51 : f32 to vector<128x512xf32>
    %173 = arith.mulf %172, %171 : vector<128x512xf32>
    %174 = arith.mulf %171, %171 : vector<128x512xf32>
    %175 = arith.mulf %174, %171 : vector<128x512xf32>
    %cst_52 = arith.constant 4.471500e-02 : f32
    %176 = vector.broadcast %cst_52 : f32 to vector<128x512xf32>
    %177 = arith.mulf %176, %175 : vector<128x512xf32>
    %178 = arith.addf %171, %177 : vector<128x512xf32>
    %cst_53 = arith.constant 0.797884583 : f32
    %179 = vector.broadcast %cst_53 : f32 to vector<128x512xf32>
    %180 = arith.mulf %179, %178 : vector<128x512xf32>
    %181 = math.tanh %180 : vector<128x512xf32>
    %cst_54 = arith.constant 1.000000e+00 : f32
    %182 = vector.broadcast %cst_54 : f32 to vector<128x512xf32>
    %183 = arith.addf %182, %181 : vector<128x512xf32>
    %184 = arith.mulf %173, %183 : vector<128x512xf32>
    %185 = arith.truncf %184 : vector<128x512xf32> to vector<128x512xbf16>
    %c0_55 = arith.constant 0 : index
    %c0_56 = arith.constant 0 : index
    %186 = vector.load %arg9[%c0_55, %c0_56] : memref<512x128xbf16, #tpu.memory_space<vmem>>, vector<512x128xbf16>
    %cst_57 = arith.constant dense<0.000000e+00> : vector<128x128xf32>
    %187 = tpu.matmul %185, %186, %cst_57 {dimension_numbers = #tpu.dot_dimension_numbers<[1], [0], [0], [1], [0, 0, 1, 1], [], []>} : vector<128x512xbf16>, vector<512x128xbf16>, vector<128x128xf32> -> vector<128x128xf32>
    %c0_58 = arith.constant 0 : index
    %c0_59 = arith.constant 0 : index
    %188 = vector.load %arg10[%c0_58, %c0_59] : memref<1x128xf32, #tpu.memory_space<vmem>>, vector<1x128xf32>
    %189 = vector.broadcast %188 : vector<1x128xf32> to vector<128x128xf32>
    %190 = arith.addf %187, %189 : vector<128x128xf32>
    %191 = vector.shape_cast %190 : vector<128x128xf32> to vector<1x128x128xf32>
    %192 = vector.broadcast %7 : vector<1x1x128xf32> to vector<1x128x128xf32>
    %193 = arith.mulf %191, %192 : vector<1x128x128xf32>
    %194 = arith.addf %140, %193 : vector<1x128x128xf32>
    %c0_60 = arith.constant 0 : index
    %c0_61 = arith.constant 0 : index
    %c0_62 = arith.constant 0 : index
    %195 = vector.load %arg11[%c0_60, %c0_61, %c0_62] : memref<1x128x128xf32, #tpu.memory_space<vmem>>, vector<1x128x128xf32>
    tpu.vector_store %arg11[%c0_60, %c0_61, %c0_62], %194 {strides = array<i32>} : memref<1x128x128xf32, #tpu.memory_space<vmem>>, vector<1x128x128xf32>,
    return
  }
  func.func @transform_0(%arg0: i32) -> (i32, i32, i32) {
    %c0_i32 = arith.constant 0 : i32
    %c0_i32_0 = arith.constant 0 : i32
    %c0_i32_1 = arith.constant 0 : i32
    return %arg0, %c0_i32, %c0_i32_0 : i32, i32, i32
  }
  func.func @transform_1(%arg0: i32) -> (i32, i32, i32) {
    %c0_i32 = arith.constant 0 : i32
    %c0_i32_0 = arith.constant 0 : i32
    %c0_i32_1 = arith.constant 0 : i32
    return %arg0, %c0_i32, %c0_i32_0 : i32, i32, i32
  }
  func.func @transform_2(%arg0: i32) -> (i32, i32) {
    %c0_i32 = arith.constant 0 : i32
    %c0_i32_0 = arith.constant 0 : i32
    %c0_i32_1 = arith.constant 0 : i32
    return %c0_i32, %c0_i32_0 : i32, i32
  }
  func.func @transform_3(%arg0: i32) -> (i32, i32) {
    %c0_i32 = arith.constant 0 : i32
    %c0_i32_0 = arith.constant 0 : i32
    %c0_i32_1 = arith.constant 0 : i32
    return %c0_i32, %c0_i32_0 : i32, i32
  }
  func.func @transform_4(%arg0: i32) -> (i32, i32) {
    %c0_i32 = arith.constant 0 : i32
    %c0_i32_0 = arith.constant 0 : i32
    %c0_i32_1 = arith.constant 0 : i32
    return %c0_i32, %c0_i32_0 : i32, i32
  }
  func.func @transform_5(%arg0: i32) -> (i32, i32) {
    %c0_i32 = arith.constant 0 : i32
    %c0_i32_0 = arith.constant 0 : i32
    %c0_i32_1 = arith.constant 0 : i32
    return %c0_i32, %c0_i32_0 : i32, i32
  }
  func.func @transform_6(%arg0: i32) -> (i32, i32) {
    %c0_i32 = arith.constant 0 : i32
    %c0_i32_0 = arith.constant 0 : i32
    %c0_i32_1 = arith.constant 0 : i32
    return %c0_i32, %c0_i32_0 : i32, i32
  }
  func.func @transform_7(%arg0: i32) -> (i32, i32) {
    %c0_i32 = arith.constant 0 : i32
    %c0_i32_0 = arith.constant 0 : i32
    %c0_i32_1 = arith.constant 0 : i32
    return %c0_i32, %c0_i32_0 : i32, i32
  }
  func.func @transform_8(%arg0: i32) -> (i32, i32) {
    %c0_i32 = arith.constant 0 : i32
    %c0_i32_0 = arith.constant 0 : i32
    %c0_i32_1 = arith.constant 0 : i32
    return %c0_i32, %c0_i32_0 : i32, i32
  }
  func.func @transform_9(%arg0: i32) -> (i32, i32) {
    %c0_i32 = arith.constant 0 : i32
    %c0_i32_0 = arith.constant 0 : i32
    %c0_i32_1 = arith.constant 0 : i32
    return %c0_i32, %c0_i32_0 : i32, i32
  }
  func.func @transform_10(%arg0: i32) -> (i32, i32, i32) {
    %c0_i32 = arith.constant 0 : i32
    %c0_i32_0 = arith.constant 0 : i32
    %c0_i32_1 = arith.constant 0 : i32
    return %arg0, %c0_i32, %c0_i32_0 : i32, i32, i32
  }
}

module attributes {stable_mosaic.version = 11 : i64} {
  func.func @_block_kernel(%arg0: i32, %arg1: memref<1x128x128xf32, #tpu.memory_space<vmem>>, %arg2: memref<1x6x128xf32, #tpu.memory_space<vmem>>, %arg3: memref<128x384xbf16, #tpu.memory_space<vmem>>, %arg4: memref<1x384xf32, #tpu.memory_space<vmem>>, %arg5: memref<128x128xbf16, #tpu.memory_space<vmem>>, %arg6: memref<1x128xf32, #tpu.memory_space<vmem>>, %arg7: memref<128x512xbf16, #tpu.memory_space<vmem>>, %arg8: memref<1x512xf32, #tpu.memory_space<vmem>>, %arg9: memref<512x128xbf16, #tpu.memory_space<vmem>>, %arg10: memref<1x128xf32, #tpu.memory_space<vmem>>, %arg11: memref<1x128x128xf32, #tpu.memory_space<vmem>>) attributes {dimension_semantics = [#tpu.dimension_semantics<parallel>], iteration_bounds = array<i64: 2>, scalar_prefetch = 0 : i64, scratch_operands = 0 : i64, tpu.core_type = #tpu.core_type<tc>, window_params = [{transform_indices = @transform_0, window_bounds = array<i64: 1, 128, 128>}, {transform_indices = @transform_1, window_bounds = array<i64: 1, 6, 128>}, {pipeline_mode = #tpu.pipeline_mode<synchronous>, transform_indices = @transform_2, window_bounds = array<i64: 128, 384>}, {pipeline_mode = #tpu.pipeline_mode<synchronous>, transform_indices = @transform_3, window_bounds = array<i64: 1, 384>}, {pipeline_mode = #tpu.pipeline_mode<synchronous>, transform_indices = @transform_4, window_bounds = array<i64: 128, 128>}, {pipeline_mode = #tpu.pipeline_mode<synchronous>, transform_indices = @transform_5, window_bounds = array<i64: 1, 128>}, {pipeline_mode = #tpu.pipeline_mode<synchronous>, transform_indices = @transform_6, window_bounds = array<i64: 128, 512>}, {pipeline_mode = #tpu.pipeline_mode<synchronous>, transform_indices = @transform_7, window_bounds = array<i64: 1, 512>}, {pipeline_mode = #tpu.pipeline_mode<synchronous>, transform_indices = @transform_8, window_bounds = array<i64: 512, 128>}, {pipeline_mode = #tpu.pipeline_mode<synchronous>, transform_indices = @transform_9, window_bounds = array<i64: 1, 128>}, {transform_indices = @transform_10, window_bounds = array<i64: 1, 128, 128>}]} {
    %c0 = arith.constant 0 : index
    %c0_0 = arith.constant 0 : index
    %c0_1 = arith.constant 0 : index
    %0 = vector.load %arg1[%c0, %c0_0, %c0_1] : memref<1x128x128xf32, #tpu.memory_space<vmem>>, vector<1x128x128xf32>
    %c0_2 = arith.constant 0 : index
    %c0_3 = arith.constant 0 : index
    %c0_4 = arith.constant 0 : index
    %1 = vector.load %arg2[%c0_2, %c0_3, %c0_4] : memref<1x6x128xf32, #tpu.memory_space<vmem>>, vector<1x6x128xf32>
    %2 = vector.extract_strided_slice %1 {offsets = [0, 0, 0], sizes = [1, 1, 128], strides = [1, 1, 1]} : vector<1x6x128xf32> to vector<1x1x128xf32>
    %3 = vector.extract_strided_slice %1 {offsets = [0, 1, 0], sizes = [1, 1, 128], strides = [1, 1, 1]} : vector<1x6x128xf32> to vector<1x1x128xf32>
    %4 = vector.extract_strided_slice %1 {offsets = [0, 2, 0], sizes = [1, 1, 128], strides = [1, 1, 1]} : vector<1x6x128xf32> to vector<1x1x128xf32>
    %5 = vector.extract_strided_slice %1 {offsets = [0, 3, 0], sizes = [1, 1, 128], strides = [1, 1, 1]} : vector<1x6x128xf32> to vector<1x1x128xf32>
    %6 = vector.extract_strided_slice %1 {offsets = [0, 4, 0], sizes = [1, 1, 128], strides = [1, 1, 1]} : vector<1x6x128xf32> to vector<1x1x128xf32>
    %7 = vector.extract_strided_slice %1 {offsets = [0, 5, 0], sizes = [1, 1, 128], strides = [1, 1, 1]} : vector<1x6x128xf32> to vector<1x1x128xf32>
    %cst = arith.constant dense<0.000000e+00> : vector<1x128xf32>
    %8 = vector.multi_reduction <add>, %0, %cst [1] : vector<1x128x128xf32> to vector<1x128xf32>
    %9 = vector.shape_cast %8 : vector<1x128xf32> to vector<1x1x128xf32>
    %cst_5 = arith.constant 1.280000e+02 : f32
    %10 = vector.broadcast %cst_5 : f32 to vector<1x1x128xf32>
    %11 = arith.divf %9, %10 : vector<1x1x128xf32>
    %12 = arith.mulf %0, %0 : vector<1x128x128xf32>
    %cst_6 = arith.constant dense<0.000000e+00> : vector<1x128xf32>
    %13 = vector.multi_reduction <add>, %12, %cst_6 [1] : vector<1x128x128xf32> to vector<1x128xf32>
    %14 = vector.shape_cast %13 : vector<1x128xf32> to vector<1x1x128xf32>
    %cst_7 = arith.constant 1.280000e+02 : f32
    %15 = vector.broadcast %cst_7 : f32 to vector<1x1x128xf32>
    %16 = arith.divf %14, %15 : vector<1x1x128xf32>
    %17 = arith.mulf %11, %11 : vector<1x1x128xf32>
    %18 = arith.subf %16, %17 : vector<1x1x128xf32>
    %cst_8 = arith.constant 0.000000e+00 : f32
    %19 = vector.broadcast %cst_8 : f32 to vector<1x1x128xf32>
    %20 = arith.maximumf %18, %19 : vector<1x1x128xf32>
    %21 = vector.broadcast %11 : vector<1x1x128xf32> to vector<1x128x128xf32>
    %22 = arith.subf %0, %21 : vector<1x128x128xf32>
    %cst_9 = arith.constant 9.99999996E-13 : f32
    %23 = vector.broadcast %cst_9 : f32 to vector<1x1x128xf32>
    %24 = arith.addf %20, %23 : vector<1x1x128xf32>
    %25 = math.rsqrt %24 : vector<1x1x128xf32>
    %26 = vector.broadcast %25 : vector<1x1x128xf32> to vector<1x128x128xf32>
    %27 = arith.mulf %22, %26 : vector<1x128x128xf32>
    %28 = vector.broadcast %2 : vector<1x1x128xf32> to vector<1x128x128xf32>
    %29 = arith.mulf %27, %28 : vector<1x128x128xf32>
    %30 = vector.broadcast %3 : vector<1x1x128xf32> to vector<1x128x128xf32>
    %31 = arith.addf %29, %30 : vector<1x128x128xf32>
    %32 = arith.truncf %31 : vector<1x128x128xf32> to vector<1x128x128xbf16>
    %33 = vector.shape_cast %32 : vector<1x128x128xbf16> to vector<128x128xbf16>
    %c0_10 = arith.constant 0 : index
    %c0_11 = arith.constant 0 : index
    %34 = vector.load %arg3[%c0_10, %c0_11] : memref<128x384xbf16, #tpu.memory_space<vmem>>, vector<128x384xbf16>
    %cst_12 = arith.constant dense<0.000000e+00> : vector<128x384xf32>
    %35 = tpu.matmul %33, %34, %cst_12 {dimension_numbers = #tpu.dot_dimension_numbers<[1], [0], [0], [1], [0, 0, 1, 1], [], []>} : vector<128x128xbf16>, vector<128x384xbf16>, vector<128x384xf32> -> vector<128x384xf32>
    %c0_13 = arith.constant 0 : index
    %c0_14 = arith.constant 0 : index
    %36 = vector.load %arg4[%c0_13, %c0_14] : memref<1x384xf32, #tpu.memory_space<vmem>>, vector<1x384xf32>
    %37 = vector.broadcast %36 : vector<1x384xf32> to vector<128x384xf32>
    %38 = arith.addf %35, %37 : vector<128x384xf32>
    %39 = vector.shape_cast %38 : vector<128x384xf32> to vector<1x128x384xf32>
    %40 = vector.extract_strided_slice %39 {offsets = [0, 0, 0], sizes = [1, 128, 128], strides = [1, 1, 1]} : vector<1x128x384xf32> to vector<1x128x128xf32>
    %41 = arith.truncf %40 : vector<1x128x128xf32> to vector<1x128x128xbf16>
    %42 = vector.extract_strided_slice %39 {offsets = [0, 0, 128], sizes = [1, 128, 128], strides = [1, 1, 1]} : vector<1x128x384xf32> to vector<1x128x128xf32>
    %43 = arith.truncf %42 : vector<1x128x128xf32> to vector<1x128x128xbf16>
    %44 = vector.extract_strided_slice %39 {offsets = [0, 0, 256], sizes = [1, 128, 128], strides = [1, 1, 1]} : vector<1x128x384xf32> to vector<1x128x128xf32>
    %45 = arith.truncf %44 : vector<1x128x128xf32> to vector<1x128x128xbf16>
    %46 = vector.extract_strided_slice %41 {offsets = [0, 0, 0], sizes = [1, 128, 32], strides = [1, 1, 1]} : vector<1x128x128xbf16> to vector<1x128x32xbf16>
    %47 = vector.extract_strided_slice %43 {offsets = [0, 0, 0], sizes = [1, 128, 32], strides = [1, 1, 1]} : vector<1x128x128xbf16> to vector<1x128x32xbf16>
    %48 = vector.extract_strided_slice %45 {offsets = [0, 0, 0], sizes = [1, 128, 32], strides = [1, 1, 1]} : vector<1x128x128xbf16> to vector<1x128x32xbf16>
    "tpu.trace_start"() <{level = 10 : i32, message = "bqc,bkc->bqk"}> : () -> ()
    %cst_15 = arith.constant dense<0.000000e+00> : vector<1x128x128xf32>
    %49 = tpu.matmul %46, %47, %cst_15 {dimension_numbers = #tpu.dot_dimension_numbers<[2], [2], [1], [1], [0, 0, 0, 1, 1, 1], [0], [0]>} : vector<1x128x32xbf16>, vector<1x128x32xbf16>, vector<1x128x128xf32> -> vector<1x128x128xf32>
    "tpu.trace_stop"() : () -> ()
    %cst_16 = arith.constant dense<0xFF800000> : vector<1x128xf32>
    %50 = vector.multi_reduction <maximumf>, %49, %cst_16 [2] : vector<1x128x128xf32> to vector<1x128xf32>
    %51 = vector.shape_cast %50 : vector<1x128xf32> to vector<1x128x1xf32>
    %52 = vector.broadcast %51 : vector<1x128x1xf32> to vector<1x128x128xf32>
    %53 = arith.subf %49, %52 : vector<1x128x128xf32>
    %54 = math.exp %53 : vector<1x128x128xf32>
    %cst_17 = arith.constant dense<0.000000e+00> : vector<1x128xf32>
    %55 = vector.multi_reduction <add>, %54, %cst_17 [2] : vector<1x128x128xf32> to vector<1x128xf32>
    %56 = vector.shape_cast %55 : vector<1x128xf32> to vector<1x128x1xf32>
    %57 = tpu.reciprocal %56 {approx = true} : vector<1x128x1xf32> -> vector<1x128x1xf32>
    %58 = arith.mulf %56, %57 : vector<1x128x1xf32>
    %cst_18 = arith.constant 2.000000e+00 : f32
    %59 = vector.broadcast %cst_18 : f32 to vector<1x128x1xf32>
    %60 = arith.subf %59, %58 : vector<1x128x1xf32>
    %61 = arith.mulf %57, %60 : vector<1x128x1xf32>
    %62 = vector.broadcast %61 : vector<1x128x1xf32> to vector<1x128x128xf32>
    %63 = arith.mulf %54, %62 : vector<1x128x128xf32>
    %64 = arith.truncf %63 : vector<1x128x128xf32> to vector<1x128x128xbf16>
    "tpu.trace_start"() <{level = 10 : i32, message = "bqk,bkc->bqc"}> : () -> ()
    %cst_19 = arith.constant dense<0.000000e+00> : vector<1x128x32xf32>
    %65 = tpu.matmul %64, %48, %cst_19 {dimension_numbers = #tpu.dot_dimension_numbers<[2], [1], [1], [2], [0, 0, 0, 1, 1, 2], [0], [0]>} : vector<1x128x128xbf16>, vector<1x128x32xbf16>, vector<1x128x32xf32> -> vector<1x128x32xf32>
    "tpu.trace_stop"() : () -> ()
    %66 = arith.truncf %65 : vector<1x128x32xf32> to vector<1x128x32xbf16>
    %67 = vector.extract_strided_slice %41 {offsets = [0, 0, 32], sizes = [1, 128, 32], strides = [1, 1, 1]} : vector<1x128x128xbf16> to vector<1x128x32xbf16>
    %68 = vector.extract_strided_slice %43 {offsets = [0, 0, 32], sizes = [1, 128, 32], strides = [1, 1, 1]} : vector<1x128x128xbf16> to vector<1x128x32xbf16>
    %69 = vector.extract_strided_slice %45 {offsets = [0, 0, 32], sizes = [1, 128, 32], strides = [1, 1, 1]} : vector<1x128x128xbf16> to vector<1x128x32xbf16>
    "tpu.trace_start"() <{level = 10 : i32, message = "bqc,bkc->bqk"}> : () -> ()
    %cst_20 = arith.constant dense<0.000000e+00> : vector<1x128x128xf32>
    %70 = tpu.matmul %67, %68, %cst_20 {dimension_numbers = #tpu.dot_dimension_numbers<[2], [2], [1], [1], [0, 0, 0, 1, 1, 1], [0], [0]>} : vector<1x128x32xbf16>, vector<1x128x32xbf16>, vector<1x128x128xf32> -> vector<1x128x128xf32>
    "tpu.trace_stop"() : () -> ()
    %cst_21 = arith.constant dense<0xFF800000> : vector<1x128xf32>
    %71 = vector.multi_reduction <maximumf>, %70, %cst_21 [2] : vector<1x128x128xf32> to vector<1x128xf32>
    %72 = vector.shape_cast %71 : vector<1x128xf32> to vector<1x128x1xf32>
    %73 = vector.broadcast %72 : vector<1x128x1xf32> to vector<1x128x128xf32>
    %74 = arith.subf %70, %73 : vector<1x128x128xf32>
    %75 = math.exp %74 : vector<1x128x128xf32>
    %cst_22 = arith.constant dense<0.000000e+00> : vector<1x128xf32>
    %76 = vector.multi_reduction <add>, %75, %cst_22 [2] : vector<1x128x128xf32> to vector<1x128xf32>
    %77 = vector.shape_cast %76 : vector<1x128xf32> to vector<1x128x1xf32>
    %78 = tpu.reciprocal %77 {approx = true} : vector<1x128x1xf32> -> vector<1x128x1xf32>
    %79 = arith.mulf %77, %78 : vector<1x128x1xf32>
    %cst_23 = arith.constant 2.000000e+00 : f32
    %80 = vector.broadcast %cst_23 : f32 to vector<1x128x1xf32>
    %81 = arith.subf %80, %79 : vector<1x128x1xf32>
    %82 = arith.mulf %78, %81 : vector<1x128x1xf32>
    %83 = vector.broadcast %82 : vector<1x128x1xf32> to vector<1x128x128xf32>
    %84 = arith.mulf %75, %83 : vector<1x128x128xf32>
    %85 = arith.truncf %84 : vector<1x128x128xf32> to vector<1x128x128xbf16>
    "tpu.trace_start"() <{level = 10 : i32, message = "bqk,bkc->bqc"}> : () -> ()
    %cst_24 = arith.constant dense<0.000000e+00> : vector<1x128x32xf32>
    %86 = tpu.matmul %85, %69, %cst_24 {dimension_numbers = #tpu.dot_dimension_numbers<[2], [1], [1], [2], [0, 0, 0, 1, 1, 2], [0], [0]>} : vector<1x128x128xbf16>, vector<1x128x32xbf16>, vector<1x128x32xf32> -> vector<1x128x32xf32>
    "tpu.trace_stop"() : () -> ()
    %87 = arith.truncf %86 : vector<1x128x32xf32> to vector<1x128x32xbf16>
    %88 = vector.extract_strided_slice %41 {offsets = [0, 0, 64], sizes = [1, 128, 32], strides = [1, 1, 1]} : vector<1x128x128xbf16> to vector<1x128x32xbf16>
    %89 = vector.extract_strided_slice %43 {offsets = [0, 0, 64], sizes = [1, 128, 32], strides = [1, 1, 1]} : vector<1x128x128xbf16> to vector<1x128x32xbf16>
    %90 = vector.extract_strided_slice %45 {offsets = [0, 0, 64], sizes = [1, 128, 32], strides = [1, 1, 1]} : vector<1x128x128xbf16> to vector<1x128x32xbf16>
    "tpu.trace_start"() <{level = 10 : i32, message = "bqc,bkc->bqk"}> : () -> ()
    %cst_25 = arith.constant dense<0.000000e+00> : vector<1x128x128xf32>
    %91 = tpu.matmul %88, %89, %cst_25 {dimension_numbers = #tpu.dot_dimension_numbers<[2], [2], [1], [1], [0, 0, 0, 1, 1, 1], [0], [0]>} : vector<1x128x32xbf16>, vector<1x128x32xbf16>, vector<1x128x128xf32> -> vector<1x128x128xf32>
    "tpu.trace_stop"() : () -> ()
    %cst_26 = arith.constant dense<0xFF800000> : vector<1x128xf32>
    %92 = vector.multi_reduction <maximumf>, %91, %cst_26 [2] : vector<1x128x128xf32> to vector<1x128xf32>
    %93 = vector.shape_cast %92 : vector<1x128xf32> to vector<1x128x1xf32>
    %94 = vector.broadcast %93 : vector<1x128x1xf32> to vector<1x128x128xf32>
    %95 = arith.subf %91, %94 : vector<1x128x128xf32>
    %96 = math.exp %95 : vector<1x128x128xf32>
    %cst_27 = arith.constant dense<0.000000e+00> : vector<1x128xf32>
    %97 = vector.multi_reduction <add>, %96, %cst_27 [2] : vector<1x128x128xf32> to vector<1x128xf32>
    %98 = vector.shape_cast %97 : vector<1x128xf32> to vector<1x128x1xf32>
    %99 = tpu.reciprocal %98 {approx = true} : vector<1x128x1xf32> -> vector<1x128x1xf32>
    %100 = arith.mulf %98, %99 : vector<1x128x1xf32>
    %cst_28 = arith.constant 2.000000e+00 : f32
    %101 = vector.broadcast %cst_28 : f32 to vector<1x128x1xf32>
    %102 = arith.subf %101, %100 : vector<1x128x1xf32>
    %103 = arith.mulf %99, %102 : vector<1x128x1xf32>
    %104 = vector.broadcast %103 : vector<1x128x1xf32> to vector<1x128x128xf32>
    %105 = arith.mulf %96, %104 : vector<1x128x128xf32>
    %106 = arith.truncf %105 : vector<1x128x128xf32> to vector<1x128x128xbf16>
    "tpu.trace_start"() <{level = 10 : i32, message = "bqk,bkc->bqc"}> : () -> ()
    %cst_29 = arith.constant dense<0.000000e+00> : vector<1x128x32xf32>
    %107 = tpu.matmul %106, %90, %cst_29 {dimension_numbers = #tpu.dot_dimension_numbers<[2], [1], [1], [2], [0, 0, 0, 1, 1, 2], [0], [0]>} : vector<1x128x128xbf16>, vector<1x128x32xbf16>, vector<1x128x32xf32> -> vector<1x128x32xf32>
    "tpu.trace_stop"() : () -> ()
    %108 = arith.truncf %107 : vector<1x128x32xf32> to vector<1x128x32xbf16>
    %109 = vector.extract_strided_slice %41 {offsets = [0, 0, 96], sizes = [1, 128, 32], strides = [1, 1, 1]} : vector<1x128x128xbf16> to vector<1x128x32xbf16>
    %110 = vector.extract_strided_slice %43 {offsets = [0, 0, 96], sizes = [1, 128, 32], strides = [1, 1, 1]} : vector<1x128x128xbf16> to vector<1x128x32xbf16>
    %111 = vector.extract_strided_slice %45 {offsets = [0, 0, 96], sizes = [1, 128, 32], strides = [1, 1, 1]} : vector<1x128x128xbf16> to vector<1x128x32xbf16>
    "tpu.trace_start"() <{level = 10 : i32, message = "bqc,bkc->bqk"}> : () -> ()
    %cst_30 = arith.constant dense<0.000000e+00> : vector<1x128x128xf32>
    %112 = tpu.matmul %109, %110, %cst_30 {dimension_numbers = #tpu.dot_dimension_numbers<[2], [2], [1], [1], [0, 0, 0, 1, 1, 1], [0], [0]>} : vector<1x128x32xbf16>, vector<1x128x32xbf16>, vector<1x128x128xf32> -> vector<1x128x128xf32>
    "tpu.trace_stop"() : () -> ()
    %cst_31 = arith.constant dense<0xFF800000> : vector<1x128xf32>
    %113 = vector.multi_reduction <maximumf>, %112, %cst_31 [2] : vector<1x128x128xf32> to vector<1x128xf32>
    %114 = vector.shape_cast %113 : vector<1x128xf32> to vector<1x128x1xf32>
    %115 = vector.broadcast %114 : vector<1x128x1xf32> to vector<1x128x128xf32>
    %116 = arith.subf %112, %115 : vector<1x128x128xf32>
    %117 = math.exp %116 : vector<1x128x128xf32>
    %cst_32 = arith.constant dense<0.000000e+00> : vector<1x128xf32>
    %118 = vector.multi_reduction <add>, %117, %cst_32 [2] : vector<1x128x128xf32> to vector<1x128xf32>
    %119 = vector.shape_cast %118 : vector<1x128xf32> to vector<1x128x1xf32>
    %120 = tpu.reciprocal %119 {approx = true} : vector<1x128x1xf32> -> vector<1x128x1xf32>
    %121 = arith.mulf %119, %120 : vector<1x128x1xf32>
    %cst_33 = arith.constant 2.000000e+00 : f32
    %122 = vector.broadcast %cst_33 : f32 to vector<1x128x1xf32>
    %123 = arith.subf %122, %121 : vector<1x128x1xf32>
    %124 = arith.mulf %120, %123 : vector<1x128x1xf32>
    %125 = vector.broadcast %124 : vector<1x128x1xf32> to vector<1x128x128xf32>
    %126 = arith.mulf %117, %125 : vector<1x128x128xf32>
    %127 = arith.truncf %126 : vector<1x128x128xf32> to vector<1x128x128xbf16>
    "tpu.trace_start"() <{level = 10 : i32, message = "bqk,bkc->bqc"}> : () -> ()
    %cst_34 = arith.constant dense<0.000000e+00> : vector<1x128x32xf32>
    %128 = tpu.matmul %127, %111, %cst_34 {dimension_numbers = #tpu.dot_dimension_numbers<[2], [1], [1], [2], [0, 0, 0, 1, 1, 2], [0], [0]>} : vector<1x128x128xbf16>, vector<1x128x32xbf16>, vector<1x128x32xf32> -> vector<1x128x32xf32>
    "tpu.trace_stop"() : () -> ()
    %129 = arith.truncf %128 : vector<1x128x32xf32> to vector<1x128x32xbf16>
    %130 = tpu.concatenate %66, %87, %108, %129 in 2 : vector<1x128x32xbf16>, vector<1x128x32xbf16>, vector<1x128x32xbf16>, vector<1x128x32xbf16> -> vector<1x128x128xbf16>
    %131 = vector.shape_cast %130 : vector<1x128x128xbf16> to vector<128x128xbf16>
    %c0_35 = arith.constant 0 : index
    %c0_36 = arith.constant 0 : index
    %132 = vector.load %arg5[%c0_35, %c0_36] : memref<128x128xbf16, #tpu.memory_space<vmem>>, vector<128x128xbf16>
    %cst_37 = arith.constant dense<0.000000e+00> : vector<128x128xf32>
    %133 = tpu.matmul %131, %132, %cst_37 {dimension_numbers = #tpu.dot_dimension_numbers<[1], [0], [0], [1], [0, 0, 1, 1], [], []>} : vector<128x128xbf16>, vector<128x128xbf16>, vector<128x128xf32> -> vector<128x128xf32>
    %c0_38 = arith.constant 0 : index
    %c0_39 = arith.constant 0 : index
    %134 = vector.load %arg6[%c0_38, %c0_39] : memref<1x128xf32, #tpu.memory_space<vmem>>, vector<1x128xf32>
    %135 = vector.broadcast %134 : vector<1x128xf32> to vector<128x128xf32>
    %136 = arith.addf %133, %135 : vector<128x128xf32>
    %137 = vector.shape_cast %136 : vector<128x128xf32> to vector<1x128x128xf32>
    %138 = vector.broadcast %4 : vector<1x1x128xf32> to vector<1x128x128xf32>
    %139 = arith.mulf %137, %138 : vector<1x128x128xf32>
    %140 = arith.addf %0, %139 : vector<1x128x128xf32>
    %cst_40 = arith.constant dense<0.000000e+00> : vector<1x128xf32>
    %141 = vector.multi_reduction <add>, %140, %cst_40 [1] : vector<1x128x128xf32> to vector<1x128xf32>
    %142 = vector.shape_cast %141 : vector<1x128xf32> to vector<1x1x128xf32>
    %cst_41 = arith.constant 1.280000e+02 : f32
    %143 = vector.broadcast %cst_41 : f32 to vector<1x1x128xf32>
    %144 = arith.divf %142, %143 : vector<1x1x128xf32>
    %145 = arith.mulf %140, %140 : vector<1x128x128xf32>
    %cst_42 = arith.constant dense<0.000000e+00> : vector<1x128xf32>
    %146 = vector.multi_reduction <add>, %145, %cst_42 [1] : vector<1x128x128xf32> to vector<1x128xf32>
    %147 = vector.shape_cast %146 : vector<1x128xf32> to vector<1x1x128xf32>
    %cst_43 = arith.constant 1.280000e+02 : f32
    %148 = vector.broadcast %cst_43 : f32 to vector<1x1x128xf32>
    %149 = arith.divf %147, %148 : vector<1x1x128xf32>
    %150 = arith.mulf %144, %144 : vector<1x1x128xf32>
    %151 = arith.subf %149, %150 : vector<1x1x128xf32>
    %cst_44 = arith.constant 0.000000e+00 : f32
    %152 = vector.broadcast %cst_44 : f32 to vector<1x1x128xf32>
    %153 = arith.maximumf %151, %152 : vector<1x1x128xf32>
    %154 = vector.broadcast %144 : vector<1x1x128xf32> to vector<1x128x128xf32>
    %155 = arith.subf %140, %154 : vector<1x128x128xf32>
    %cst_45 = arith.constant 9.99999996E-13 : f32
    %156 = vector.broadcast %cst_45 : f32 to vector<1x1x128xf32>
    %157 = arith.addf %153, %156 : vector<1x1x128xf32>
    %158 = math.rsqrt %157 : vector<1x1x128xf32>
    %159 = vector.broadcast %158 : vector<1x1x128xf32> to vector<1x128x128xf32>
    %160 = arith.mulf %155, %159 : vector<1x128x128xf32>
    %161 = vector.broadcast %5 : vector<1x1x128xf32> to vector<1x128x128xf32>
    %162 = arith.mulf %160, %161 : vector<1x128x128xf32>
    %163 = vector.broadcast %6 : vector<1x1x128xf32> to vector<1x128x128xf32>
    %164 = arith.addf %162, %163 : vector<1x128x128xf32>
    %165 = arith.truncf %164 : vector<1x128x128xf32> to vector<1x128x128xbf16>
    %166 = vector.shape_cast %165 : vector<1x128x128xbf16> to vector<128x128xbf16>
    %c0_46 = arith.constant 0 : index
    %c0_47 = arith.constant 0 : index
    %167 = vector.load %arg7[%c0_46, %c0_47] : memref<128x512xbf16, #tpu.memory_space<vmem>>, vector<128x512xbf16>
    %cst_48 = arith.constant dense<0.000000e+00> : vector<128x512xf32>
    %168 = tpu.matmul %166, %167, %cst_48 {dimension_numbers = #tpu.dot_dimension_numbers<[1], [0], [0], [1], [0, 0, 1, 1], [], []>} : vector<128x128xbf16>, vector<128x512xbf16>, vector<128x512xf32> -> vector<128x512xf32>
    %c0_49 = arith.constant 0 : index
    %c0_50 = arith.constant 0 : index
    %169 = vector.load %arg8[%c0_49, %c0_50] : memref<1x512xf32, #tpu.memory_space<vmem>>, vector<1x512xf32>
    %170 = vector.broadcast %169 : vector<1x512xf32> to vector<128x512xf32>
    %171 = arith.addf %168, %170 : vector<128x512xf32>
    %cst_51 = arith.constant 5.000000e-01 : f32
    %172 = vector.broadcast %cst_51 : f32 to vector<128x512xf32>
    %173 = arith.mulf %172, %171 : vector<128x512xf32>
    %174 = arith.mulf %171, %171 : vector<128x512xf32>
    %175 = arith.mulf %174, %171 : vector<128x512xf32>
    %cst_52 = arith.constant 4.471500e-02 : f32
    %176 = vector.broadcast %cst_52 : f32 to vector<128x512xf32>
    %177 = arith.mulf %176, %175 : vector<128x512xf32>
    %178 = arith.addf %171, %177 : vector<128x512xf32>
    %cst_53 = arith.constant 0.797884583 : f32
    %179 = vector.broadcast %cst_53 : f32 to vector<128x512xf32>
    %180 = arith.mulf %179, %178 : vector<128x512xf32>
    %181 = math.tanh %180 : vector<128x512xf32>
    %cst_54 = arith.constant 1.000000e+00 : f32
    %182 = vector.broadcast %cst_54 : f32 to vector<128x512xf32>
    %183 = arith.addf %182, %181 : vector<128x512xf32>
    %184 = arith.mulf %173, %183 : vector<128x512xf32>
    %185 = arith.truncf %184 : vector<128x512xf32> to vector<128x512xbf16>
    %c0_55 = arith.constant 0 : index
    %c0_56 = arith.constant 0 : index
    %186 = vector.load %arg9[%c0_55, %c0_56] : memref<512x128xbf16, #tpu.memory_space<vmem>>, vector<512x128xbf16>
    %cst_57 = arith.constant dense<0.000000e+00> : vector<128x128xf32>
    %187 = tpu.matmul %185, %186, %cst_57 {dimension_numbers = #tpu.dot_dimension_numbers<[1], [0], [0], [1], [0, 0, 1, 1], [], []>} : vector<128x512xbf16>, vector<512x128xbf16>, vector<128x128xf32> -> vector<128x128xf32>
    %c0_58 = arith.constant 0 : index
    %c0_59 = arith.constant 0 : index
    %188 = vector.load %arg10[%c0_58, %c0_59] : memref<1x128xf32, #tpu.memory_space<vmem>>, vector<1x128xf32>
    %189 = vector.broadcast %188 : vector<1x128xf32> to vector<128x128xf32>
    %190 = arith.addf %187, %189 : vector<128x128xf32>
    %191 = vector.shape_cast %190 : vector<128x128xf32> to vector<1x128x128xf32>
    %192 = vector.broadcast %7 : vector<1x1x128xf32> to vector<1x128x128xf32>
    %193 = arith.mulf %191, %192 : vector<1x128x128xf32>
    %194 = arith.addf %140, %193 : vector<1x128x128xf32>
    %c0_60 = arith.constant 0 : index
    %c0_61 = arith.constant 0 : index
    %c0_62 = arith.constant 0 : index
    %195 = vector.load %arg11[%c0_60, %c0_61, %c0_62] : memref<1x128x128xf32, #tpu.memory_space<vmem>>, vector<1x128x128xf32>
    tpu.vector_store %arg11[%c0_60, %c0_61, %c0_62], %194 {strides = array<i32>} : memref<1x128x128xf32, #tpu.memory_space<vmem>>, vector<1x128x128xf32>,
    return
  }
  func.func @transform_0(%arg0: i32) -> (i32, i32, i32) {
    %c0_i32 = arith.constant 0 : i32
    %c0_i32_0 = arith.constant 0 : i32
    %c0_i32_1 = arith.constant 0 : i32
    return %arg0, %c0_i32, %c0_i32_0 : i32, i32, i32
  }
  func.func @transform_1(%arg0: i32) -> (i32, i32, i32) {
    %c0_i32 = arith.constant 0 : i32
    %c0_i32_0 = arith.constant 0 : i32
    %c0_i32_1 = arith.constant 0 : i32
    return %arg0, %c0_i32, %c0_i32_0 : i32, i32, i32
  }
  func.func @transform_2(%arg0: i32) -> (i32, i32) {
    %c0_i32 = arith.constant 0 : i32
    %c0_i32_0 = arith.constant 0 : i32
    %c0_i32_1 = arith.constant 0 : i32
    return %c0_i32, %c0_i32_0 : i32, i32
  }
  func.func @transform_3(%arg0: i32) -> (i32, i32) {
    %c0_i32 = arith.constant 0 : i32
    %c0_i32_0 = arith.constant 0 : i32
    %c0_i32_1 = arith.constant 0 : i32
    return %c0_i32, %c0_i32_0 : i32, i32
  }
  func.func @transform_4(%arg0: i32) -> (i32, i32) {
    %c0_i32 = arith.constant 0 : i32
    %c0_i32_0 = arith.constant 0 : i32
    %c0_i32_1 = arith.constant 0 : i32
    return %c0_i32, %c0_i32_0 : i32, i32
  }
  func.func @transform_5(%arg0: i32) -> (i32, i32) {
    %c0_i32 = arith.constant 0 : i32
    %c0_i32_0 = arith.constant 0 : i32
    %c0_i32_1 = arith.constant 0 : i32
    return %c0_i32, %c0_i32_0 : i32, i32
  }
  func.func @transform_6(%arg0: i32) -> (i32, i32) {
    %c0_i32 = arith.constant 0 : i32
    %c0_i32_0 = arith.constant 0 : i32
    %c0_i32_1 = arith.constant 0 : i32
    return %c0_i32, %c0_i32_0 : i32, i32
  }
  func.func @transform_7(%arg0: i32) -> (i32, i32) {
    %c0_i32 = arith.constant 0 : i32
    %c0_i32_0 = arith.constant 0 : i32
    %c0_i32_1 = arith.constant 0 : i32
    return %c0_i32, %c0_i32_0 : i32, i32
  }
  func.func @transform_8(%arg0: i32) -> (i32, i32) {
    %c0_i32 = arith.constant 0 : i32
    %c0_i32_0 = arith.constant 0 : i32
    %c0_i32_1 = arith.constant 0 : i32
    return %c0_i32, %c0_i32_0 : i32, i32
  }
  func.func @transform_9(%arg0: i32) -> (i32, i32) {
    %c0_i32 = arith.constant 0 : i32
    %c0_i32_0 = arith.constant 0 : i32
    %c0_i32_1 = arith.constant 0 : i32
    return %c0_i32, %c0_i32_0 : i32, i32
  }
  func.func @transform_10(%arg0: i32) -> (i32, i32, i32) {
    %c0_i32 = arith.constant 0 : i32
    %c0_i32_0 = arith.constant 0 : i32
    %c0_i32_1 = arith.constant 0 : i32
    return %arg0, %c0_i32, %c0_i32_0 : i32, i32, i32
  }
}

</mosaic_0001>

<llo_original>
// kernel: tpu_custom_call.1
$region0: #{tpu_custom_call.1}
  #allocation0 [shape = 'u32[]', space=smem, size = 0x4, offset = 0x4, fixed_abs, tag = 'smem constant byte address 0x4 - core index']
  #allocation1 [shape = 'u32[72,128]{1,0:T(1,128)}', space=vmem, size = 0x9000, scoped, tag = 'internal scratch']
  %s0 = inlined_call_operand.hbm [shape: f32[2,128,128], index: 0, kind: input, shape index: {}]
  %s1 = inlined_call_operand.vmem [shape: f32[2,6,128], index: 1, kind: input, shape index: {}]
  %s2 = inlined_call_operand.hbm [shape: bf16[128,384], index: 2, kind: input, shape index: {}]
  %s3 = inlined_call_operand.vmem [shape: f32[1,384], index: 3, kind: input, shape index: {}]
  %s4 = inlined_call_operand.hbm [shape: bf16[128,128], index: 4, kind: input, shape index: {}]
  %s5 = inlined_call_operand.vmem [shape: f32[1,128], index: 5, kind: input, shape index: {}]
  %s6 = inlined_call_operand.hbm [shape: bf16[128,512], index: 6, kind: input, shape index: {}]
  %s7 = inlined_call_operand.vmem [shape: f32[1,512], index: 7, kind: input, shape index: {}]
  %s8 = inlined_call_operand.hbm [shape: bf16[512,128], index: 8, kind: input, shape index: {}]
  %s9 = inlined_call_operand.vmem [shape: f32[1,128], index: 9, kind: input, shape index: {}]
  %s10 = inlined_call_operand.hbm [shape: f32[2,128,128], index: 10, kind: output, shape index: {}]
  %s11 = sld [smem:[#allocation0]]
  $region93: #{tpu_custom_call.1} parent=0
    _
  %s13 = ssub.s32 1, %s11
  %s14 = scalar_select 0, %s13, %s11
  $region1: #{tpu_custom_call.1} parent=0
    #allocation2 [shape = 'u8[131072]{0}', space=vmem, size = 0x20000, scoped, tag = 'input window, operand 0']
    #allocation3 [shape = 's32[2]{0}', space=sflag, size = 0x8, scoped, tag = 'scoped memory for tpu_custom_call.1']
    #allocation4 [shape = 's32[2]{0}', space=sflag, size = 0x8, scoped, tag = 'scoped memory for tpu_custom_call.1']
    #allocation5 [shape = 'u8[98304]{0}', space=vmem, size = 0x18000, scoped, tag = 'input window, operand 2, single buffered']
    #allocation6 [shape = 's32[1]{0}', space=sflag, size = 0x4, scoped, tag = 'scoped memory for tpu_custom_call.1']
    #allocation7 [shape = 'u8[32768]{0}', space=vmem, size = 0x8000, scoped, tag = 'input window, operand 4, single buffered']
    #allocation8 [shape = 'u8[131072]{0}', space=vmem, size = 0x20000, scoped, tag = 'input window, operand 6, single buffered']
    #allocation9 [shape = 's32[1]{0}', space=sflag, size = 0x4, scoped, tag = 'scoped memory for tpu_custom_call.1']
    #allocation10 [shape = 'u8[131072]{0}', space=vmem, size = 0x20000, scoped, tag = 'input window, operand 8, single buffered']
    #allocation11 [shape = 'u8[131072]{0}', space=vmem, size = 0x20000, scoped, tag = 'output window, operand 0']
    %15 = vsyncpa [#allocation3], 0
    %s16 = scalar_lea.sflag [#allocation3], 1
    %17 = vsyncpa %s16, 0
    %18 = vsyncpa [#allocation6], 0
    %19 = vsyncpa [#allocation9], 0
    %20 = vsyncpa [#allocation4], 0
    %s21 = scalar_lea.sflag [#allocation4], 1
    %22 = vsyncpa %s21, 0
    loop: start=0, step=1, limit=4
    $region2: #{tpu_custom_call.1} parent=1 // loop_pre_header
      _
    $region3: #{tpu_custom_call.1} parent=1 // loop_header
      %s24 = sphi 0, %s28
      %p25 = scmp.ge.s32.totalorder %s24, 4
      %s34 = sphi 0, %s36
      %s37 = sphi 0, %s34
      %s38 = sphi 0, %s37
      %s54 = sphi 0, %s38
      %s60 = sphi 0, %s62
      %s63 = sphi 0, %s60
      %s64 = sphi 0, %s63
      %s80 = sphi 0, %s64
      %s84 = sphi 0, %s84
      %s86 = sphi 0, %s84
      %s87 = sphi 0, %s86
      %s101 = sphi 0, %s87
      %s105 = sphi 0, %s105
      %s107 = sphi 0, %s105
      %s108 = sphi 0, %s107
      %s122 = sphi 0, %s108
      %s126 = sphi 0, %s126
      %s128 = sphi 0, %s126
      %s129 = sphi 0, %s128
      %s143 = sphi 0, %s129
      %s147 = sphi 0, %s147
      %s149 = sphi 0, %s147
      %s150 = sphi 0, %s149
      %s164 = sphi 0, %s150
      %s168 = sphi 0, %s168
      %s170 = sphi 0, %s168
      %s171 = sphi 0, %s170
      %s185 = sphi 0, %s171
      %s189 = sphi 0, %s189
      %s191 = sphi 0, %s189
      %s192 = sphi 0, %s191
      %s206 = sphi 0, %s192
      %s210 = sphi 0, %s210
      %s212 = sphi 0, %s210
      %s213 = sphi 0, %s212
      %s227 = sphi 0, %s213
      %s231 = sphi 0, %s231
      %s233 = sphi 0, %s231
      %s234 = sphi 0, %s233
      %s248 = sphi 0, %s234
      %s254 = sphi 0, %s256
      %s257 = sphi 0, %s254
      %s258 = sphi 0, %s257
      %s274 = sphi 0, %s258
    $region4: #{tpu_custom_call.1} parent=1 // loop_header_branch
      %27 = sbr.rel (%p25) target = $region8
    $region5: #{tpu_custom_call.1} parent=1 // loop_body
      %s29 = ssub.s32 %s24, 1
      %s30 = ssub.s32 %s24, 2
      %s31 = sadd.s32 %s24, 1
      %s32 = ssub.s32 %s24, %s31
      %p33 = scmp.eq.s32.totalorder %s32, 0
      %s35 = sadd.s32 %s34, 1
      %s36 = scalar_select %p33, %s34, %s35
      %p39 = pneg %p33
      %p40 = scmp.eq.s32.totalorder %s24, 1
      %p41 = por %p39, %p40
      %p42 = scmp.ne.s32.totalorder %s34, %s37
      %p43 = scmp.eq.s32.totalorder %s24, 0
      %p44 = por %p42, %p43
      %p45 = scmp.ne.s32.totalorder %s34, %s37
      %p46 = scmp.eq.s32.totalorder %s29, 1
      %p47 = por %p45, %p46
      %p48 = scmp.ne.s32.totalorder %s37, %s38
      %p49 = scmp.eq.s32.totalorder %s29, 0
      %p50 = por %p48, %p49
      %p51 = scmp.ne.s32.totalorder %s37, %s38
      %p52 = scmp.eq.s32.totalorder %s30, 1
      %p53 = por %p51, %p52
      %p55 = scmp.ne.s32.totalorder %s38, %s54
      %p56 = scmp.eq.s32.totalorder %s30, 0
      %p57 = por %p55, %p56
      %s58 = ssub.s32 %s24, %s31
      %p59 = scmp.eq.s32.totalorder %s58, 0
      %s61 = sadd.s32 %s60, 1
      %s62 = scalar_select %p59, %s60, %s61
      %p65 = pneg %p59
      %p66 = scmp.eq.s32.totalorder %s24, 1
      %p67 = por %p65, %p66
      %p68 = scmp.ne.s32.totalorder %s60, %s63
      %p69 = scmp.eq.s32.totalorder %s24, 0
      %p70 = por %p68, %p69
      %p71 = scmp.ne.s32.totalorder %s60, %s63
      %p72 = scmp.eq.s32.totalorder %s29, 1
      %p73 = por %p71, %p72
      %p74 = scmp.ne.s32.totalorder %s63, %s64
      %p75 = scmp.eq.s32.totalorder %s29, 0
      %p76 = por %p74, %p75
      %p77 = scmp.ne.s32.totalorder %s63, %s64
      %p78 = scmp.eq.s32.totalorder %s30, 1
      %p79 = por %p77, %p78
      %p81 = scmp.ne.s32.totalorder %s64, %s80
      %p82 = scmp.eq.s32.totalorder %s30, 0
      %p83 = por %p81, %p82
      %s85 = sadd.s32 %s84, 1
      %p88 = scmp.eq.s32.totalorder %s24, 1
      %p89 = scmp.ne.s32.totalorder %s84, %s86
      %p90 = scmp.eq.s32.totalorder %s24, 0
      %p91 = por %p89, %p90
      %p92 = scmp.ne.s32.totalorder %s84, %s86
      %p93 = scmp.eq.s32.totalorder %s29, 1
      %p94 = por %p92, %p93
      %p95 = scmp.ne.s32.totalorder %s86, %s87
      %p96 = scmp.eq.s32.totalorder %s29, 0
      %p97 = por %p95, %p96
      %p98 = scmp.ne.s32.totalorder %s86, %s87
      %p99 = scmp.eq.s32.totalorder %s30, 1
      %p100 = por %p98, %p99
      %p102 = scmp.ne.s32.totalorder %s87, %s101
      %p103 = scmp.eq.s32.totalorder %s30, 0
      %p104 = por %p102, %p103
      %s106 = sadd.s32 %s105, 1
      %p109 = scmp.eq.s32.totalorder %s24, 1
      %p110 = scmp.ne.s32.totalorder %s105, %s107
      %p111 = scmp.eq.s32.totalorder %s24, 0
      %p112 = por %p110, %p111
      %p113 = scmp.ne.s32.totalorder %s105, %s107
      %p114 = scmp.eq.s32.totalorder %s29, 1
      %p115 = por %p113, %p114
      %p116 = scmp.ne.s32.totalorder %s107, %s108
      %p117 = scmp.eq.s32.totalorder %s29, 0
      %p118 = por %p116, %p117
      %p119 = scmp.ne.s32.totalorder %s107, %s108
      %p120 = scmp.eq.s32.totalorder %s30, 1
      %p121 = por %p119, %p120
      %p123 = scmp.ne.s32.totalorder %s108, %s122
      %p124 = scmp.eq.s32.totalorder %s30, 0
      %p125 = por %p123, %p124
      %s127 = sadd.s32 %s126, 1
      %p130 = scmp.eq.s32.totalorder %s24, 1
      %p131 = scmp.ne.s32.totalorder %s126, %s128
      %p132 = scmp.eq.s32.totalorder %s24, 0
      %p133 = por %p131, %p132
      %p134 = scmp.ne.s32.totalorder %s126, %s128
      %p135 = scmp.eq.s32.totalorder %s29, 1
      %p136 = por %p134, %p135
      %p137 = scmp.ne.s32.totalorder %s128, %s129
      %p138 = scmp.eq.s32.totalorder %s29, 0
      %p139 = por %p137, %p138
      %p140 = scmp.ne.s32.totalorder %s128, %s129
      %p141 = scmp.eq.s32.totalorder %s30, 1
      %p142 = por %p140, %p141
      %p144 = scmp.ne.s32.totalorder %s129, %s143
      %p145 = scmp.eq.s32.totalorder %s30, 0
      %p146 = por %p144, %p145
      %s148 = sadd.s32 %s147, 1
      %p151 = scmp.eq.s32.totalorder %s24, 1
      %p152 = scmp.ne.s32.totalorder %s147, %s149
      %p153 = scmp.eq.s32.totalorder %s24, 0
      %p154 = por %p152, %p153
      %p155 = scmp.ne.s32.totalorder %s147, %s149
      %p156 = scmp.eq.s32.totalorder %s29, 1
      %p157 = por %p155, %p156
      %p158 = scmp.ne.s32.totalorder %s149, %s150
      %p159 = scmp.eq.s32.totalorder %s29, 0
      %p160 = por %p158, %p159
      %p161 = scmp.ne.s32.totalorder %s149, %s150
      %p162 = scmp.eq.s32.totalorder %s30, 1
      %p163 = por %p161, %p162
      %p165 = scmp.ne.s32.totalorder %s150, %s164
      %p166 = scmp.eq.s32.totalorder %s30, 0
      %p167 = por %p165, %p166
      %s169 = sadd.s32 %s168, 1
      %p172 = scmp.eq.s32.totalorder %s24, 1
      %p173 = scmp.ne.s32.totalorder %s168, %s170
      %p174 = scmp.eq.s32.totalorder %s24, 0
      %p175 = por %p173, %p174
      %p176 = scmp.ne.s32.totalorder %s168, %s170
      %p177 = scmp.eq.s32.totalorder %s29, 1
      %p178 = por %p176, %p177
      %p179 = scmp.ne.s32.totalorder %s170, %s171
      %p180 = scmp.eq.s32.totalorder %s29, 0
      %p181 = por %p179, %p180
      %p182 = scmp.ne.s32.totalorder %s170, %s171
      %p183 = scmp.eq.s32.totalorder %s30, 1
      %p184 = por %p182, %p183
      %p186 = scmp.ne.s32.totalorder %s171, %s185
      %p187 = scmp.eq.s32.totalorder %s30, 0
      %p188 = por %p186, %p187
      %s190 = sadd.s32 %s189, 1
      %p193 = scmp.eq.s32.totalorder %s24, 1
      %p194 = scmp.ne.s32.totalorder %s189, %s191
      %p195 = scmp.eq.s32.totalorder %s24, 0
      %p196 = por %p194, %p195
      %p197 = scmp.ne.s32.totalorder %s189, %s191
      %p198 = scmp.eq.s32.totalorder %s29, 1
      %p199 = por %p197, %p198
      %p200 = scmp.ne.s32.totalorder %s191, %s192
      %p201 = scmp.eq.s32.totalorder %s29, 0
      %p202 = por %p200, %p201
      %p203 = scmp.ne.s32.totalorder %s191, %s192
      %p204 = scmp.eq.s32.totalorder %s30, 1
      %p205 = por %p203, %p204
      %p207 = scmp.ne.s32.totalorder %s192, %s206
      %p208 = scmp.eq.s32.totalorder %s30, 0
      %p209 = por %p207, %p208
      %s211 = sadd.s32 %s210, 1
      %p214 = scmp.eq.s32.totalorder %s24, 1
      %p215 = scmp.ne.s32.totalorder %s210, %s212
      %p216 = scmp.eq.s32.totalorder %s24, 0
      %p217 = por %p215, %p216
      %p218 = scmp.ne.s32.totalorder %s210, %s212
      %p219 = scmp.eq.s32.totalorder %s29, 1
      %p220 = por %p218, %p219
      %p221 = scmp.ne.s32.totalorder %s212, %s213
      %p222 = scmp.eq.s32.totalorder %s29, 0
      %p223 = por %p221, %p222
      %p224 = scmp.ne.s32.totalorder %s212, %s213
      %p225 = scmp.eq.s32.totalorder %s30, 1
      %p226 = por %p224, %p225
      %p228 = scmp.ne.s32.totalorder %s213, %s227
      %p229 = scmp.eq.s32.totalorder %s30, 0
      %p230 = por %p228, %p229
      %s232 = sadd.s32 %s231, 1
      %p235 = scmp.eq.s32.totalorder %s24, 1
      %p236 = scmp.ne.s32.totalorder %s231, %s233
      %p237 = scmp.eq.s32.totalorder %s24, 0
      %p238 = por %p236, %p237
      %p239 = scmp.ne.s32.totalorder %s231, %s233
      %p240 = scmp.eq.s32.totalorder %s29, 1
      %p241 = por %p239, %p240
      %p242 = scmp.ne.s32.totalorder %s233, %s234
      %p243 = scmp.eq.s32.totalorder %s29, 0
      %p244 = por %p242, %p243
      %p245 = scmp.ne.s32.totalorder %s233, %s234
      %p246 = scmp.eq.s32.totalorder %s30, 1
      %p247 = por %p245, %p246
      %p249 = scmp.ne.s32.totalorder %s234, %s248
      %p250 = scmp.eq.s32.totalorder %s30, 0
      %p251 = por %p249, %p250
      %s252 = ssub.s32 %s24, %s31
      %p253 = scmp.eq.s32.totalorder %s252, 0
      %s255 = sadd.s32 %s254, 1
      %s256 = scalar_select %p253, %s254, %s255
      %p259 = pneg %p253
      %p260 = scmp.eq.s32.totalorder %s24, 1
      %p261 = por %p259, %p260
      %p262 = scmp.ne.s32.totalorder %s254, %s257
      %p263 = scmp.eq.s32.totalorder %s24, 0
      %p264 = por %p262, %p263
      %p265 = scmp.ne.s32.totalorder %s254, %s257
      %p266 = scmp.eq.s32.totalorder %s29, 1
      %p267 = por %p265, %p266
      %p268 = scmp.ne.s32.totalorder %s257, %s258
      %p269 = scmp.eq.s32.totalorder %s29, 0
      %p270 = por %p268, %p269
      %p271 = scmp.ne.s32.totalorder %s257, %s258
      %p272 = scmp.eq.s32.totalorder %s30, 1
      %p273 = por %p271, %p272
      %p275 = scmp.ne.s32.totalorder %s258, %s274
      %p276 = scmp.eq.s32.totalorder %s30, 0
      %p277 = por %p275, %p276
      %p278 = scmp.le.s32.totalorder 1, %s24
      %p279 = scmp.lt.s32.totalorder %s24, 3
      %p280 = pnand %p278, %p279
      %p281 = pneg %p280
      // Predicated region
      $region9: #{tpu_custom_call.1} parent=5 // pred_check
        _
      $region10: #{tpu_custom_call.1} parent=5 // pred_check_branch
        %283 = sbr.rel (%p280) target = $region12
      $region11: #{tpu_custom_call.1} parent=5 // pred_region
        %s284 = ssub.s32 %s24, 1
        // Predicated region
        $region13: #{tpu_custom_call.1} parent=11 // pred_check
          %p285 = pneg %p97
        $region14: #{tpu_custom_call.1} parent=11 // pred_check_branch
          %287 = sbr.rel (%p285) target = $region16
        $region15: #{tpu_custom_call.1} parent=11 // pred_region
          %289 = vsyncadd [#allocation6], 0
          %s290 = sshll.u32 %s2, 4
          %s291 = int_to_ptr.hbm [resolvable:$true] %s290
          %s292 = sshll.u32 [#allocation5], 4
          %s293 = int_to_ptr.vmem [resolvable:$true] %s292
          %298 = dma.hbm_to_vmem [thread:$0]  %s291, 3072, %s293, [#allocation6], 192, 192, 12
        $region16: #{tpu_custom_call.1} parent=11 // pred_fallthru
          _
        // Predicated region
        $region17: #{tpu_custom_call.1} parent=11 // pred_check
          %p299 = pneg %p118
        $region18: #{tpu_custom_call.1} parent=11 // pred_check_branch
          %301 = sbr.rel (%p299) target = $region20
        $region19: #{tpu_custom_call.1} parent=11 // pred_region
          _
        $region20: #{tpu_custom_call.1} parent=11 // pred_fallthru
          _
        // Predicated region
        $region21: #{tpu_custom_call.1} parent=11 // pred_check
          %p302 = pneg %p139
        $region22: #{tpu_custom_call.1} parent=11 // pred_check_branch
          %304 = sbr.rel (%p302) target = $region24
        $region23: #{tpu_custom_call.1} parent=11 // pred_region
          %306 = vsyncadd [#allocation6], 0
          %s307 = sshll.u32 %s4, 4
          %s308 = int_to_ptr.hbm [resolvable:$true] %s307
          %s309 = sshll.u32 [#allocation7], 4
          %s310 = int_to_ptr.vmem [resolvable:$true] %s309
          %315 = dma.hbm_to_vmem [thread:$0]  %s308, 1024, %s310, [#allocation6], 64, 64, 4
        $region24: #{tpu_custom_call.1} parent=11 // pred_fallthru
          _
        // Predicated region
        $region25: #{tpu_custom_call.1} parent=11 // pred_check
          %p316 = pneg %p160
        $region26: #{tpu_custom_call.1} parent=11 // pred_check_branch
          %318 = sbr.rel (%p316) target = $region28
        $region27: #{tpu_custom_call.1} parent=11 // pred_region
          _
        $region28: #{tpu_custom_call.1} parent=11 // pred_fallthru
          _
        // Predicated region
        $region29: #{tpu_custom_call.1} parent=11 // pred_check
          %p319 = pneg %p181
        $region30: #{tpu_custom_call.1} parent=11 // pred_check_branch
          %321 = sbr.rel (%p319) target = $region32
        $region31: #{tpu_custom_call.1} parent=11 // pred_region
          %323 = vsyncadd [#allocation9], 0
          %s324 = sshll.u32 %s6, 4
          %s325 = int_to_ptr.hbm [resolvable:$true] %s324
          %s326 = sshll.u32 [#allocation8], 4
          %s327 = int_to_ptr.vmem [resolvable:$true] %s326
          %332 = dma.hbm_to_vmem [thread:$0]  %s325, 4096, %s327, [#allocation9], 256, 256, 16
        $region32: #{tpu_custom_call.1} parent=11 // pred_fallthru
          _
        // Predicated region
        $region33: #{tpu_custom_call.1} parent=11 // pred_check
          %p333 = pneg %p202
        $region34: #{tpu_custom_call.1} parent=11 // pred_check_branch
          %335 = sbr.rel (%p333) target = $region36
        $region35: #{tpu_custom_call.1} parent=11 // pred_region
          _
        $region36: #{tpu_custom_call.1} parent=11 // pred_fallthru
          _
        // Predicated region
        $region37: #{tpu_custom_call.1} parent=11 // pred_check
          %p336 = pneg %p223
        $region38: #{tpu_custom_call.1} parent=11 // pred_check_branch
          %338 = sbr.rel (%p336) target = $region40
        $region39: #{tpu_custom_call.1} parent=11 // pred_region
          %340 = vsyncadd [#allocation9], 0
          %s341 = sshll.u32 %s8, 4
          %s342 = int_to_ptr.hbm [resolvable:$true] %s341
          %s343 = sshll.u32 [#allocation10], 4
          %s344 = int_to_ptr.vmem [resolvable:$true] %s343
          %349 = dma.hbm_to_vmem [thread:$0]  %s342, 4096, %s344, [#allocation9], 64, 64, 4
        $region40: #{tpu_custom_call.1} parent=11 // pred_fallthru
          _
        // Predicated region
        $region41: #{tpu_custom_call.1} parent=11 // pred_check
          %p350 = pneg %p244
        $region42: #{tpu_custom_call.1} parent=11 // pred_check_branch
          %352 = sbr.rel (%p350) target = $region44
        $region43: #{tpu_custom_call.1} parent=11 // pred_region
          _
        $region44: #{tpu_custom_call.1} parent=11 // pred_fallthru
          _
      $region12: #{tpu_custom_call.1} parent=5 // pred_fallthru
        _
      %p353 = scmp.lt.s32.totalorder %s24, 2
      // Predicated region
      $region45: #{tpu_custom_call.1} parent=5 // pred_check
        %p354 = pneg %p353
      $region46: #{tpu_custom_call.1} parent=5 // pred_check_branch
        %356 = sbr.rel (%p354) target = $region48
      $region47: #{tpu_custom_call.1} parent=5 // pred_region
        // Predicated region
        $region49: #{tpu_custom_call.1} parent=47 // pred_check
          %p357 = pneg %p44
        $region50: #{tpu_custom_call.1} parent=47 // pred_check_branch
          %359 = sbr.rel (%p357) target = $region52
        $region51: #{tpu_custom_call.1} parent=47 // pred_region
          %s360 = sand.u32 %s34, 1
          %s361 = scalar_lea.sflag [#allocation3], %s360
          %s362 = sand.u32 %s34, 1
          %s363 = smul.addr %s362, 128
          %s364 = scalar_lea.vmem [#allocation2], %s363
          %366 = vsyncadd %s361, 0
          %s367 = smul.addr %s24, 16
          %s368 = smul.addr %s367, 8
          %s369 = scalar_lea.hbm %s0, %s368
          %s370 = sshll.u32 %s369, 4
          %s371 = int_to_ptr.hbm [resolvable:$true] %s370
          %s372 = sshll.u32 %s364, 4
          %s373 = int_to_ptr.vmem [resolvable:$true] %s372
          %378 = dma.hbm_to_vmem [thread:$0]  %s371, 2048, %s373, %s361, 128, 128, 8
        $region52: #{tpu_custom_call.1} parent=47 // pred_fallthru
          _
        // Predicated region
        $region53: #{tpu_custom_call.1} parent=47 // pred_check
          %p379 = pneg %p70
        $region54: #{tpu_custom_call.1} parent=47 // pred_check_branch
          %381 = sbr.rel (%p379) target = $region56
        $region55: #{tpu_custom_call.1} parent=47 // pred_region
          %p382 = scmp.lt.s32.totalorder %s24, 1
          %s383 = scalar_select %p382, %s24, 1
          %s384 = smul.addr %s383, 8
          %s385 = scalar_lea.vmem %s1, %s384
        $region56: #{tpu_custom_call.1} parent=47 // pred_fallthru
          _
      $region48: #{tpu_custom_call.1} parent=5 // pred_fallthru
        _
      %p386 = scmp.le.s32.totalorder 1, %s24
      %p387 = scmp.lt.s32.totalorder %s24, 3
      %p388 = pnand %p386, %p387
      %p389 = pneg %p388
      // Predicated region
      $region57: #{tpu_custom_call.1} parent=5 // pred_check
        _
      $region58: #{tpu_custom_call.1} parent=5 // pred_check_branch
        %391 = sbr.rel (%p388) target = $region60
      $region59: #{tpu_custom_call.1} parent=5 // pred_region
        %s392 = ssub.s32 %s24, 1
        %s393 = sand.u32 %s37, 1
        %s394 = scalar_lea.sflag [#allocation3], %s393
        %s395 = sand.u32 %s37, 1
        %s396 = smul.addr %s395, 128
        %s397 = scalar_lea.vmem [#allocation2], %s396
        // Predicated region
        $region61: #{tpu_custom_call.1} parent=59 // pred_check
          %p398 = pneg %p50
        $region62: #{tpu_custom_call.1} parent=59 // pred_check_branch
          %400 = sbr.rel (%p398) target = $region64
        $region63: #{tpu_custom_call.1} parent=59 // pred_region
          %402 = dma.done %s394, 2048
        $region64: #{tpu_custom_call.1} parent=59 // pred_fallthru
          _
        // Predicated region
        $region65: #{tpu_custom_call.1} parent=59 // pred_check
          %p403 = pneg %p97
        $region66: #{tpu_custom_call.1} parent=59 // pred_check_branch
          %405 = sbr.rel (%p403) target = $region68
        $region67: #{tpu_custom_call.1} parent=59 // pred_region
          %407 = dma.done [#allocation6], 3072
        $region68: #{tpu_custom_call.1} parent=59 // pred_fallthru
          _
        // Predicated region
        $region69: #{tpu_custom_call.1} parent=59 // pred_check
          %p408 = pneg %p139
        $region70: #{tpu_custom_call.1} parent=59 // pred_check_branch
          %410 = sbr.rel (%p408) target = $region72
        $region71: #{tpu_custom_call.1} parent=59 // pred_region
          %412 = dma.done [#allocation6], 1024
        $region72: #{tpu_custom_call.1} parent=59 // pred_fallthru
          _
        // Predicated region
        $region73: #{tpu_custom_call.1} parent=59 // pred_check
          %p413 = pneg %p181
        $region74: #{tpu_custom_call.1} parent=59 // pred_check_branch
          %415 = sbr.rel (%p413) target = $region76
        $region75: #{tpu_custom_call.1} parent=59 // pred_region
          %417 = dma.done [#allocation9], 4096
        $region76: #{tpu_custom_call.1} parent=59 // pred_fallthru
          _
        // Predicated region
        $region77: #{tpu_custom_call.1} parent=59 // pred_check
          %p418 = pneg %p223
        $region78: #{tpu_custom_call.1} parent=59 // pred_check_branch
          %420 = sbr.rel (%p418) target = $region80
        $region79: #{tpu_custom_call.1} parent=59 // pred_region
          %422 = dma.done [#allocation9], 4096
        $region80: #{tpu_custom_call.1} parent=59 // pred_fallthru
          _
        %s423 = sand.u32 %s37, 1
        %s424 = scalar_lea.sflag [#allocation3], %s423
        %s425 = sand.u32 %s37, 1
        %s426 = smul.addr %s425, 128
        %s427 = scalar_lea.vmem [#allocation2], %s426
        %p428 = pneg %p50
        %p429 = pneg %p47
        %p430 = scmp.lt.s32.totalorder %s29, 1
        %s431 = scalar_select %p430, %s29, 1
        %s432 = smul.addr %s431, 8
        %s433 = scalar_lea.vmem %s1, %s432
        %p434 = pneg %p76
        %p435 = pneg %p73
        %p436 = pneg %p97
        %p437 = pneg %p94
        %p438 = pneg %p118
        %p439 = pneg %p115
        %p440 = pneg %p139
        %p441 = pneg %p136
        %p442 = pneg %p160
        %p443 = pneg %p157
        %p444 = pneg %p181
        %p445 = pneg %p178
        %p446 = pneg %p202
        %p447 = pneg %p199
        %p448 = pneg %p223
        %p449 = pneg %p220
        %p450 = pneg %p244
        %p451 = pneg %p241
        %p452 = pneg %p270
        %p453 = pneg %p267
        %s454 = sand.u32 %s257, 1
        %s455 = scalar_lea.sflag [#allocation4], %s454
        %s456 = sand.u32 %s257, 1
        %s457 = smul.addr %s456, 128
        %s458 = scalar_lea.vmem [#allocation11], %s457
        %p459 = scmp.lt.s32.totalorder %s29, 1
        %s460 = scalar_select %p459, %s29, 1
        %s461 = smul.addr %s460, 8
        %s462 = scalar_lea.vmem %s1, %s461
        %v463 = vld [vmem:[%s397] sm:$0xff]
        %v464 = vld [vmem:[%s397 + $0x8] sm:$0xff]
        %v465 = vld [vmem:[%s397 + $0x10] sm:$0xff]
        %v466 = vld [vmem:[%s397 + $0x18] sm:$0xff]
        %v467 = vld [vmem:[%s397 + $0x20] sm:$0xff]
        %v468 = vld [vmem:[%s397 + $0x28] sm:$0xff]
        %v469 = vld [vmem:[%s397 + $0x30] sm:$0xff]
        %v470 = vld [vmem:[%s397 + $0x38] sm:$0xff]
        %v471 = vld [vmem:[%s397 + $0x40] sm:$0xff]
        %v472 = vld [vmem:[%s397 + $0x48] sm:$0xff]
        %v473 = vld [vmem:[%s397 + $0x50] sm:$0xff]
        %v474 = vld [vmem:[%s397 + $0x58] sm:$0xff]
        %v475 = vld [vmem:[%s397 + $0x60] sm:$0xff]
        %v476 = vld [vmem:[%s397 + $0x68] sm:$0xff]
        %v477 = vld [vmem:[%s397 + $0x70] sm:$0xff]
        %v478 = vld [vmem:[%s397 + $0x78] sm:$0xff]
        %v479 = vld [vmem:[%s462] sm:$0x3f]
        %v480 = vadd.f32 %v463, %v464
        %v481 = vadd.f32 %v480, %v465
        %v482 = vadd.f32 %v481, %v466
        %v483 = vadd.f32 %v482, %v467
        %v484 = vadd.f32 %v483, %v468
        %v485 = vadd.f32 %v484, %v469
        %v486 = vadd.f32 %v485, %v470
        %v487 = vadd.f32 %v486, %v471
        %v488 = vadd.f32 %v487, %v472
        %v489 = vadd.f32 %v488, %v473
        %v490 = vadd.f32 %v489, %v474
        %v491 = vadd.f32 %v490, %v475
        %v492 = vadd.f32 %v491, %v476
        %v493 = vadd.f32 %v492, %v477
        %v494 = vadd.f32 %v493, %v478
        %v495 = vrot.slane %v494, 4
        %v496 = vadd.f32 %v494, %v495
        %v497 = vrot.slane %v496, 2
        %v498 = vadd.f32 %v496, %v497
        %v499 = vrot.slane %v498, 1
        %v500 = vadd.f32 %v498, %v499
        %v501 = vrcp.pop 128.0
        %v502 = vmul.f32 128.0, %v501
        %v503 = vsub.f32 1.0, %v502
        %v504 = vmul.f32 %v501, %v503
        %v505 = vadd.f32 %v501, %v504
        %vm506 = vweird.f32 %v501
        %v507 = vsel %vm506, %v501, %v505
        %v508 = vmul.f32 %v500, %v507
        %v509 = vmul.f32 %v463, %v463
        %v510 = vmul.f32 %v464, %v464
        %v511 = vmul.f32 %v465, %v465
        %v512 = vmul.f32 %v466, %v466
        %v513 = vmul.f32 %v467, %v467
        %v514 = vmul.f32 %v468, %v468
        %v515 = vmul.f32 %v469, %v469
        %v516 = vmul.f32 %v470, %v470
        %v517 = vmul.f32 %v471, %v471
        %v518 = vmul.f32 %v472, %v472
        %v519 = vmul.f32 %v473, %v473
        %v520 = vmul.f32 %v474, %v474
        %v521 = vmul.f32 %v475, %v475
        %v522 = vmul.f32 %v476, %v476
        %v523 = vmul.f32 %v477, %v477
        %v524 = vmul.f32 %v478, %v478
        %v525 = vadd.f32 %v509, %v510
        %v526 = vadd.f32 %v525, %v511
        %v527 = vadd.f32 %v526, %v512
        %v528 = vadd.f32 %v527, %v513
        %v529 = vadd.f32 %v528, %v514
        %v530 = vadd.f32 %v529, %v515
        %v531 = vadd.f32 %v530, %v516
        %v532 = vadd.f32 %v531, %v517
        %v533 = vadd.f32 %v532, %v518
        %v534 = vadd.f32 %v533, %v519
        %v535 = vadd.f32 %v534, %v520
        %v536 = vadd.f32 %v535, %v521
        %v537 = vadd.f32 %v536, %v522
        %v538 = vadd.f32 %v537, %v523
        %v539 = vadd.f32 %v538, %v524
        %v540 = vrot.slane %v539, 4
        %v541 = vadd.f32 %v539, %v540
        %v542 = vrot.slane %v541, 2
        %v543 = vadd.f32 %v541, %v542
        %v544 = vrot.slane %v543, 1
        %v545 = vadd.f32 %v543, %v544
        %v546 = vmul.f32 %v545, %v507
        %v547 = vmul.f32 %v508, %v508
        %v548 = vsub.f32 %v546, %v547
        %v549 = vmax.f32 %v548, 0.0
        %v550 = vsub.f32 %v463, %v508
        %v551 = vsub.f32 %v464, %v508
        %v552 = vsub.f32 %v465, %v508
        %v553 = vsub.f32 %v466, %v508
        %v554 = vsub.f32 %v467, %v508
        %v555 = vsub.f32 %v468, %v508
        %v556 = vsub.f32 %v469, %v508
        %v557 = vsub.f32 %v470, %v508
        %v558 = vsub.f32 %v471, %v508
        %v559 = vsub.f32 %v472, %v508
        %v560 = vsub.f32 %v473, %v508
        %v561 = vsub.f32 %v474, %v508
        %v562 = vsub.f32 %v475, %v508
        %v563 = vsub.f32 %v476, %v508
        %v564 = vsub.f32 %v477, %v508
        %v565 = vsub.f32 %v478, %v508
        %v566 = vadd.f32 %v549, 1e-12
        %v567 = vrsqrt.pop %v566
        %v568 = vmul.f32 %v567, %v566
        %v569 = vmul.f32 %v568, %v567
        %v570 = vmul.f32 0.5, %v569
        %v571 = vsub.f32 1.5, %v570
        %v572 = vmul.f32 %v567, %v571
        %vm573 = vweird.f32 %v566
        %vm574 = vweird.f32 %v567
        %vm575 = vmor %vm573, %vm574
        %v576 = vsel %vm575, %v567, %v572
        %v577 = vmul.f32 %v550, %v576
        %v578 = vmul.f32 %v551, %v576
        %v579 = vmul.f32 %v552, %v576
        %v580 = vmul.f32 %v553, %v576
        %v581 = vmul.f32 %v554, %v576
        %v582 = vmul.f32 %v555, %v576
        %v583 = vmul.f32 %v556, %v576
        %v584 = vmul.f32 %v557, %v576
        %v585 = vmul.f32 %v558, %v576
        %v586 = vmul.f32 %v559, %v576
        %v587 = vmul.f32 %v560, %v576
        %v588 = vmul.f32 %v561, %v576
        %v589 = vmul.f32 %v562, %v576
        %v590 = vmul.f32 %v563, %v576
        %v591 = vmul.f32 %v564, %v576
        %v592 = vmul.f32 %v565, %v576
        %v593 = vperm.slane %v479, 0
        %v594 = vmul.f32 %v577, %v593
        %v595 = vmul.f32 %v578, %v593
        %v596 = vmul.f32 %v579, %v593
        %v597 = vmul.f32 %v580, %v593
        %v598 = vmul.f32 %v581, %v593
        %v599 = vmul.f32 %v582, %v593
        %v600 = vmul.f32 %v583, %v593
        %v601 = vmul.f32 %v584, %v593
        %v602 = vmul.f32 %v585, %v593
        %v603 = vmul.f32 %v586, %v593
        %v604 = vmul.f32 %v587, %v593
        %v605 = vmul.f32 %v588, %v593
        %v606 = vmul.f32 %v589, %v593
        %v607 = vmul.f32 %v590, %v593
        %v608 = vmul.f32 %v591, %v593
        %v609 = vmul.f32 %v592, %v593
        %v610 = vperm.slane %v479, 1
        %v611 = vadd.f32 %v594, %v610
        %v612 = vadd.f32 %v595, %v610
        %v613 = vadd.f32 %v596, %v610
        %v614 = vadd.f32 %v597, %v610
        %v615 = vadd.f32 %v598, %v610
        %v616 = vadd.f32 %v599, %v610
        %v617 = vadd.f32 %v600, %v610
        %v618 = vadd.f32 %v601, %v610
        %v619 = vadd.f32 %v602, %v610
        %v620 = vadd.f32 %v603, %v610
        %v621 = vadd.f32 %v604, %v610
        %v622 = vadd.f32 %v605, %v610
        %v623 = vadd.f32 %v606, %v610
        %v624 = vadd.f32 %v607, %v610
        %v625 = vadd.f32 %v608, %v610
        %v626 = vadd.f32 %v609, %v610
        %v627 = vpack.c.bf16 %v611, %v611
        %v628 = vpack.c.bf16 %v612, %v612
        %v629 = vpack.c.bf16 %v613, %v613
        %v630 = vpack.c.bf16 %v614, %v614
        %v631 = vpack.c.bf16 %v615, %v615
        %v632 = vpack.c.bf16 %v616, %v616
        %v633 = vpack.c.bf16 %v617, %v617
        %v634 = vpack.c.bf16 %v618, %v618
        %v635 = vpack.c.bf16 %v619, %v619
        %v636 = vpack.c.bf16 %v620, %v620
        %v637 = vpack.c.bf16 %v621, %v621
        %v638 = vpack.c.bf16 %v622, %v622
        %v639 = vpack.c.bf16 %v623, %v623
        %v640 = vpack.c.bf16 %v624, %v624
        %v641 = vpack.c.bf16 %v625, %v625
        %v642 = vpack.c.bf16 %v626, %v626
        %v643 = vld [vmem:[#allocation5] sm:$0xff]
        %v644 = vld [vmem:[#allocation5 + $0x8] sm:$0xf]
        %v645 = vld [vmem:[#allocation5 + $0xc] sm:$0xff]
        %v646 = vld [vmem:[#allocation5 + $0x14] sm:$0xf]
        %v647 = vld [vmem:[#allocation5 + $0x18] sm:$0xff]
        %v648 = vld [vmem:[#allocation5 + $0x20] sm:$0xf]
        %v649 = vld [vmem:[#allocation5 + $0x24] sm:$0xff]
        %v650 = vld [vmem:[#allocation5 + $0x2c] sm:$0xf]
        %v651 = vld [vmem:[#allocation5 + $0x30] sm:$0xff]
        %v652 = vld [vmem:[#allocation5 + $0x38] sm:$0xf]
        %v653 = vld [vmem:[#allocation5 + $0x3c] sm:$0xff]
        %v654 = vld [vmem:[#allocation5 + $0x44] sm:$0xf]
        %v655 = vld [vmem:[#allocation5 + $0x48] sm:$0xff]
        %v656 = vld [vmem:[#allocation5 + $0x50] sm:$0xf]
        %v657 = vld [vmem:[#allocation5 + $0x54] sm:$0xff]
        %v658 = vld [vmem:[#allocation5 + $0x5c] sm:$0xf]
        %v659 = vld [vmem:[#allocation5 + $0x60] sm:$0xff]
        %v660 = vld [vmem:[#allocation5 + $0x68] sm:$0xf]
        %v661 = vld [vmem:[#allocation5 + $0x6c] sm:$0xff]
        %v662 = vld [vmem:[#allocation5 + $0x74] sm:$0xf]
        %v663 = vld [vmem:[#allocation5 + $0x78] sm:$0xff]
        %v664 = vld [vmem:[#allocation5 + $0x80] sm:$0xf]
        %v665 = vld [vmem:[#allocation5 + $0x84] sm:$0xff]
        %v666 = vld [vmem:[#allocation5 + $0x8c] sm:$0xf]
        %v667 = vld [vmem:[#allocation5 + $0x90] sm:$0xff]
        %v668 = vld [vmem:[#allocation5 + $0x98] sm:$0xf]
        %v669 = vld [vmem:[#allocation5 + $0x9c] sm:$0xff]
        %v670 = vld [vmem:[#allocation5 + $0xa4] sm:$0xf]
        %v671 = vld [vmem:[#allocation5 + $0xa8] sm:$0xff]
        %v672 = vld [vmem:[#allocation5 + $0xb0] sm:$0xf]
        %v673 = vld [vmem:[#allocation5 + $0xb4] sm:$0xff]
        %v674 = vld [vmem:[#allocation5 + $0xbc] sm:$0xf]
        %v675 = vld [vmem:[%s3] sm:$0x7]
        %v677 = vperm.slane %v675, 0
        %v678 = vperm.slane %v675, 1
        %v679 = vperm.slane %v675, 2
        %v699 = vunpack.c.l.b16 %v627
        %v700 = vunpack.c.l.b16 %v628
        %v701 = vunpack.c.l.b16 %v629
        %v702 = vunpack.c.l.b16 %v630
        %v703 = vunpack.c.l.b16 %v631
        %v704 = vunpack.c.l.b16 %v632
        %v705 = vunpack.c.l.b16 %v633
        %v706 = vunpack.c.l.b16 %v634
        %v707 = vunpack.c.l.b16 %v635
        %v708 = vunpack.c.l.b16 %v636
        %v709 = vunpack.c.l.b16 %v637
        %v710 = vunpack.c.l.b16 %v638
        %v711 = vunpack.c.l.b16 %v639
        %v712 = vunpack.c.l.b16 %v640
        %v713 = vunpack.c.l.b16 %v641
        %v714 = vunpack.c.l.b16 %v642
        %v715 = vpack.c.b16 %v700, %v699
        %v716 = vpack.c.b16 %v702, %v701
        %v717 = vpack.c.b16 %v704, %v703
        %v718 = vpack.c.b16 %v706, %v705
        %v719 = vpack.c.b16 %v708, %v707
        %v720 = vpack.c.b16 %v710, %v709
        %v721 = vpack.c.b16 %v712, %v711
        %v722 = vpack.c.b16 %v714, %v713
        %v763 = vunpack.c.l.b16 %v643
        %v764 = vunpack.c.h.b16 %v643
        %v765 = vunpack.c.l.b16 %v644
        %v766 = vunpack.c.l.b16 %v645
        %v767 = vunpack.c.h.b16 %v645
        %v768 = vunpack.c.l.b16 %v646
        %v769 = vunpack.c.l.b16 %v647
        %v770 = vunpack.c.h.b16 %v647
        %v771 = vunpack.c.l.b16 %v648
        %v772 = vunpack.c.l.b16 %v649
        %v773 = vunpack.c.h.b16 %v649
        %v774 = vunpack.c.l.b16 %v650
        %v775 = vunpack.c.l.b16 %v651
        %v776 = vunpack.c.h.b16 %v651
        %v777 = vunpack.c.l.b16 %v652
        %v778 = vunpack.c.l.b16 %v653
        %v779 = vunpack.c.h.b16 %v653
        %v780 = vunpack.c.l.b16 %v654
        %v781 = vunpack.c.l.b16 %v655
        %v782 = vunpack.c.h.b16 %v655
        %v783 = vunpack.c.l.b16 %v656
        %v784 = vunpack.c.l.b16 %v657
        %v785 = vunpack.c.h.b16 %v657
        %v786 = vunpack.c.l.b16 %v658
        %v787 = vunpack.c.l.b16 %v659
        %v788 = vunpack.c.h.b16 %v659
        %v789 = vunpack.c.l.b16 %v660
        %v790 = vunpack.c.l.b16 %v661
        %v791 = vunpack.c.h.b16 %v661
        %v792 = vunpack.c.l.b16 %v662
        %v793 = vunpack.c.l.b16 %v663
        %v794 = vunpack.c.h.b16 %v663
        %v795 = vunpack.c.l.b16 %v664
        %v796 = vunpack.c.l.b16 %v665
        %v797 = vunpack.c.h.b16 %v665
        %v798 = vunpack.c.l.b16 %v666
        %v799 = vunpack.c.l.b16 %v667
        %v800 = vunpack.c.h.b16 %v667
        %v801 = vunpack.c.l.b16 %v668
        %v802 = vunpack.c.l.b16 %v669
        %v803 = vunpack.c.h.b16 %v669
        %v804 = vunpack.c.l.b16 %v670
        %v805 = vunpack.c.l.b16 %v671
        %v806 = vunpack.c.h.b16 %v671
        %v807 = vunpack.c.l.b16 %v672
        %v808 = vunpack.c.l.b16 %v673
        %v809 = vunpack.c.h.b16 %v673
        %v810 = vunpack.c.l.b16 %v674
        %v811 = vpack.c.b16 %v766, %v763
        %v812 = vpack.c.b16 %v767, %v764
        %v813 = vpack.c.b16 %v768, %v765
        %v814 = vpack.c.b16 %v772, %v769
        %v815 = vpack.c.b16 %v773, %v770
        %v816 = vpack.c.b16 %v774, %v771
        %v817 = vpack.c.b16 %v778, %v775
        %v818 = vpack.c.b16 %v779, %v776
        %v819 = vpack.c.b16 %v780, %v777
        %v820 = vpack.c.b16 %v784, %v781
        %v821 = vpack.c.b16 %v785, %v782
        %v822 = vpack.c.b16 %v786, %v783
        %v823 = vpack.c.b16 %v790, %v787
        %v824 = vpack.c.b16 %v791, %v788
        %v825 = vpack.c.b16 %v792, %v789
        %v826 = vpack.c.b16 %v796, %v793
        %v827 = vpack.c.b16 %v797, %v794
        %v828 = vpack.c.b16 %v798, %v795
        %v829 = vpack.c.b16 %v802, %v799
        %v830 = vpack.c.b16 %v803, %v800
        %v831 = vpack.c.b16 %v804, %v801
        %v832 = vpack.c.b16 %v808, %v805
        %v833 = vpack.c.b16 %v809, %v806
        %v834 = vpack.c.b16 %v810, %v807
        %859 = vmatpush.bf16.msra.mxu0 %v832
        %860 = vmatpush.bf16.msra.mxu0 %v829
        %861 = vmatpush.bf16.msra.mxu0 %v826
        %862 = vmatpush.bf16.msra.mxu0 %v823
        %863 = vmatpush.bf16.msra.mxu0 %v820
        %864 = vmatpush.bf16.msra.mxu0 %v817
        %865 = vmatpush.bf16.msra.mxu0 %v814
        %866 = vmatpush.bf16.msra.mxu0 %v811
        %867 = vmatmul.bf16.gmra.mxu0 %v715
        %v868 = vpop.f32.mrf.mxu0
        %v869 = vadd.f32 %v677, %v868
        %v870 = vpop.f32.mrf.mxu0
        %v871 = vadd.f32 %v677, %v870
        %872 = vmatmul.bf16.gmra.mxu0 %v716
        %v873 = vpop.f32.mrf.mxu0
        %v874 = vadd.f32 %v677, %v873
        %v875 = vpop.f32.mrf.mxu0
        %v876 = vadd.f32 %v677, %v875
        %877 = vmatmul.bf16.gmra.mxu0 %v717
        %v878 = vpop.f32.mrf.mxu0
        %v879 = vadd.f32 %v677, %v878
        %v880 = vpop.f32.mrf.mxu0
        %v881 = vadd.f32 %v677, %v880
        %882 = vmatmul.bf16.gmra.mxu0 %v718
        %v883 = vpop.f32.mrf.mxu0
        %v884 = vadd.f32 %v677, %v883
        %v885 = vpop.f32.mrf.mxu0
        %v886 = vadd.f32 %v677, %v885
        %887 = vmatmul.bf16.gmra.mxu0 %v719
        %v888 = vpop.f32.mrf.mxu0
        %v889 = vadd.f32 %v677, %v888
        %v890 = vpop.f32.mrf.mxu0
        %v891 = vadd.f32 %v677, %v890
        %892 = vmatmul.bf16.gmra.mxu0 %v720
        %v893 = vpop.f32.mrf.mxu0
        %v894 = vadd.f32 %v677, %v893
        %v895 = vpop.f32.mrf.mxu0
        %v896 = vadd.f32 %v677, %v895
        %897 = vmatmul.bf16.gmra.mxu0 %v721
        %v898 = vpop.f32.mrf.mxu0
        %v899 = vadd.f32 %v677, %v898
        %v900 = vpop.f32.mrf.mxu0
        %v901 = vadd.f32 %v677, %v900
        %902 = vmatmul.bf16.gmra.mxu0 %v722
        %v903 = vpop.f32.mrf.mxu0
        %v904 = vadd.f32 %v677, %v903
        %v905 = vpop.f32.mrf.mxu0
        %v906 = vadd.f32 %v677, %v905
        %907 = vdwg.mxu0
        %908 = vmatpush.bf16.msra.mxu0 %v833
        %909 = vmatpush.bf16.msra.mxu0 %v830
        %910 = vmatpush.bf16.msra.mxu0 %v827
        %911 = vmatpush.bf16.msra.mxu0 %v824
        %912 = vmatpush.bf16.msra.mxu0 %v821
        %913 = vmatpush.bf16.msra.mxu0 %v818
        %914 = vmatpush.bf16.msra.mxu0 %v815
        %915 = vmatpush.bf16.msra.mxu0 %v812
        %916 = vmatmul.bf16.gmra.mxu0 %v715
        %v917 = vpop.f32.mrf.mxu0
        %v918 = vadd.f32 %v678, %v917
        %v919 = vpop.f32.mrf.mxu0
        %v920 = vadd.f32 %v678, %v919
        %921 = vmatmul.bf16.gmra.mxu0 %v716
        %v922 = vpop.f32.mrf.mxu0
        %v923 = vadd.f32 %v678, %v922
        %v924 = vpop.f32.mrf.mxu0
        %v925 = vadd.f32 %v678, %v924
        %926 = vmatmul.bf16.gmra.mxu0 %v717
        %v927 = vpop.f32.mrf.mxu0
        %v928 = vadd.f32 %v678, %v927
        %v929 = vpop.f32.mrf.mxu0
        %v930 = vadd.f32 %v678, %v929
        %931 = vmatmul.bf16.gmra.mxu0 %v718
        %v932 = vpop.f32.mrf.mxu0
        %v933 = vadd.f32 %v678, %v932
        %v934 = vpop.f32.mrf.mxu0
        %v935 = vadd.f32 %v678, %v934
        %936 = vmatmul.bf16.gmra.mxu0 %v719
        %v937 = vpop.f32.mrf.mxu0
        %v938 = vadd.f32 %v678, %v937
        %v939 = vpop.f32.mrf.mxu0
        %v940 = vadd.f32 %v678, %v939
        %941 = vmatmul.bf16.gmra.mxu0 %v720
        %v942 = vpop.f32.mrf.mxu0
        %v943 = vadd.f32 %v678, %v942
        %v944 = vpop.f32.mrf.mxu0
        %v945 = vadd.f32 %v678, %v944
        %946 = vmatmul.bf16.gmra.mxu0 %v721
        %v947 = vpop.f32.mrf.mxu0
        %v948 = vadd.f32 %v678, %v947
        %v949 = vpop.f32.mrf.mxu0
        %v950 = vadd.f32 %v678, %v949
        %951 = vmatmul.bf16.gmra.mxu0 %v722
        %v952 = vpop.f32.mrf.mxu0
        %v953 = vadd.f32 %v678, %v952
        %v954 = vpop.f32.mrf.mxu0
        %v955 = vadd.f32 %v678, %v954
        %956 = vdwg.mxu0
        %957 = vmatpush.bf16.msra.mxu0 %v834
        %958 = vmatpush.bf16.msra.mxu0 %v831
        %959 = vmatpush.bf16.msra.mxu0 %v828
        %960 = vmatpush.bf16.msra.mxu0 %v825
        %961 = vmatpush.bf16.msra.mxu0 %v822
        %962 = vmatpush.bf16.msra.mxu0 %v819
        %963 = vmatpush.bf16.msra.mxu0 %v816
        %964 = vmatpush.bf16.msra.mxu0 %v813
        %965 = vmatmul.bf16.gmra.mxu0 %v715
        %v966 = vpop.f32.mrf.mxu0
        %v967 = vadd.f32 %v679, %v966
        %v968 = vpop.f32.mrf.mxu0
        %v969 = vadd.f32 %v679, %v968
        %970 = vmatmul.bf16.gmra.mxu0 %v716
        %v971 = vpop.f32.mrf.mxu0
        %v972 = vadd.f32 %v679, %v971
        %v973 = vpop.f32.mrf.mxu0
        %v974 = vadd.f32 %v679, %v973
        %975 = vmatmul.bf16.gmra.mxu0 %v717
        %v976 = vpop.f32.mrf.mxu0
        %v977 = vadd.f32 %v679, %v976
        %v978 = vpop.f32.mrf.mxu0
        %v979 = vadd.f32 %v679, %v978
        %980 = vmatmul.bf16.gmra.mxu0 %v718
        %v981 = vpop.f32.mrf.mxu0
        %v982 = vadd.f32 %v679, %v981
        %v983 = vpop.f32.mrf.mxu0
        %v984 = vadd.f32 %v679, %v983
        %985 = vmatmul.bf16.gmra.mxu0 %v719
        %v986 = vpop.f32.mrf.mxu0
        %v987 = vadd.f32 %v679, %v986
        %v988 = vpop.f32.mrf.mxu0
        %v989 = vadd.f32 %v679, %v988
        %990 = vmatmul.bf16.gmra.mxu0 %v720
        %v991 = vpop.f32.mrf.mxu0
        %v992 = vadd.f32 %v679, %v991
        %v993 = vpop.f32.mrf.mxu0
        %v994 = vadd.f32 %v679, %v993
        %995 = vmatmul.bf16.gmra.mxu0 %v721
        %v996 = vpop.f32.mrf.mxu0
        %v997 = vadd.f32 %v679, %v996
        %v998 = vpop.f32.mrf.mxu0
        %v999 = vadd.f32 %v679, %v998
        %1000 = vmatmul.bf16.gmra.mxu0 %v722
        %v1001 = vpop.f32.mrf.mxu0
        %v1002 = vadd.f32 %v679, %v1001
        %v1003 = vpop.f32.mrf.mxu0
        %v1004 = vadd.f32 %v679, %v1003
        %1005 = vdwg.mxu0
        %v1006 = vpack.c.bf16 %v869, %v869
        %v1007 = vpack.c.bf16 %v871, %v871
        %v1008 = vpack.c.bf16 %v874, %v874
        %v1009 = vpack.c.bf16 %v876, %v876
        %v1010 = vpack.c.bf16 %v879, %v879
        %v1011 = vpack.c.bf16 %v881, %v881
        %v1012 = vpack.c.bf16 %v884, %v884
        %v1013 = vpack.c.bf16 %v886, %v886
        %v1014 = vpack.c.bf16 %v889, %v889
        %v1015 = vpack.c.bf16 %v891, %v891
        %v1016 = vpack.c.bf16 %v894, %v894
        %v1017 = vpack.c.bf16 %v896, %v896
        %v1018 = vpack.c.bf16 %v899, %v899
        %v1019 = vpack.c.bf16 %v901, %v901
        %v1020 = vpack.c.bf16 %v904, %v904
        %v1021 = vpack.c.bf16 %v906, %v906
        %v1022 = vpack.c.bf16 %v918, %v918
        %v1023 = vpack.c.bf16 %v920, %v920
        %v1024 = vpack.c.bf16 %v923, %v923
        %v1025 = vpack.c.bf16 %v925, %v925
        %v1026 = vpack.c.bf16 %v928, %v928
        %v1027 = vpack.c.bf16 %v930, %v930
        %v1028 = vpack.c.bf16 %v933, %v933
        %v1029 = vpack.c.bf16 %v935, %v935
        %v1030 = vpack.c.bf16 %v938, %v938
        %v1031 = vpack.c.bf16 %v940, %v940
        %v1032 = vpack.c.bf16 %v943, %v943
        %v1033 = vpack.c.bf16 %v945, %v945
        %v1034 = vpack.c.bf16 %v948, %v948
        %v1035 = vpack.c.bf16 %v950, %v950
        %v1036 = vpack.c.bf16 %v953, %v953
        %v1037 = vpack.c.bf16 %v955, %v955
        %v1038 = vpack.c.bf16 %v967, %v967
        %v1039 = vpack.c.bf16 %v969, %v969
        %v1040 = vpack.c.bf16 %v972, %v972
        %v1041 = vpack.c.bf16 %v974, %v974
        %v1042 = vpack.c.bf16 %v977, %v977
        %v1043 = vpack.c.bf16 %v979, %v979
        %v1044 = vpack.c.bf16 %v982, %v982
        %v1045 = vpack.c.bf16 %v984, %v984
        %v1046 = vpack.c.bf16 %v987, %v987
        %v1047 = vpack.c.bf16 %v989, %v989
        %v1048 = vpack.c.bf16 %v992, %v992
        %v1049 = vpack.c.bf16 %v994, %v994
        %v1050 = vpack.c.bf16 %v997, %v997
        %v1051 = vpack.c.bf16 %v999, %v999
        %v1052 = vpack.c.bf16 %v1002, %v1002
        %v1053 = vpack.c.bf16 %v1004, %v1004
        %v1070 = vunpack.c.l.b16 %v1006
        %v1071 = vunpack.c.l.b16 %v1007
        %v1072 = vunpack.c.l.b16 %v1008
        %v1073 = vunpack.c.l.b16 %v1009
        %v1074 = vunpack.c.l.b16 %v1010
        %v1075 = vunpack.c.l.b16 %v1011
        %v1076 = vunpack.c.l.b16 %v1012
        %v1077 = vunpack.c.l.b16 %v1013
        %v1078 = vunpack.c.l.b16 %v1014
        %v1079 = vunpack.c.l.b16 %v1015
        %v1080 = vunpack.c.l.b16 %v1016
        %v1081 = vunpack.c.l.b16 %v1017
        %v1082 = vunpack.c.l.b16 %v1018
        %v1083 = vunpack.c.l.b16 %v1019
        %v1084 = vunpack.c.l.b16 %v1020
        %v1085 = vunpack.c.l.b16 %v1021
        %v1086 = vpack.c.b16 %v1071, %v1070
        %v1087 = vpack.c.b16 %v1073, %v1072
        %v1088 = vpack.c.b16 %v1075, %v1074
        %v1089 = vpack.c.b16 %v1077, %v1076
        %v1090 = vpack.c.b16 %v1079, %v1078
        %v1091 = vpack.c.b16 %v1081, %v1080
        %v1092 = vpack.c.b16 %v1083, %v1082
        %v1093 = vpack.c.b16 %v1085, %v1084
        %v1110 = vunpack.c.l.b16 %v1022
        %v1111 = vunpack.c.l.b16 %v1023
        %v1112 = vunpack.c.l.b16 %v1024
        %v1113 = vunpack.c.l.b16 %v1025
        %v1114 = vunpack.c.l.b16 %v1026
        %v1115 = vunpack.c.l.b16 %v1027
        %v1116 = vunpack.c.l.b16 %v1028
        %v1117 = vunpack.c.l.b16 %v1029
        %v1118 = vunpack.c.l.b16 %v1030
        %v1119 = vunpack.c.l.b16 %v1031
        %v1120 = vunpack.c.l.b16 %v1032
        %v1121 = vunpack.c.l.b16 %v1033
        %v1122 = vunpack.c.l.b16 %v1034
        %v1123 = vunpack.c.l.b16 %v1035
        %v1124 = vunpack.c.l.b16 %v1036
        %v1125 = vunpack.c.l.b16 %v1037
        %v1126 = vpack.c.b16 %v1111, %v1110
        %v1127 = vpack.c.b16 %v1113, %v1112
        %v1128 = vpack.c.b16 %v1115, %v1114
        %v1129 = vpack.c.b16 %v1117, %v1116
        %v1130 = vpack.c.b16 %v1119, %v1118
        %v1131 = vpack.c.b16 %v1121, %v1120
        %v1132 = vpack.c.b16 %v1123, %v1122
        %v1133 = vpack.c.b16 %v1125, %v1124
        %vm1134 = vcmask 261120
        %v1136 = vsel %vm1134, %v1086, 0
        %v1139 = vsel %vm1134, %v1087, 0
        %v1142 = vsel %vm1134, %v1088, 0
        %v1145 = vsel %vm1134, %v1089, 0
        %v1148 = vsel %vm1134, %v1090, 0
        %v1151 = vsel %vm1134, %v1091, 0
        %v1154 = vsel %vm1134, %v1092, 0
        %v1157 = vsel %vm1134, %v1093, 0
        %v1160 = vsel %vm1134, %v1126, 0
        %v1163 = vsel %vm1134, %v1127, 0
        %v1166 = vsel %vm1134, %v1128, 0
        %v1169 = vsel %vm1134, %v1129, 0
        %v1172 = vsel %vm1134, %v1130, 0
        %v1175 = vsel %vm1134, %v1131, 0
        %v1178 = vsel %vm1134, %v1132, 0
        %v1181 = vsel %vm1134, %v1133, 0
        %1183 = vmatpush.bf16.xpose.msra.mxu0 %v1181
        %1184 = vmatpush.bf16.xpose.msra.mxu0 %v1178
        %1185 = vmatpush.bf16.xpose.msra.mxu0 %v1175
        %1186 = vmatpush.bf16.xpose.msra.mxu0 %v1172
        %1187 = vmatpush.bf16.xpose.msra.mxu0 %v1169
        %1188 = vmatpush.bf16.xpose.msra.mxu0 %v1166
        %1189 = vmatpush.bf16.xpose.msra.mxu0 %v1163
        %1190 = vmatpush.bf16.xpose.msra.mxu0 %v1160
        %1191 = vmatmul.bf16.gmra.mxu0 %v1136
        %v1192 = vpop.f32.mrf.mxu0
        %v1193 = vadd.f32 0.0, %v1192
        %v1194 = vpop.f32.mrf.mxu0
        %v1195 = vadd.f32 0.0, %v1194
        %1196 = vmatmul.bf16.gmra.mxu0 %v1139
        %v1197 = vpop.f32.mrf.mxu0
        %v1198 = vadd.f32 0.0, %v1197
        %v1199 = vpop.f32.mrf.mxu0
        %v1200 = vadd.f32 0.0, %v1199
        %1201 = vmatmul.bf16.gmra.mxu0 %v1142
        %v1202 = vpop.f32.mrf.mxu0
        %v1203 = vadd.f32 0.0, %v1202
        %v1204 = vpop.f32.mrf.mxu0
        %v1205 = vadd.f32 0.0, %v1204
        %1206 = vmatmul.bf16.gmra.mxu0 %v1145
        %v1207 = vpop.f32.mrf.mxu0
        %v1208 = vadd.f32 0.0, %v1207
        %v1209 = vpop.f32.mrf.mxu0
        %v1210 = vadd.f32 0.0, %v1209
        %1211 = vmatmul.bf16.gmra.mxu0 %v1148
        %v1212 = vpop.f32.mrf.mxu0
        %v1213 = vadd.f32 0.0, %v1212
        %v1214 = vpop.f32.mrf.mxu0
        %v1215 = vadd.f32 0.0, %v1214
        %1216 = vmatmul.bf16.gmra.mxu0 %v1151
        %v1217 = vpop.f32.mrf.mxu0
        %v1218 = vadd.f32 0.0, %v1217
        %v1219 = vpop.f32.mrf.mxu0
        %v1220 = vadd.f32 0.0, %v1219
        %1221 = vmatmul.bf16.gmra.mxu0 %v1154
        %v1222 = vpop.f32.mrf.mxu0
        %v1223 = vadd.f32 0.0, %v1222
        %v1224 = vpop.f32.mrf.mxu0
        %v1225 = vadd.f32 0.0, %v1224
        %1226 = vmatmul.bf16.gmra.mxu0 %v1157
        %v1227 = vpop.f32.mrf.mxu0
        %v1228 = vadd.f32 0.0, %v1227
        %v1229 = vpop.f32.mrf.mxu0
        %v1230 = vadd.f32 0.0, %v1229
        %1231 = vdwg.mxu0
        %1232 = vmax.xlane.f32.xlu0 %v1193
        %v1233 = vpop.xlane.xlu0 %1232
        %1234 = vmax.xlane.f32.xlu0 %v1195
        %v1235 = vpop.xlane.xlu0 %1234
        %1236 = vmax.xlane.f32.xlu0 %v1198
        %v1237 = vpop.xlane.xlu0 %1236
        %1238 = vmax.xlane.f32.xlu0 %v1200
        %v1239 = vpop.xlane.xlu0 %1238
        %1240 = vmax.xlane.f32.xlu0 %v1203
        %v1241 = vpop.xlane.xlu0 %1240
        %1242 = vmax.xlane.f32.xlu0 %v1205
        %v1243 = vpop.xlane.xlu0 %1242
        %1244 = vmax.xlane.f32.xlu0 %v1208
        %v1245 = vpop.xlane.xlu0 %1244
        %1246 = vmax.xlane.f32.xlu0 %v1210
        %v1247 = vpop.xlane.xlu0 %1246
        %1248 = vmax.xlane.f32.xlu0 %v1213
        %v1249 = vpop.xlane.xlu0 %1248
        %1250 = vmax.xlane.f32.xlu0 %v1215
        %v1251 = vpop.xlane.xlu0 %1250
        %1252 = vmax.xlane.f32.xlu0 %v1218
        %v1253 = vpop.xlane.xlu0 %1252
        %1254 = vmax.xlane.f32.xlu0 %v1220
        %v1255 = vpop.xlane.xlu0 %1254
        %1256 = vmax.xlane.f32.xlu0 %v1223
        %v1257 = vpop.xlane.xlu0 %1256
        %1258 = vmax.xlane.f32.xlu0 %v1225
        %v1259 = vpop.xlane.xlu0 %1258
        %1260 = vmax.xlane.f32.xlu0 %v1228
        %v1261 = vpop.xlane.xlu0 %1260
        %1262 = vmax.xlane.f32.xlu0 %v1230
        %v1263 = vpop.xlane.xlu0 %1262
        %v1264 = vsub.f32 %v1193, %v1233
        %v1265 = vsub.f32 %v1195, %v1235
        %v1266 = vsub.f32 %v1198, %v1237
        %v1267 = vsub.f32 %v1200, %v1239
        %v1268 = vsub.f32 %v1203, %v1241
        %v1269 = vsub.f32 %v1205, %v1243
        %v1270 = vsub.f32 %v1208, %v1245
        %v1271 = vsub.f32 %v1210, %v1247
        %v1272 = vsub.f32 %v1213, %v1249
        %v1273 = vsub.f32 %v1215, %v1251
        %v1274 = vsub.f32 %v1218, %v1253
        %v1275 = vsub.f32 %v1220, %v1255
        %v1276 = vsub.f32 %v1223, %v1257
        %v1277 = vsub.f32 %v1225, %v1259
        %v1278 = vsub.f32 %v1228, %v1261
        %v1279 = vsub.f32 %v1230, %v1263
        %v1280 = vmul.f32 %v1264, 1.442695
        %v1281 = vpow.pop %v1280
        %v1282 = vmul.f32 %v1265, 1.442695
        %v1283 = vpow.pop %v1282
        %v1284 = vmul.f32 %v1266, 1.442695
        %v1285 = vpow.pop %v1284
        %v1286 = vmul.f32 %v1267, 1.442695
        %v1287 = vpow.pop %v1286
        %v1288 = vmul.f32 %v1268, 1.442695
        %v1289 = vpow.pop %v1288
        %v1290 = vmul.f32 %v1269, 1.442695
        %v1291 = vpow.pop %v1290
        %v1292 = vmul.f32 %v1270, 1.442695
        %v1293 = vpow.pop %v1292
        %v1294 = vmul.f32 %v1271, 1.442695
        %v1295 = vpow.pop %v1294
        %v1296 = vmul.f32 %v1272, 1.442695
        %v1297 = vpow.pop %v1296
        %v1298 = vmul.f32 %v1273, 1.442695
        %v1299 = vpow.pop %v1298
        %v1300 = vmul.f32 %v1274, 1.442695
        %v1301 = vpow.pop %v1300
        %v1302 = vmul.f32 %v1275, 1.442695
        %v1303 = vpow.pop %v1302
        %v1304 = vmul.f32 %v1276, 1.442695
        %v1305 = vpow.pop %v1304
        %v1306 = vmul.f32 %v1277, 1.442695
        %v1307 = vpow.pop %v1306
        %v1308 = vmul.f32 %v1278, 1.442695
        %v1309 = vpow.pop %v1308
        %v1310 = vmul.f32 %v1279, 1.442695
        %v1311 = vpow.pop %v1310
        %1312 = vadd.xlane.f32.xlu0 %v1281
        %v1313 = vpop.xlane.xlu0 %1312
        %1314 = vadd.xlane.f32.xlu0 %v1283
        %v1315 = vpop.xlane.xlu0 %1314
        %1316 = vadd.xlane.f32.xlu0 %v1285
        %v1317 = vpop.xlane.xlu0 %1316
        %1318 = vadd.xlane.f32.xlu0 %v1287
        %v1319 = vpop.xlane.xlu0 %1318
        %1320 = vadd.xlane.f32.xlu0 %v1289
        %v1321 = vpop.xlane.xlu0 %1320
        %1322 = vadd.xlane.f32.xlu0 %v1291
        %v1323 = vpop.xlane.xlu0 %1322
        %1324 = vadd.xlane.f32.xlu0 %v1293
        %v1325 = vpop.xlane.xlu0 %1324
        %1326 = vadd.xlane.f32.xlu0 %v1295
        %v1327 = vpop.xlane.xlu0 %1326
        %1328 = vadd.xlane.f32.xlu0 %v1297
        %v1329 = vpop.xlane.xlu0 %1328
        %1330 = vadd.xlane.f32.xlu0 %v1299
        %v1331 = vpop.xlane.xlu0 %1330
        %1332 = vadd.xlane.f32.xlu0 %v1301
        %v1333 = vpop.xlane.xlu0 %1332
        %1334 = vadd.xlane.f32.xlu0 %v1303
        %v1335 = vpop.xlane.xlu0 %1334
        %1336 = vadd.xlane.f32.xlu0 %v1305
        %v1337 = vpop.xlane.xlu0 %1336
        %1338 = vadd.xlane.f32.xlu0 %v1307
        %v1339 = vpop.xlane.xlu0 %1338
        %1340 = vadd.xlane.f32.xlu0 %v1309
        %v1341 = vpop.xlane.xlu0 %1340
        %1342 = vadd.xlane.f32.xlu0 %v1311
        %v1343 = vpop.xlane.xlu0 %1342
        %v1344 = vrcp.pop %v1313
        %v1345 = vrcp.pop %v1315
        %v1346 = vrcp.pop %v1317
        %v1347 = vrcp.pop %v1319
        %v1348 = vrcp.pop %v1321
        %v1349 = vrcp.pop %v1323
        %v1350 = vrcp.pop %v1325
        %v1351 = vrcp.pop %v1327
        %v1352 = vrcp.pop %v1329
        %v1353 = vrcp.pop %v1331
        %v1354 = vrcp.pop %v1333
        %v1355 = vrcp.pop %v1335
        %v1356 = vrcp.pop %v1337
        %v1357 = vrcp.pop %v1339
        %v1358 = vrcp.pop %v1341
        %v1359 = vrcp.pop %v1343
        %v1360 = vmul.f32 %v1313, %v1344
        %v1361 = vmul.f32 %v1315, %v1345
        %v1362 = vmul.f32 %v1317, %v1346
        %v1363 = vmul.f32 %v1319, %v1347
        %v1364 = vmul.f32 %v1321, %v1348
        %v1365 = vmul.f32 %v1323, %v1349
        %v1366 = vmul.f32 %v1325, %v1350
        %v1367 = vmul.f32 %v1327, %v1351
        %v1368 = vmul.f32 %v1329, %v1352
        %v1369 = vmul.f32 %v1331, %v1353
        %v1370 = vmul.f32 %v1333, %v1354
        %v1371 = vmul.f32 %v1335, %v1355
        %v1372 = vmul.f32 %v1337, %v1356
        %v1373 = vmul.f32 %v1339, %v1357
        %v1374 = vmul.f32 %v1341, %v1358
        %v1375 = vmul.f32 %v1343, %v1359
        %v1376 = vsub.f32 2.0, %v1360
        %v1377 = vsub.f32 2.0, %v1361
        %v1378 = vsub.f32 2.0, %v1362
        %v1379 = vsub.f32 2.0, %v1363
        %v1380 = vsub.f32 2.0, %v1364
        %v1381 = vsub.f32 2.0, %v1365
        %v1382 = vsub.f32 2.0, %v1366
        %v1383 = vsub.f32 2.0, %v1367
        %v1384 = vsub.f32 2.0, %v1368
        %v1385 = vsub.f32 2.0, %v1369
        %v1386 = vsub.f32 2.0, %v1370
        %v1387 = vsub.f32 2.0, %v1371
        %v1388 = vsub.f32 2.0, %v1372
        %v1389 = vsub.f32 2.0, %v1373
        %v1390 = vsub.f32 2.0, %v1374
        %v1391 = vsub.f32 2.0, %v1375
        %v1392 = vmul.f32 %v1344, %v1376
        %v1393 = vmul.f32 %v1345, %v1377
        %v1394 = vmul.f32 %v1346, %v1378
        %v1395 = vmul.f32 %v1347, %v1379
        %v1396 = vmul.f32 %v1348, %v1380
        %v1397 = vmul.f32 %v1349, %v1381
        %v1398 = vmul.f32 %v1350, %v1382
        %v1399 = vmul.f32 %v1351, %v1383
        %v1400 = vmul.f32 %v1352, %v1384
        %v1401 = vmul.f32 %v1353, %v1385
        %v1402 = vmul.f32 %v1354, %v1386
        %v1403 = vmul.f32 %v1355, %v1387
        %v1404 = vmul.f32 %v1356, %v1388
        %v1405 = vmul.f32 %v1357, %v1389
        %v1406 = vmul.f32 %v1358, %v1390
        %v1407 = vmul.f32 %v1359, %v1391
        %v1408 = vmul.f32 %v1281, %v1392
        %v1409 = vmul.f32 %v1283, %v1393
        %v1410 = vmul.f32 %v1285, %v1394
        %v1411 = vmul.f32 %v1287, %v1395
        %v1412 = vmul.f32 %v1289, %v1396
        %v1413 = vmul.f32 %v1291, %v1397
        %v1414 = vmul.f32 %v1293, %v1398
        %v1415 = vmul.f32 %v1295, %v1399
        %v1416 = vmul.f32 %v1297, %v1400
        %v1417 = vmul.f32 %v1299, %v1401
        %v1418 = vmul.f32 %v1301, %v1402
        %v1419 = vmul.f32 %v1303, %v1403
        %v1420 = vmul.f32 %v1305, %v1404
        %v1421 = vmul.f32 %v1307, %v1405
        %v1422 = vmul.f32 %v1309, %v1406
        %v1423 = vmul.f32 %v1311, %v1407
        %v1424 = vpack.c.bf16 %v1408, %v1408
        %v1425 = vpack.c.bf16 %v1409, %v1409
        %v1426 = vpack.c.bf16 %v1410, %v1410
        %v1427 = vpack.c.bf16 %v1411, %v1411
        %v1428 = vpack.c.bf16 %v1412, %v1412
        %v1429 = vpack.c.bf16 %v1413, %v1413
        %v1430 = vpack.c.bf16 %v1414, %v1414
        %v1431 = vpack.c.bf16 %v1415, %v1415
        %v1432 = vpack.c.bf16 %v1416, %v1416
        %v1433 = vpack.c.bf16 %v1417, %v1417
        %v1434 = vpack.c.bf16 %v1418, %v1418
        %v1435 = vpack.c.bf16 %v1419, %v1419
        %v1436 = vpack.c.bf16 %v1420, %v1420
        %v1437 = vpack.c.bf16 %v1421, %v1421
        %v1438 = vpack.c.bf16 %v1422, %v1422
        %v1439 = vpack.c.bf16 %v1423, %v1423
        %v1456 = vunpack.c.l.b16 %v1424
        %v1457 = vunpack.c.l.b16 %v1425
        %v1458 = vunpack.c.l.b16 %v1426
        %v1459 = vunpack.c.l.b16 %v1427
        %v1460 = vunpack.c.l.b16 %v1428
        %v1461 = vunpack.c.l.b16 %v1429
        %v1462 = vunpack.c.l.b16 %v1430
        %v1463 = vunpack.c.l.b16 %v1431
        %v1464 = vunpack.c.l.b16 %v1432
        %v1465 = vunpack.c.l.b16 %v1433
        %v1466 = vunpack.c.l.b16 %v1434
        %v1467 = vunpack.c.l.b16 %v1435
        %v1468 = vunpack.c.l.b16 %v1436
        %v1469 = vunpack.c.l.b16 %v1437
        %v1470 = vunpack.c.l.b16 %v1438
        %v1471 = vunpack.c.l.b16 %v1439
        %v1472 = vpack.c.b16 %v1457, %v1456
        %v1473 = vpack.c.b16 %v1459, %v1458
        %v1474 = vpack.c.b16 %v1461, %v1460
        %v1475 = vpack.c.b16 %v1463, %v1462
        %v1476 = vpack.c.b16 %v1465, %v1464
        %v1477 = vpack.c.b16 %v1467, %v1466
        %v1478 = vpack.c.b16 %v1469, %v1468
        %v1479 = vpack.c.b16 %v1471, %v1470
        %v1504 = vunpack.c.l.b16 %v1038
        %v1505 = vunpack.c.l.b16 %v1039
        %v1506 = vunpack.c.l.b16 %v1040
        %v1507 = vunpack.c.l.b16 %v1041
        %v1508 = vunpack.c.l.b16 %v1042
        %v1509 = vunpack.c.l.b16 %v1043
        %v1510 = vunpack.c.l.b16 %v1044
        %v1511 = vunpack.c.l.b16 %v1045
        %v1512 = vunpack.c.l.b16 %v1046
        %v1513 = vunpack.c.l.b16 %v1047
        %v1514 = vunpack.c.l.b16 %v1048
        %v1515 = vunpack.c.l.b16 %v1049
        %v1516 = vunpack.c.l.b16 %v1050
        %v1517 = vunpack.c.l.b16 %v1051
        %v1518 = vunpack.c.l.b16 %v1052
        %v1519 = vunpack.c.l.b16 %v1053
        %v1520 = vpack.c.b16 %v1505, %v1504
        %v1521 = vpack.c.b16 %v1507, %v1506
        %v1522 = vpack.c.b16 %v1509, %v1508
        %v1523 = vpack.c.b16 %v1511, %v1510
        %v1524 = vpack.c.b16 %v1513, %v1512
        %v1525 = vpack.c.b16 %v1515, %v1514
        %v1526 = vpack.c.b16 %v1517, %v1516
        %v1527 = vpack.c.b16 %v1519, %v1518
        %1536 = vmatpush.bf16.msra.mxu0 %v1527
        %1537 = vmatpush.bf16.msra.mxu0 %v1526
        %1538 = vmatpush.bf16.msra.mxu0 %v1525
        %1539 = vmatpush.bf16.msra.mxu0 %v1524
        %1540 = vmatpush.bf16.msra.mxu0 %v1523
        %1541 = vmatpush.bf16.msra.mxu0 %v1522
        %1542 = vmatpush.bf16.msra.mxu0 %v1521
        %1543 = vmatpush.bf16.msra.mxu0 %v1520
        %1544 = vmatmul.bf16.gmra.mxu0 %v1472
        %v1545 = vpop.f32.mrf.mxu0
        %v1546 = vadd.f32 0.0, %v1545
        %v1547 = vpop.f32.mrf.mxu0
        %v1548 = vadd.f32 0.0, %v1547
        %1549 = vmatmul.bf16.gmra.mxu0 %v1473
        %v1550 = vpop.f32.mrf.mxu0
        %v1551 = vadd.f32 0.0, %v1550
        %v1552 = vpop.f32.mrf.mxu0
        %v1553 = vadd.f32 0.0, %v1552
        %1554 = vmatmul.bf16.gmra.mxu0 %v1474
        %v1555 = vpop.f32.mrf.mxu0
        %v1556 = vadd.f32 0.0, %v1555
        %v1557 = vpop.f32.mrf.mxu0
        %v1558 = vadd.f32 0.0, %v1557
        %1559 = vmatmul.bf16.gmra.mxu0 %v1475
        %v1560 = vpop.f32.mrf.mxu0
        %v1561 = vadd.f32 0.0, %v1560
        %v1562 = vpop.f32.mrf.mxu0
        %v1563 = vadd.f32 0.0, %v1562
        %1564 = vmatmul.bf16.gmra.mxu0 %v1476
        %v1565 = vpop.f32.mrf.mxu0
        %v1566 = vadd.f32 0.0, %v1565
        %v1567 = vpop.f32.mrf.mxu0
        %v1568 = vadd.f32 0.0, %v1567
        %1569 = vmatmul.bf16.gmra.mxu0 %v1477
        %v1570 = vpop.f32.mrf.mxu0
        %v1571 = vadd.f32 0.0, %v1570
        %v1572 = vpop.f32.mrf.mxu0
        %v1573 = vadd.f32 0.0, %v1572
        %1574 = vmatmul.bf16.gmra.mxu0 %v1478
        %v1575 = vpop.f32.mrf.mxu0
        %v1576 = vadd.f32 0.0, %v1575
        %v1577 = vpop.f32.mrf.mxu0
        %v1578 = vadd.f32 0.0, %v1577
        %1579 = vmatmul.bf16.gmra.mxu0 %v1479
        %v1580 = vpop.f32.mrf.mxu0
        %v1581 = vadd.f32 0.0, %v1580
        %v1582 = vpop.f32.mrf.mxu0
        %v1583 = vadd.f32 0.0, %v1582
        %1584 = vdwg.mxu0
        %v1585 = vpack.c.bf16 %v1546, %v1546
        %v1586 = vpack.c.bf16 %v1548, %v1548
        %v1587 = vpack.c.bf16 %v1551, %v1551
        %v1588 = vpack.c.bf16 %v1553, %v1553
        %v1589 = vpack.c.bf16 %v1556, %v1556
        %v1590 = vpack.c.bf16 %v1558, %v1558
        %v1591 = vpack.c.bf16 %v1561, %v1561
        %v1592 = vpack.c.bf16 %v1563, %v1563
        %v1593 = vpack.c.bf16 %v1566, %v1566
        %v1594 = vpack.c.bf16 %v1568, %v1568
        %v1595 = vpack.c.bf16 %v1571, %v1571
        %v1596 = vpack.c.bf16 %v1573, %v1573
        %v1597 = vpack.c.bf16 %v1576, %v1576
        %v1598 = vpack.c.bf16 %v1578, %v1578
        %v1599 = vpack.c.bf16 %v1581, %v1581
        %v1600 = vpack.c.bf16 %v1583, %v1583
        %1601 = vrot.lane.b32.xlu0 %v1086, 96
        %v1602 = vpop.permute.xlu0 %1601
        %1603 = vrot.lane.b32.xlu0 %v1087, 96
        %v1604 = vpop.permute.xlu0 %1603
        %1605 = vrot.lane.b32.xlu0 %v1088, 96
        %v1606 = vpop.permute.xlu0 %1605
        %1607 = vrot.lane.b32.xlu0 %v1089, 96
        %v1608 = vpop.permute.xlu0 %1607
        %1609 = vrot.lane.b32.xlu0 %v1090, 96
        %v1610 = vpop.permute.xlu0 %1609
        %1611 = vrot.lane.b32.xlu0 %v1091, 96
        %v1612 = vpop.permute.xlu0 %1611
        %1613 = vrot.lane.b32.xlu0 %v1092, 96
        %v1614 = vpop.permute.xlu0 %1613
        %1615 = vrot.lane.b32.xlu0 %v1093, 96
        %v1616 = vpop.permute.xlu0 %1615
        %1617 = vrot.lane.b32.xlu0 %v1126, 96
        %v1618 = vpop.permute.xlu0 %1617
        %1619 = vrot.lane.b32.xlu0 %v1127, 96
        %v1620 = vpop.permute.xlu0 %1619
        %1621 = vrot.lane.b32.xlu0 %v1128, 96
        %v1622 = vpop.permute.xlu0 %1621
        %1623 = vrot.lane.b32.xlu0 %v1129, 96
        %v1624 = vpop.permute.xlu0 %1623
        %1625 = vrot.lane.b32.xlu0 %v1130, 96
        %v1626 = vpop.permute.xlu0 %1625
        %1627 = vrot.lane.b32.xlu0 %v1131, 96
        %v1628 = vpop.permute.xlu0 %1627
        %1629 = vrot.lane.b32.xlu0 %v1132, 96
        %v1630 = vpop.permute.xlu0 %1629
        %1631 = vrot.lane.b32.xlu0 %v1133, 96
        %v1632 = vpop.permute.xlu0 %1631
        %v1634 = vsel %vm1134, %v1602, 0
        %v1637 = vsel %vm1134, %v1604, 0
        %v1640 = vsel %vm1134, %v1606, 0
        %v1643 = vsel %vm1134, %v1608, 0
        %v1646 = vsel %vm1134, %v1610, 0
        %v1649 = vsel %vm1134, %v1612, 0
        %v1652 = vsel %vm1134, %v1614, 0
        %v1655 = vsel %vm1134, %v1616, 0
        %v1658 = vsel %vm1134, %v1618, 0
        %v1661 = vsel %vm1134, %v1620, 0
        %v1664 = vsel %vm1134, %v1622, 0
        %v1667 = vsel %vm1134, %v1624, 0
        %v1670 = vsel %vm1134, %v1626, 0
        %v1673 = vsel %vm1134, %v1628, 0
        %v1676 = vsel %vm1134, %v1630, 0
        %v1679 = vsel %vm1134, %v1632, 0
        %1681 = vmatpush.bf16.xpose.msra.mxu0 %v1679
        %1682 = vmatpush.bf16.xpose.msra.mxu0 %v1676
        %1683 = vmatpush.bf16.xpose.msra.mxu0 %v1673
        %1684 = vmatpush.bf16.xpose.msra.mxu0 %v1670
        %1685 = vmatpush.bf16.xpose.msra.mxu0 %v1667
        %1686 = vmatpush.bf16.xpose.msra.mxu0 %v1664
        %1687 = vmatpush.bf16.xpose.msra.mxu0 %v1661
        %1688 = vmatpush.bf16.xpose.msra.mxu0 %v1658
        %1689 = vmatmul.bf16.gmra.mxu0 %v1634
        %v1690 = vpop.f32.mrf.mxu0
        %v1691 = vadd.f32 0.0, %v1690
        %v1692 = vpop.f32.mrf.mxu0
        %v1693 = vadd.f32 0.0, %v1692
        %1694 = vmatmul.bf16.gmra.mxu0 %v1637
        %v1695 = vpop.f32.mrf.mxu0
        %v1696 = vadd.f32 0.0, %v1695
        %v1697 = vpop.f32.mrf.mxu0
        %v1698 = vadd.f32 0.0, %v1697
        %1699 = vmatmul.bf16.gmra.mxu0 %v1640
        %v1700 = vpop.f32.mrf.mxu0
        %v1701 = vadd.f32 0.0, %v1700
        %v1702 = vpop.f32.mrf.mxu0
        %v1703 = vadd.f32 0.0, %v1702
        %1704 = vmatmul.bf16.gmra.mxu0 %v1643
        %v1705 = vpop.f32.mrf.mxu0
        %v1706 = vadd.f32 0.0, %v1705
        %v1707 = vpop.f32.mrf.mxu0
        %v1708 = vadd.f32 0.0, %v1707
        %1709 = vmatmul.bf16.gmra.mxu0 %v1646
        %v1710 = vpop.f32.mrf.mxu0
        %v1711 = vadd.f32 0.0, %v1710
        %v1712 = vpop.f32.mrf.mxu0
        %v1713 = vadd.f32 0.0, %v1712
        %1714 = vmatmul.bf16.gmra.mxu0 %v1649
        %v1715 = vpop.f32.mrf.mxu0
        %v1716 = vadd.f32 0.0, %v1715
        %v1717 = vpop.f32.mrf.mxu0
        %v1718 = vadd.f32 0.0, %v1717
        %1719 = vmatmul.bf16.gmra.mxu0 %v1652
        %v1720 = vpop.f32.mrf.mxu0
        %v1721 = vadd.f32 0.0, %v1720
        %v1722 = vpop.f32.mrf.mxu0
        %v1723 = vadd.f32 0.0, %v1722
        %1724 = vmatmul.bf16.gmra.mxu0 %v1655
        %v1725 = vpop.f32.mrf.mxu0
        %v1726 = vadd.f32 0.0, %v1725
        %v1727 = vpop.f32.mrf.mxu0
        %v1728 = vadd.f32 0.0, %v1727
        %1729 = vdwg.mxu0
        %1730 = vmax.xlane.f32.xlu0 %v1691
        %v1731 = vpop.xlane.xlu0 %1730
        %1732 = vmax.xlane.f32.xlu0 %v1693
        %v1733 = vpop.xlane.xlu0 %1732
        %1734 = vmax.xlane.f32.xlu0 %v1696
        %v1735 = vpop.xlane.xlu0 %1734
        %1736 = vmax.xlane.f32.xlu0 %v1698
        %v1737 = vpop.xlane.xlu0 %1736
        %1738 = vmax.xlane.f32.xlu0 %v1701
        %v1739 = vpop.xlane.xlu0 %1738
        %1740 = vmax.xlane.f32.xlu0 %v1703
        %v1741 = vpop.xlane.xlu0 %1740
        %1742 = vmax.xlane.f32.xlu0 %v1706
        %v1743 = vpop.xlane.xlu0 %1742
        %1744 = vmax.xlane.f32.xlu0 %v1708
        %v1745 = vpop.xlane.xlu0 %1744
        %1746 = vmax.xlane.f32.xlu0 %v1711
        %v1747 = vpop.xlane.xlu0 %1746
        %1748 = vmax.xlane.f32.xlu0 %v1713
        %v1749 = vpop.xlane.xlu0 %1748
        %1750 = vmax.xlane.f32.xlu0 %v1716
        %v1751 = vpop.xlane.xlu0 %1750
        %1752 = vmax.xlane.f32.xlu0 %v1718
        %v1753 = vpop.xlane.xlu0 %1752
        %1754 = vmax.xlane.f32.xlu0 %v1721
        %v1755 = vpop.xlane.xlu0 %1754
        %1756 = vmax.xlane.f32.xlu0 %v1723
        %v1757 = vpop.xlane.xlu0 %1756
        %1758 = vmax.xlane.f32.xlu0 %v1726
        %v1759 = vpop.xlane.xlu0 %1758
        %1760 = vmax.xlane.f32.xlu0 %v1728
        %v1761 = vpop.xlane.xlu0 %1760
        %v1762 = vsub.f32 %v1691, %v1731
        %v1763 = vsub.f32 %v1693, %v1733
        %v1764 = vsub.f32 %v1696, %v1735
        %v1765 = vsub.f32 %v1698, %v1737
        %v1766 = vsub.f32 %v1701, %v1739
        %v1767 = vsub.f32 %v1703, %v1741
        %v1768 = vsub.f32 %v1706, %v1743
        %v1769 = vsub.f32 %v1708, %v1745
        %v1770 = vsub.f32 %v1711, %v1747
        %v1771 = vsub.f32 %v1713, %v1749
        %v1772 = vsub.f32 %v1716, %v1751
        %v1773 = vsub.f32 %v1718, %v1753
        %v1774 = vsub.f32 %v1721, %v1755
        %v1775 = vsub.f32 %v1723, %v1757
        %v1776 = vsub.f32 %v1726, %v1759
        %v1777 = vsub.f32 %v1728, %v1761
        %v1778 = vmul.f32 %v1762, 1.442695
        %v1779 = vpow.pop %v1778
        %v1780 = vmul.f32 %v1763, 1.442695
        %v1781 = vpow.pop %v1780
        %v1782 = vmul.f32 %v1764, 1.442695
        %v1783 = vpow.pop %v1782
        %v1784 = vmul.f32 %v1765, 1.442695
        %v1785 = vpow.pop %v1784
        %v1786 = vmul.f32 %v1766, 1.442695
        %v1787 = vpow.pop %v1786
        %v1788 = vmul.f32 %v1767, 1.442695
        %v1789 = vpow.pop %v1788
        %v1790 = vmul.f32 %v1768, 1.442695
        %v1791 = vpow.pop %v1790
        %v1792 = vmul.f32 %v1769, 1.442695
        %v1793 = vpow.pop %v1792
        %v1794 = vmul.f32 %v1770, 1.442695
        %v1795 = vpow.pop %v1794
        %v1796 = vmul.f32 %v1771, 1.442695
        %v1797 = vpow.pop %v1796
        %v1798 = vmul.f32 %v1772, 1.442695
        %v1799 = vpow.pop %v1798
        %v1800 = vmul.f32 %v1773, 1.442695
        %v1801 = vpow.pop %v1800
        %v1802 = vmul.f32 %v1774, 1.442695
        %v1803 = vpow.pop %v1802
        %v1804 = vmul.f32 %v1775, 1.442695
        %v1805 = vpow.pop %v1804
        %v1806 = vmul.f32 %v1776, 1.442695
        %v1807 = vpow.pop %v1806
        %v1808 = vmul.f32 %v1777, 1.442695
        %v1809 = vpow.pop %v1808
        %1810 = vadd.xlane.f32.xlu0 %v1779
        %v1811 = vpop.xlane.xlu0 %1810
        %1812 = vadd.xlane.f32.xlu0 %v1781
        %v1813 = vpop.xlane.xlu0 %1812
        %1814 = vadd.xlane.f32.xlu0 %v1783
        %v1815 = vpop.xlane.xlu0 %1814
        %1816 = vadd.xlane.f32.xlu0 %v1785
        %v1817 = vpop.xlane.xlu0 %1816
        %1818 = vadd.xlane.f32.xlu0 %v1787
        %v1819 = vpop.xlane.xlu0 %1818
        %1820 = vadd.xlane.f32.xlu0 %v1789
        %v1821 = vpop.xlane.xlu0 %1820
        %1822 = vadd.xlane.f32.xlu0 %v1791
        %v1823 = vpop.xlane.xlu0 %1822
        %1824 = vadd.xlane.f32.xlu0 %v1793
        %v1825 = vpop.xlane.xlu0 %1824
        %1826 = vadd.xlane.f32.xlu0 %v1795
        %v1827 = vpop.xlane.xlu0 %1826
        %1828 = vadd.xlane.f32.xlu0 %v1797
        %v1829 = vpop.xlane.xlu0 %1828
        %1830 = vadd.xlane.f32.xlu0 %v1799
        %v1831 = vpop.xlane.xlu0 %1830
        %1832 = vadd.xlane.f32.xlu0 %v1801
        %v1833 = vpop.xlane.xlu0 %1832
        %1834 = vadd.xlane.f32.xlu0 %v1803
        %v1835 = vpop.xlane.xlu0 %1834
        %1836 = vadd.xlane.f32.xlu0 %v1805
        %v1837 = vpop.xlane.xlu0 %1836
        %1838 = vadd.xlane.f32.xlu0 %v1807
        %v1839 = vpop.xlane.xlu0 %1838
        %1840 = vadd.xlane.f32.xlu0 %v1809
        %v1841 = vpop.xlane.xlu0 %1840
        %v1842 = vrcp.pop %v1811
        %v1843 = vrcp.pop %v1813
        %v1844 = vrcp.pop %v1815
        %v1845 = vrcp.pop %v1817
        %v1846 = vrcp.pop %v1819
        %v1847 = vrcp.pop %v1821
        %v1848 = vrcp.pop %v1823
        %v1849 = vrcp.pop %v1825
        %v1850 = vrcp.pop %v1827
        %v1851 = vrcp.pop %v1829
        %v1852 = vrcp.pop %v1831
        %v1853 = vrcp.pop %v1833
        %v1854 = vrcp.pop %v1835
        %v1855 = vrcp.pop %v1837
        %v1856 = vrcp.pop %v1839
        %v1857 = vrcp.pop %v1841
        %v1858 = vmul.f32 %v1811, %v1842
        %v1859 = vmul.f32 %v1813, %v1843
        %v1860 = vmul.f32 %v1815, %v1844
        %v1861 = vmul.f32 %v1817, %v1845
        %v1862 = vmul.f32 %v1819, %v1846
        %v1863 = vmul.f32 %v1821, %v1847
        %v1864 = vmul.f32 %v1823, %v1848
        %v1865 = vmul.f32 %v1825, %v1849
        %v1866 = vmul.f32 %v1827, %v1850
        %v1867 = vmul.f32 %v1829, %v1851
        %v1868 = vmul.f32 %v1831, %v1852
        %v1869 = vmul.f32 %v1833, %v1853
        %v1870 = vmul.f32 %v1835, %v1854
        %v1871 = vmul.f32 %v1837, %v1855
        %v1872 = vmul.f32 %v1839, %v1856
        %v1873 = vmul.f32 %v1841, %v1857
        %v1874 = vsub.f32 2.0, %v1858
        %v1875 = vsub.f32 2.0, %v1859
        %v1876 = vsub.f32 2.0, %v1860
        %v1877 = vsub.f32 2.0, %v1861
        %v1878 = vsub.f32 2.0, %v1862
        %v1879 = vsub.f32 2.0, %v1863
        %v1880 = vsub.f32 2.0, %v1864
        %v1881 = vsub.f32 2.0, %v1865
        %v1882 = vsub.f32 2.0, %v1866
        %v1883 = vsub.f32 2.0, %v1867
        %v1884 = vsub.f32 2.0, %v1868
        %v1885 = vsub.f32 2.0, %v1869
        %v1886 = vsub.f32 2.0, %v1870
        %v1887 = vsub.f32 2.0, %v1871
        %v1888 = vsub.f32 2.0, %v1872
        %v1889 = vsub.f32 2.0, %v1873
        %v1890 = vmul.f32 %v1842, %v1874
        %v1891 = vmul.f32 %v1843, %v1875
        %v1892 = vmul.f32 %v1844, %v1876
        %v1893 = vmul.f32 %v1845, %v1877
        %v1894 = vmul.f32 %v1846, %v1878
        %v1895 = vmul.f32 %v1847, %v1879
        %v1896 = vmul.f32 %v1848, %v1880
        %v1897 = vmul.f32 %v1849, %v1881
        %v1898 = vmul.f32 %v1850, %v1882
        %v1899 = vmul.f32 %v1851, %v1883
        %v1900 = vmul.f32 %v1852, %v1884
        %v1901 = vmul.f32 %v1853, %v1885
        %v1902 = vmul.f32 %v1854, %v1886
        %v1903 = vmul.f32 %v1855, %v1887
        %v1904 = vmul.f32 %v1856, %v1888
        %v1905 = vmul.f32 %v1857, %v1889
        %v1906 = vmul.f32 %v1779, %v1890
        %v1907 = vmul.f32 %v1781, %v1891
        %v1908 = vmul.f32 %v1783, %v1892
        %v1909 = vmul.f32 %v1785, %v1893
        %v1910 = vmul.f32 %v1787, %v1894
        %v1911 = vmul.f32 %v1789, %v1895
        %v1912 = vmul.f32 %v1791, %v1896
        %v1913 = vmul.f32 %v1793, %v1897
        %v1914 = vmul.f32 %v1795, %v1898
        %v1915 = vmul.f32 %v1797, %v1899
        %v1916 = vmul.f32 %v1799, %v1900
        %v1917 = vmul.f32 %v1801, %v1901
        %v1918 = vmul.f32 %v1803, %v1902
        %v1919 = vmul.f32 %v1805, %v1903
        %v1920 = vmul.f32 %v1807, %v1904
        %v1921 = vmul.f32 %v1809, %v1905
        %v1922 = vpack.c.bf16 %v1906, %v1906
        %v1923 = vpack.c.bf16 %v1907, %v1907
        %v1924 = vpack.c.bf16 %v1908, %v1908
        %v1925 = vpack.c.bf16 %v1909, %v1909
        %v1926 = vpack.c.bf16 %v1910, %v1910
        %v1927 = vpack.c.bf16 %v1911, %v1911
        %v1928 = vpack.c.bf16 %v1912, %v1912
        %v1929 = vpack.c.bf16 %v1913, %v1913
        %v1930 = vpack.c.bf16 %v1914, %v1914
        %v1931 = vpack.c.bf16 %v1915, %v1915
        %v1932 = vpack.c.bf16 %v1916, %v1916
        %v1933 = vpack.c.bf16 %v1917, %v1917
        %v1934 = vpack.c.bf16 %v1918, %v1918
        %v1935 = vpack.c.bf16 %v1919, %v1919
        %v1936 = vpack.c.bf16 %v1920, %v1920
        %v1937 = vpack.c.bf16 %v1921, %v1921
        %v1954 = vunpack.c.l.b16 %v1922
        %v1955 = vunpack.c.l.b16 %v1923
        %v1956 = vunpack.c.l.b16 %v1924
        %v1957 = vunpack.c.l.b16 %v1925
        %v1958 = vunpack.c.l.b16 %v1926
        %v1959 = vunpack.c.l.b16 %v1927
        %v1960 = vunpack.c.l.b16 %v1928
        %v1961 = vunpack.c.l.b16 %v1929
        %v1962 = vunpack.c.l.b16 %v1930
        %v1963 = vunpack.c.l.b16 %v1931
        %v1964 = vunpack.c.l.b16 %v1932
        %v1965 = vunpack.c.l.b16 %v1933
        %v1966 = vunpack.c.l.b16 %v1934
        %v1967 = vunpack.c.l.b16 %v1935
        %v1968 = vunpack.c.l.b16 %v1936
        %v1969 = vunpack.c.l.b16 %v1937
        %v1970 = vpack.c.b16 %v1955, %v1954
        %v1971 = vpack.c.b16 %v1957, %v1956
        %v1972 = vpack.c.b16 %v1959, %v1958
        %v1973 = vpack.c.b16 %v1961, %v1960
        %v1974 = vpack.c.b16 %v1963, %v1962
        %v1975 = vpack.c.b16 %v1965, %v1964
        %v1976 = vpack.c.b16 %v1967, %v1966
        %v1977 = vpack.c.b16 %v1969, %v1968
        %1986 = vrot.lane.b32.xlu0 %v1520, 96
        %v1987 = vpop.permute.xlu0 %1986
        %1988 = vrot.lane.b32.xlu0 %v1521, 96
        %v1989 = vpop.permute.xlu0 %1988
        %1990 = vrot.lane.b32.xlu0 %v1522, 96
        %v1991 = vpop.permute.xlu0 %1990
        %1992 = vrot.lane.b32.xlu0 %v1523, 96
        %v1993 = vpop.permute.xlu0 %1992
        %1994 = vrot.lane.b32.xlu0 %v1524, 96
        %v1995 = vpop.permute.xlu0 %1994
        %1996 = vrot.lane.b32.xlu0 %v1525, 96
        %v1997 = vpop.permute.xlu0 %1996
        %1998 = vrot.lane.b32.xlu0 %v1526, 96
        %v1999 = vpop.permute.xlu0 %1998
        %2000 = vrot.lane.b32.xlu0 %v1527, 96
        %v2001 = vpop.permute.xlu0 %2000
        %2010 = vmatpush.bf16.msra.mxu0 %v2001
        %2011 = vmatpush.bf16.msra.mxu0 %v1999
        %2012 = vmatpush.bf16.msra.mxu0 %v1997
        %2013 = vmatpush.bf16.msra.mxu0 %v1995
        %2014 = vmatpush.bf16.msra.mxu0 %v1993
        %2015 = vmatpush.bf16.msra.mxu0 %v1991
        %2016 = vmatpush.bf16.msra.mxu0 %v1989
        %2017 = vmatpush.bf16.msra.mxu0 %v1987
        %2018 = vmatmul.bf16.gmra.mxu0 %v1970
        %v2019 = vpop.f32.mrf.mxu0
        %v2020 = vadd.f32 0.0, %v2019
        %v2021 = vpop.f32.mrf.mxu0
        %v2022 = vadd.f32 0.0, %v2021
        %2023 = vmatmul.bf16.gmra.mxu0 %v1971
        %v2024 = vpop.f32.mrf.mxu0
        %v2025 = vadd.f32 0.0, %v2024
        %v2026 = vpop.f32.mrf.mxu0
        %v2027 = vadd.f32 0.0, %v2026
        %2028 = vmatmul.bf16.gmra.mxu0 %v1972
        %v2029 = vpop.f32.mrf.mxu0
        %v2030 = vadd.f32 0.0, %v2029
        %v2031 = vpop.f32.mrf.mxu0
        %v2032 = vadd.f32 0.0, %v2031
        %2033 = vmatmul.bf16.gmra.mxu0 %v1973
        %v2034 = vpop.f32.mrf.mxu0
        %v2035 = vadd.f32 0.0, %v2034
        %v2036 = vpop.f32.mrf.mxu0
        %v2037 = vadd.f32 0.0, %v2036
        %2038 = vmatmul.bf16.gmra.mxu0 %v1974
        %v2039 = vpop.f32.mrf.mxu0
        %v2040 = vadd.f32 0.0, %v2039
        %v2041 = vpop.f32.mrf.mxu0
        %v2042 = vadd.f32 0.0, %v2041
        %2043 = vmatmul.bf16.gmra.mxu0 %v1975
        %v2044 = vpop.f32.mrf.mxu0
        %v2045 = vadd.f32 0.0, %v2044
        %v2046 = vpop.f32.mrf.mxu0
        %v2047 = vadd.f32 0.0, %v2046
        %2048 = vmatmul.bf16.gmra.mxu0 %v1976
        %v2049 = vpop.f32.mrf.mxu0
        %v2050 = vadd.f32 0.0, %v2049
        %v2051 = vpop.f32.mrf.mxu0
        %v2052 = vadd.f32 0.0, %v2051
        %2053 = vmatmul.bf16.gmra.mxu0 %v1977
        %v2054 = vpop.f32.mrf.mxu0
        %v2055 = vadd.f32 0.0, %v2054
        %v2056 = vpop.f32.mrf.mxu0
        %v2057 = vadd.f32 0.0, %v2056
        %2058 = vdwg.mxu0
        %v2059 = vpack.c.bf16 %v2020, %v2020
        %v2060 = vpack.c.bf16 %v2022, %v2022
        %v2061 = vpack.c.bf16 %v2025, %v2025
        %v2062 = vpack.c.bf16 %v2027, %v2027
        %v2063 = vpack.c.bf16 %v2030, %v2030
        %v2064 = vpack.c.bf16 %v2032, %v2032
        %v2065 = vpack.c.bf16 %v2035, %v2035
        %v2066 = vpack.c.bf16 %v2037, %v2037
        %v2067 = vpack.c.bf16 %v2040, %v2040
        %v2068 = vpack.c.bf16 %v2042, %v2042
        %v2069 = vpack.c.bf16 %v2045, %v2045
        %v2070 = vpack.c.bf16 %v2047, %v2047
        %v2071 = vpack.c.bf16 %v2050, %v2050
        %v2072 = vpack.c.bf16 %v2052, %v2052
        %v2073 = vpack.c.bf16 %v2055, %v2055
        %v2074 = vpack.c.bf16 %v2057, %v2057
        %2075 = vrot.lane.b32.xlu0 %v1086, 64
        %v2076 = vpop.permute.xlu0 %2075
        %2077 = vrot.lane.b32.xlu0 %v1087, 64
        %v2078 = vpop.permute.xlu0 %2077
        %2079 = vrot.lane.b32.xlu0 %v1088, 64
        %v2080 = vpop.permute.xlu0 %2079
        %2081 = vrot.lane.b32.xlu0 %v1089, 64
        %v2082 = vpop.permute.xlu0 %2081
        %2083 = vrot.lane.b32.xlu0 %v1090, 64
        %v2084 = vpop.permute.xlu0 %2083
        %2085 = vrot.lane.b32.xlu0 %v1091, 64
        %v2086 = vpop.permute.xlu0 %2085
        %2087 = vrot.lane.b32.xlu0 %v1092, 64
        %v2088 = vpop.permute.xlu0 %2087
        %2089 = vrot.lane.b32.xlu0 %v1093, 64
        %v2090 = vpop.permute.xlu0 %2089
        %2091 = vrot.lane.b32.xlu0 %v1126, 64
        %v2092 = vpop.permute.xlu0 %2091
        %2093 = vrot.lane.b32.xlu0 %v1127, 64
        %v2094 = vpop.permute.xlu0 %2093
        %2095 = vrot.lane.b32.xlu0 %v1128, 64
        %v2096 = vpop.permute.xlu0 %2095
        %2097 = vrot.lane.b32.xlu0 %v1129, 64
        %v2098 = vpop.permute.xlu0 %2097
        %2099 = vrot.lane.b32.xlu0 %v1130, 64
        %v2100 = vpop.permute.xlu0 %2099
        %2101 = vrot.lane.b32.xlu0 %v1131, 64
        %v2102 = vpop.permute.xlu0 %2101
        %2103 = vrot.lane.b32.xlu0 %v1132, 64
        %v2104 = vpop.permute.xlu0 %2103
        %2105 = vrot.lane.b32.xlu0 %v1133, 64
        %v2106 = vpop.permute.xlu0 %2105
        %v2108 = vsel %vm1134, %v2076, 0
        %v2111 = vsel %vm1134, %v2078, 0
        %v2114 = vsel %vm1134, %v2080, 0
        %v2117 = vsel %vm1134, %v2082, 0
        %v2120 = vsel %vm1134, %v2084, 0
        %v2123 = vsel %vm1134, %v2086, 0
        %v2126 = vsel %vm1134, %v2088, 0
        %v2129 = vsel %vm1134, %v2090, 0
        %v2132 = vsel %vm1134, %v2092, 0
        %v2135 = vsel %vm1134, %v2094, 0
        %v2138 = vsel %vm1134, %v2096, 0
        %v2141 = vsel %vm1134, %v2098, 0
        %v2144 = vsel %vm1134, %v2100, 0
        %v2147 = vsel %vm1134, %v2102, 0
        %v2150 = vsel %vm1134, %v2104, 0
        %v2153 = vsel %vm1134, %v2106, 0
        %2155 = vmatpush.bf16.xpose.msra.mxu0 %v2153
        %2156 = vmatpush.bf16.xpose.msra.mxu0 %v2150
        %2157 = vmatpush.bf16.xpose.msra.mxu0 %v2147
        %2158 = vmatpush.bf16.xpose.msra.mxu0 %v2144
        %2159 = vmatpush.bf16.xpose.msra.mxu0 %v2141
        %2160 = vmatpush.bf16.xpose.msra.mxu0 %v2138
        %2161 = vmatpush.bf16.xpose.msra.mxu0 %v2135
        %2162 = vmatpush.bf16.xpose.msra.mxu0 %v2132
        %2163 = vmatmul.bf16.gmra.mxu0 %v2108
        %v2164 = vpop.f32.mrf.mxu0
        %v2165 = vadd.f32 0.0, %v2164
        %v2166 = vpop.f32.mrf.mxu0
        %v2167 = vadd.f32 0.0, %v2166
        %2168 = vmatmul.bf16.gmra.mxu0 %v2111
        %v2169 = vpop.f32.mrf.mxu0
        %v2170 = vadd.f32 0.0, %v2169
        %v2171 = vpop.f32.mrf.mxu0
        %v2172 = vadd.f32 0.0, %v2171
        %2173 = vmatmul.bf16.gmra.mxu0 %v2114
        %v2174 = vpop.f32.mrf.mxu0
        %v2175 = vadd.f32 0.0, %v2174
        %v2176 = vpop.f32.mrf.mxu0
        %v2177 = vadd.f32 0.0, %v2176
        %2178 = vmatmul.bf16.gmra.mxu0 %v2117
        %v2179 = vpop.f32.mrf.mxu0
        %v2180 = vadd.f32 0.0, %v2179
        %v2181 = vpop.f32.mrf.mxu0
        %v2182 = vadd.f32 0.0, %v2181
        %2183 = vmatmul.bf16.gmra.mxu0 %v2120
        %v2184 = vpop.f32.mrf.mxu0
        %v2185 = vadd.f32 0.0, %v2184
        %v2186 = vpop.f32.mrf.mxu0
        %v2187 = vadd.f32 0.0, %v2186
        %2188 = vmatmul.bf16.gmra.mxu0 %v2123
        %v2189 = vpop.f32.mrf.mxu0
        %v2190 = vadd.f32 0.0, %v2189
        %v2191 = vpop.f32.mrf.mxu0
        %v2192 = vadd.f32 0.0, %v2191
        %2193 = vmatmul.bf16.gmra.mxu0 %v2126
        %v2194 = vpop.f32.mrf.mxu0
        %v2195 = vadd.f32 0.0, %v2194
        %v2196 = vpop.f32.mrf.mxu0
        %v2197 = vadd.f32 0.0, %v2196
        %2198 = vmatmul.bf16.gmra.mxu0 %v2129
        %v2199 = vpop.f32.mrf.mxu0
        %v2200 = vadd.f32 0.0, %v2199
        %v2201 = vpop.f32.mrf.mxu0
        %v2202 = vadd.f32 0.0, %v2201
        %2203 = vdwg.mxu0
        %2204 = vmax.xlane.f32.xlu0 %v2165
        %v2205 = vpop.xlane.xlu0 %2204
        %2206 = vmax.xlane.f32.xlu0 %v2167
        %v2207 = vpop.xlane.xlu0 %2206
        %2208 = vmax.xlane.f32.xlu0 %v2170
        %v2209 = vpop.xlane.xlu0 %2208
        %2210 = vmax.xlane.f32.xlu0 %v2172
        %v2211 = vpop.xlane.xlu0 %2210
        %2212 = vmax.xlane.f32.xlu0 %v2175
        %v2213 = vpop.xlane.xlu0 %2212
        %2214 = vmax.xlane.f32.xlu0 %v2177
        %v2215 = vpop.xlane.xlu0 %2214
        %2216 = vmax.xlane.f32.xlu0 %v2180
        %v2217 = vpop.xlane.xlu0 %2216
        %2218 = vmax.xlane.f32.xlu0 %v2182
        %v2219 = vpop.xlane.xlu0 %2218
        %2220 = vmax.xlane.f32.xlu0 %v2185
        %v2221 = vpop.xlane.xlu0 %2220
        %2222 = vmax.xlane.f32.xlu0 %v2187
        %v2223 = vpop.xlane.xlu0 %2222
        %2224 = vmax.xlane.f32.xlu0 %v2190
        %v2225 = vpop.xlane.xlu0 %2224
        %2226 = vmax.xlane.f32.xlu0 %v2192
        %v2227 = vpop.xlane.xlu0 %2226
        %2228 = vmax.xlane.f32.xlu0 %v2195
        %v2229 = vpop.xlane.xlu0 %2228
        %2230 = vmax.xlane.f32.xlu0 %v2197
        %v2231 = vpop.xlane.xlu0 %2230
        %2232 = vmax.xlane.f32.xlu0 %v2200
        %v2233 = vpop.xlane.xlu0 %2232
        %2234 = vmax.xlane.f32.xlu0 %v2202
        %v2235 = vpop.xlane.xlu0 %2234
        %v2236 = vsub.f32 %v2165, %v2205
        %v2237 = vsub.f32 %v2167, %v2207
        %v2238 = vsub.f32 %v2170, %v2209
        %v2239 = vsub.f32 %v2172, %v2211
        %v2240 = vsub.f32 %v2175, %v2213
        %v2241 = vsub.f32 %v2177, %v2215
        %v2242 = vsub.f32 %v2180, %v2217
        %v2243 = vsub.f32 %v2182, %v2219
        %v2244 = vsub.f32 %v2185, %v2221
        %v2245 = vsub.f32 %v2187, %v2223
        %v2246 = vsub.f32 %v2190, %v2225
        %v2247 = vsub.f32 %v2192, %v2227
        %v2248 = vsub.f32 %v2195, %v2229
        %v2249 = vsub.f32 %v2197, %v2231
        %v2250 = vsub.f32 %v2200, %v2233
        %v2251 = vsub.f32 %v2202, %v2235
        %v2252 = vmul.f32 %v2236, 1.442695
        %v2253 = vpow.pop %v2252
        %v2254 = vmul.f32 %v2237, 1.442695
        %v2255 = vpow.pop %v2254
        %v2256 = vmul.f32 %v2238, 1.442695
        %v2257 = vpow.pop %v2256
        %v2258 = vmul.f32 %v2239, 1.442695
        %v2259 = vpow.pop %v2258
        %v2260 = vmul.f32 %v2240, 1.442695
        %v2261 = vpow.pop %v2260
        %v2262 = vmul.f32 %v2241, 1.442695
        %v2263 = vpow.pop %v2262
        %v2264 = vmul.f32 %v2242, 1.442695
        %v2265 = vpow.pop %v2264
        %v2266 = vmul.f32 %v2243, 1.442695
        %v2267 = vpow.pop %v2266
        %v2268 = vmul.f32 %v2244, 1.442695
        %v2269 = vpow.pop %v2268
        %v2270 = vmul.f32 %v2245, 1.442695
        %v2271 = vpow.pop %v2270
        %v2272 = vmul.f32 %v2246, 1.442695
        %v2273 = vpow.pop %v2272
        %v2274 = vmul.f32 %v2247, 1.442695
        %v2275 = vpow.pop %v2274
        %v2276 = vmul.f32 %v2248, 1.442695
        %v2277 = vpow.pop %v2276
        %v2278 = vmul.f32 %v2249, 1.442695
        %v2279 = vpow.pop %v2278
        %v2280 = vmul.f32 %v2250, 1.442695
        %v2281 = vpow.pop %v2280
        %v2282 = vmul.f32 %v2251, 1.442695
        %v2283 = vpow.pop %v2282
        %2284 = vadd.xlane.f32.xlu0 %v2253
        %v2285 = vpop.xlane.xlu0 %2284
        %2286 = vadd.xlane.f32.xlu0 %v2255
        %v2287 = vpop.xlane.xlu0 %2286
        %2288 = vadd.xlane.f32.xlu0 %v2257
        %v2289 = vpop.xlane.xlu0 %2288
        %2290 = vadd.xlane.f32.xlu0 %v2259
        %v2291 = vpop.xlane.xlu0 %2290
        %2292 = vadd.xlane.f32.xlu0 %v2261
        %v2293 = vpop.xlane.xlu0 %2292
        %2294 = vadd.xlane.f32.xlu0 %v2263
        %v2295 = vpop.xlane.xlu0 %2294
        %2296 = vadd.xlane.f32.xlu0 %v2265
        %v2297 = vpop.xlane.xlu0 %2296
        %2298 = vadd.xlane.f32.xlu0 %v2267
        %v2299 = vpop.xlane.xlu0 %2298
        %2300 = vadd.xlane.f32.xlu0 %v2269
        %v2301 = vpop.xlane.xlu0 %2300
        %2302 = vadd.xlane.f32.xlu0 %v2271
        %v2303 = vpop.xlane.xlu0 %2302
        %2304 = vadd.xlane.f32.xlu0 %v2273
        %v2305 = vpop.xlane.xlu0 %2304
        %2306 = vadd.xlane.f32.xlu0 %v2275
        %v2307 = vpop.xlane.xlu0 %2306
        %2308 = vadd.xlane.f32.xlu0 %v2277
        %v2309 = vpop.xlane.xlu0 %2308
        %2310 = vadd.xlane.f32.xlu0 %v2279
        %v2311 = vpop.xlane.xlu0 %2310
        %2312 = vadd.xlane.f32.xlu0 %v2281
        %v2313 = vpop.xlane.xlu0 %2312
        %2314 = vadd.xlane.f32.xlu0 %v2283
        %v2315 = vpop.xlane.xlu0 %2314
        %v2316 = vrcp.pop %v2285
        %v2317 = vrcp.pop %v2287
        %v2318 = vrcp.pop %v2289
        %v2319 = vrcp.pop %v2291
        %v2320 = vrcp.pop %v2293
        %v2321 = vrcp.pop %v2295
        %v2322 = vrcp.pop %v2297
        %v2323 = vrcp.pop %v2299
        %v2324 = vrcp.pop %v2301
        %v2325 = vrcp.pop %v2303
        %v2326 = vrcp.pop %v2305
        %v2327 = vrcp.pop %v2307
        %v2328 = vrcp.pop %v2309
        %v2329 = vrcp.pop %v2311
        %v2330 = vrcp.pop %v2313
        %v2331 = vrcp.pop %v2315
        %v2332 = vmul.f32 %v2285, %v2316
        %v2333 = vmul.f32 %v2287, %v2317
        %v2334 = vmul.f32 %v2289, %v2318
        %v2335 = vmul.f32 %v2291, %v2319
        %v2336 = vmul.f32 %v2293, %v2320
        %v2337 = vmul.f32 %v2295, %v2321
        %v2338 = vmul.f32 %v2297, %v2322
        %v2339 = vmul.f32 %v2299, %v2323
        %v2340 = vmul.f32 %v2301, %v2324
        %v2341 = vmul.f32 %v2303, %v2325
        %v2342 = vmul.f32 %v2305, %v2326
        %v2343 = vmul.f32 %v2307, %v2327
        %v2344 = vmul.f32 %v2309, %v2328
        %v2345 = vmul.f32 %v2311, %v2329
        %v2346 = vmul.f32 %v2313, %v2330
        %v2347 = vmul.f32 %v2315, %v2331
        %v2348 = vsub.f32 2.0, %v2332
        %v2349 = vsub.f32 2.0, %v2333
        %v2350 = vsub.f32 2.0, %v2334
        %v2351 = vsub.f32 2.0, %v2335
        %v2352 = vsub.f32 2.0, %v2336
        %v2353 = vsub.f32 2.0, %v2337
        %v2354 = vsub.f32 2.0, %v2338
        %v2355 = vsub.f32 2.0, %v2339
        %v2356 = vsub.f32 2.0, %v2340
        %v2357 = vsub.f32 2.0, %v2341
        %v2358 = vsub.f32 2.0, %v2342
        %v2359 = vsub.f32 2.0, %v2343
        %v2360 = vsub.f32 2.0, %v2344
        %v2361 = vsub.f32 2.0, %v2345
        %v2362 = vsub.f32 2.0, %v2346
        %v2363 = vsub.f32 2.0, %v2347
        %v2364 = vmul.f32 %v2316, %v2348
        %v2365 = vmul.f32 %v2317, %v2349
        %v2366 = vmul.f32 %v2318, %v2350
        %v2367 = vmul.f32 %v2319, %v2351
        %v2368 = vmul.f32 %v2320, %v2352
        %v2369 = vmul.f32 %v2321, %v2353
        %v2370 = vmul.f32 %v2322, %v2354
        %v2371 = vmul.f32 %v2323, %v2355
        %v2372 = vmul.f32 %v2324, %v2356
        %v2373 = vmul.f32 %v2325, %v2357
        %v2374 = vmul.f32 %v2326, %v2358
        %v2375 = vmul.f32 %v2327, %v2359
        %v2376 = vmul.f32 %v2328, %v2360
        %v2377 = vmul.f32 %v2329, %v2361
        %v2378 = vmul.f32 %v2330, %v2362
        %v2379 = vmul.f32 %v2331, %v2363
        %v2380 = vmul.f32 %v2253, %v2364
        %v2381 = vmul.f32 %v2255, %v2365
        %v2382 = vmul.f32 %v2257, %v2366
        %v2383 = vmul.f32 %v2259, %v2367
        %v2384 = vmul.f32 %v2261, %v2368
        %v2385 = vmul.f32 %v2263, %v2369
        %v2386 = vmul.f32 %v2265, %v2370
        %v2387 = vmul.f32 %v2267, %v2371
        %v2388 = vmul.f32 %v2269, %v2372
        %v2389 = vmul.f32 %v2271, %v2373
        %v2390 = vmul.f32 %v2273, %v2374
        %v2391 = vmul.f32 %v2275, %v2375
        %v2392 = vmul.f32 %v2277, %v2376
        %v2393 = vmul.f32 %v2279, %v2377
        %v2394 = vmul.f32 %v2281, %v2378
        %v2395 = vmul.f32 %v2283, %v2379
        %v2396 = vpack.c.bf16 %v2380, %v2380
        %v2397 = vpack.c.bf16 %v2381, %v2381
        %v2398 = vpack.c.bf16 %v2382, %v2382
        %v2399 = vpack.c.bf16 %v2383, %v2383
        %v2400 = vpack.c.bf16 %v2384, %v2384
        %v2401 = vpack.c.bf16 %v2385, %v2385
        %v2402 = vpack.c.bf16 %v2386, %v2386
        %v2403 = vpack.c.bf16 %v2387, %v2387
        %v2404 = vpack.c.bf16 %v2388, %v2388
        %v2405 = vpack.c.bf16 %v2389, %v2389
        %v2406 = vpack.c.bf16 %v2390, %v2390
        %v2407 = vpack.c.bf16 %v2391, %v2391
        %v2408 = vpack.c.bf16 %v2392, %v2392
        %v2409 = vpack.c.bf16 %v2393, %v2393
        %v2410 = vpack.c.bf16 %v2394, %v2394
        %v2411 = vpack.c.bf16 %v2395, %v2395
        %v2428 = vunpack.c.l.b16 %v2396
        %v2429 = vunpack.c.l.b16 %v2397
        %v2430 = vunpack.c.l.b16 %v2398
        %v2431 = vunpack.c.l.b16 %v2399
        %v2432 = vunpack.c.l.b16 %v2400
        %v2433 = vunpack.c.l.b16 %v2401
        %v2434 = vunpack.c.l.b16 %v2402
        %v2435 = vunpack.c.l.b16 %v2403
        %v2436 = vunpack.c.l.b16 %v2404
        %v2437 = vunpack.c.l.b16 %v2405
        %v2438 = vunpack.c.l.b16 %v2406
        %v2439 = vunpack.c.l.b16 %v2407
        %v2440 = vunpack.c.l.b16 %v2408
        %v2441 = vunpack.c.l.b16 %v2409
        %v2442 = vunpack.c.l.b16 %v2410
        %v2443 = vunpack.c.l.b16 %v2411
        %v2444 = vpack.c.b16 %v2429, %v2428
        %v2445 = vpack.c.b16 %v2431, %v2430
        %v2446 = vpack.c.b16 %v2433, %v2432
        %v2447 = vpack.c.b16 %v2435, %v2434
        %v2448 = vpack.c.b16 %v2437, %v2436
        %v2449 = vpack.c.b16 %v2439, %v2438
        %v2450 = vpack.c.b16 %v2441, %v2440
        %v2451 = vpack.c.b16 %v2443, %v2442
        %2460 = vrot.lane.b32.xlu0 %v1520, 64
        %v2461 = vpop.permute.xlu0 %2460
        %2462 = vrot.lane.b32.xlu0 %v1521, 64
        %v2463 = vpop.permute.xlu0 %2462
        %2464 = vrot.lane.b32.xlu0 %v1522, 64
        %v2465 = vpop.permute.xlu0 %2464
        %2466 = vrot.lane.b32.xlu0 %v1523, 64
        %v2467 = vpop.permute.xlu0 %2466
        %2468 = vrot.lane.b32.xlu0 %v1524, 64
        %v2469 = vpop.permute.xlu0 %2468
        %2470 = vrot.lane.b32.xlu0 %v1525, 64
        %v2471 = vpop.permute.xlu0 %2470
        %2472 = vrot.lane.b32.xlu0 %v1526, 64
        %v2473 = vpop.permute.xlu0 %2472
        %2474 = vrot.lane.b32.xlu0 %v1527, 64
        %v2475 = vpop.permute.xlu0 %2474
        %2484 = vmatpush.bf16.msra.mxu0 %v2475
        %2485 = vmatpush.bf16.msra.mxu0 %v2473
        %2486 = vmatpush.bf16.msra.mxu0 %v2471
        %2487 = vmatpush.bf16.msra.mxu0 %v2469
        %2488 = vmatpush.bf16.msra.mxu0 %v2467
        %2489 = vmatpush.bf16.msra.mxu0 %v2465
        %2490 = vmatpush.bf16.msra.mxu0 %v2463
        %2491 = vmatpush.bf16.msra.mxu0 %v2461
        %2492 = vmatmul.bf16.gmra.mxu0 %v2444
        %v2493 = vpop.f32.mrf.mxu0
        %v2494 = vadd.f32 0.0, %v2493
        %v2495 = vpop.f32.mrf.mxu0
        %v2496 = vadd.f32 0.0, %v2495
        %2497 = vmatmul.bf16.gmra.mxu0 %v2445
        %v2498 = vpop.f32.mrf.mxu0
        %v2499 = vadd.f32 0.0, %v2498
        %v2500 = vpop.f32.mrf.mxu0
        %v2501 = vadd.f32 0.0, %v2500
        %2502 = vmatmul.bf16.gmra.mxu0 %v2446
        %v2503 = vpop.f32.mrf.mxu0
        %v2504 = vadd.f32 0.0, %v2503
        %v2505 = vpop.f32.mrf.mxu0
        %v2506 = vadd.f32 0.0, %v2505
        %2507 = vmatmul.bf16.gmra.mxu0 %v2447
        %v2508 = vpop.f32.mrf.mxu0
        %v2509 = vadd.f32 0.0, %v2508
        %v2510 = vpop.f32.mrf.mxu0
        %v2511 = vadd.f32 0.0, %v2510
        %2512 = vmatmul.bf16.gmra.mxu0 %v2448
        %v2513 = vpop.f32.mrf.mxu0
        %v2514 = vadd.f32 0.0, %v2513
        %v2515 = vpop.f32.mrf.mxu0
        %v2516 = vadd.f32 0.0, %v2515
        %2517 = vmatmul.bf16.gmra.mxu0 %v2449
        %v2518 = vpop.f32.mrf.mxu0
        %v2519 = vadd.f32 0.0, %v2518
        %v2520 = vpop.f32.mrf.mxu0
        %v2521 = vadd.f32 0.0, %v2520
        %2522 = vmatmul.bf16.gmra.mxu0 %v2450
        %v2523 = vpop.f32.mrf.mxu0
        %v2524 = vadd.f32 0.0, %v2523
        %v2525 = vpop.f32.mrf.mxu0
        %v2526 = vadd.f32 0.0, %v2525
        %2527 = vmatmul.bf16.gmra.mxu0 %v2451
        %v2528 = vpop.f32.mrf.mxu0
        %v2529 = vadd.f32 0.0, %v2528
        %v2530 = vpop.f32.mrf.mxu0
        %v2531 = vadd.f32 0.0, %v2530
        %2532 = vdwg.mxu0
        %v2533 = vpack.c.bf16 %v2494, %v2494
        %v2534 = vpack.c.bf16 %v2496, %v2496
        %v2535 = vpack.c.bf16 %v2499, %v2499
        %v2536 = vpack.c.bf16 %v2501, %v2501
        %v2537 = vpack.c.bf16 %v2504, %v2504
        %v2538 = vpack.c.bf16 %v2506, %v2506
        %v2539 = vpack.c.bf16 %v2509, %v2509
        %v2540 = vpack.c.bf16 %v2511, %v2511
        %v2541 = vpack.c.bf16 %v2514, %v2514
        %v2542 = vpack.c.bf16 %v2516, %v2516
        %v2543 = vpack.c.bf16 %v2519, %v2519
        %v2544 = vpack.c.bf16 %v2521, %v2521
        %v2545 = vpack.c.bf16 %v2524, %v2524
        %v2546 = vpack.c.bf16 %v2526, %v2526
        %v2547 = vpack.c.bf16 %v2529, %v2529
        %v2548 = vpack.c.bf16 %v2531, %v2531
        %2549 = vrot.lane.b32.xlu0 %v1086, 32
        %v2550 = vpop.permute.xlu0 %2549
        %2551 = vrot.lane.b32.xlu0 %v1087, 32
        %v2552 = vpop.permute.xlu0 %2551
        %2553 = vrot.lane.b32.xlu0 %v1088, 32
        %v2554 = vpop.permute.xlu0 %2553
        %2555 = vrot.lane.b32.xlu0 %v1089, 32
        %v2556 = vpop.permute.xlu0 %2555
        %2557 = vrot.lane.b32.xlu0 %v1090, 32
        %v2558 = vpop.permute.xlu0 %2557
        %2559 = vrot.lane.b32.xlu0 %v1091, 32
        %v2560 = vpop.permute.xlu0 %2559
        %2561 = vrot.lane.b32.xlu0 %v1092, 32
        %v2562 = vpop.permute.xlu0 %2561
        %2563 = vrot.lane.b32.xlu0 %v1093, 32
        %v2564 = vpop.permute.xlu0 %2563
        %2565 = vrot.lane.b32.xlu0 %v1126, 32
        %v2566 = vpop.permute.xlu0 %2565
        %2567 = vrot.lane.b32.xlu0 %v1127, 32
        %v2568 = vpop.permute.xlu0 %2567
        %2569 = vrot.lane.b32.xlu0 %v1128, 32
        %v2570 = vpop.permute.xlu0 %2569
        %2571 = vrot.lane.b32.xlu0 %v1129, 32
        %v2572 = vpop.permute.xlu0 %2571
        %2573 = vrot.lane.b32.xlu0 %v1130, 32
        %v2574 = vpop.permute.xlu0 %2573
        %2575 = vrot.lane.b32.xlu0 %v1131, 32
        %v2576 = vpop.permute.xlu0 %2575
        %2577 = vrot.lane.b32.xlu0 %v1132, 32
        %v2578 = vpop.permute.xlu0 %2577
        %2579 = vrot.lane.b32.xlu0 %v1133, 32
        %v2580 = vpop.permute.xlu0 %2579
        %v2582 = vsel %vm1134, %v2550, 0
        %v2585 = vsel %vm1134, %v2552, 0
        %v2588 = vsel %vm1134, %v2554, 0
        %v2591 = vsel %vm1134, %v2556, 0
        %v2594 = vsel %vm1134, %v2558, 0
        %v2597 = vsel %vm1134, %v2560, 0
        %v2600 = vsel %vm1134, %v2562, 0
        %v2603 = vsel %vm1134, %v2564, 0
        %v2606 = vsel %vm1134, %v2566, 0
        %v2609 = vsel %vm1134, %v2568, 0
        %v2612 = vsel %vm1134, %v2570, 0
        %v2615 = vsel %vm1134, %v2572, 0
        %v2618 = vsel %vm1134, %v2574, 0
        %v2621 = vsel %vm1134, %v2576, 0
        %v2624 = vsel %vm1134, %v2578, 0
        %v2627 = vsel %vm1134, %v2580, 0
        %2629 = vmatpush.bf16.xpose.msra.mxu0 %v2627
        %2630 = vmatpush.bf16.xpose.msra.mxu0 %v2624
        %2631 = vmatpush.bf16.xpose.msra.mxu0 %v2621
        %2632 = vmatpush.bf16.xpose.msra.mxu0 %v2618
        %2633 = vmatpush.bf16.xpose.msra.mxu0 %v2615
        %2634 = vmatpush.bf16.xpose.msra.mxu0 %v2612
        %2635 = vmatpush.bf16.xpose.msra.mxu0 %v2609
        %2636 = vmatpush.bf16.xpose.msra.mxu0 %v2606
        %2637 = vmatmul.bf16.gmra.mxu0 %v2582
        %v2638 = vpop.f32.mrf.mxu0
        %v2639 = vadd.f32 0.0, %v2638
        %v2640 = vpop.f32.mrf.mxu0
        %v2641 = vadd.f32 0.0, %v2640
        %2642 = vmatmul.bf16.gmra.mxu0 %v2585
        %v2643 = vpop.f32.mrf.mxu0
        %v2644 = vadd.f32 0.0, %v2643
        %v2645 = vpop.f32.mrf.mxu0
        %v2646 = vadd.f32 0.0, %v2645
        %2647 = vmatmul.bf16.gmra.mxu0 %v2588
        %v2648 = vpop.f32.mrf.mxu0
        %v2649 = vadd.f32 0.0, %v2648
        %v2650 = vpop.f32.mrf.mxu0
        %v2651 = vadd.f32 0.0, %v2650
        %2652 = vmatmul.bf16.gmra.mxu0 %v2591
        %v2653 = vpop.f32.mrf.mxu0
        %v2654 = vadd.f32 0.0, %v2653
        %v2655 = vpop.f32.mrf.mxu0
        %v2656 = vadd.f32 0.0, %v2655
        %2657 = vmatmul.bf16.gmra.mxu0 %v2594
        %v2658 = vpop.f32.mrf.mxu0
        %v2659 = vadd.f32 0.0, %v2658
        %v2660 = vpop.f32.mrf.mxu0
        %v2661 = vadd.f32 0.0, %v2660
        %2662 = vmatmul.bf16.gmra.mxu0 %v2597
        %v2663 = vpop.f32.mrf.mxu0
        %v2664 = vadd.f32 0.0, %v2663
        %v2665 = vpop.f32.mrf.mxu0
        %v2666 = vadd.f32 0.0, %v2665
        %2667 = vmatmul.bf16.gmra.mxu0 %v2600
        %v2668 = vpop.f32.mrf.mxu0
        %v2669 = vadd.f32 0.0, %v2668
        %v2670 = vpop.f32.mrf.mxu0
        %v2671 = vadd.f32 0.0, %v2670
        %2672 = vmatmul.bf16.gmra.mxu0 %v2603
        %v2673 = vpop.f32.mrf.mxu0
        %v2674 = vadd.f32 0.0, %v2673
        %v2675 = vpop.f32.mrf.mxu0
        %v2676 = vadd.f32 0.0, %v2675
        %2677 = vdwg.mxu0
        %2678 = vmax.xlane.f32.xlu0 %v2639
        %v2679 = vpop.xlane.xlu0 %2678
        %2680 = vmax.xlane.f32.xlu0 %v2641
        %v2681 = vpop.xlane.xlu0 %2680
        %2682 = vmax.xlane.f32.xlu0 %v2644
        %v2683 = vpop.xlane.xlu0 %2682
        %2684 = vmax.xlane.f32.xlu0 %v2646
        %v2685 = vpop.xlane.xlu0 %2684
        %2686 = vmax.xlane.f32.xlu0 %v2649
        %v2687 = vpop.xlane.xlu0 %2686
        %2688 = vmax.xlane.f32.xlu0 %v2651
        %v2689 = vpop.xlane.xlu0 %2688
        %2690 = vmax.xlane.f32.xlu0 %v2654
        %v2691 = vpop.xlane.xlu0 %2690
        %2692 = vmax.xlane.f32.xlu0 %v2656
        %v2693 = vpop.xlane.xlu0 %2692
        %2694 = vmax.xlane.f32.xlu0 %v2659
        %v2695 = vpop.xlane.xlu0 %2694
        %2696 = vmax.xlane.f32.xlu0 %v2661
        %v2697 = vpop.xlane.xlu0 %2696
        %2698 = vmax.xlane.f32.xlu0 %v2664
        %v2699 = vpop.xlane.xlu0 %2698
        %2700 = vmax.xlane.f32.xlu0 %v2666
        %v2701 = vpop.xlane.xlu0 %2700
        %2702 = vmax.xlane.f32.xlu0 %v2669
        %v2703 = vpop.xlane.xlu0 %2702
        %2704 = vmax.xlane.f32.xlu0 %v2671
        %v2705 = vpop.xlane.xlu0 %2704
        %2706 = vmax.xlane.f32.xlu0 %v2674
        %v2707 = vpop.xlane.xlu0 %2706
        %2708 = vmax.xlane.f32.xlu0 %v2676
        %v2709 = vpop.xlane.xlu0 %2708
        %v2710 = vsub.f32 %v2639, %v2679
        %v2711 = vsub.f32 %v2641, %v2681
        %v2712 = vsub.f32 %v2644, %v2683
        %v2713 = vsub.f32 %v2646, %v2685
        %v2714 = vsub.f32 %v2649, %v2687
        %v2715 = vsub.f32 %v2651, %v2689
        %v2716 = vsub.f32 %v2654, %v2691
        %v2717 = vsub.f32 %v2656, %v2693
        %v2718 = vsub.f32 %v2659, %v2695
        %v2719 = vsub.f32 %v2661, %v2697
        %v2720 = vsub.f32 %v2664, %v2699
        %v2721 = vsub.f32 %v2666, %v2701
        %v2722 = vsub.f32 %v2669, %v2703
        %v2723 = vsub.f32 %v2671, %v2705
        %v2724 = vsub.f32 %v2674, %v2707
        %v2725 = vsub.f32 %v2676, %v2709
        %v2726 = vmul.f32 %v2710, 1.442695
        %v2727 = vpow.pop %v2726
        %v2728 = vmul.f32 %v2711, 1.442695
        %v2729 = vpow.pop %v2728
        %v2730 = vmul.f32 %v2712, 1.442695
        %v2731 = vpow.pop %v2730
        %v2732 = vmul.f32 %v2713, 1.442695
        %v2733 = vpow.pop %v2732
        %v2734 = vmul.f32 %v2714, 1.442695
        %v2735 = vpow.pop %v2734
        %v2736 = vmul.f32 %v2715, 1.442695
        %v2737 = vpow.pop %v2736
        %v2738 = vmul.f32 %v2716, 1.442695
        %v2739 = vpow.pop %v2738
        %v2740 = vmul.f32 %v2717, 1.442695
        %v2741 = vpow.pop %v2740
        %v2742 = vmul.f32 %v2718, 1.442695
        %v2743 = vpow.pop %v2742
        %v2744 = vmul.f32 %v2719, 1.442695
        %v2745 = vpow.pop %v2744
        %v2746 = vmul.f32 %v2720, 1.442695
        %v2747 = vpow.pop %v2746
        %v2748 = vmul.f32 %v2721, 1.442695
        %v2749 = vpow.pop %v2748
        %v2750 = vmul.f32 %v2722, 1.442695
        %v2751 = vpow.pop %v2750
        %v2752 = vmul.f32 %v2723, 1.442695
        %v2753 = vpow.pop %v2752
        %v2754 = vmul.f32 %v2724, 1.442695
        %v2755 = vpow.pop %v2754
        %v2756 = vmul.f32 %v2725, 1.442695
        %v2757 = vpow.pop %v2756
        %2758 = vadd.xlane.f32.xlu0 %v2727
        %v2759 = vpop.xlane.xlu0 %2758
        %2760 = vadd.xlane.f32.xlu0 %v2729
        %v2761 = vpop.xlane.xlu0 %2760
        %2762 = vadd.xlane.f32.xlu0 %v2731
        %v2763 = vpop.xlane.xlu0 %2762
        %2764 = vadd.xlane.f32.xlu0 %v2733
        %v2765 = vpop.xlane.xlu0 %2764
        %2766 = vadd.xlane.f32.xlu0 %v2735
        %v2767 = vpop.xlane.xlu0 %2766
        %2768 = vadd.xlane.f32.xlu0 %v2737
        %v2769 = vpop.xlane.xlu0 %2768
        %2770 = vadd.xlane.f32.xlu0 %v2739
        %v2771 = vpop.xlane.xlu0 %2770
        %2772 = vadd.xlane.f32.xlu0 %v2741
        %v2773 = vpop.xlane.xlu0 %2772
        %2774 = vadd.xlane.f32.xlu0 %v2743
        %v2775 = vpop.xlane.xlu0 %2774
        %2776 = vadd.xlane.f32.xlu0 %v2745
        %v2777 = vpop.xlane.xlu0 %2776
        %2778 = vadd.xlane.f32.xlu0 %v2747
        %v2779 = vpop.xlane.xlu0 %2778
        %2780 = vadd.xlane.f32.xlu0 %v2749
        %v2781 = vpop.xlane.xlu0 %2780
        %2782 = vadd.xlane.f32.xlu0 %v2751
        %v2783 = vpop.xlane.xlu0 %2782
        %2784 = vadd.xlane.f32.xlu0 %v2753
        %v2785 = vpop.xlane.xlu0 %2784
        %2786 = vadd.xlane.f32.xlu0 %v2755
        %v2787 = vpop.xlane.xlu0 %2786
        %2788 = vadd.xlane.f32.xlu0 %v2757
        %v2789 = vpop.xlane.xlu0 %2788
        %v2790 = vrcp.pop %v2759
        %v2791 = vrcp.pop %v2761
        %v2792 = vrcp.pop %v2763
        %v2793 = vrcp.pop %v2765
        %v2794 = vrcp.pop %v2767
        %v2795 = vrcp.pop %v2769
        %v2796 = vrcp.pop %v2771
        %v2797 = vrcp.pop %v2773
        %v2798 = vrcp.pop %v2775
        %v2799 = vrcp.pop %v2777
        %v2800 = vrcp.pop %v2779
        %v2801 = vrcp.pop %v2781
        %v2802 = vrcp.pop %v2783
        %v2803 = vrcp.pop %v2785
        %v2804 = vrcp.pop %v2787
        %v2805 = vrcp.pop %v2789
        %v2806 = vmul.f32 %v2759, %v2790
        %v2807 = vmul.f32 %v2761, %v2791
        %v2808 = vmul.f32 %v2763, %v2792
        %v2809 = vmul.f32 %v2765, %v2793
        %v2810 = vmul.f32 %v2767, %v2794
        %v2811 = vmul.f32 %v2769, %v2795
        %v2812 = vmul.f32 %v2771, %v2796
        %v2813 = vmul.f32 %v2773, %v2797
        %v2814 = vmul.f32 %v2775, %v2798
        %v2815 = vmul.f32 %v2777, %v2799
        %v2816 = vmul.f32 %v2779, %v2800
        %v2817 = vmul.f32 %v2781, %v2801
        %v2818 = vmul.f32 %v2783, %v2802
        %v2819 = vmul.f32 %v2785, %v2803
        %v2820 = vmul.f32 %v2787, %v2804
        %v2821 = vmul.f32 %v2789, %v2805
        %v2822 = vsub.f32 2.0, %v2806
        %v2823 = vsub.f32 2.0, %v2807
        %v2824 = vsub.f32 2.0, %v2808
        %v2825 = vsub.f32 2.0, %v2809
        %v2826 = vsub.f32 2.0, %v2810
        %v2827 = vsub.f32 2.0, %v2811
        %v2828 = vsub.f32 2.0, %v2812
        %v2829 = vsub.f32 2.0, %v2813
        %v2830 = vsub.f32 2.0, %v2814
        %v2831 = vsub.f32 2.0, %v2815
        %v2832 = vsub.f32 2.0, %v2816
        %v2833 = vsub.f32 2.0, %v2817
        %v2834 = vsub.f32 2.0, %v2818
        %v2835 = vsub.f32 2.0, %v2819
        %v2836 = vsub.f32 2.0, %v2820
        %v2837 = vsub.f32 2.0, %v2821
        %v2838 = vmul.f32 %v2790, %v2822
        %v2839 = vmul.f32 %v2791, %v2823
        %v2840 = vmul.f32 %v2792, %v2824
        %v2841 = vmul.f32 %v2793, %v2825
        %v2842 = vmul.f32 %v2794, %v2826
        %v2843 = vmul.f32 %v2795, %v2827
        %v2844 = vmul.f32 %v2796, %v2828
        %v2845 = vmul.f32 %v2797, %v2829
        %v2846 = vmul.f32 %v2798, %v2830
        %v2847 = vmul.f32 %v2799, %v2831
        %v2848 = vmul.f32 %v2800, %v2832
        %v2849 = vmul.f32 %v2801, %v2833
        %v2850 = vmul.f32 %v2802, %v2834
        %v2851 = vmul.f32 %v2803, %v2835
        %v2852 = vmul.f32 %v2804, %v2836
        %v2853 = vmul.f32 %v2805, %v2837
        %v2854 = vmul.f32 %v2727, %v2838
        %v2855 = vmul.f32 %v2729, %v2839
        %v2856 = vmul.f32 %v2731, %v2840
        %v2857 = vmul.f32 %v2733, %v2841
        %v2858 = vmul.f32 %v2735, %v2842
        %v2859 = vmul.f32 %v2737, %v2843
        %v2860 = vmul.f32 %v2739, %v2844
        %v2861 = vmul.f32 %v2741, %v2845
        %v2862 = vmul.f32 %v2743, %v2846
        %v2863 = vmul.f32 %v2745, %v2847
        %v2864 = vmul.f32 %v2747, %v2848
        %v2865 = vmul.f32 %v2749, %v2849
        %v2866 = vmul.f32 %v2751, %v2850
        %v2867 = vmul.f32 %v2753, %v2851
        %v2868 = vmul.f32 %v2755, %v2852
        %v2869 = vmul.f32 %v2757, %v2853
        %v2870 = vpack.c.bf16 %v2854, %v2854
        %v2871 = vpack.c.bf16 %v2855, %v2855
        %v2872 = vpack.c.bf16 %v2856, %v2856
        %v2873 = vpack.c.bf16 %v2857, %v2857
        %v2874 = vpack.c.bf16 %v2858, %v2858
        %v2875 = vpack.c.bf16 %v2859, %v2859
        %v2876 = vpack.c.bf16 %v2860, %v2860
        %v2877 = vpack.c.bf16 %v2861, %v2861
        %v2878 = vpack.c.bf16 %v2862, %v2862
        %v2879 = vpack.c.bf16 %v2863, %v2863
        %v2880 = vpack.c.bf16 %v2864, %v2864
        %v2881 = vpack.c.bf16 %v2865, %v2865
        %v2882 = vpack.c.bf16 %v2866, %v2866
        %v2883 = vpack.c.bf16 %v2867, %v2867
        %v2884 = vpack.c.bf16 %v2868, %v2868
        %v2885 = vpack.c.bf16 %v2869, %v2869
        %v2902 = vunpack.c.l.b16 %v2870
        %v2903 = vunpack.c.l.b16 %v2871
        %v2904 = vunpack.c.l.b16 %v2872
        %v2905 = vunpack.c.l.b16 %v2873
        %v2906 = vunpack.c.l.b16 %v2874
        %v2907 = vunpack.c.l.b16 %v2875
        %v2908 = vunpack.c.l.b16 %v2876
        %v2909 = vunpack.c.l.b16 %v2877
        %v2910 = vunpack.c.l.b16 %v2878
        %v2911 = vunpack.c.l.b16 %v2879
        %v2912 = vunpack.c.l.b16 %v2880
        %v2913 = vunpack.c.l.b16 %v2881
        %v2914 = vunpack.c.l.b16 %v2882
        %v2915 = vunpack.c.l.b16 %v2883
        %v2916 = vunpack.c.l.b16 %v2884
        %v2917 = vunpack.c.l.b16 %v2885
        %v2918 = vpack.c.b16 %v2903, %v2902
        %v2919 = vpack.c.b16 %v2905, %v2904
        %v2920 = vpack.c.b16 %v2907, %v2906
        %v2921 = vpack.c.b16 %v2909, %v2908
        %v2922 = vpack.c.b16 %v2911, %v2910
        %v2923 = vpack.c.b16 %v2913, %v2912
        %v2924 = vpack.c.b16 %v2915, %v2914
        %v2925 = vpack.c.b16 %v2917, %v2916
        %2934 = vrot.lane.b32.xlu0 %v1520, 32
        %v2935 = vpop.permute.xlu0 %2934
        %2936 = vrot.lane.b32.xlu0 %v1521, 32
        %v2937 = vpop.permute.xlu0 %2936
        %2938 = vrot.lane.b32.xlu0 %v1522, 32
        %v2939 = vpop.permute.xlu0 %2938
        %2940 = vrot.lane.b32.xlu0 %v1523, 32
        %v2941 = vpop.permute.xlu0 %2940
        %2942 = vrot.lane.b32.xlu0 %v1524, 32
        %v2943 = vpop.permute.xlu0 %2942
        %2944 = vrot.lane.b32.xlu0 %v1525, 32
        %v2945 = vpop.permute.xlu0 %2944
        %2946 = vrot.lane.b32.xlu0 %v1526, 32
        %v2947 = vpop.permute.xlu0 %2946
        %2948 = vrot.lane.b32.xlu0 %v1527, 32
        %v2949 = vpop.permute.xlu0 %2948
        %2958 = vmatpush.bf16.msra.mxu0 %v2949
        %2959 = vmatpush.bf16.msra.mxu0 %v2947
        %2960 = vmatpush.bf16.msra.mxu0 %v2945
        %2961 = vmatpush.bf16.msra.mxu0 %v2943
        %2962 = vmatpush.bf16.msra.mxu0 %v2941
        %2963 = vmatpush.bf16.msra.mxu0 %v2939
        %2964 = vmatpush.bf16.msra.mxu0 %v2937
        %2965 = vmatpush.bf16.msra.mxu0 %v2935
        %2966 = vmatmul.bf16.gmra.mxu0 %v2918
        %v2967 = vpop.f32.mrf.mxu0
        %v2968 = vadd.f32 0.0, %v2967
        %v2969 = vpop.f32.mrf.mxu0
        %v2970 = vadd.f32 0.0, %v2969
        %2971 = vmatmul.bf16.gmra.mxu0 %v2919
        %v2972 = vpop.f32.mrf.mxu0
        %v2973 = vadd.f32 0.0, %v2972
        %v2974 = vpop.f32.mrf.mxu0
        %v2975 = vadd.f32 0.0, %v2974
        %2976 = vmatmul.bf16.gmra.mxu0 %v2920
        %v2977 = vpop.f32.mrf.mxu0
        %v2978 = vadd.f32 0.0, %v2977
        %v2979 = vpop.f32.mrf.mxu0
        %v2980 = vadd.f32 0.0, %v2979
        %2981 = vmatmul.bf16.gmra.mxu0 %v2921
        %v2982 = vpop.f32.mrf.mxu0
        %v2983 = vadd.f32 0.0, %v2982
        %v2984 = vpop.f32.mrf.mxu0
        %v2985 = vadd.f32 0.0, %v2984
        %2986 = vmatmul.bf16.gmra.mxu0 %v2922
        %v2987 = vpop.f32.mrf.mxu0
        %v2988 = vadd.f32 0.0, %v2987
        %v2989 = vpop.f32.mrf.mxu0
        %v2990 = vadd.f32 0.0, %v2989
        %2991 = vmatmul.bf16.gmra.mxu0 %v2923
        %v2992 = vpop.f32.mrf.mxu0
        %v2993 = vadd.f32 0.0, %v2992
        %v2994 = vpop.f32.mrf.mxu0
        %v2995 = vadd.f32 0.0, %v2994
        %2996 = vmatmul.bf16.gmra.mxu0 %v2924
        %v2997 = vpop.f32.mrf.mxu0
        %v2998 = vadd.f32 0.0, %v2997
        %v2999 = vpop.f32.mrf.mxu0
        %v3000 = vadd.f32 0.0, %v2999
        %3001 = vmatmul.bf16.gmra.mxu0 %v2925
        %v3002 = vpop.f32.mrf.mxu0
        %v3003 = vadd.f32 0.0, %v3002
        %v3004 = vpop.f32.mrf.mxu0
        %v3005 = vadd.f32 0.0, %v3004
        %3006 = vdwg.mxu0
        %v3007 = vpack.c.bf16 %v2968, %v2968
        %v3008 = vpack.c.bf16 %v2970, %v2970
        %v3009 = vpack.c.bf16 %v2973, %v2973
        %v3010 = vpack.c.bf16 %v2975, %v2975
        %v3011 = vpack.c.bf16 %v2978, %v2978
        %v3012 = vpack.c.bf16 %v2980, %v2980
        %v3013 = vpack.c.bf16 %v2983, %v2983
        %v3014 = vpack.c.bf16 %v2985, %v2985
        %v3015 = vpack.c.bf16 %v2988, %v2988
        %v3016 = vpack.c.bf16 %v2990, %v2990
        %v3017 = vpack.c.bf16 %v2993, %v2993
        %v3018 = vpack.c.bf16 %v2995, %v2995
        %v3019 = vpack.c.bf16 %v2998, %v2998
        %v3020 = vpack.c.bf16 %v3000, %v3000
        %v3021 = vpack.c.bf16 %v3003, %v3003
        %v3022 = vpack.c.bf16 %v3005, %v3005
        %v3039 = vunpack.c.l.b16 %v1585
        %v3040 = vunpack.c.l.b16 %v1586
        %v3041 = vunpack.c.l.b16 %v1587
        %v3042 = vunpack.c.l.b16 %v1588
        %v3043 = vunpack.c.l.b16 %v1589
        %v3044 = vunpack.c.l.b16 %v1590
        %v3045 = vunpack.c.l.b16 %v1591
        %v3046 = vunpack.c.l.b16 %v1592
        %v3047 = vunpack.c.l.b16 %v1593
        %v3048 = vunpack.c.l.b16 %v1594
        %v3049 = vunpack.c.l.b16 %v1595
        %v3050 = vunpack.c.l.b16 %v1596
        %v3051 = vunpack.c.l.b16 %v1597
        %v3052 = vunpack.c.l.b16 %v1598
        %v3053 = vunpack.c.l.b16 %v1599
        %v3054 = vunpack.c.l.b16 %v1600
        %v3055 = vpack.c.b16 %v3040, %v3039
        %v3056 = vpack.c.b16 %v3042, %v3041
        %v3057 = vpack.c.b16 %v3044, %v3043
        %v3058 = vpack.c.b16 %v3046, %v3045
        %v3059 = vpack.c.b16 %v3048, %v3047
        %v3060 = vpack.c.b16 %v3050, %v3049
        %v3061 = vpack.c.b16 %v3052, %v3051
        %v3062 = vpack.c.b16 %v3054, %v3053
        %v3079 = vunpack.c.l.b16 %v2059
        %v3080 = vunpack.c.l.b16 %v2060
        %v3081 = vunpack.c.l.b16 %v2061
        %v3082 = vunpack.c.l.b16 %v2062
        %v3083 = vunpack.c.l.b16 %v2063
        %v3084 = vunpack.c.l.b16 %v2064
        %v3085 = vunpack.c.l.b16 %v2065
        %v3086 = vunpack.c.l.b16 %v2066
        %v3087 = vunpack.c.l.b16 %v2067
        %v3088 = vunpack.c.l.b16 %v2068
        %v3089 = vunpack.c.l.b16 %v2069
        %v3090 = vunpack.c.l.b16 %v2070
        %v3091 = vunpack.c.l.b16 %v2071
        %v3092 = vunpack.c.l.b16 %v2072
        %v3093 = vunpack.c.l.b16 %v2073
        %v3094 = vunpack.c.l.b16 %v2074
        %v3095 = vpack.c.b16 %v3080, %v3079
        %v3096 = vpack.c.b16 %v3082, %v3081
        %v3097 = vpack.c.b16 %v3084, %v3083
        %v3098 = vpack.c.b16 %v3086, %v3085
        %v3099 = vpack.c.b16 %v3088, %v3087
        %v3100 = vpack.c.b16 %v3090, %v3089
        %v3101 = vpack.c.b16 %v3092, %v3091
        %v3102 = vpack.c.b16 %v3094, %v3093
        %3103 = vrot.lane.b32.xlu0 %v3095, 32
        %v3104 = vpop.permute.xlu0 %3103
        %3105 = vrot.lane.b32.xlu0 %v3096, 32
        %v3106 = vpop.permute.xlu0 %3105
        %3107 = vrot.lane.b32.xlu0 %v3097, 32
        %v3108 = vpop.permute.xlu0 %3107
        %3109 = vrot.lane.b32.xlu0 %v3098, 32
        %v3110 = vpop.permute.xlu0 %3109
        %3111 = vrot.lane.b32.xlu0 %v3099, 32
        %v3112 = vpop.permute.xlu0 %3111
        %3113 = vrot.lane.b32.xlu0 %v3100, 32
        %v3114 = vpop.permute.xlu0 %3113
        %3115 = vrot.lane.b32.xlu0 %v3101, 32
        %v3116 = vpop.permute.xlu0 %3115
        %3117 = vrot.lane.b32.xlu0 %v3102, 32
        %v3118 = vpop.permute.xlu0 %3117
        %v3135 = vunpack.c.l.b16 %v2533
        %v3136 = vunpack.c.l.b16 %v2534
        %v3137 = vunpack.c.l.b16 %v2535
        %v3138 = vunpack.c.l.b16 %v2536
        %v3139 = vunpack.c.l.b16 %v2537
        %v3140 = vunpack.c.l.b16 %v2538
        %v3141 = vunpack.c.l.b16 %v2539
        %v3142 = vunpack.c.l.b16 %v2540
        %v3143 = vunpack.c.l.b16 %v2541
        %v3144 = vunpack.c.l.b16 %v2542
        %v3145 = vunpack.c.l.b16 %v2543
        %v3146 = vunpack.c.l.b16 %v2544
        %v3147 = vunpack.c.l.b16 %v2545
        %v3148 = vunpack.c.l.b16 %v2546
        %v3149 = vunpack.c.l.b16 %v2547
        %v3150 = vunpack.c.l.b16 %v2548
        %v3151 = vpack.c.b16 %v3136, %v3135
        %v3152 = vpack.c.b16 %v3138, %v3137
        %v3153 = vpack.c.b16 %v3140, %v3139
        %v3154 = vpack.c.b16 %v3142, %v3141
        %v3155 = vpack.c.b16 %v3144, %v3143
        %v3156 = vpack.c.b16 %v3146, %v3145
        %v3157 = vpack.c.b16 %v3148, %v3147
        %v3158 = vpack.c.b16 %v3150, %v3149
        %3159 = vrot.lane.b32.xlu0 %v3151, 64
        %v3160 = vpop.permute.xlu0 %3159
        %3161 = vrot.lane.b32.xlu0 %v3152, 64
        %v3162 = vpop.permute.xlu0 %3161
        %3163 = vrot.lane.b32.xlu0 %v3153, 64
        %v3164 = vpop.permute.xlu0 %3163
        %3165 = vrot.lane.b32.xlu0 %v3154, 64
        %v3166 = vpop.permute.xlu0 %3165
        %3167 = vrot.lane.b32.xlu0 %v3155, 64
        %v3168 = vpop.permute.xlu0 %3167
        %3169 = vrot.lane.b32.xlu0 %v3156, 64
        %v3170 = vpop.permute.xlu0 %3169
        %3171 = vrot.lane.b32.xlu0 %v3157, 64
        %v3172 = vpop.permute.xlu0 %3171
        %3173 = vrot.lane.b32.xlu0 %v3158, 64
        %v3174 = vpop.permute.xlu0 %3173
        %v3191 = vunpack.c.l.b16 %v3007
        %v3192 = vunpack.c.l.b16 %v3008
        %v3193 = vunpack.c.l.b16 %v3009
        %v3194 = vunpack.c.l.b16 %v3010
        %v3195 = vunpack.c.l.b16 %v3011
        %v3196 = vunpack.c.l.b16 %v3012
        %v3197 = vunpack.c.l.b16 %v3013
        %v3198 = vunpack.c.l.b16 %v3014
        %v3199 = vunpack.c.l.b16 %v3015
        %v3200 = vunpack.c.l.b16 %v3016
        %v3201 = vunpack.c.l.b16 %v3017
        %v3202 = vunpack.c.l.b16 %v3018
        %v3203 = vunpack.c.l.b16 %v3019
        %v3204 = vunpack.c.l.b16 %v3020
        %v3205 = vunpack.c.l.b16 %v3021
        %v3206 = vunpack.c.l.b16 %v3022
        %v3207 = vpack.c.b16 %v3192, %v3191
        %v3208 = vpack.c.b16 %v3194, %v3193
        %v3209 = vpack.c.b16 %v3196, %v3195
        %v3210 = vpack.c.b16 %v3198, %v3197
        %v3211 = vpack.c.b16 %v3200, %v3199
        %v3212 = vpack.c.b16 %v3202, %v3201
        %v3213 = vpack.c.b16 %v3204, %v3203
        %v3214 = vpack.c.b16 %v3206, %v3205
        %3215 = vrot.lane.b32.xlu0 %v3207, 96
        %v3216 = vpop.permute.xlu0 %3215
        %3217 = vrot.lane.b32.xlu0 %v3208, 96
        %v3218 = vpop.permute.xlu0 %3217
        %3219 = vrot.lane.b32.xlu0 %v3209, 96
        %v3220 = vpop.permute.xlu0 %3219
        %3221 = vrot.lane.b32.xlu0 %v3210, 96
        %v3222 = vpop.permute.xlu0 %3221
        %3223 = vrot.lane.b32.xlu0 %v3211, 96
        %v3224 = vpop.permute.xlu0 %3223
        %3225 = vrot.lane.b32.xlu0 %v3212, 96
        %v3226 = vpop.permute.xlu0 %3225
        %3227 = vrot.lane.b32.xlu0 %v3213, 96
        %v3228 = vpop.permute.xlu0 %3227
        %3229 = vrot.lane.b32.xlu0 %v3214, 96
        %v3230 = vpop.permute.xlu0 %3229
        %v3233 = vsel %vm1134, %v3055, %v3104
        %v3236 = vsel %vm1134, %v3056, %v3106
        %v3239 = vsel %vm1134, %v3057, %v3108
        %v3242 = vsel %vm1134, %v3058, %v3110
        %v3245 = vsel %vm1134, %v3059, %v3112
        %v3248 = vsel %vm1134, %v3060, %v3114
        %v3251 = vsel %vm1134, %v3061, %v3116
        %v3254 = vsel %vm1134, %v3062, %v3118
        %vm3255 = vcmask 523264
        %v3257 = vsel %vm3255, %v3233, %v3160
        %v3259 = vsel %vm3255, %v3236, %v3162
        %v3261 = vsel %vm3255, %v3239, %v3164
        %v3263 = vsel %vm3255, %v3242, %v3166
        %v3265 = vsel %vm3255, %v3245, %v3168
        %v3267 = vsel %vm3255, %v3248, %v3170
        %v3269 = vsel %vm3255, %v3251, %v3172
        %v3271 = vsel %vm3255, %v3254, %v3174
        %vm3272 = vcmask 785408
        %v3274 = vsel %vm3272, %v3257, %v3216
        %v3277 = vsel %vm3272, %v3259, %v3218
        %v3280 = vsel %vm3272, %v3261, %v3220
        %v3283 = vsel %vm3272, %v3263, %v3222
        %v3286 = vsel %vm3272, %v3265, %v3224
        %v3289 = vsel %vm3272, %v3267, %v3226
        %v3292 = vsel %vm3272, %v3269, %v3228
        %v3295 = vsel %vm3272, %v3271, %v3230
        %v3297 = vld [vmem:[#allocation7] sm:$0xf]
        %v3298 = vld [vmem:[#allocation7 + $0x4] sm:$0xf]
        %v3299 = vld [vmem:[#allocation7 + $0x8] sm:$0xf]
        %v3300 = vld [vmem:[#allocation7 + $0xc] sm:$0xf]
        %v3301 = vld [vmem:[#allocation7 + $0x10] sm:$0xf]
        %v3302 = vld [vmem:[#allocation7 + $0x14] sm:$0xf]
        %v3303 = vld [vmem:[#allocation7 + $0x18] sm:$0xf]
        %v3304 = vld [vmem:[#allocation7 + $0x1c] sm:$0xf]
        %v3305 = vld [vmem:[#allocation7 + $0x20] sm:$0xf]
        %v3306 = vld [vmem:[#allocation7 + $0x24] sm:$0xf]
        %v3307 = vld [vmem:[#allocation7 + $0x28] sm:$0xf]
        %v3308 = vld [vmem:[#allocation7 + $0x2c] sm:$0xf]
        %v3309 = vld [vmem:[#allocation7 + $0x30] sm:$0xf]
        %v3310 = vld [vmem:[#allocation7 + $0x34] sm:$0xf]
        %v3311 = vld [vmem:[#allocation7 + $0x38] sm:$0xf]
        %v3312 = vld [vmem:[#allocation7 + $0x3c] sm:$0xf]
        %v3313 = vld [vmem:[%s5] sm:$0x1]
        %v3315 = vperm.slane %v3313, 0
        %v3333 = vunpack.c.l.b16 %v3297
        %v3334 = vunpack.c.l.b16 %v3298
        %v3335 = vunpack.c.l.b16 %v3299
        %v3336 = vunpack.c.l.b16 %v3300
        %v3337 = vunpack.c.l.b16 %v3301
        %v3338 = vunpack.c.l.b16 %v3302
        %v3339 = vunpack.c.l.b16 %v3303
        %v3340 = vunpack.c.l.b16 %v3304
        %v3341 = vunpack.c.l.b16 %v3305
        %v3342 = vunpack.c.l.b16 %v3306
        %v3343 = vunpack.c.l.b16 %v3307
        %v3344 = vunpack.c.l.b16 %v3308
        %v3345 = vunpack.c.l.b16 %v3309
        %v3346 = vunpack.c.l.b16 %v3310
        %v3347 = vunpack.c.l.b16 %v3311
        %v3348 = vunpack.c.l.b16 %v3312
        %v3349 = vpack.c.b16 %v3334, %v3333
        %v3350 = vpack.c.b16 %v3336, %v3335
        %v3351 = vpack.c.b16 %v3338, %v3337
        %v3352 = vpack.c.b16 %v3340, %v3339
        %v3353 = vpack.c.b16 %v3342, %v3341
        %v3354 = vpack.c.b16 %v3344, %v3343
        %v3355 = vpack.c.b16 %v3346, %v3345
        %v3356 = vpack.c.b16 %v3348, %v3347
        %3365 = vmatpush.bf16.msra.mxu0 %v3356
        %3366 = vmatpush.bf16.msra.mxu0 %v3355
        %3367 = vmatpush.bf16.msra.mxu0 %v3354
        %3368 = vmatpush.bf16.msra.mxu0 %v3353
        %3369 = vmatpush.bf16.msra.mxu0 %v3352
        %3370 = vmatpush.bf16.msra.mxu0 %v3351
        %3371 = vmatpush.bf16.msra.mxu0 %v3350
        %3372 = vmatpush.bf16.msra.mxu0 %v3349
        %3373 = vmatmul.bf16.gmra.mxu0 %v3274
        %v3374 = vpop.f32.mrf.mxu0
        %v3375 = vadd.f32 %v3315, %v3374
        %v3376 = vpop.f32.mrf.mxu0
        %v3377 = vadd.f32 %v3315, %v3376
        %3378 = vmatmul.bf16.gmra.mxu0 %v3277
        %v3379 = vpop.f32.mrf.mxu0
        %v3380 = vadd.f32 %v3315, %v3379
        %v3381 = vpop.f32.mrf.mxu0
        %v3382 = vadd.f32 %v3315, %v3381
        %3383 = vmatmul.bf16.gmra.mxu0 %v3280
        %v3384 = vpop.f32.mrf.mxu0
        %v3385 = vadd.f32 %v3315, %v3384
        %v3386 = vpop.f32.mrf.mxu0
        %v3387 = vadd.f32 %v3315, %v3386
        %3388 = vmatmul.bf16.gmra.mxu0 %v3283
        %v3389 = vpop.f32.mrf.mxu0
        %v3390 = vadd.f32 %v3315, %v3389
        %v3391 = vpop.f32.mrf.mxu0
        %v3392 = vadd.f32 %v3315, %v3391
        %3393 = vmatmul.bf16.gmra.mxu0 %v3286
        %v3394 = vpop.f32.mrf.mxu0
        %v3395 = vadd.f32 %v3315, %v3394
        %v3396 = vpop.f32.mrf.mxu0
        %v3397 = vadd.f32 %v3315, %v3396
        %3398 = vmatmul.bf16.gmra.mxu0 %v3289
        %v3399 = vpop.f32.mrf.mxu0
        %v3400 = vadd.f32 %v3315, %v3399
        %v3401 = vpop.f32.mrf.mxu0
        %v3402 = vadd.f32 %v3315, %v3401
        %3403 = vmatmul.bf16.gmra.mxu0 %v3292
        %v3404 = vpop.f32.mrf.mxu0
        %v3405 = vadd.f32 %v3315, %v3404
        %v3406 = vpop.f32.mrf.mxu0
        %v3407 = vadd.f32 %v3315, %v3406
        %3408 = vmatmul.bf16.gmra.mxu0 %v3295
        %v3409 = vpop.f32.mrf.mxu0
        %v3410 = vadd.f32 %v3315, %v3409
        %v3411 = vpop.f32.mrf.mxu0
        %v3412 = vadd.f32 %v3315, %v3411
        %3413 = vdwg.mxu0
        %v3414 = vperm.slane %v479, 2
        %v3415 = vmul.f32 %v3375, %v3414
        %v3416 = vmul.f32 %v3377, %v3414
        %v3417 = vmul.f32 %v3380, %v3414
        %v3418 = vmul.f32 %v3382, %v3414
        %v3419 = vmul.f32 %v3385, %v3414
        %v3420 = vmul.f32 %v3387, %v3414
        %v3421 = vmul.f32 %v3390, %v3414
        %v3422 = vmul.f32 %v3392, %v3414
        %v3423 = vmul.f32 %v3395, %v3414
        %v3424 = vmul.f32 %v3397, %v3414
        %v3425 = vmul.f32 %v3400, %v3414
        %v3426 = vmul.f32 %v3402, %v3414
        %v3427 = vmul.f32 %v3405, %v3414
        %v3428 = vmul.f32 %v3407, %v3414
        %v3429 = vmul.f32 %v3410, %v3414
        %v3430 = vmul.f32 %v3412, %v3414
        %v3431 = vadd.f32 %v463, %v3415
        %v3432 = vadd.f32 %v464, %v3416
        %v3433 = vadd.f32 %v465, %v3417
        %v3434 = vadd.f32 %v466, %v3418
        %v3435 = vadd.f32 %v467, %v3419
        %v3436 = vadd.f32 %v468, %v3420
        %v3437 = vadd.f32 %v469, %v3421
        %v3438 = vadd.f32 %v470, %v3422
        %v3439 = vadd.f32 %v471, %v3423
        %v3440 = vadd.f32 %v472, %v3424
        %v3441 = vadd.f32 %v473, %v3425
        %v3442 = vadd.f32 %v474, %v3426
        %v3443 = vadd.f32 %v475, %v3427
        %v3444 = vadd.f32 %v476, %v3428
        %v3445 = vadd.f32 %v477, %v3429
        %v3446 = vadd.f32 %v478, %v3430
        %v3447 = vadd.f32 %v3431, %v3432
        %v3448 = vadd.f32 %v3447, %v3433
        %v3449 = vadd.f32 %v3448, %v3434
        %v3450 = vadd.f32 %v3449, %v3435
        %v3451 = vadd.f32 %v3450, %v3436
        %v3452 = vadd.f32 %v3451, %v3437
        %v3453 = vadd.f32 %v3452, %v3438
        %v3454 = vadd.f32 %v3453, %v3439
        %v3455 = vadd.f32 %v3454, %v3440
        %v3456 = vadd.f32 %v3455, %v3441
        %v3457 = vadd.f32 %v3456, %v3442
        %v3458 = vadd.f32 %v3457, %v3443
        %v3459 = vadd.f32 %v3458, %v3444
        %v3460 = vadd.f32 %v3459, %v3445
        %v3461 = vadd.f32 %v3460, %v3446
        %v3462 = vrot.slane %v3461, 4
        %v3463 = vadd.f32 %v3461, %v3462
        %v3464 = vrot.slane %v3463, 2
        %v3465 = vadd.f32 %v3463, %v3464
        %v3466 = vrot.slane %v3465, 1
        %v3467 = vadd.f32 %v3465, %v3466
        %v3468 = vmul.f32 %v3467, %v507
        %v3469 = vmul.f32 %v3431, %v3431
        %v3470 = vmul.f32 %v3432, %v3432
        %v3471 = vmul.f32 %v3433, %v3433
        %v3472 = vmul.f32 %v3434, %v3434
        %v3473 = vmul.f32 %v3435, %v3435
        %v3474 = vmul.f32 %v3436, %v3436
        %v3475 = vmul.f32 %v3437, %v3437
        %v3476 = vmul.f32 %v3438, %v3438
        %v3477 = vmul.f32 %v3439, %v3439
        %v3478 = vmul.f32 %v3440, %v3440
        %v3479 = vmul.f32 %v3441, %v3441
        %v3480 = vmul.f32 %v3442, %v3442
        %v3481 = vmul.f32 %v3443, %v3443
        %v3482 = vmul.f32 %v3444, %v3444
        %v3483 = vmul.f32 %v3445, %v3445
        %v3484 = vmul.f32 %v3446, %v3446
        %v3485 = vadd.f32 %v3469, %v3470
        %v3486 = vadd.f32 %v3485, %v3471
        %v3487 = vadd.f32 %v3486, %v3472
        %v3488 = vadd.f32 %v3487, %v3473
        %v3489 = vadd.f32 %v3488, %v3474
        %v3490 = vadd.f32 %v3489, %v3475
        %v3491 = vadd.f32 %v3490, %v3476
        %v3492 = vadd.f32 %v3491, %v3477
        %v3493 = vadd.f32 %v3492, %v3478
        %v3494 = vadd.f32 %v3493, %v3479
        %v3495 = vadd.f32 %v3494, %v3480
        %v3496 = vadd.f32 %v3495, %v3481
        %v3497 = vadd.f32 %v3496, %v3482
        %v3498 = vadd.f32 %v3497, %v3483
        %v3499 = vadd.f32 %v3498, %v3484
        %v3500 = vrot.slane %v3499, 4
        %v3501 = vadd.f32 %v3499, %v3500
        %v3502 = vrot.slane %v3501, 2
        %v3503 = vadd.f32 %v3501, %v3502
        %v3504 = vrot.slane %v3503, 1
        %v3505 = vadd.f32 %v3503, %v3504
        %v3506 = vmul.f32 %v3505, %v507
        %v3507 = vmul.f32 %v3468, %v3468
        %v3508 = vsub.f32 %v3506, %v3507
        %v3509 = vmax.f32 %v3508, 0.0
        %v3510 = vsub.f32 %v3431, %v3468
        %v3511 = vsub.f32 %v3432, %v3468
        %v3512 = vsub.f32 %v3433, %v3468
        %v3513 = vsub.f32 %v3434, %v3468
        %v3514 = vsub.f32 %v3435, %v3468
        %v3515 = vsub.f32 %v3436, %v3468
        %v3516 = vsub.f32 %v3437, %v3468
        %v3517 = vsub.f32 %v3438, %v3468
        %v3518 = vsub.f32 %v3439, %v3468
        %v3519 = vsub.f32 %v3440, %v3468
        %v3520 = vsub.f32 %v3441, %v3468
        %v3521 = vsub.f32 %v3442, %v3468
        %v3522 = vsub.f32 %v3443, %v3468
        %v3523 = vsub.f32 %v3444, %v3468
        %v3524 = vsub.f32 %v3445, %v3468
        %v3525 = vsub.f32 %v3446, %v3468
        %v3526 = vadd.f32 %v3509, 1e-12
        %v3527 = vrsqrt.pop %v3526
        %v3528 = vmul.f32 %v3527, %v3526
        %v3529 = vmul.f32 %v3528, %v3527
        %v3530 = vmul.f32 0.5, %v3529
        %v3531 = vsub.f32 1.5, %v3530
        %v3532 = vmul.f32 %v3527, %v3531
        %vm3533 = vweird.f32 %v3526
        %vm3534 = vweird.f32 %v3527
        %vm3535 = vmor %vm3533, %vm3534
        %v3536 = vsel %vm3535, %v3527, %v3532
        %v3537 = vmul.f32 %v3510, %v3536
        %v3538 = vmul.f32 %v3511, %v3536
        %v3539 = vmul.f32 %v3512, %v3536
        %v3540 = vmul.f32 %v3513, %v3536
        %v3541 = vmul.f32 %v3514, %v3536
        %v3542 = vmul.f32 %v3515, %v3536
        %v3543 = vmul.f32 %v3516, %v3536
        %v3544 = vmul.f32 %v3517, %v3536
        %v3545 = vmul.f32 %v3518, %v3536
        %v3546 = vmul.f32 %v3519, %v3536
        %v3547 = vmul.f32 %v3520, %v3536
        %v3548 = vmul.f32 %v3521, %v3536
        %v3549 = vmul.f32 %v3522, %v3536
        %v3550 = vmul.f32 %v3523, %v3536
        %v3551 = vmul.f32 %v3524, %v3536
        %v3552 = vmul.f32 %v3525, %v3536
        %v3553 = vperm.slane %v479, 3
        %v3554 = vmul.f32 %v3537, %v3553
        %v3555 = vmul.f32 %v3538, %v3553
        %v3556 = vmul.f32 %v3539, %v3553
        %v3557 = vmul.f32 %v3540, %v3553
        %v3558 = vmul.f32 %v3541, %v3553
        %v3559 = vmul.f32 %v3542, %v3553
        %v3560 = vmul.f32 %v3543, %v3553
        %v3561 = vmul.f32 %v3544, %v3553
        %v3562 = vmul.f32 %v3545, %v3553
        %v3563 = vmul.f32 %v3546, %v3553
        %v3564 = vmul.f32 %v3547, %v3553
        %v3565 = vmul.f32 %v3548, %v3553
        %v3566 = vmul.f32 %v3549, %v3553
        %v3567 = vmul.f32 %v3550, %v3553
        %v3568 = vmul.f32 %v3551, %v3553
        %v3569 = vmul.f32 %v3552, %v3553
        %v3570 = vperm.slane %v479, 4
        %v3571 = vadd.f32 %v3554, %v3570
        %v3572 = vadd.f32 %v3555, %v3570
        %v3573 = vadd.f32 %v3556, %v3570
        %v3574 = vadd.f32 %v3557, %v3570
        %v3575 = vadd.f32 %v3558, %v3570
        %v3576 = vadd.f32 %v3559, %v3570
        %v3577 = vadd.f32 %v3560, %v3570
        %v3578 = vadd.f32 %v3561, %v3570
        %v3579 = vadd.f32 %v3562, %v3570
        %v3580 = vadd.f32 %v3563, %v3570
        %v3581 = vadd.f32 %v3564, %v3570
        %v3582 = vadd.f32 %v3565, %v3570
        %v3583 = vadd.f32 %v3566, %v3570
        %v3584 = vadd.f32 %v3567, %v3570
        %v3585 = vadd.f32 %v3568, %v3570
        %v3586 = vadd.f32 %v3569, %v3570
        %v3587 = vpack.c.bf16 %v3571, %v3571
        %v3588 = vpack.c.bf16 %v3572, %v3572
        %v3589 = vpack.c.bf16 %v3573, %v3573
        %v3590 = vpack.c.bf16 %v3574, %v3574
        %v3591 = vpack.c.bf16 %v3575, %v3575
        %v3592 = vpack.c.bf16 %v3576, %v3576
        %v3593 = vpack.c.bf16 %v3577, %v3577
        %v3594 = vpack.c.bf16 %v3578, %v3578
        %v3595 = vpack.c.bf16 %v3579, %v3579
        %v3596 = vpack.c.bf16 %v3580, %v3580
        %v3597 = vpack.c.bf16 %v3581, %v3581
        %v3598 = vpack.c.bf16 %v3582, %v3582
        %v3599 = vpack.c.bf16 %v3583, %v3583
        %v3600 = vpack.c.bf16 %v3584, %v3584
        %v3601 = vpack.c.bf16 %v3585, %v3585
        %v3602 = vpack.c.bf16 %v3586, %v3586
        %v3603 = vld [vmem:[#allocation8] sm:$0xff]
        %v3604 = vld [vmem:[#allocation8 + $0x8] sm:$0xff]
        %v3605 = vld [vmem:[#allocation8 + $0x10] sm:$0xff]
        %v3606 = vld [vmem:[#allocation8 + $0x18] sm:$0xff]
        %v3607 = vld [vmem:[#allocation8 + $0x20] sm:$0xff]
        %v3608 = vld [vmem:[#allocation8 + $0x28] sm:$0xff]
        %v3609 = vld [vmem:[#allocation8 + $0x30] sm:$0xff]
        %v3610 = vld [vmem:[#allocation8 + $0x38] sm:$0xff]
        %v3611 = vld [vmem:[#allocation8 + $0x40] sm:$0xff]
        %v3612 = vld [vmem:[#allocation8 + $0x48] sm:$0xff]
        %v3613 = vld [vmem:[#allocation8 + $0x50] sm:$0xff]
        %v3614 = vld [vmem:[#allocation8 + $0x58] sm:$0xff]
        %v3615 = vld [vmem:[#allocation8 + $0x60] sm:$0xff]
        %v3616 = vld [vmem:[#allocation8 + $0x68] sm:$0xff]
        %v3617 = vld [vmem:[#allocation8 + $0x70] sm:$0xff]
        %v3618 = vld [vmem:[#allocation8 + $0x78] sm:$0xff]
        %v3619 = vld [vmem:[#allocation8 + $0x80] sm:$0xff]
        %v3620 = vld [vmem:[#allocation8 + $0x88] sm:$0xff]
        %v3621 = vld [vmem:[#allocation8 + $0x90] sm:$0xff]
        %v3622 = vld [vmem:[#allocation8 + $0x98] sm:$0xff]
        %v3623 = vld [vmem:[#allocation8 + $0xa0] sm:$0xff]
        %v3624 = vld [vmem:[#allocation8 + $0xa8] sm:$0xff]
        %v3625 = vld [vmem:[#allocation8 + $0xb0] sm:$0xff]
        %v3626 = vld [vmem:[#allocation8 + $0xb8] sm:$0xff]
        %v3627 = vld [vmem:[#allocation8 + $0xc0] sm:$0xff]
        %v3628 = vld [vmem:[#allocation8 + $0xc8] sm:$0xff]
        %v3629 = vld [vmem:[#allocation8 + $0xd0] sm:$0xff]
        %v3630 = vld [vmem:[#allocation8 + $0xd8] sm:$0xff]
        %v3631 = vld [vmem:[#allocation8 + $0xe0] sm:$0xff]
        %v3632 = vld [vmem:[#allocation8 + $0xe8] sm:$0xff]
        %v3633 = vld [vmem:[#allocation8 + $0xf0] sm:$0xff]
        %v3634 = vld [vmem:[#allocation8 + $0xf8] sm:$0xff]
        %v3635 = vld [vmem:[%s7] sm:$0xf]
        %v3637 = vperm.slane %v3635, 0
        %v3638 = vperm.slane %v3635, 1
        %v3639 = vperm.slane %v3635, 2
        %v3640 = vperm.slane %v3635, 3
        %v3661 = vunpack.c.l.b16 %v3587
        %v3662 = vunpack.c.l.b16 %v3588
        %v3663 = vunpack.c.l.b16 %v3589
        %v3664 = vunpack.c.l.b16 %v3590
        %v3665 = vunpack.c.l.b16 %v3591
        %v3666 = vunpack.c.l.b16 %v3592
        %v3667 = vunpack.c.l.b16 %v3593
        %v3668 = vunpack.c.l.b16 %v3594
        %v3669 = vunpack.c.l.b16 %v3595
        %v3670 = vunpack.c.l.b16 %v3596
        %v3671 = vunpack.c.l.b16 %v3597
        %v3672 = vunpack.c.l.b16 %v3598
        %v3673 = vunpack.c.l.b16 %v3599
        %v3674 = vunpack.c.l.b16 %v3600
        %v3675 = vunpack.c.l.b16 %v3601
        %v3676 = vunpack.c.l.b16 %v3602
        %v3677 = vpack.c.b16 %v3662, %v3661
        %v3678 = vpack.c.b16 %v3664, %v3663
        %v3679 = vpack.c.b16 %v3666, %v3665
        %v3680 = vpack.c.b16 %v3668, %v3667
        %v3681 = vpack.c.b16 %v3670, %v3669
        %v3682 = vpack.c.b16 %v3672, %v3671
        %v3683 = vpack.c.b16 %v3674, %v3673
        %v3684 = vpack.c.b16 %v3676, %v3675
        %v3725 = vunpack.c.l.b16 %v3603
        %v3726 = vunpack.c.h.b16 %v3603
        %v3727 = vunpack.c.l.b16 %v3604
        %v3728 = vunpack.c.h.b16 %v3604
        %v3729 = vunpack.c.l.b16 %v3605
        %v3730 = vunpack.c.h.b16 %v3605
        %v3731 = vunpack.c.l.b16 %v3606
        %v3732 = vunpack.c.h.b16 %v3606
        %v3733 = vunpack.c.l.b16 %v3607
        %v3734 = vunpack.c.h.b16 %v3607
        %v3735 = vunpack.c.l.b16 %v3608
        %v3736 = vunpack.c.h.b16 %v3608
        %v3737 = vunpack.c.l.b16 %v3609
        %v3738 = vunpack.c.h.b16 %v3609
        %v3739 = vunpack.c.l.b16 %v3610
        %v3740 = vunpack.c.h.b16 %v3610
        %v3741 = vunpack.c.l.b16 %v3611
        %v3742 = vunpack.c.h.b16 %v3611
        %v3743 = vunpack.c.l.b16 %v3612
        %v3744 = vunpack.c.h.b16 %v3612
        %v3745 = vunpack.c.l.b16 %v3613
        %v3746 = vunpack.c.h.b16 %v3613
        %v3747 = vunpack.c.l.b16 %v3614
        %v3748 = vunpack.c.h.b16 %v3614
        %v3749 = vunpack.c.l.b16 %v3615
        %v3750 = vunpack.c.h.b16 %v3615
        %v3751 = vunpack.c.l.b16 %v3616
        %v3752 = vunpack.c.h.b16 %v3616
        %v3753 = vunpack.c.l.b16 %v3617
        %v3754 = vunpack.c.h.b16 %v3617
        %v3755 = vunpack.c.l.b16 %v3618
        %v3756 = vunpack.c.h.b16 %v3618
        %v3757 = vunpack.c.l.b16 %v3619
        %v3758 = vunpack.c.h.b16 %v3619
        %v3759 = vunpack.c.l.b16 %v3620
        %v3760 = vunpack.c.h.b16 %v3620
        %v3761 = vunpack.c.l.b16 %v3621
        %v3762 = vunpack.c.h.b16 %v3621
        %v3763 = vunpack.c.l.b16 %v3622
        %v3764 = vunpack.c.h.b16 %v3622
        %v3765 = vunpack.c.l.b16 %v3623
        %v3766 = vunpack.c.h.b16 %v3623
        %v3767 = vunpack.c.l.b16 %v3624
        %v3768 = vunpack.c.h.b16 %v3624
        %v3769 = vunpack.c.l.b16 %v3625
        %v3770 = vunpack.c.h.b16 %v3625
        %v3771 = vunpack.c.l.b16 %v3626
        %v3772 = vunpack.c.h.b16 %v3626
        %v3773 = vunpack.c.l.b16 %v3627
        %v3774 = vunpack.c.h.b16 %v3627
        %v3775 = vunpack.c.l.b16 %v3628
        %v3776 = vunpack.c.h.b16 %v3628
        %v3777 = vunpack.c.l.b16 %v3629
        %v3778 = vunpack.c.h.b16 %v3629
        %v3779 = vunpack.c.l.b16 %v3630
        %v3780 = vunpack.c.h.b16 %v3630
        %v3781 = vunpack.c.l.b16 %v3631
        %v3782 = vunpack.c.h.b16 %v3631
        %v3783 = vunpack.c.l.b16 %v3632
        %v3784 = vunpack.c.h.b16 %v3632
        %v3785 = vunpack.c.l.b16 %v3633
        %v3786 = vunpack.c.h.b16 %v3633
        %v3787 = vunpack.c.l.b16 %v3634
        %v3788 = vunpack.c.h.b16 %v3634
        %v3789 = vpack.c.b16 %v3729, %v3725
        %v3790 = vpack.c.b16 %v3730, %v3726
        %v3791 = vpack.c.b16 %v3731, %v3727
        %v3792 = vpack.c.b16 %v3732, %v3728
        %v3793 = vpack.c.b16 %v3737, %v3733
        %v3794 = vpack.c.b16 %v3738, %v3734
        %v3795 = vpack.c.b16 %v3739, %v3735
        %v3796 = vpack.c.b16 %v3740, %v3736
        %v3797 = vpack.c.b16 %v3745, %v3741
        %v3798 = vpack.c.b16 %v3746, %v3742
        %v3799 = vpack.c.b16 %v3747, %v3743
        %v3800 = vpack.c.b16 %v3748, %v3744
        %v3801 = vpack.c.b16 %v3753, %v3749
        %v3802 = vpack.c.b16 %v3754, %v3750
        %v3803 = vpack.c.b16 %v3755, %v3751
        %v3804 = vpack.c.b16 %v3756, %v3752
        %v3805 = vpack.c.b16 %v3761, %v3757
        %v3806 = vpack.c.b16 %v3762, %v3758
        %v3807 = vpack.c.b16 %v3763, %v3759
        %v3808 = vpack.c.b16 %v3764, %v3760
        %v3809 = vpack.c.b16 %v3769, %v3765
        %v3810 = vpack.c.b16 %v3770, %v3766
        %v3811 = vpack.c.b16 %v3771, %v3767
        %v3812 = vpack.c.b16 %v3772, %v3768
        %v3813 = vpack.c.b16 %v3777, %v3773
        %v3814 = vpack.c.b16 %v3778, %v3774
        %v3815 = vpack.c.b16 %v3779, %v3775
        %v3816 = vpack.c.b16 %v3780, %v3776
        %v3817 = vpack.c.b16 %v3785, %v3781
        %v3818 = vpack.c.b16 %v3786, %v3782
        %v3819 = vpack.c.b16 %v3787, %v3783
        %v3820 = vpack.c.b16 %v3788, %v3784
        %3853 = vmatpush.bf16.msra.mxu0 %v3817
        %3854 = vmatpush.bf16.msra.mxu0 %v3813
        %3855 = vmatpush.bf16.msra.mxu0 %v3809
        %3856 = vmatpush.bf16.msra.mxu0 %v3805
        %3857 = vmatpush.bf16.msra.mxu0 %v3801
        %3858 = vmatpush.bf16.msra.mxu0 %v3797
        %3859 = vmatpush.bf16.msra.mxu0 %v3793
        %3860 = vmatpush.bf16.msra.mxu0 %v3789
        %3861 = vmatmul.bf16.gmra.mxu0 %v3677
        %v3862 = vpop.f32.mrf.mxu0
        %v3863 = vadd.f32 %v3637, %v3862
        %v3864 = vpop.f32.mrf.mxu0
        %v3865 = vadd.f32 %v3637, %v3864
        %3866 = vmatmul.bf16.gmra.mxu0 %v3678
        %v3867 = vpop.f32.mrf.mxu0
        %v3868 = vadd.f32 %v3637, %v3867
        %v3869 = vpop.f32.mrf.mxu0
        %v3870 = vadd.f32 %v3637, %v3869
        %3871 = vmatmul.bf16.gmra.mxu0 %v3679
        %v3872 = vpop.f32.mrf.mxu0
        %v3873 = vadd.f32 %v3637, %v3872
        %v3874 = vpop.f32.mrf.mxu0
        %v3875 = vadd.f32 %v3637, %v3874
        %3876 = vmatmul.bf16.gmra.mxu0 %v3680
        %v3877 = vpop.f32.mrf.mxu0
        %v3878 = vadd.f32 %v3637, %v3877
        %v3879 = vpop.f32.mrf.mxu0
        %v3880 = vadd.f32 %v3637, %v3879
        %3881 = vmatmul.bf16.gmra.mxu0 %v3681
        %v3882 = vpop.f32.mrf.mxu0
        %v3883 = vadd.f32 %v3637, %v3882
        %v3884 = vpop.f32.mrf.mxu0
        %v3885 = vadd.f32 %v3637, %v3884
        %3886 = vmatmul.bf16.gmra.mxu0 %v3682
        %v3887 = vpop.f32.mrf.mxu0
        %v3888 = vadd.f32 %v3637, %v3887
        %v3889 = vpop.f32.mrf.mxu0
        %v3890 = vadd.f32 %v3637, %v3889
        %3891 = vmatmul.bf16.gmra.mxu0 %v3683
        %v3892 = vpop.f32.mrf.mxu0
        %v3893 = vadd.f32 %v3637, %v3892
        %v3894 = vpop.f32.mrf.mxu0
        %v3895 = vadd.f32 %v3637, %v3894
        %3896 = vmatmul.bf16.gmra.mxu0 %v3684
        %v3897 = vpop.f32.mrf.mxu0
        %v3898 = vadd.f32 %v3637, %v3897
        %v3899 = vpop.f32.mrf.mxu0
        %v3900 = vadd.f32 %v3637, %v3899
        %3901 = vdwg.mxu0
        %3902 = vmatpush.bf16.msra.mxu0 %v3818
        %3903 = vmatpush.bf16.msra.mxu0 %v3814
        %3904 = vmatpush.bf16.msra.mxu0 %v3810
        %3905 = vmatpush.bf16.msra.mxu0 %v3806
        %3906 = vmatpush.bf16.msra.mxu0 %v3802
        %3907 = vmatpush.bf16.msra.mxu0 %v3798
        %3908 = vmatpush.bf16.msra.mxu0 %v3794
        %3909 = vmatpush.bf16.msra.mxu0 %v3790
        %3910 = vmatmul.bf16.gmra.mxu0 %v3677
        %v3911 = vpop.f32.mrf.mxu0
        %v3912 = vadd.f32 %v3638, %v3911
        %v3913 = vpop.f32.mrf.mxu0
        %v3914 = vadd.f32 %v3638, %v3913
        %3915 = vmatmul.bf16.gmra.mxu0 %v3678
        %v3916 = vpop.f32.mrf.mxu0
        %v3917 = vadd.f32 %v3638, %v3916
        %v3918 = vpop.f32.mrf.mxu0
        %v3919 = vadd.f32 %v3638, %v3918
        %3920 = vmatmul.bf16.gmra.mxu0 %v3679
        %v3921 = vpop.f32.mrf.mxu0
        %v3922 = vadd.f32 %v3638, %v3921
        %v3923 = vpop.f32.mrf.mxu0
        %v3924 = vadd.f32 %v3638, %v3923
        %3925 = vmatmul.bf16.gmra.mxu0 %v3680
        %v3926 = vpop.f32.mrf.mxu0
        %v3927 = vadd.f32 %v3638, %v3926
        %v3928 = vpop.f32.mrf.mxu0
        %v3929 = vadd.f32 %v3638, %v3928
        %3930 = vmatmul.bf16.gmra.mxu0 %v3681
        %v3931 = vpop.f32.mrf.mxu0
        %v3932 = vadd.f32 %v3638, %v3931
        %v3933 = vpop.f32.mrf.mxu0
        %v3934 = vadd.f32 %v3638, %v3933
        %3935 = vmatmul.bf16.gmra.mxu0 %v3682
        %v3936 = vpop.f32.mrf.mxu0
        %v3937 = vadd.f32 %v3638, %v3936
        %v3938 = vpop.f32.mrf.mxu0
        %v3939 = vadd.f32 %v3638, %v3938
        %3940 = vmatmul.bf16.gmra.mxu0 %v3683
        %v3941 = vpop.f32.mrf.mxu0
        %v3942 = vadd.f32 %v3638, %v3941
        %v3943 = vpop.f32.mrf.mxu0
        %v3944 = vadd.f32 %v3638, %v3943
        %3945 = vmatmul.bf16.gmra.mxu0 %v3684
        %v3946 = vpop.f32.mrf.mxu0
        %v3947 = vadd.f32 %v3638, %v3946
        %v3948 = vpop.f32.mrf.mxu0
        %v3949 = vadd.f32 %v3638, %v3948
        %3950 = vdwg.mxu0
        %3951 = vmatpush.bf16.msra.mxu0 %v3819
        %3952 = vmatpush.bf16.msra.mxu0 %v3815
        %3953 = vmatpush.bf16.msra.mxu0 %v3811
        %3954 = vmatpush.bf16.msra.mxu0 %v3807
        %3955 = vmatpush.bf16.msra.mxu0 %v3803
        %3956 = vmatpush.bf16.msra.mxu0 %v3799
        %3957 = vmatpush.bf16.msra.mxu0 %v3795
        %3958 = vmatpush.bf16.msra.mxu0 %v3791
        %3959 = vmatmul.bf16.gmra.mxu0 %v3677
        %v3960 = vpop.f32.mrf.mxu0
        %v3961 = vadd.f32 %v3639, %v3960
        %v3962 = vpop.f32.mrf.mxu0
        %v3963 = vadd.f32 %v3639, %v3962
        %3964 = vmatmul.bf16.gmra.mxu0 %v3678
        %v3965 = vpop.f32.mrf.mxu0
        %v3966 = vadd.f32 %v3639, %v3965
        %v3967 = vpop.f32.mrf.mxu0
        %v3968 = vadd.f32 %v3639, %v3967
        %3969 = vmatmul.bf16.gmra.mxu0 %v3679
        %v3970 = vpop.f32.mrf.mxu0
        %v3971 = vadd.f32 %v3639, %v3970
        %v3972 = vpop.f32.mrf.mxu0
        %v3973 = vadd.f32 %v3639, %v3972
        %3974 = vmatmul.bf16.gmra.mxu0 %v3680
        %v3975 = vpop.f32.mrf.mxu0
        %v3976 = vadd.f32 %v3639, %v3975
        %v3977 = vpop.f32.mrf.mxu0
        %v3978 = vadd.f32 %v3639, %v3977
        %3979 = vmatmul.bf16.gmra.mxu0 %v3681
        %v3980 = vpop.f32.mrf.mxu0
        %v3981 = vadd.f32 %v3639, %v3980
        %v3982 = vpop.f32.mrf.mxu0
        %v3983 = vadd.f32 %v3639, %v3982
        %3984 = vmatmul.bf16.gmra.mxu0 %v3682
        %v3985 = vpop.f32.mrf.mxu0
        %v3986 = vadd.f32 %v3639, %v3985
        %v3987 = vpop.f32.mrf.mxu0
        %v3988 = vadd.f32 %v3639, %v3987
        %3989 = vmatmul.bf16.gmra.mxu0 %v3683
        %v3990 = vpop.f32.mrf.mxu0
        %v3991 = vadd.f32 %v3639, %v3990
        %v3992 = vpop.f32.mrf.mxu0
        %v3993 = vadd.f32 %v3639, %v3992
        %3994 = vmatmul.bf16.gmra.mxu0 %v3684
        %v3995 = vpop.f32.mrf.mxu0
        %v3996 = vadd.f32 %v3639, %v3995
        %v3997 = vpop.f32.mrf.mxu0
        %v3998 = vadd.f32 %v3639, %v3997
        %3999 = vdwg.mxu0
        %4000 = vmatpush.bf16.msra.mxu0 %v3820
        %4001 = vmatpush.bf16.msra.mxu0 %v3816
        %4002 = vmatpush.bf16.msra.mxu0 %v3812
        %4003 = vmatpush.bf16.msra.mxu0 %v3808
        %4004 = vmatpush.bf16.msra.mxu0 %v3804
        %4005 = vmatpush.bf16.msra.mxu0 %v3800
        %4006 = vmatpush.bf16.msra.mxu0 %v3796
        %4007 = vmatpush.bf16.msra.mxu0 %v3792
        %4008 = vmatmul.bf16.gmra.mxu0 %v3677
        %v4009 = vpop.f32.mrf.mxu0
        %v4010 = vadd.f32 %v3640, %v4009
        %v4011 = vpop.f32.mrf.mxu0
        %v4012 = vadd.f32 %v3640, %v4011
        %4013 = vmatmul.bf16.gmra.mxu0 %v3678
        %v4014 = vpop.f32.mrf.mxu0
        %v4015 = vadd.f32 %v3640, %v4014
        %v4016 = vpop.f32.mrf.mxu0
        %v4017 = vadd.f32 %v3640, %v4016
        %4018 = vmatmul.bf16.gmra.mxu0 %v3679
        %v4019 = vpop.f32.mrf.mxu0
        %v4020 = vadd.f32 %v3640, %v4019
        %v4021 = vpop.f32.mrf.mxu0
        %v4022 = vadd.f32 %v3640, %v4021
        %4023 = vmatmul.bf16.gmra.mxu0 %v3680
        %v4024 = vpop.f32.mrf.mxu0
        %v4025 = vadd.f32 %v3640, %v4024
        %v4026 = vpop.f32.mrf.mxu0
        %v4027 = vadd.f32 %v3640, %v4026
        %4028 = vmatmul.bf16.gmra.mxu0 %v3681
        %v4029 = vpop.f32.mrf.mxu0
        %v4030 = vadd.f32 %v3640, %v4029
        %v4031 = vpop.f32.mrf.mxu0
        %v4032 = vadd.f32 %v3640, %v4031
        %4033 = vmatmul.bf16.gmra.mxu0 %v3682
        %v4034 = vpop.f32.mrf.mxu0
        %v4035 = vadd.f32 %v3640, %v4034
        %v4036 = vpop.f32.mrf.mxu0
        %v4037 = vadd.f32 %v3640, %v4036
        %4038 = vmatmul.bf16.gmra.mxu0 %v3683
        %v4039 = vpop.f32.mrf.mxu0
        %v4040 = vadd.f32 %v3640, %v4039
        %v4041 = vpop.f32.mrf.mxu0
        %v4042 = vadd.f32 %v3640, %v4041
        %4043 = vmatmul.bf16.gmra.mxu0 %v3684
        %v4044 = vpop.f32.mrf.mxu0
        %v4045 = vadd.f32 %v3640, %v4044
        %v4046 = vpop.f32.mrf.mxu0
        %v4047 = vadd.f32 %v3640, %v4046
        %4048 = vdwg.mxu0
        %v4049 = vmul.f32 %v3863, 0.5
        %v4050 = vmul.f32 %v3912, 0.5
        %v4051 = vmul.f32 %v3961, 0.5
        %v4052 = vmul.f32 %v4010, 0.5
        %v4053 = vmul.f32 %v3865, 0.5
        %v4054 = vmul.f32 %v3914, 0.5
        %v4055 = vmul.f32 %v3963, 0.5
        %v4056 = vmul.f32 %v4012, 0.5
        %v4057 = vmul.f32 %v3868, 0.5
        %v4058 = vmul.f32 %v3917, 0.5
        %v4059 = vmul.f32 %v3966, 0.5
        %v4060 = vmul.f32 %v4015, 0.5
        %v4061 = vmul.f32 %v3870, 0.5
        %v4062 = vmul.f32 %v3919, 0.5
        %v4063 = vmul.f32 %v3968, 0.5
        %v4064 = vmul.f32 %v4017, 0.5
        %v4065 = vmul.f32 %v3873, 0.5
        %v4066 = vmul.f32 %v3922, 0.5
        %v4067 = vmul.f32 %v3971, 0.5
        %v4068 = vmul.f32 %v4020, 0.5
        %v4069 = vmul.f32 %v3875, 0.5
        %v4070 = vmul.f32 %v3924, 0.5
        %v4071 = vmul.f32 %v3973, 0.5
        %v4072 = vmul.f32 %v4022, 0.5
        %v4073 = vmul.f32 %v3878, 0.5
        %v4074 = vmul.f32 %v3927, 0.5
        %v4075 = vmul.f32 %v3976, 0.5
        %v4076 = vmul.f32 %v4025, 0.5
        %v4077 = vmul.f32 %v3880, 0.5
        %v4078 = vmul.f32 %v3929, 0.5
        %v4079 = vmul.f32 %v3978, 0.5
        %v4080 = vmul.f32 %v4027, 0.5
        %v4081 = vmul.f32 %v3883, 0.5
        %v4082 = vmul.f32 %v3932, 0.5
        %v4083 = vmul.f32 %v3981, 0.5
        %v4084 = vmul.f32 %v4030, 0.5
        %v4085 = vmul.f32 %v3885, 0.5
        %v4086 = vmul.f32 %v3934, 0.5
        %v4087 = vmul.f32 %v3983, 0.5
        %v4088 = vmul.f32 %v4032, 0.5
        %v4089 = vmul.f32 %v3888, 0.5
        %v4090 = vmul.f32 %v3937, 0.5
        %v4091 = vmul.f32 %v3986, 0.5
        %v4092 = vmul.f32 %v4035, 0.5
        %v4093 = vmul.f32 %v3890, 0.5
        %v4094 = vmul.f32 %v3939, 0.5
        %v4095 = vmul.f32 %v3988, 0.5
        %v4096 = vmul.f32 %v4037, 0.5
        %v4097 = vmul.f32 %v3893, 0.5
        %v4098 = vmul.f32 %v3942, 0.5
        %v4099 = vmul.f32 %v3991, 0.5
        %v4100 = vmul.f32 %v4040, 0.5
        %v4101 = vmul.f32 %v3895, 0.5
        %v4102 = vmul.f32 %v3944, 0.5
        %v4103 = vmul.f32 %v3993, 0.5
        %v4104 = vmul.f32 %v4042, 0.5
        %v4105 = vmul.f32 %v3898, 0.5
        %v4106 = vmul.f32 %v3947, 0.5
        %v4107 = vmul.f32 %v3996, 0.5
        %v4108 = vmul.f32 %v4045, 0.5
        %v4109 = vmul.f32 %v3900, 0.5
        %v4110 = vmul.f32 %v3949, 0.5
        %v4111 = vmul.f32 %v3998, 0.5
        %v4112 = vmul.f32 %v4047, 0.5
        %v4113 = vmul.f32 %v3863, %v3863
        %v4114 = vmul.f32 %v3912, %v3912
        %v4115 = vmul.f32 %v3961, %v3961
        %v4116 = vmul.f32 %v4010, %v4010
        %v4117 = vmul.f32 %v3865, %v3865
        %v4118 = vmul.f32 %v3914, %v3914
        %v4119 = vmul.f32 %v3963, %v3963
        %v4120 = vmul.f32 %v4012, %v4012
        %v4121 = vmul.f32 %v3868, %v3868
        %v4122 = vmul.f32 %v3917, %v3917
        %v4123 = vmul.f32 %v3966, %v3966
        %v4124 = vmul.f32 %v4015, %v4015
        %v4125 = vmul.f32 %v3870, %v3870
        %v4126 = vmul.f32 %v3919, %v3919
        %v4127 = vmul.f32 %v3968, %v3968
        %v4128 = vmul.f32 %v4017, %v4017
        %v4129 = vmul.f32 %v3873, %v3873
        %v4130 = vmul.f32 %v3922, %v3922
        %v4131 = vmul.f32 %v3971, %v3971
        %v4132 = vmul.f32 %v4020, %v4020
        %v4133 = vmul.f32 %v3875, %v3875
        %v4134 = vmul.f32 %v3924, %v3924
        %v4135 = vmul.f32 %v3973, %v3973
        %v4136 = vmul.f32 %v4022, %v4022
        %v4137 = vmul.f32 %v3878, %v3878
        %v4138 = vmul.f32 %v3927, %v3927
        %v4139 = vmul.f32 %v3976, %v3976
        %v4140 = vmul.f32 %v4025, %v4025
        %v4141 = vmul.f32 %v3880, %v3880
        %v4142 = vmul.f32 %v3929, %v3929
        %v4143 = vmul.f32 %v3978, %v3978
        %v4144 = vmul.f32 %v4027, %v4027
        %v4145 = vmul.f32 %v3883, %v3883
        %v4146 = vmul.f32 %v3932, %v3932
        %v4147 = vmul.f32 %v3981, %v3981
        %v4148 = vmul.f32 %v4030, %v4030
        %v4149 = vmul.f32 %v3885, %v3885
        %v4150 = vmul.f32 %v3934, %v3934
        %v4151 = vmul.f32 %v3983, %v3983
        %v4152 = vmul.f32 %v4032, %v4032
        %v4153 = vmul.f32 %v3888, %v3888
        %v4154 = vmul.f32 %v3937, %v3937
        %v4155 = vmul.f32 %v3986, %v3986
        %v4156 = vmul.f32 %v4035, %v4035
        %v4157 = vmul.f32 %v3890, %v3890
        %v4158 = vmul.f32 %v3939, %v3939
        %v4159 = vmul.f32 %v3988, %v3988
        %v4160 = vmul.f32 %v4037, %v4037
        %v4161 = vmul.f32 %v3893, %v3893
        %v4162 = vmul.f32 %v3942, %v3942
        %v4163 = vmul.f32 %v3991, %v3991
        %v4164 = vmul.f32 %v4040, %v4040
        %v4165 = vmul.f32 %v3895, %v3895
        %v4166 = vmul.f32 %v3944, %v3944
        %v4167 = vmul.f32 %v3993, %v3993
        %v4168 = vmul.f32 %v4042, %v4042
        %v4169 = vmul.f32 %v3898, %v3898
        %v4170 = vmul.f32 %v3947, %v3947
        %v4171 = vmul.f32 %v3996, %v3996
        %v4172 = vmul.f32 %v4045, %v4045
        %v4173 = vmul.f32 %v3900, %v3900
        %v4174 = vmul.f32 %v3949, %v3949
        %v4175 = vmul.f32 %v3998, %v3998
        %v4176 = vmul.f32 %v4047, %v4047
        %v4177 = vmul.f32 %v4113, %v3863
        %v4178 = vmul.f32 %v4114, %v3912
        %v4179 = vmul.f32 %v4115, %v3961
        %v4180 = vmul.f32 %v4116, %v4010
        %v4181 = vmul.f32 %v4117, %v3865
        %v4182 = vmul.f32 %v4118, %v3914
        %v4183 = vmul.f32 %v4119, %v3963
        %v4184 = vmul.f32 %v4120, %v4012
        %v4185 = vmul.f32 %v4121, %v3868
        %v4186 = vmul.f32 %v4122, %v3917
        %v4187 = vmul.f32 %v4123, %v3966
        %v4188 = vmul.f32 %v4124, %v4015
        %v4189 = vmul.f32 %v4125, %v3870
        %v4190 = vmul.f32 %v4126, %v3919
        %v4191 = vmul.f32 %v4127, %v3968
        %v4192 = vmul.f32 %v4128, %v4017
        %v4193 = vmul.f32 %v4129, %v3873
        %v4194 = vmul.f32 %v4130, %v3922
        %v4195 = vmul.f32 %v4131, %v3971
        %v4196 = vmul.f32 %v4132, %v4020
        %v4197 = vmul.f32 %v4133, %v3875
        %v4198 = vmul.f32 %v4134, %v3924
        %v4199 = vmul.f32 %v4135, %v3973
        %v4200 = vmul.f32 %v4136, %v4022
        %v4201 = vmul.f32 %v4137, %v3878
        %v4202 = vmul.f32 %v4138, %v3927
        %v4203 = vmul.f32 %v4139, %v3976
        %v4204 = vmul.f32 %v4140, %v4025
        %v4205 = vmul.f32 %v4141, %v3880
        %v4206 = vmul.f32 %v4142, %v3929
        %v4207 = vmul.f32 %v4143, %v3978
        %v4208 = vmul.f32 %v4144, %v4027
        %v4209 = vmul.f32 %v4145, %v3883
        %v4210 = vmul.f32 %v4146, %v3932
        %v4211 = vmul.f32 %v4147, %v3981
        %v4212 = vmul.f32 %v4148, %v4030
        %v4213 = vmul.f32 %v4149, %v3885
        %v4214 = vmul.f32 %v4150, %v3934
        %v4215 = vmul.f32 %v4151, %v3983
        %v4216 = vmul.f32 %v4152, %v4032
        %v4217 = vmul.f32 %v4153, %v3888
        %v4218 = vmul.f32 %v4154, %v3937
        %v4219 = vmul.f32 %v4155, %v3986
        %v4220 = vmul.f32 %v4156, %v4035
        %v4221 = vmul.f32 %v4157, %v3890
        %v4222 = vmul.f32 %v4158, %v3939
        %v4223 = vmul.f32 %v4159, %v3988
        %v4224 = vmul.f32 %v4160, %v4037
        %v4225 = vmul.f32 %v4161, %v3893
        %v4226 = vmul.f32 %v4162, %v3942
        %v4227 = vmul.f32 %v4163, %v3991
        %v4228 = vmul.f32 %v4164, %v4040
        %v4229 = vmul.f32 %v4165, %v3895
        %v4230 = vmul.f32 %v4166, %v3944
        %v4231 = vmul.f32 %v4167, %v3993
        %v4232 = vmul.f32 %v4168, %v4042
        %v4233 = vmul.f32 %v4169, %v3898
        %v4234 = vmul.f32 %v4170, %v3947
        %v4235 = vmul.f32 %v4171, %v3996
        %v4236 = vmul.f32 %v4172, %v4045
        %v4237 = vmul.f32 %v4173, %v3900
        %v4238 = vmul.f32 %v4174, %v3949
        %v4239 = vmul.f32 %v4175, %v3998
        %v4240 = vmul.f32 %v4176, %v4047
        %v4241 = vmul.f32 %v4177, 0.044715
        %v4242 = vmul.f32 %v4178, 0.044715
        %v4243 = vmul.f32 %v4179, 0.044715
        %v4244 = vmul.f32 %v4180, 0.044715
        %v4245 = vmul.f32 %v4181, 0.044715
        %v4246 = vmul.f32 %v4182, 0.044715
        %v4247 = vmul.f32 %v4183, 0.044715
        %v4248 = vmul.f32 %v4184, 0.044715
        %v4249 = vmul.f32 %v4185, 0.044715
        %v4250 = vmul.f32 %v4186, 0.044715
        %v4251 = vmul.f32 %v4187, 0.044715
        %v4252 = vmul.f32 %v4188, 0.044715
        %v4253 = vmul.f32 %v4189, 0.044715
        %v4254 = vmul.f32 %v4190, 0.044715
        %v4255 = vmul.f32 %v4191, 0.044715
        %v4256 = vmul.f32 %v4192, 0.044715
        %v4257 = vmul.f32 %v4193, 0.044715
        %v4258 = vmul.f32 %v4194, 0.044715
        %v4259 = vmul.f32 %v4195, 0.044715
        %v4260 = vmul.f32 %v4196, 0.044715
        %v4261 = vmul.f32 %v4197, 0.044715
        %v4262 = vmul.f32 %v4198, 0.044715
        %v4263 = vmul.f32 %v4199, 0.044715
        %v4264 = vmul.f32 %v4200, 0.044715
        %v4265 = vmul.f32 %v4201, 0.044715
        %v4266 = vmul.f32 %v4202, 0.044715
        %v4267 = vmul.f32 %v4203, 0.044715
        %v4268 = vmul.f32 %v4204, 0.044715
        %v4269 = vmul.f32 %v4205, 0.044715
        %v4270 = vmul.f32 %v4206, 0.044715
        %v4271 = vmul.f32 %v4207, 0.044715
        %v4272 = vmul.f32 %v4208, 0.044715
        %v4273 = vmul.f32 %v4209, 0.044715
        %v4274 = vmul.f32 %v4210, 0.044715
        %v4275 = vmul.f32 %v4211, 0.044715
        %v4276 = vmul.f32 %v4212, 0.044715
        %v4277 = vmul.f32 %v4213, 0.044715
        %v4278 = vmul.f32 %v4214, 0.044715
        %v4279 = vmul.f32 %v4215, 0.044715
        %v4280 = vmul.f32 %v4216, 0.044715
        %v4281 = vmul.f32 %v4217, 0.044715
        %v4282 = vmul.f32 %v4218, 0.044715
        %v4283 = vmul.f32 %v4219, 0.044715
        %v4284 = vmul.f32 %v4220, 0.044715
        %v4285 = vmul.f32 %v4221, 0.044715
        %v4286 = vmul.f32 %v4222, 0.044715
        %v4287 = vmul.f32 %v4223, 0.044715
        %v4288 = vmul.f32 %v4224, 0.044715
        %v4289 = vmul.f32 %v4225, 0.044715
        %v4290 = vmul.f32 %v4226, 0.044715
        %v4291 = vmul.f32 %v4227, 0.044715
        %v4292 = vmul.f32 %v4228, 0.044715
        %v4293 = vmul.f32 %v4229, 0.044715
        %v4294 = vmul.f32 %v4230, 0.044715
        %v4295 = vmul.f32 %v4231, 0.044715
        %v4296 = vmul.f32 %v4232, 0.044715
        %v4297 = vmul.f32 %v4233, 0.044715
        %v4298 = vmul.f32 %v4234, 0.044715
        %v4299 = vmul.f32 %v4235, 0.044715
        %v4300 = vmul.f32 %v4236, 0.044715
        %v4301 = vmul.f32 %v4237, 0.044715
        %v4302 = vmul.f32 %v4238, 0.044715
        %v4303 = vmul.f32 %v4239, 0.044715
        %v4304 = vmul.f32 %v4240, 0.044715
        %v4305 = vadd.f32 %v3863, %v4241
        %v4306 = vadd.f32 %v3912, %v4242
        %v4307 = vadd.f32 %v3961, %v4243
        %v4308 = vadd.f32 %v4010, %v4244
        %v4309 = vadd.f32 %v3865, %v4245
        %v4310 = vadd.f32 %v3914, %v4246
        %v4311 = vadd.f32 %v3963, %v4247
        %v4312 = vadd.f32 %v4012, %v4248
        %v4313 = vadd.f32 %v3868, %v4249
        %v4314 = vadd.f32 %v3917, %v4250
        %v4315 = vadd.f32 %v3966, %v4251
        %v4316 = vadd.f32 %v4015, %v4252
        %v4317 = vadd.f32 %v3870, %v4253
        %v4318 = vadd.f32 %v3919, %v4254
        %v4319 = vadd.f32 %v3968, %v4255
        %v4320 = vadd.f32 %v4017, %v4256
        %v4321 = vadd.f32 %v3873, %v4257
        %v4322 = vadd.f32 %v3922, %v4258
        %v4323 = vadd.f32 %v3971, %v4259
        %v4324 = vadd.f32 %v4020, %v4260
        %v4325 = vadd.f32 %v3875, %v4261
        %v4326 = vadd.f32 %v3924, %v4262
        %v4327 = vadd.f32 %v3973, %v4263
        %v4328 = vadd.f32 %v4022, %v4264
        %v4329 = vadd.f32 %v3878, %v4265
        %v4330 = vadd.f32 %v3927, %v4266
        %v4331 = vadd.f32 %v3976, %v4267
        %v4332 = vadd.f32 %v4025, %v4268
        %v4333 = vadd.f32 %v3880, %v4269
        %v4334 = vadd.f32 %v3929, %v4270
        %v4335 = vadd.f32 %v3978, %v4271
        %v4336 = vadd.f32 %v4027, %v4272
        %v4337 = vadd.f32 %v3883, %v4273
        %v4338 = vadd.f32 %v3932, %v4274
        %v4339 = vadd.f32 %v3981, %v4275
        %v4340 = vadd.f32 %v4030, %v4276
        %v4341 = vadd.f32 %v3885, %v4277
        %v4342 = vadd.f32 %v3934, %v4278
        %v4343 = vadd.f32 %v3983, %v4279
        %v4344 = vadd.f32 %v4032, %v4280
        %v4345 = vadd.f32 %v3888, %v4281
        %v4346 = vadd.f32 %v3937, %v4282
        %v4347 = vadd.f32 %v3986, %v4283
        %v4348 = vadd.f32 %v4035, %v4284
        %v4349 = vadd.f32 %v3890, %v4285
        %v4350 = vadd.f32 %v3939, %v4286
        %v4351 = vadd.f32 %v3988, %v4287
        %v4352 = vadd.f32 %v4037, %v4288
        %v4353 = vadd.f32 %v3893, %v4289
        %v4354 = vadd.f32 %v3942, %v4290
        %v4355 = vadd.f32 %v3991, %v4291
        %v4356 = vadd.f32 %v4040, %v4292
        %v4357 = vadd.f32 %v3895, %v4293
        %v4358 = vadd.f32 %v3944, %v4294
        %v4359 = vadd.f32 %v3993, %v4295
        %v4360 = vadd.f32 %v4042, %v4296
        %v4361 = vadd.f32 %v3898, %v4297
        %v4362 = vadd.f32 %v3947, %v4298
        %v4363 = vadd.f32 %v3996, %v4299
        %v4364 = vadd.f32 %v4045, %v4300
        %v4365 = vadd.f32 %v3900, %v4301
        %v4366 = vadd.f32 %v3949, %v4302
        %v4367 = vadd.f32 %v3998, %v4303
        %v4368 = vadd.f32 %v4047, %v4304
        %v4369 = vmul.f32 %v4305, 0.7978846
        %v4370 = vmul.f32 %v4306, 0.7978846
        %v4371 = vmul.f32 %v4307, 0.7978846
        %v4372 = vmul.f32 %v4308, 0.7978846
        %v4373 = vmul.f32 %v4309, 0.7978846
        %v4374 = vmul.f32 %v4310, 0.7978846
        %v4375 = vmul.f32 %v4311, 0.7978846
        %v4376 = vmul.f32 %v4312, 0.7978846
        %v4377 = vmul.f32 %v4313, 0.7978846
        %v4378 = vmul.f32 %v4314, 0.7978846
        %v4379 = vmul.f32 %v4315, 0.7978846
        %v4380 = vmul.f32 %v4316, 0.7978846
        %v4381 = vmul.f32 %v4317, 0.7978846
        %v4382 = vmul.f32 %v4318, 0.7978846
        %v4383 = vmul.f32 %v4319, 0.7978846
        %v4384 = vmul.f32 %v4320, 0.7978846
        %v4385 = vmul.f32 %v4321, 0.7978846
        %v4386 = vmul.f32 %v4322, 0.7978846
        %v4387 = vmul.f32 %v4323, 0.7978846
        %v4388 = vmul.f32 %v4324, 0.7978846
        %v4389 = vmul.f32 %v4325, 0.7978846
        %v4390 = vmul.f32 %v4326, 0.7978846
        %v4391 = vmul.f32 %v4327, 0.7978846
        %v4392 = vmul.f32 %v4328, 0.7978846
        %v4393 = vmul.f32 %v4329, 0.7978846
        %v4394 = vmul.f32 %v4330, 0.7978846
        %v4395 = vmul.f32 %v4331, 0.7978846
        %v4396 = vmul.f32 %v4332, 0.7978846
        %v4397 = vmul.f32 %v4333, 0.7978846
        %v4398 = vmul.f32 %v4334, 0.7978846
        %v4399 = vmul.f32 %v4335, 0.7978846
        %v4400 = vmul.f32 %v4336, 0.7978846
        %v4401 = vmul.f32 %v4337, 0.7978846
        %v4402 = vmul.f32 %v4338, 0.7978846
        %v4403 = vmul.f32 %v4339, 0.7978846
        %v4404 = vmul.f32 %v4340, 0.7978846
        %v4405 = vmul.f32 %v4341, 0.7978846
        %v4406 = vmul.f32 %v4342, 0.7978846
        %v4407 = vmul.f32 %v4343, 0.7978846
        %v4408 = vmul.f32 %v4344, 0.7978846
        %v4409 = vmul.f32 %v4345, 0.7978846
        %v4410 = vmul.f32 %v4346, 0.7978846
        %v4411 = vmul.f32 %v4347, 0.7978846
        %v4412 = vmul.f32 %v4348, 0.7978846
        %v4413 = vmul.f32 %v4349, 0.7978846
        %v4414 = vmul.f32 %v4350, 0.7978846
        %v4415 = vmul.f32 %v4351, 0.7978846
        %v4416 = vmul.f32 %v4352, 0.7978846
        %v4417 = vmul.f32 %v4353, 0.7978846
        %v4418 = vmul.f32 %v4354, 0.7978846
        %v4419 = vmul.f32 %v4355, 0.7978846
        %v4420 = vmul.f32 %v4356, 0.7978846
        %v4421 = vmul.f32 %v4357, 0.7978846
        %v4422 = vmul.f32 %v4358, 0.7978846
        %v4423 = vmul.f32 %v4359, 0.7978846
        %v4424 = vmul.f32 %v4360, 0.7978846
        %v4425 = vmul.f32 %v4361, 0.7978846
        %v4426 = vmul.f32 %v4362, 0.7978846
        %v4427 = vmul.f32 %v4363, 0.7978846
        %v4428 = vmul.f32 %v4364, 0.7978846
        %v4429 = vmul.f32 %v4365, 0.7978846
        %v4430 = vmul.f32 %v4366, 0.7978846
        %v4431 = vmul.f32 %v4367, 0.7978846
        %v4432 = vmul.f32 %v4368, 0.7978846
        %v4433 = vtanh.pop %v4369
        %v4434 = vtanh.pop %v4370
        %v4435 = vtanh.pop %v4371
        %v4436 = vtanh.pop %v4372
        %v4437 = vtanh.pop %v4373
        %v4438 = vtanh.pop %v4374
        %v4439 = vtanh.pop %v4375
        %v4440 = vtanh.pop %v4376
        %v4441 = vtanh.pop %v4377
        %v4442 = vtanh.pop %v4378
        %v4443 = vtanh.pop %v4379
        %v4444 = vtanh.pop %v4380
        %v4445 = vtanh.pop %v4381
        %v4446 = vtanh.pop %v4382
        %v4447 = vtanh.pop %v4383
        %v4448 = vtanh.pop %v4384
        %v4449 = vtanh.pop %v4385
        %v4450 = vtanh.pop %v4386
        %v4451 = vtanh.pop %v4387
        %v4452 = vtanh.pop %v4388
        %v4453 = vtanh.pop %v4389
        %v4454 = vtanh.pop %v4390
        %v4455 = vtanh.pop %v4391
        %v4456 = vtanh.pop %v4392
        %v4457 = vtanh.pop %v4393
        %v4458 = vtanh.pop %v4394
        %v4459 = vtanh.pop %v4395
        %v4460 = vtanh.pop %v4396
        %v4461 = vtanh.pop %v4397
        %v4462 = vtanh.pop %v4398
        %v4463 = vtanh.pop %v4399
        %v4464 = vtanh.pop %v4400
        %v4465 = vtanh.pop %v4401
        %v4466 = vtanh.pop %v4402
        %v4467 = vtanh.pop %v4403
        %v4468 = vtanh.pop %v4404
        %v4469 = vtanh.pop %v4405
        %v4470 = vtanh.pop %v4406
        %v4471 = vtanh.pop %v4407
        %v4472 = vtanh.pop %v4408
        %v4473 = vtanh.pop %v4409
        %v4474 = vtanh.pop %v4410
        %v4475 = vtanh.pop %v4411
        %v4476 = vtanh.pop %v4412
        %v4477 = vtanh.pop %v4413
        %v4478 = vtanh.pop %v4414
        %v4479 = vtanh.pop %v4415
        %v4480 = vtanh.pop %v4416
        %v4481 = vtanh.pop %v4417
        %v4482 = vtanh.pop %v4418
        %v4483 = vtanh.pop %v4419
        %v4484 = vtanh.pop %v4420
        %v4485 = vtanh.pop %v4421
        %v4486 = vtanh.pop %v4422
        %v4487 = vtanh.pop %v4423
        %v4488 = vtanh.pop %v4424
        %v4489 = vtanh.pop %v4425
        %v4490 = vtanh.pop %v4426
        %v4491 = vtanh.pop %v4427
        %v4492 = vtanh.pop %v4428
        %v4493 = vtanh.pop %v4429
        %v4494 = vtanh.pop %v4430
        %v4495 = vtanh.pop %v4431
        %v4496 = vtanh.pop %v4432
        %v4497 = vadd.f32 %v4433, 1.0
        %v4498 = vadd.f32 %v4434, 1.0
        %v4499 = vadd.f32 %v4435, 1.0
        %v4500 = vadd.f32 %v4436, 1.0
        %v4501 = vadd.f32 %v4437, 1.0
        %v4502 = vadd.f32 %v4438, 1.0
        %v4503 = vadd.f32 %v4439, 1.0
        %v4504 = vadd.f32 %v4440, 1.0
        %v4505 = vadd.f32 %v4441, 1.0
        %v4506 = vadd.f32 %v4442, 1.0
        %v4507 = vadd.f32 %v4443, 1.0
        %v4508 = vadd.f32 %v4444, 1.0
        %v4509 = vadd.f32 %v4445, 1.0
        %v4510 = vadd.f32 %v4446, 1.0
        %v4511 = vadd.f32 %v4447, 1.0
        %v4512 = vadd.f32 %v4448, 1.0
        %v4513 = vadd.f32 %v4449, 1.0
        %v4514 = vadd.f32 %v4450, 1.0
        %v4515 = vadd.f32 %v4451, 1.0
        %v4516 = vadd.f32 %v4452, 1.0
        %v4517 = vadd.f32 %v4453, 1.0
        %v4518 = vadd.f32 %v4454, 1.0
        %v4519 = vadd.f32 %v4455, 1.0
        %v4520 = vadd.f32 %v4456, 1.0
        %v4521 = vadd.f32 %v4457, 1.0
        %v4522 = vadd.f32 %v4458, 1.0
        %v4523 = vadd.f32 %v4459, 1.0
        %v4524 = vadd.f32 %v4460, 1.0
        %v4525 = vadd.f32 %v4461, 1.0
        %v4526 = vadd.f32 %v4462, 1.0
        %v4527 = vadd.f32 %v4463, 1.0
        %v4528 = vadd.f32 %v4464, 1.0
        %v4529 = vadd.f32 %v4465, 1.0
        %v4530 = vadd.f32 %v4466, 1.0
        %v4531 = vadd.f32 %v4467, 1.0
        %v4532 = vadd.f32 %v4468, 1.0
        %v4533 = vadd.f32 %v4469, 1.0
        %v4534 = vadd.f32 %v4470, 1.0
        %v4535 = vadd.f32 %v4471, 1.0
        %v4536 = vadd.f32 %v4472, 1.0
        %v4537 = vadd.f32 %v4473, 1.0
        %v4538 = vadd.f32 %v4474, 1.0
        %v4539 = vadd.f32 %v4475, 1.0
        %v4540 = vadd.f32 %v4476, 1.0
        %v4541 = vadd.f32 %v4477, 1.0
        %v4542 = vadd.f32 %v4478, 1.0
        %v4543 = vadd.f32 %v4479, 1.0
        %v4544 = vadd.f32 %v4480, 1.0
        %v4545 = vadd.f32 %v4481, 1.0
        %v4546 = vadd.f32 %v4482, 1.0
        %v4547 = vadd.f32 %v4483, 1.0
        %v4548 = vadd.f32 %v4484, 1.0
        %v4549 = vadd.f32 %v4485, 1.0
        %v4550 = vadd.f32 %v4486, 1.0
        %v4551 = vadd.f32 %v4487, 1.0
        %v4552 = vadd.f32 %v4488, 1.0
        %v4553 = vadd.f32 %v4489, 1.0
        %v4554 = vadd.f32 %v4490, 1.0
        %v4555 = vadd.f32 %v4491, 1.0
        %v4556 = vadd.f32 %v4492, 1.0
        %v4557 = vadd.f32 %v4493, 1.0
        %v4558 = vadd.f32 %v4494, 1.0
        %v4559 = vadd.f32 %v4495, 1.0
        %v4560 = vadd.f32 %v4496, 1.0
        %v4561 = vmul.f32 %v4049, %v4497
        %v4562 = vmul.f32 %v4050, %v4498
        %v4563 = vmul.f32 %v4051, %v4499
        %v4564 = vmul.f32 %v4052, %v4500
        %v4565 = vmul.f32 %v4053, %v4501
        %v4566 = vmul.f32 %v4054, %v4502
        %v4567 = vmul.f32 %v4055, %v4503
        %v4568 = vmul.f32 %v4056, %v4504
        %v4569 = vmul.f32 %v4057, %v4505
        %v4570 = vmul.f32 %v4058, %v4506
        %v4571 = vmul.f32 %v4059, %v4507
        %v4572 = vmul.f32 %v4060, %v4508
        %v4573 = vmul.f32 %v4061, %v4509
        %v4574 = vmul.f32 %v4062, %v4510
        %v4575 = vmul.f32 %v4063, %v4511
        %v4576 = vmul.f32 %v4064, %v4512
        %v4577 = vmul.f32 %v4065, %v4513
        %v4578 = vmul.f32 %v4066, %v4514
        %v4579 = vmul.f32 %v4067, %v4515
        %v4580 = vmul.f32 %v4068, %v4516
        %v4581 = vmul.f32 %v4069, %v4517
        %v4582 = vmul.f32 %v4070, %v4518
        %v4583 = vmul.f32 %v4071, %v4519
        %v4584 = vmul.f32 %v4072, %v4520
        %v4585 = vmul.f32 %v4073, %v4521
        %v4586 = vmul.f32 %v4074, %v4522
        %v4587 = vmul.f32 %v4075, %v4523
        %v4588 = vmul.f32 %v4076, %v4524
        %v4589 = vmul.f32 %v4077, %v4525
        %v4590 = vmul.f32 %v4078, %v4526
        %v4591 = vmul.f32 %v4079, %v4527
        %v4592 = vmul.f32 %v4080, %v4528
        %v4593 = vmul.f32 %v4081, %v4529
        %v4594 = vmul.f32 %v4082, %v4530
        %v4595 = vmul.f32 %v4083, %v4531
        %v4596 = vmul.f32 %v4084, %v4532
        %v4597 = vmul.f32 %v4085, %v4533
        %v4598 = vmul.f32 %v4086, %v4534
        %v4599 = vmul.f32 %v4087, %v4535
        %v4600 = vmul.f32 %v4088, %v4536
        %v4601 = vmul.f32 %v4089, %v4537
        %v4602 = vmul.f32 %v4090, %v4538
        %v4603 = vmul.f32 %v4091, %v4539
        %v4604 = vmul.f32 %v4092, %v4540
        %v4605 = vmul.f32 %v4093, %v4541
        %v4606 = vmul.f32 %v4094, %v4542
        %v4607 = vmul.f32 %v4095, %v4543
        %v4608 = vmul.f32 %v4096, %v4544
        %v4609 = vmul.f32 %v4097, %v4545
        %v4610 = vmul.f32 %v4098, %v4546
        %v4611 = vmul.f32 %v4099, %v4547
        %v4612 = vmul.f32 %v4100, %v4548
        %v4613 = vmul.f32 %v4101, %v4549
        %v4614 = vmul.f32 %v4102, %v4550
        %v4615 = vmul.f32 %v4103, %v4551
        %v4616 = vmul.f32 %v4104, %v4552
        %v4617 = vmul.f32 %v4105, %v4553
        %v4618 = vmul.f32 %v4106, %v4554
        %v4619 = vmul.f32 %v4107, %v4555
        %v4620 = vmul.f32 %v4108, %v4556
        %v4621 = vmul.f32 %v4109, %v4557
        %v4622 = vmul.f32 %v4110, %v4558
        %v4623 = vmul.f32 %v4111, %v4559
        %v4624 = vmul.f32 %v4112, %v4560
        %v4625 = vpack.c.bf16 %v4565, %v4561
        %v4626 = vpack.c.bf16 %v4566, %v4562
        %v4627 = vpack.c.bf16 %v4567, %v4563
        %v4628 = vpack.c.bf16 %v4568, %v4564
        %v4629 = vpack.c.bf16 %v4573, %v4569
        %v4630 = vpack.c.bf16 %v4574, %v4570
        %v4631 = vpack.c.bf16 %v4575, %v4571
        %v4632 = vpack.c.bf16 %v4576, %v4572
        %v4633 = vpack.c.bf16 %v4581, %v4577
        %v4634 = vpack.c.bf16 %v4582, %v4578
        %v4635 = vpack.c.bf16 %v4583, %v4579
        %v4636 = vpack.c.bf16 %v4584, %v4580
        %v4637 = vpack.c.bf16 %v4589, %v4585
        %v4638 = vpack.c.bf16 %v4590, %v4586
        %v4639 = vpack.c.bf16 %v4591, %v4587
        %v4640 = vpack.c.bf16 %v4592, %v4588
        %v4641 = vpack.c.bf16 %v4597, %v4593
        %v4642 = vpack.c.bf16 %v4598, %v4594
        %v4643 = vpack.c.bf16 %v4599, %v4595
        %v4644 = vpack.c.bf16 %v4600, %v4596
        %v4645 = vpack.c.bf16 %v4605, %v4601
        %v4646 = vpack.c.bf16 %v4606, %v4602
        %v4647 = vpack.c.bf16 %v4607, %v4603
        %v4648 = vpack.c.bf16 %v4608, %v4604
        %v4649 = vpack.c.bf16 %v4613, %v4609
        %v4650 = vpack.c.bf16 %v4614, %v4610
        %v4651 = vpack.c.bf16 %v4615, %v4611
        %v4652 = vpack.c.bf16 %v4616, %v4612
        %v4653 = vpack.c.bf16 %v4621, %v4617
        %v4654 = vpack.c.bf16 %v4622, %v4618
        %v4655 = vpack.c.bf16 %v4623, %v4619
        %v4656 = vpack.c.bf16 %v4624, %v4620
        %v4657 = vld [vmem:[#allocation10] sm:$0xf]
        %v4658 = vld [vmem:[#allocation10 + $0x4] sm:$0xf]
        %v4659 = vld [vmem:[#allocation10 + $0x8] sm:$0xf]
        %v4660 = vld [vmem:[#allocation10 + $0xc] sm:$0xf]
        %v4661 = vld [vmem:[#allocation10 + $0x10] sm:$0xf]
        %v4662 = vld [vmem:[#allocation10 + $0x14] sm:$0xf]
        %v4663 = vld [vmem:[#allocation10 + $0x18] sm:$0xf]
        %v4664 = vld [vmem:[#allocation10 + $0x1c] sm:$0xf]
        %v4665 = vld [vmem:[#allocation10 + $0x20] sm:$0xf]
        %v4666 = vld [vmem:[#allocation10 + $0x24] sm:$0xf]
        %v4667 = vld [vmem:[#allocation10 + $0x28] sm:$0xf]
        %v4668 = vld [vmem:[#allocation10 + $0x2c] sm:$0xf]
        %v4669 = vld [vmem:[#allocation10 + $0x30] sm:$0xf]
        %v4670 = vld [vmem:[#allocation10 + $0x34] sm:$0xf]
        %v4671 = vld [vmem:[#allocation10 + $0x38] sm:$0xf]
        %v4672 = vld [vmem:[#allocation10 + $0x3c] sm:$0xf]
        %v4673 = vld [vmem:[#allocation10 + $0x40] sm:$0xf]
        %v4674 = vld [vmem:[#allocation10 + $0x44] sm:$0xf]
        %v4675 = vld [vmem:[#allocation10 + $0x48] sm:$0xf]
        %v4676 = vld [vmem:[#allocation10 + $0x4c] sm:$0xf]
        %v4677 = vld [vmem:[#allocation10 + $0x50] sm:$0xf]
        %v4678 = vld [vmem:[#allocation10 + $0x54] sm:$0xf]
        %v4679 = vld [vmem:[#allocation10 + $0x58] sm:$0xf]
        %v4680 = vld [vmem:[#allocation10 + $0x5c] sm:$0xf]
        %v4681 = vld [vmem:[#allocation10 + $0x60] sm:$0xf]
        %v4682 = vld [vmem:[#allocation10 + $0x64] sm:$0xf]
        %v4683 = vld [vmem:[#allocation10 + $0x68] sm:$0xf]
        %v4684 = vld [vmem:[#allocation10 + $0x6c] sm:$0xf]
        %v4685 = vld [vmem:[#allocation10 + $0x70] sm:$0xf]
        %v4686 = vld [vmem:[#allocation10 + $0x74] sm:$0xf]
        %v4687 = vld [vmem:[#allocation10 + $0x78] sm:$0xf]
        %v4688 = vld [vmem:[#allocation10 + $0x7c] sm:$0xf]
        %v4689 = vld [vmem:[#allocation10 + $0x80] sm:$0xf]
        %v4690 = vld [vmem:[#allocation10 + $0x84] sm:$0xf]
        %v4691 = vld [vmem:[#allocation10 + $0x88] sm:$0xf]
        %v4692 = vld [vmem:[#allocation10 + $0x8c] sm:$0xf]
        %v4693 = vld [vmem:[#allocation10 + $0x90] sm:$0xf]
        %v4694 = vld [vmem:[#allocation10 + $0x94] sm:$0xf]
        %v4695 = vld [vmem:[#allocation10 + $0x98] sm:$0xf]
        %v4696 = vld [vmem:[#allocation10 + $0x9c] sm:$0xf]
        %v4697 = vld [vmem:[#allocation10 + $0xa0] sm:$0xf]
        %v4698 = vld [vmem:[#allocation10 + $0xa4] sm:$0xf]
        %v4699 = vld [vmem:[#allocation10 + $0xa8] sm:$0xf]
        %v4700 = vld [vmem:[#allocation10 + $0xac] sm:$0xf]
        %v4701 = vld [vmem:[#allocation10 + $0xb0] sm:$0xf]
        %v4702 = vld [vmem:[#allocation10 + $0xb4] sm:$0xf]
        %v4703 = vld [vmem:[#allocation10 + $0xb8] sm:$0xf]
        %v4704 = vld [vmem:[#allocation10 + $0xbc] sm:$0xf]
        %v4705 = vld [vmem:[#allocation10 + $0xc0] sm:$0xf]
        %v4706 = vld [vmem:[#allocation10 + $0xc4] sm:$0xf]
        %v4707 = vld [vmem:[#allocation10 + $0xc8] sm:$0xf]
        %v4708 = vld [vmem:[#allocation10 + $0xcc] sm:$0xf]
        %v4709 = vld [vmem:[#allocation10 + $0xd0] sm:$0xf]
        %v4710 = vld [vmem:[#allocation10 + $0xd4] sm:$0xf]
        %v4711 = vld [vmem:[#allocation10 + $0xd8] sm:$0xf]
        %v4712 = vld [vmem:[#allocation10 + $0xdc] sm:$0xf]
        %v4713 = vld [vmem:[#allocation10 + $0xe0] sm:$0xf]
        %v4714 = vld [vmem:[#allocation10 + $0xe4] sm:$0xf]
        %v4715 = vld [vmem:[#allocation10 + $0xe8] sm:$0xf]
        %v4716 = vld [vmem:[#allocation10 + $0xec] sm:$0xf]
        %v4717 = vld [vmem:[#allocation10 + $0xf0] sm:$0xf]
        %v4718 = vld [vmem:[#allocation10 + $0xf4] sm:$0xf]
        %v4719 = vld [vmem:[#allocation10 + $0xf8] sm:$0xf]
        %v4720 = vld [vmem:[#allocation10 + $0xfc] sm:$0xf]
        %v4721 = vld [vmem:[%s9] sm:$0x1]
        %v4723 = vperm.slane %v4721, 0
        %v4789 = vunpack.c.l.b16 %v4657
        %v4790 = vunpack.c.l.b16 %v4658
        %v4791 = vunpack.c.l.b16 %v4659
        %v4792 = vunpack.c.l.b16 %v4660
        %v4793 = vunpack.c.l.b16 %v4661
        %v4794 = vunpack.c.l.b16 %v4662
        %v4795 = vunpack.c.l.b16 %v4663
        %v4796 = vunpack.c.l.b16 %v4664
        %v4797 = vunpack.c.l.b16 %v4665
        %v4798 = vunpack.c.l.b16 %v4666
        %v4799 = vunpack.c.l.b16 %v4667
        %v4800 = vunpack.c.l.b16 %v4668
        %v4801 = vunpack.c.l.b16 %v4669
        %v4802 = vunpack.c.l.b16 %v4670
        %v4803 = vunpack.c.l.b16 %v4671
        %v4804 = vunpack.c.l.b16 %v4672
        %v4805 = vunpack.c.l.b16 %v4673
        %v4806 = vunpack.c.l.b16 %v4674
        %v4807 = vunpack.c.l.b16 %v4675
        %v4808 = vunpack.c.l.b16 %v4676
        %v4809 = vunpack.c.l.b16 %v4677
        %v4810 = vunpack.c.l.b16 %v4678
        %v4811 = vunpack.c.l.b16 %v4679
        %v4812 = vunpack.c.l.b16 %v4680
        %v4813 = vunpack.c.l.b16 %v4681
        %v4814 = vunpack.c.l.b16 %v4682
        %v4815 = vunpack.c.l.b16 %v4683
        %v4816 = vunpack.c.l.b16 %v4684
        %v4817 = vunpack.c.l.b16 %v4685
        %v4818 = vunpack.c.l.b16 %v4686
        %v4819 = vunpack.c.l.b16 %v4687
        %v4820 = vunpack.c.l.b16 %v4688
        %v4821 = vunpack.c.l.b16 %v4689
        %v4822 = vunpack.c.l.b16 %v4690
        %v4823 = vunpack.c.l.b16 %v4691
        %v4824 = vunpack.c.l.b16 %v4692
        %v4825 = vunpack.c.l.b16 %v4693
        %v4826 = vunpack.c.l.b16 %v4694
        %v4827 = vunpack.c.l.b16 %v4695
        %v4828 = vunpack.c.l.b16 %v4696
        %v4829 = vunpack.c.l.b16 %v4697
        %v4830 = vunpack.c.l.b16 %v4698
        %v4831 = vunpack.c.l.b16 %v4699
        %v4832 = vunpack.c.l.b16 %v4700
        %v4833 = vunpack.c.l.b16 %v4701
        %v4834 = vunpack.c.l.b16 %v4702
        %v4835 = vunpack.c.l.b16 %v4703
        %v4836 = vunpack.c.l.b16 %v4704
        %v4837 = vunpack.c.l.b16 %v4705
        %v4838 = vunpack.c.l.b16 %v4706
        %v4839 = vunpack.c.l.b16 %v4707
        %v4840 = vunpack.c.l.b16 %v4708
        %v4841 = vunpack.c.l.b16 %v4709
        %v4842 = vunpack.c.l.b16 %v4710
        %v4843 = vunpack.c.l.b16 %v4711
        %v4844 = vunpack.c.l.b16 %v4712
        %v4845 = vunpack.c.l.b16 %v4713
        %v4846 = vunpack.c.l.b16 %v4714
        %v4847 = vunpack.c.l.b16 %v4715
        %v4848 = vunpack.c.l.b16 %v4716
        %v4849 = vunpack.c.l.b16 %v4717
        %v4850 = vunpack.c.l.b16 %v4718
        %v4851 = vunpack.c.l.b16 %v4719
        %v4852 = vunpack.c.l.b16 %v4720
        %v4853 = vpack.c.b16 %v4790, %v4789
        %v4854 = vpack.c.b16 %v4792, %v4791
        %v4855 = vpack.c.b16 %v4794, %v4793
        %v4856 = vpack.c.b16 %v4796, %v4795
        %v4857 = vpack.c.b16 %v4798, %v4797
        %v4858 = vpack.c.b16 %v4800, %v4799
        %v4859 = vpack.c.b16 %v4802, %v4801
        %v4860 = vpack.c.b16 %v4804, %v4803
        %v4861 = vpack.c.b16 %v4806, %v4805
        %v4862 = vpack.c.b16 %v4808, %v4807
        %v4863 = vpack.c.b16 %v4810, %v4809
        %v4864 = vpack.c.b16 %v4812, %v4811
        %v4865 = vpack.c.b16 %v4814, %v4813
        %v4866 = vpack.c.b16 %v4816, %v4815
        %v4867 = vpack.c.b16 %v4818, %v4817
        %v4868 = vpack.c.b16 %v4820, %v4819
        %v4869 = vpack.c.b16 %v4822, %v4821
        %v4870 = vpack.c.b16 %v4824, %v4823
        %v4871 = vpack.c.b16 %v4826, %v4825
        %v4872 = vpack.c.b16 %v4828, %v4827
        %v4873 = vpack.c.b16 %v4830, %v4829
        %v4874 = vpack.c.b16 %v4832, %v4831
        %v4875 = vpack.c.b16 %v4834, %v4833
        %v4876 = vpack.c.b16 %v4836, %v4835
        %v4877 = vpack.c.b16 %v4838, %v4837
        %v4878 = vpack.c.b16 %v4840, %v4839
        %v4879 = vpack.c.b16 %v4842, %v4841
        %v4880 = vpack.c.b16 %v4844, %v4843
        %v4881 = vpack.c.b16 %v4846, %v4845
        %v4882 = vpack.c.b16 %v4848, %v4847
        %v4883 = vpack.c.b16 %v4850, %v4849
        %v4884 = vpack.c.b16 %v4852, %v4851
        %4917 = vmatpush.bf16.msra.mxu0 %v4860
        %4918 = vmatpush.bf16.msra.mxu0 %v4859
        %4919 = vmatpush.bf16.msra.mxu0 %v4858
        %4920 = vmatpush.bf16.msra.mxu0 %v4857
        %4921 = vmatpush.bf16.msra.mxu0 %v4856
        %4922 = vmatpush.bf16.msra.mxu0 %v4855
        %4923 = vmatpush.bf16.msra.mxu0 %v4854
        %4924 = vmatpush.bf16.msra.mxu0 %v4853
        %4925 = vmatmul.bf16.gmra.mxu0 %v4625
        %v4926 = vpop.f32.mrf.mxu0
        %v4927 = vadd.f32 %v4723, %v4926
        %v4928 = vpop.f32.mrf.mxu0
        %v4929 = vadd.f32 %v4723, %v4928
        %4930 = vmatmul.bf16.gmra.mxu0 %v4629
        %v4931 = vpop.f32.mrf.mxu0
        %v4932 = vadd.f32 %v4723, %v4931
        %v4933 = vpop.f32.mrf.mxu0
        %v4934 = vadd.f32 %v4723, %v4933
        %4935 = vmatmul.bf16.gmra.mxu0 %v4633
        %v4936 = vpop.f32.mrf.mxu0
        %v4937 = vadd.f32 %v4723, %v4936
        %v4938 = vpop.f32.mrf.mxu0
        %v4939 = vadd.f32 %v4723, %v4938
        %4940 = vmatmul.bf16.gmra.mxu0 %v4637
        %v4941 = vpop.f32.mrf.mxu0
        %v4942 = vadd.f32 %v4723, %v4941
        %v4943 = vpop.f32.mrf.mxu0
        %v4944 = vadd.f32 %v4723, %v4943
        %4945 = vmatmul.bf16.gmra.mxu0 %v4641
        %v4946 = vpop.f32.mrf.mxu0
        %v4947 = vadd.f32 %v4723, %v4946
        %v4948 = vpop.f32.mrf.mxu0
        %v4949 = vadd.f32 %v4723, %v4948
        %4950 = vmatmul.bf16.gmra.mxu0 %v4645
        %v4951 = vpop.f32.mrf.mxu0
        %v4952 = vadd.f32 %v4723, %v4951
        %v4953 = vpop.f32.mrf.mxu0
        %v4954 = vadd.f32 %v4723, %v4953
        %4955 = vmatmul.bf16.gmra.mxu0 %v4649
        %v4956 = vpop.f32.mrf.mxu0
        %v4957 = vadd.f32 %v4723, %v4956
        %v4958 = vpop.f32.mrf.mxu0
        %v4959 = vadd.f32 %v4723, %v4958
        %4960 = vmatmul.bf16.gmra.mxu0 %v4653
        %v4961 = vpop.f32.mrf.mxu0
        %v4962 = vadd.f32 %v4723, %v4961
        %v4963 = vpop.f32.mrf.mxu0
        %v4964 = vadd.f32 %v4723, %v4963
        %4965 = vdwg.mxu0
        %4966 = vmatpush.bf16.msra.mxu0 %v4868
        %4967 = vmatpush.bf16.msra.mxu0 %v4867
        %4968 = vmatpush.bf16.msra.mxu0 %v4866
        %4969 = vmatpush.bf16.msra.mxu0 %v4865
        %4970 = vmatpush.bf16.msra.mxu0 %v4864
        %4971 = vmatpush.bf16.msra.mxu0 %v4863
        %4972 = vmatpush.bf16.msra.mxu0 %v4862
        %4973 = vmatpush.bf16.msra.mxu0 %v4861
        %4974 = vmatmul.bf16.gmra.mxu0 %v4626
        %v4975 = vpop.f32.mrf.mxu0
        %v4976 = vadd.f32 %v4927, %v4975
        %v4977 = vpop.f32.mrf.mxu0
        %v4978 = vadd.f32 %v4929, %v4977
        %4979 = vmatmul.bf16.gmra.mxu0 %v4630
        %v4980 = vpop.f32.mrf.mxu0
        %v4981 = vadd.f32 %v4932, %v4980
        %v4982 = vpop.f32.mrf.mxu0
        %v4983 = vadd.f32 %v4934, %v4982
        %4984 = vmatmul.bf16.gmra.mxu0 %v4634
        %v4985 = vpop.f32.mrf.mxu0
        %v4986 = vadd.f32 %v4937, %v4985
        %v4987 = vpop.f32.mrf.mxu0
        %v4988 = vadd.f32 %v4939, %v4987
        %4989 = vmatmul.bf16.gmra.mxu0 %v4638
        %v4990 = vpop.f32.mrf.mxu0
        %v4991 = vadd.f32 %v4942, %v4990
        %v4992 = vpop.f32.mrf.mxu0
        %v4993 = vadd.f32 %v4944, %v4992
        %4994 = vmatmul.bf16.gmra.mxu0 %v4642
        %v4995 = vpop.f32.mrf.mxu0
        %v4996 = vadd.f32 %v4947, %v4995
        %v4997 = vpop.f32.mrf.mxu0
        %v4998 = vadd.f32 %v4949, %v4997
        %4999 = vmatmul.bf16.gmra.mxu0 %v4646
        %v5000 = vpop.f32.mrf.mxu0
        %v5001 = vadd.f32 %v4952, %v5000
        %v5002 = vpop.f32.mrf.mxu0
        %v5003 = vadd.f32 %v4954, %v5002
        %5004 = vmatmul.bf16.gmra.mxu0 %v4650
        %v5005 = vpop.f32.mrf.mxu0
        %v5006 = vadd.f32 %v4957, %v5005
        %v5007 = vpop.f32.mrf.mxu0
        %v5008 = vadd.f32 %v4959, %v5007
        %5009 = vmatmul.bf16.gmra.mxu0 %v4654
        %v5010 = vpop.f32.mrf.mxu0
        %v5011 = vadd.f32 %v4962, %v5010
        %v5012 = vpop.f32.mrf.mxu0
        %v5013 = vadd.f32 %v4964, %v5012
        %5014 = vdwg.mxu0
        %5015 = vmatpush.bf16.msra.mxu0 %v4876
        %5016 = vmatpush.bf16.msra.mxu0 %v4875
        %5017 = vmatpush.bf16.msra.mxu0 %v4874
        %5018 = vmatpush.bf16.msra.mxu0 %v4873
        %5019 = vmatpush.bf16.msra.mxu0 %v4872
        %5020 = vmatpush.bf16.msra.mxu0 %v4871
        %5021 = vmatpush.bf16.msra.mxu0 %v4870
        %5022 = vmatpush.bf16.msra.mxu0 %v4869
        %5023 = vmatmul.bf16.gmra.mxu0 %v4627
        %v5024 = vpop.f32.mrf.mxu0
        %v5025 = vadd.f32 %v4976, %v5024
        %v5026 = vpop.f32.mrf.mxu0
        %v5027 = vadd.f32 %v4978, %v5026
        %5028 = vmatmul.bf16.gmra.mxu0 %v4631
        %v5029 = vpop.f32.mrf.mxu0
        %v5030 = vadd.f32 %v4981, %v5029
        %v5031 = vpop.f32.mrf.mxu0
        %v5032 = vadd.f32 %v4983, %v5031
        %5033 = vmatmul.bf16.gmra.mxu0 %v4635
        %v5034 = vpop.f32.mrf.mxu0
        %v5035 = vadd.f32 %v4986, %v5034
        %v5036 = vpop.f32.mrf.mxu0
        %v5037 = vadd.f32 %v4988, %v5036
        %5038 = vmatmul.bf16.gmra.mxu0 %v4639
        %v5039 = vpop.f32.mrf.mxu0
        %v5040 = vadd.f32 %v4991, %v5039
        %v5041 = vpop.f32.mrf.mxu0
        %v5042 = vadd.f32 %v4993, %v5041
        %5043 = vmatmul.bf16.gmra.mxu0 %v4643
        %v5044 = vpop.f32.mrf.mxu0
        %v5045 = vadd.f32 %v4996, %v5044
        %v5046 = vpop.f32.mrf.mxu0
        %v5047 = vadd.f32 %v4998, %v5046
        %5048 = vmatmul.bf16.gmra.mxu0 %v4647
        %v5049 = vpop.f32.mrf.mxu0
        %v5050 = vadd.f32 %v5001, %v5049
        %v5051 = vpop.f32.mrf.mxu0
        %v5052 = vadd.f32 %v5003, %v5051
        %5053 = vmatmul.bf16.gmra.mxu0 %v4651
        %v5054 = vpop.f32.mrf.mxu0
        %v5055 = vadd.f32 %v5006, %v5054
        %v5056 = vpop.f32.mrf.mxu0
        %v5057 = vadd.f32 %v5008, %v5056
        %5058 = vmatmul.bf16.gmra.mxu0 %v4655
        %v5059 = vpop.f32.mrf.mxu0
        %v5060 = vadd.f32 %v5011, %v5059
        %v5061 = vpop.f32.mrf.mxu0
        %v5062 = vadd.f32 %v5013, %v5061
        %5063 = vdwg.mxu0
        %5064 = vmatpush.bf16.msra.mxu0 %v4884
        %5065 = vmatpush.bf16.msra.mxu0 %v4883
        %5066 = vmatpush.bf16.msra.mxu0 %v4882
        %5067 = vmatpush.bf16.msra.mxu0 %v4881
        %5068 = vmatpush.bf16.msra.mxu0 %v4880
        %5069 = vmatpush.bf16.msra.mxu0 %v4879
        %5070 = vmatpush.bf16.msra.mxu0 %v4878
        %5071 = vmatpush.bf16.msra.mxu0 %v4877
        %5072 = vmatmul.bf16.gmra.mxu0 %v4628
        %v5073 = vpop.f32.mrf.mxu0
        %v5074 = vadd.f32 %v5025, %v5073
        %v5075 = vpop.f32.mrf.mxu0
        %v5076 = vadd.f32 %v5027, %v5075
        %5077 = vmatmul.bf16.gmra.mxu0 %v4632
        %v5078 = vpop.f32.mrf.mxu0
        %v5079 = vadd.f32 %v5030, %v5078
        %v5080 = vpop.f32.mrf.mxu0
        %v5081 = vadd.f32 %v5032, %v5080
        %5082 = vmatmul.bf16.gmra.mxu0 %v4636
        %v5083 = vpop.f32.mrf.mxu0
        %v5084 = vadd.f32 %v5035, %v5083
        %v5085 = vpop.f32.mrf.mxu0
        %v5086 = vadd.f32 %v5037, %v5085
        %5087 = vmatmul.bf16.gmra.mxu0 %v4640
        %v5088 = vpop.f32.mrf.mxu0
        %v5089 = vadd.f32 %v5040, %v5088
        %v5090 = vpop.f32.mrf.mxu0
        %v5091 = vadd.f32 %v5042, %v5090
        %5092 = vmatmul.bf16.gmra.mxu0 %v4644
        %v5093 = vpop.f32.mrf.mxu0
        %v5094 = vadd.f32 %v5045, %v5093
        %v5095 = vpop.f32.mrf.mxu0
        %v5096 = vadd.f32 %v5047, %v5095
        %5097 = vmatmul.bf16.gmra.mxu0 %v4648
        %v5098 = vpop.f32.mrf.mxu0
        %v5099 = vadd.f32 %v5050, %v5098
        %v5100 = vpop.f32.mrf.mxu0
        %v5101 = vadd.f32 %v5052, %v5100
        %5102 = vmatmul.bf16.gmra.mxu0 %v4652
        %v5103 = vpop.f32.mrf.mxu0
        %v5104 = vadd.f32 %v5055, %v5103
        %v5105 = vpop.f32.mrf.mxu0
        %v5106 = vadd.f32 %v5057, %v5105
        %5107 = vmatmul.bf16.gmra.mxu0 %v4656
        %v5108 = vpop.f32.mrf.mxu0
        %v5109 = vadd.f32 %v5060, %v5108
        %v5110 = vpop.f32.mrf.mxu0
        %v5111 = vadd.f32 %v5062, %v5110
        %5112 = vdwg.mxu0
        %v5113 = vperm.slane %v479, 5
        %v5114 = vmul.f32 %v5074, %v5113
        %v5115 = vmul.f32 %v5076, %v5113
        %v5116 = vmul.f32 %v5079, %v5113
        %v5117 = vmul.f32 %v5081, %v5113
        %v5118 = vmul.f32 %v5084, %v5113
        %v5119 = vmul.f32 %v5086, %v5113
        %v5120 = vmul.f32 %v5089, %v5113
        %v5121 = vmul.f32 %v5091, %v5113
        %v5122 = vmul.f32 %v5094, %v5113
        %v5123 = vmul.f32 %v5096, %v5113
        %v5124 = vmul.f32 %v5099, %v5113
        %v5125 = vmul.f32 %v5101, %v5113
        %v5126 = vmul.f32 %v5104, %v5113
        %v5127 = vmul.f32 %v5106, %v5113
        %v5128 = vmul.f32 %v5109, %v5113
        %v5129 = vmul.f32 %v5111, %v5113
        %v5130 = vadd.f32 %v3431, %v5114
        %v5131 = vadd.f32 %v3432, %v5115
        %v5132 = vadd.f32 %v3433, %v5116
        %v5133 = vadd.f32 %v3434, %v5117
        %v5134 = vadd.f32 %v3435, %v5118
        %v5135 = vadd.f32 %v3436, %v5119
        %v5136 = vadd.f32 %v3437, %v5120
        %v5137 = vadd.f32 %v3438, %v5121
        %v5138 = vadd.f32 %v3439, %v5122
        %v5139 = vadd.f32 %v3440, %v5123
        %v5140 = vadd.f32 %v3441, %v5124
        %v5141 = vadd.f32 %v3442, %v5125
        %v5142 = vadd.f32 %v3443, %v5126
        %v5143 = vadd.f32 %v3444, %v5127
        %v5144 = vadd.f32 %v3445, %v5128
        %v5145 = vadd.f32 %v3446, %v5129
        %5146 = vst [vmem:[%s458] sm:$0xff] %v5130
        %5147 = vst [vmem:[%s458 + $0x8] sm:$0xff] %v5131
        %5148 = vst [vmem:[%s458 + $0x10] sm:$0xff] %v5132
        %5149 = vst [vmem:[%s458 + $0x18] sm:$0xff] %v5133
        %5150 = vst [vmem:[%s458 + $0x20] sm:$0xff] %v5134
        %5151 = vst [vmem:[%s458 + $0x28] sm:$0xff] %v5135
        %5152 = vst [vmem:[%s458 + $0x30] sm:$0xff] %v5136
        %5153 = vst [vmem:[%s458 + $0x38] sm:$0xff] %v5137
        %5154 = vst [vmem:[%s458 + $0x40] sm:$0xff] %v5138
        %5155 = vst [vmem:[%s458 + $0x48] sm:$0xff] %v5139
        %5156 = vst [vmem:[%s458 + $0x50] sm:$0xff] %v5140
        %5157 = vst [vmem:[%s458 + $0x58] sm:$0xff] %v5141
        %5158 = vst [vmem:[%s458 + $0x60] sm:$0xff] %v5142
        %5159 = vst [vmem:[%s458 + $0x68] sm:$0xff] %v5143
        %5160 = vst [vmem:[%s458 + $0x70] sm:$0xff] %v5144
        %5161 = vst [vmem:[%s458 + $0x78] sm:$0xff] %v5145
        %s5162 = sand.u32 %s257, 1
        %s5163 = scalar_lea.sflag [#allocation4], %s5162
        %s5164 = sand.u32 %s257, 1
        %s5165 = smul.addr %s5164, 128
        %s5166 = scalar_lea.vmem [#allocation11], %s5165
        // Predicated region
        $region81: #{tpu_custom_call.1} parent=59 // pred_check
          %p5167 = pneg %p267
        $region82: #{tpu_custom_call.1} parent=59 // pred_check_branch
          %5169 = sbr.rel (%p5167) target = $region84
        $region83: #{tpu_custom_call.1} parent=59 // pred_region
          %5171 = vsyncadd %s5163, 0
          %s5172 = smul.addr %s29, 16
          %s5173 = smul.addr %s5172, 8
          %s5174 = scalar_lea.hbm %s10, %s5173
          %s5175 = sshll.u32 %s5166, 4
          %s5176 = int_to_ptr.vmem [resolvable:$true] %s5175
          %s5177 = sshll.u32 %s5174, 4
          %s5178 = int_to_ptr.hbm [resolvable:$true] %s5177
          %5183 = dma.vmem_to_hbm [thread:$0]  %s5176, 2048, %s5178, %s5163, 128, 128, 8
        $region84: #{tpu_custom_call.1} parent=59 // pred_fallthru
          _
      $region60: #{tpu_custom_call.1} parent=5 // pred_fallthru
        _
      %p5184 = scmp.le.s32.totalorder 2, %s24
      // Predicated region
      $region85: #{tpu_custom_call.1} parent=5 // pred_check
        %p5185 = pneg %p5184
      $region86: #{tpu_custom_call.1} parent=5 // pred_check_branch
        %5187 = sbr.rel (%p5185) target = $region88
      $region87: #{tpu_custom_call.1} parent=5 // pred_region
        %s5188 = ssub.s32 %s24, 2
        // Predicated region
        $region89: #{tpu_custom_call.1} parent=87 // pred_check
          %p5189 = pneg %p273
        $region90: #{tpu_custom_call.1} parent=87 // pred_check_branch
          %5191 = sbr.rel (%p5189) target = $region92
        $region91: #{tpu_custom_call.1} parent=87 // pred_region
          %s5192 = sand.u32 %s258, 1
          %s5193 = scalar_lea.sflag [#allocation4], %s5192
          %s5194 = sand.u32 %s258, 1
          %s5195 = smul.addr %s5194, 128
          %s5196 = scalar_lea.vmem [#allocation11], %s5195
          %5198 = dma.done %s5193, 2048
        $region92: #{tpu_custom_call.1} parent=87 // pred_fallthru
          _
      $region88: #{tpu_custom_call.1} parent=5 // pred_fallthru
        _
    $region6: #{tpu_custom_call.1} parent=1 // loop_footer
      %s28 = sadd.s32 1, %s24
    $region7: #{tpu_custom_call.1} parent=1 // loop_footer_branch
      %23 = sbr.rel target = $region3
    $region8: #{tpu_custom_call.1} parent=1 // loop_exit
      _
    %5199 = vsyncpa [#allocation3], 1
    %s5200 = scalar_lea.sflag [#allocation3], 1
    %5201 = vsyncpa %s5200, 1
    %5202 = vsyncpa [#allocation6], 1
    %5203 = vsyncpa [#allocation9], 1
    %5204 = vsyncpa [#allocation4], 1
    %s5205 = scalar_lea.sflag [#allocation4], 1
    %5206 = vsyncpa %s5205, 1

// kernel: tpu_custom_call.1
$region0: #{tpu_custom_call.1}
  #allocation0 [shape = 'u32[]', space=smem, size = 0x4, offset = 0x4, fixed_abs, tag = 'smem constant byte address 0x4 - core index']
  #allocation1 [shape = 'u32[72,128]{1,0:T(1,128)}', space=vmem, size = 0x9000, scoped, tag = 'internal scratch']
  %s0 = inlined_call_operand.hbm [shape: f32[2,128,128], index: 0, kind: input, shape index: {}]
  %s1 = inlined_call_operand.vmem [shape: f32[2,6,128], index: 1, kind: input, shape index: {}]
  %s2 = inlined_call_operand.hbm [shape: bf16[128,384], index: 2, kind: input, shape index: {}]
  %s3 = inlined_call_operand.vmem [shape: f32[1,384], index: 3, kind: input, shape index: {}]
  %s4 = inlined_call_operand.hbm [shape: bf16[128,128], index: 4, kind: input, shape index: {}]
  %s5 = inlined_call_operand.vmem [shape: f32[1,128], index: 5, kind: input, shape index: {}]
  %s6 = inlined_call_operand.hbm [shape: bf16[128,512], index: 6, kind: input, shape index: {}]
  %s7 = inlined_call_operand.vmem [shape: f32[1,512], index: 7, kind: input, shape index: {}]
  %s8 = inlined_call_operand.hbm [shape: bf16[512,128], index: 8, kind: input, shape index: {}]
  %s9 = inlined_call_operand.vmem [shape: f32[1,128], index: 9, kind: input, shape index: {}]
  %s10 = inlined_call_operand.hbm [shape: f32[2,128,128], index: 10, kind: output, shape index: {}]
  %s11 = sld [smem:[#allocation0]]
  $region93: #{tpu_custom_call.1} parent=0
    _
  %s13 = ssub.s32 1, %s11
  %s14 = scalar_select 0, %s13, %s11
  $region1: #{tpu_custom_call.1} parent=0
    #allocation2 [shape = 'u8[131072]{0}', space=vmem, size = 0x20000, scoped, tag = 'input window, operand 0']
    #allocation3 [shape = 's32[2]{0}', space=sflag, size = 0x8, scoped, tag = 'scoped memory for tpu_custom_call.1']
    #allocation4 [shape = 's32[2]{0}', space=sflag, size = 0x8, scoped, tag = 'scoped memory for tpu_custom_call.1']
    #allocation5 [shape = 'u8[98304]{0}', space=vmem, size = 0x18000, scoped, tag = 'input window, operand 2, single buffered']
    #allocation6 [shape = 's32[1]{0}', space=sflag, size = 0x4, scoped, tag = 'scoped memory for tpu_custom_call.1']
    #allocation7 [shape = 'u8[32768]{0}', space=vmem, size = 0x8000, scoped, tag = 'input window, operand 4, single buffered']
    #allocation8 [shape = 'u8[131072]{0}', space=vmem, size = 0x20000, scoped, tag = 'input window, operand 6, single buffered']
    #allocation9 [shape = 's32[1]{0}', space=sflag, size = 0x4, scoped, tag = 'scoped memory for tpu_custom_call.1']
    #allocation10 [shape = 'u8[131072]{0}', space=vmem, size = 0x20000, scoped, tag = 'input window, operand 8, single buffered']
    #allocation11 [shape = 'u8[131072]{0}', space=vmem, size = 0x20000, scoped, tag = 'output window, operand 0']
    %15 = vsyncpa [#allocation3], 0
    %s16 = scalar_lea.sflag [#allocation3], 1
    %17 = vsyncpa %s16, 0
    %18 = vsyncpa [#allocation6], 0
    %19 = vsyncpa [#allocation9], 0
    %20 = vsyncpa [#allocation4], 0
    %s21 = scalar_lea.sflag [#allocation4], 1
    %22 = vsyncpa %s21, 0
    loop: start=0, step=1, limit=4
    $region2: #{tpu_custom_call.1} parent=1 // loop_pre_header
      _
    $region3: #{tpu_custom_call.1} parent=1 // loop_header
      %s24 = sphi 0, %s28
      %p25 = scmp.ge.s32.totalorder %s24, 4
      %s34 = sphi 0, %s36
      %s37 = sphi 0, %s34
      %s38 = sphi 0, %s37
      %s54 = sphi 0, %s38
      %s60 = sphi 0, %s62
      %s63 = sphi 0, %s60
      %s64 = sphi 0, %s63
      %s80 = sphi 0, %s64
      %s84 = sphi 0, %s84
      %s86 = sphi 0, %s84
      %s87 = sphi 0, %s86
      %s101 = sphi 0, %s87
      %s105 = sphi 0, %s105
      %s107 = sphi 0, %s105
      %s108 = sphi 0, %s107
      %s122 = sphi 0, %s108
      %s126 = sphi 0, %s126
      %s128 = sphi 0, %s126
      %s129 = sphi 0, %s128
      %s143 = sphi 0, %s129
      %s147 = sphi 0, %s147
      %s149 = sphi 0, %s147
      %s150 = sphi 0, %s149
      %s164 = sphi 0, %s150
      %s168 = sphi 0, %s168
      %s170 = sphi 0, %s168
      %s171 = sphi 0, %s170
      %s185 = sphi 0, %s171
      %s189 = sphi 0, %s189
      %s191 = sphi 0, %s189
      %s192 = sphi 0, %s191
      %s206 = sphi 0, %s192
      %s210 = sphi 0, %s210
      %s212 = sphi 0, %s210
      %s213 = sphi 0, %s212
      %s227 = sphi 0, %s213
      %s231 = sphi 0, %s231
      %s233 = sphi 0, %s231
      %s234 = sphi 0, %s233
      %s248 = sphi 0, %s234
      %s254 = sphi 0, %s256
      %s257 = sphi 0, %s254
      %s258 = sphi 0, %s257
      %s274 = sphi 0, %s258
    $region4: #{tpu_custom_call.1} parent=1 // loop_header_branch
      %27 = sbr.rel (%p25) target = $region8
    $region5: #{tpu_custom_call.1} parent=1 // loop_body
      %s29 = ssub.s32 %s24, 1
      %s30 = ssub.s32 %s24, 2
      %s31 = sadd.s32 %s24, 1
      %s32 = ssub.s32 %s24, %s31
      %p33 = scmp.eq.s32.totalorder %s32, 0
      %s35 = sadd.s32 %s34, 1
      %s36 = scalar_select %p33, %s34, %s35
      %p39 = pneg %p33
      %p40 = scmp.eq.s32.totalorder %s24, 1
      %p41 = por %p39, %p40
      %p42 = scmp.ne.s32.totalorder %s34, %s37
      %p43 = scmp.eq.s32.totalorder %s24, 0
      %p44 = por %p42, %p43
      %p45 = scmp.ne.s32.totalorder %s34, %s37
      %p46 = scmp.eq.s32.totalorder %s29, 1
      %p47 = por %p45, %p46
      %p48 = scmp.ne.s32.totalorder %s37, %s38
      %p49 = scmp.eq.s32.totalorder %s29, 0
      %p50 = por %p48, %p49
      %p51 = scmp.ne.s32.totalorder %s37, %s38
      %p52 = scmp.eq.s32.totalorder %s30, 1
      %p53 = por %p51, %p52
      %p55 = scmp.ne.s32.totalorder %s38, %s54
      %p56 = scmp.eq.s32.totalorder %s30, 0
      %p57 = por %p55, %p56
      %s58 = ssub.s32 %s24, %s31
      %p59 = scmp.eq.s32.totalorder %s58, 0
      %s61 = sadd.s32 %s60, 1
      %s62 = scalar_select %p59, %s60, %s61
      %p65 = pneg %p59
      %p66 = scmp.eq.s32.totalorder %s24, 1
      %p67 = por %p65, %p66
      %p68 = scmp.ne.s32.totalorder %s60, %s63
      %p69 = scmp.eq.s32.totalorder %s24, 0
      %p70 = por %p68, %p69
      %p71 = scmp.ne.s32.totalorder %s60, %s63
      %p72 = scmp.eq.s32.totalorder %s29, 1
      %p73 = por %p71, %p72
      %p74 = scmp.ne.s32.totalorder %s63, %s64
      %p75 = scmp.eq.s32.totalorder %s29, 0
      %p76 = por %p74, %p75
      %p77 = scmp.ne.s32.totalorder %s63, %s64
      %p78 = scmp.eq.s32.totalorder %s30, 1
      %p79 = por %p77, %p78
      %p81 = scmp.ne.s32.totalorder %s64, %s80
      %p82 = scmp.eq.s32.totalorder %s30, 0
      %p83 = por %p81, %p82
      %s85 = sadd.s32 %s84, 1
      %p88 = scmp.eq.s32.totalorder %s24, 1
      %p89 = scmp.ne.s32.totalorder %s84, %s86
      %p90 = scmp.eq.s32.totalorder %s24, 0
      %p91 = por %p89, %p90
      %p92 = scmp.ne.s32.totalorder %s84, %s86
      %p93 = scmp.eq.s32.totalorder %s29, 1
      %p94 = por %p92, %p93
      %p95 = scmp.ne.s32.totalorder %s86, %s87
      %p96 = scmp.eq.s32.totalorder %s29, 0
      %p97 = por %p95, %p96
      %p98 = scmp.ne.s32.totalorder %s86, %s87
      %p99 = scmp.eq.s32.totalorder %s30, 1
      %p100 = por %p98, %p99
      %p102 = scmp.ne.s32.totalorder %s87, %s101
      %p103 = scmp.eq.s32.totalorder %s30, 0
      %p104 = por %p102, %p103
      %s106 = sadd.s32 %s105, 1
      %p109 = scmp.eq.s32.totalorder %s24, 1
      %p110 = scmp.ne.s32.totalorder %s105, %s107
      %p111 = scmp.eq.s32.totalorder %s24, 0
      %p112 = por %p110, %p111
      %p113 = scmp.ne.s32.totalorder %s105, %s107
      %p114 = scmp.eq.s32.totalorder %s29, 1
      %p115 = por %p113, %p114
      %p116 = scmp.ne.s32.totalorder %s107, %s108
      %p117 = scmp.eq.s32.totalorder %s29, 0
      %p118 = por %p116, %p117
      %p119 = scmp.ne.s32.totalorder %s107, %s108
      %p120 = scmp.eq.s32.totalorder %s30, 1
      %p121 = por %p119, %p120
      %p123 = scmp.ne.s32.totalorder %s108, %s122
      %p124 = scmp.eq.s32.totalorder %s30, 0
      %p125 = por %p123, %p124
      %s127 = sadd.s32 %s126, 1
      %p130 = scmp.eq.s32.totalorder %s24, 1
      %p131 = scmp.ne.s32.totalorder %s126, %s128
      %p132 = scmp.eq.s32.totalorder %s24, 0
      %p133 = por %p131, %p132
      %p134 = scmp.ne.s32.totalorder %s126, %s128
      %p135 = scmp.eq.s32.totalorder %s29, 1
      %p136 = por %p134, %p135
      %p137 = scmp.ne.s32.totalorder %s128, %s129
      %p138 = scmp.eq.s32.totalorder %s29, 0
      %p139 = por %p137, %p138
      %p140 = scmp.ne.s32.totalorder %s128, %s129
      %p141 = scmp.eq.s32.totalorder %s30, 1
      %p142 = por %p140, %p141
      %p144 = scmp.ne.s32.totalorder %s129, %s143
      %p145 = scmp.eq.s32.totalorder %s30, 0
      %p146 = por %p144, %p145
      %s148 = sadd.s32 %s147, 1
      %p151 = scmp.eq.s32.totalorder %s24, 1
      %p152 = scmp.ne.s32.totalorder %s147, %s149
      %p153 = scmp.eq.s32.totalorder %s24, 0
      %p154 = por %p152, %p153
      %p155 = scmp.ne.s32.totalorder %s147, %s149
      %p156 = scmp.eq.s32.totalorder %s29, 1
      %p157 = por %p155, %p156
      %p158 = scmp.ne.s32.totalorder %s149, %s150
      %p159 = scmp.eq.s32.totalorder %s29, 0
      %p160 = por %p158, %p159
      %p161 = scmp.ne.s32.totalorder %s149, %s150
      %p162 = scmp.eq.s32.totalorder %s30, 1
      %p163 = por %p161, %p162
      %p165 = scmp.ne.s32.totalorder %s150, %s164
      %p166 = scmp.eq.s32.totalorder %s30, 0
      %p167 = por %p165, %p166
      %s169 = sadd.s32 %s168, 1
      %p172 = scmp.eq.s32.totalorder %s24, 1
      %p173 = scmp.ne.s32.totalorder %s168, %s170
      %p174 = scmp.eq.s32.totalorder %s24, 0
      %p175 = por %p173, %p174
      %p176 = scmp.ne.s32.totalorder %s168, %s170
      %p177 = scmp.eq.s32.totalorder %s29, 1
      %p178 = por %p176, %p177
      %p179 = scmp.ne.s32.totalorder %s170, %s171
      %p180 = scmp.eq.s32.totalorder %s29, 0
      %p181 = por %p179, %p180
      %p182 = scmp.ne.s32.totalorder %s170, %s171
      %p183 = scmp.eq.s32.totalorder %s30, 1
      %p184 = por %p182, %p183
      %p186 = scmp.ne.s32.totalorder %s171, %s185
      %p187 = scmp.eq.s32.totalorder %s30, 0
      %p188 = por %p186, %p187
      %s190 = sadd.s32 %s189, 1
      %p193 = scmp.eq.s32.totalorder %s24, 1
      %p194 = scmp.ne.s32.totalorder %s189, %s191
      %p195 = scmp.eq.s32.totalorder %s24, 0
      %p196 = por %p194, %p195
      %p197 = scmp.ne.s32.totalorder %s189, %s191
      %p198 = scmp.eq.s32.totalorder %s29, 1
      %p199 = por %p197, %p198
      %p200 = scmp.ne.s32.totalorder %s191, %s192
      %p201 = scmp.eq.s32.totalorder %s29, 0
      %p202 = por %p200, %p201
      %p203 = scmp.ne.s32.totalorder %s191, %s192
      %p204 = scmp.eq.s32.totalorder %s30, 1
      %p205 = por %p203, %p204
      %p207 = scmp.ne.s32.totalorder %s192, %s206
      %p208 = scmp.eq.s32.totalorder %s30, 0
      %p209 = por %p207, %p208
      %s211 = sadd.s32 %s210, 1
      %p214 = scmp.eq.s32.totalorder %s24, 1
      %p215 = scmp.ne.s32.totalorder %s210, %s212
      %p216 = scmp.eq.s32.totalorder %s24, 0
      %p217 = por %p215, %p216
      %p218 = scmp.ne.s32.totalorder %s210, %s212
      %p219 = scmp.eq.s32.totalorder %s29, 1
      %p220 = por %p218, %p219
      %p221 = scmp.ne.s32.totalorder %s212, %s213
      %p222 = scmp.eq.s32.totalorder %s29, 0
      %p223 = por %p221, %p222
      %p224 = scmp.ne.s32.totalorder %s212, %s213
      %p225 = scmp.eq.s32.totalorder %s30, 1
      %p226 = por %p224, %p225
      %p228 = scmp.ne.s32.totalorder %s213, %s227
      %p229 = scmp.eq.s32.totalorder %s30, 0
      %p230 = por %p228, %p229
      %s232 = sadd.s32 %s231, 1
      %p235 = scmp.eq.s32.totalorder %s24, 1
      %p236 = scmp.ne.s32.totalorder %s231, %s233
      %p237 = scmp.eq.s32.totalorder %s24, 0
      %p238 = por %p236, %p237
      %p239 = scmp.ne.s32.totalorder %s231, %s233
      %p240 = scmp.eq.s32.totalorder %s29, 1
      %p241 = por %p239, %p240
      %p242 = scmp.ne.s32.totalorder %s233, %s234
      %p243 = scmp.eq.s32.totalorder %s29, 0
      %p244 = por %p242, %p243
      %p245 = scmp.ne.s32.totalorder %s233, %s234
      %p246 = scmp.eq.s32.totalorder %s30, 1
      %p247 = por %p245, %p246
      %p249 = scmp.ne.s32.totalorder %s234, %s248
      %p250 = scmp.eq.s32.totalorder %s30, 0
      %p251 = por %p249, %p250
      %s252 = ssub.s32 %s24, %s31
      %p253 = scmp.eq.s32.totalorder %s252, 0
      %s255 = sadd.s32 %s254, 1
      %s256 = scalar_select %p253, %s254, %s255
      %p259 = pneg %p253
      %p260 = scmp.eq.s32.totalorder %s24, 1
      %p261 = por %p259, %p260
      %p262 = scmp.ne.s32.totalorder %s254, %s257
      %p263 = scmp.eq.s32.totalorder %s24, 0
      %p264 = por %p262, %p263
      %p265 = scmp.ne.s32.totalorder %s254, %s257
      %p266 = scmp.eq.s32.totalorder %s29, 1
      %p267 = por %p265, %p266
      %p268 = scmp.ne.s32.totalorder %s257, %s258
      %p269 = scmp.eq.s32.totalorder %s29, 0
      %p270 = por %p268, %p269
      %p271 = scmp.ne.s32.totalorder %s257, %s258
      %p272 = scmp.eq.s32.totalorder %s30, 1
      %p273 = por %p271, %p272
      %p275 = scmp.ne.s32.totalorder %s258, %s274
      %p276 = scmp.eq.s32.totalorder %s30, 0
      %p277 = por %p275, %p276
      %p278 = scmp.le.s32.totalorder 1, %s24
      %p279 = scmp.lt.s32.totalorder %s24, 3
      %p280 = pnand %p278, %p279
      %p281 = pneg %p280
      // Predicated region
      $region9: #{tpu_custom_call.1} parent=5 // pred_check
        _
      $region10: #{tpu_custom_call.1} parent=5 // pred_check_branch
        %283 = sbr.rel (%p280) target = $region12
      $region11: #{tpu_custom_call.1} parent=5 // pred_region
        %s284 = ssub.s32 %s24, 1
        // Predicated region
        $region13: #{tpu_custom_call.1} parent=11 // pred_check
          %p285 = pneg %p97
        $region14: #{tpu_custom_call.1} parent=11 // pred_check_branch
          %287 = sbr.rel (%p285) target = $region16
        $region15: #{tpu_custom_call.1} parent=11 // pred_region
          %289 = vsyncadd [#allocation6], 0
          %s290 = sshll.u32 %s2, 4
          %s291 = int_to_ptr.hbm [resolvable:$true] %s290
          %s292 = sshll.u32 [#allocation5], 4
          %s293 = int_to_ptr.vmem [resolvable:$true] %s292
          %298 = dma.hbm_to_vmem [thread:$0]  %s291, 3072, %s293, [#allocation6], 192, 192, 12
        $region16: #{tpu_custom_call.1} parent=11 // pred_fallthru
          _
        // Predicated region
        $region17: #{tpu_custom_call.1} parent=11 // pred_check
          %p299 = pneg %p118
        $region18: #{tpu_custom_call.1} parent=11 // pred_check_branch
          %301 = sbr.rel (%p299) target = $region20
        $region19: #{tpu_custom_call.1} parent=11 // pred_region
          _
        $region20: #{tpu_custom_call.1} parent=11 // pred_fallthru
          _
        // Predicated region
        $region21: #{tpu_custom_call.1} parent=11 // pred_check
          %p302 = pneg %p139
        $region22: #{tpu_custom_call.1} parent=11 // pred_check_branch
          %304 = sbr.rel (%p302) target = $region24
        $region23: #{tpu_custom_call.1} parent=11 // pred_region
          %306 = vsyncadd [#allocation6], 0
          %s307 = sshll.u32 %s4, 4
          %s308 = int_to_ptr.hbm [resolvable:$true] %s307
          %s309 = sshll.u32 [#allocation7], 4
          %s310 = int_to_ptr.vmem [resolvable:$true] %s309
          %315 = dma.hbm_to_vmem [thread:$0]  %s308, 1024, %s310, [#allocation6], 64, 64, 4
        $region24: #{tpu_custom_call.1} parent=11 // pred_fallthru
          _
        // Predicated region
        $region25: #{tpu_custom_call.1} parent=11 // pred_check
          %p316 = pneg %p160
        $region26: #{tpu_custom_call.1} parent=11 // pred_check_branch
          %318 = sbr.rel (%p316) target = $region28
        $region27: #{tpu_custom_call.1} parent=11 // pred_region
          _
        $region28: #{tpu_custom_call.1} parent=11 // pred_fallthru
          _
        // Predicated region
        $region29: #{tpu_custom_call.1} parent=11 // pred_check
          %p319 = pneg %p181
        $region30: #{tpu_custom_call.1} parent=11 // pred_check_branch
          %321 = sbr.rel (%p319) target = $region32
        $region31: #{tpu_custom_call.1} parent=11 // pred_region
          %323 = vsyncadd [#allocation9], 0
          %s324 = sshll.u32 %s6, 4
          %s325 = int_to_ptr.hbm [resolvable:$true] %s324
          %s326 = sshll.u32 [#allocation8], 4
          %s327 = int_to_ptr.vmem [resolvable:$true] %s326
          %332 = dma.hbm_to_vmem [thread:$0]  %s325, 4096, %s327, [#allocation9], 256, 256, 16
        $region32: #{tpu_custom_call.1} parent=11 // pred_fallthru
          _
        // Predicated region
        $region33: #{tpu_custom_call.1} parent=11 // pred_check
          %p333 = pneg %p202
        $region34: #{tpu_custom_call.1} parent=11 // pred_check_branch
          %335 = sbr.rel (%p333) target = $region36
        $region35: #{tpu_custom_call.1} parent=11 // pred_region
          _
        $region36: #{tpu_custom_call.1} parent=11 // pred_fallthru
          _
        // Predicated region
        $region37: #{tpu_custom_call.1} parent=11 // pred_check
          %p336 = pneg %p223
        $region38: #{tpu_custom_call.1} parent=11 // pred_check_branch
          %338 = sbr.rel (%p336) target = $region40
        $region39: #{tpu_custom_call.1} parent=11 // pred_region
          %340 = vsyncadd [#allocation9], 0
          %s341 = sshll.u32 %s8, 4
          %s342 = int_to_ptr.hbm [resolvable:$true] %s341
          %s343 = sshll.u32 [#allocation10], 4
          %s344 = int_to_ptr.vmem [resolvable:$true] %s343
          %349 = dma.hbm_to_vmem [thread:$0]  %s342, 4096, %s344, [#allocation9], 64, 64, 4
        $region40: #{tpu_custom_call.1} parent=11 // pred_fallthru
          _
        // Predicated region
        $region41: #{tpu_custom_call.1} parent=11 // pred_check
          %p350 = pneg %p244
        $region42: #{tpu_custom_call.1} parent=11 // pred_check_branch
          %352 = sbr.rel (%p350) target = $region44
        $region43: #{tpu_custom_call.1} parent=11 // pred_region
          _
        $region44: #{tpu_custom_call.1} parent=11 // pred_fallthru
          _
      $region12: #{tpu_custom_call.1} parent=5 // pred_fallthru
        _
      %p353 = scmp.lt.s32.totalorder %s24, 2
      // Predicated region
      $region45: #{tpu_custom_call.1} parent=5 // pred_check
        %p354 = pneg %p353
      $region46: #{tpu_custom_call.1} parent=5 // pred_check_branch
        %356 = sbr.rel (%p354) target = $region48
      $region47: #{tpu_custom_call.1} parent=5 // pred_region
        // Predicated region
        $region49: #{tpu_custom_call.1} parent=47 // pred_check
          %p357 = pneg %p44
        $region50: #{tpu_custom_call.1} parent=47 // pred_check_branch
          %359 = sbr.rel (%p357) target = $region52
        $region51: #{tpu_custom_call.1} parent=47 // pred_region
          %s360 = sand.u32 %s34, 1
          %s361 = scalar_lea.sflag [#allocation3], %s360
          %s362 = sand.u32 %s34, 1
          %s363 = smul.addr %s362, 128
          %s364 = scalar_lea.vmem [#allocation2], %s363
          %366 = vsyncadd %s361, 0
          %s367 = smul.addr %s24, 16
          %s368 = smul.addr %s367, 8
          %s369 = scalar_lea.hbm %s0, %s368
          %s370 = sshll.u32 %s369, 4
          %s371 = int_to_ptr.hbm [resolvable:$true] %s370
          %s372 = sshll.u32 %s364, 4
          %s373 = int_to_ptr.vmem [resolvable:$true] %s372
          %378 = dma.hbm_to_vmem [thread:$0]  %s371, 2048, %s373, %s361, 128, 128, 8
        $region52: #{tpu_custom_call.1} parent=47 // pred_fallthru
          _
        // Predicated region
        $region53: #{tpu_custom_call.1} parent=47 // pred_check
          %p379 = pneg %p70
        $region54: #{tpu_custom_call.1} parent=47 // pred_check_branch
          %381 = sbr.rel (%p379) target = $region56
        $region55: #{tpu_custom_call.1} parent=47 // pred_region
          %p382 = scmp.lt.s32.totalorder %s24, 1
          %s383 = scalar_select %p382, %s24, 1
          %s384 = smul.addr %s383, 8
          %s385 = scalar_lea.vmem %s1, %s384
        $region56: #{tpu_custom_call.1} parent=47 // pred_fallthru
          _
      $region48: #{tpu_custom_call.1} parent=5 // pred_fallthru
        _
      %p386 = scmp.le.s32.totalorder 1, %s24
      %p387 = scmp.lt.s32.totalorder %s24, 3
      %p388 = pnand %p386, %p387
      %p389 = pneg %p388
      // Predicated region
      $region57: #{tpu_custom_call.1} parent=5 // pred_check
        _
      $region58: #{tpu_custom_call.1} parent=5 // pred_check_branch
        %391 = sbr.rel (%p388) target = $region60
      $region59: #{tpu_custom_call.1} parent=5 // pred_region
        %s392 = ssub.s32 %s24, 1
        %s393 = sand.u32 %s37, 1
        %s394 = scalar_lea.sflag [#allocation3], %s393
        %s395 = sand.u32 %s37, 1
        %s396 = smul.addr %s395, 128
        %s397 = scalar_lea.vmem [#allocation2], %s396
        // Predicated region
        $region61: #{tpu_custom_call.1} parent=59 // pred_check
          %p398 = pneg %p50
        $region62: #{tpu_custom_call.1} parent=59 // pred_check_branch
          %400 = sbr.rel (%p398) target = $region64
        $region63: #{tpu_custom_call.1} parent=59 // pred_region
          %402 = dma.done %s394, 2048
        $region64: #{tpu_custom_call.1} parent=59 // pred_fallthru
          _
        // Predicated region
        $region65: #{tpu_custom_call.1} parent=59 // pred_check
          %p403 = pneg %p97
        $region66: #{tpu_custom_call.1} parent=59 // pred_check_branch
          %405 = sbr.rel (%p403) target = $region68
        $region67: #{tpu_custom_call.1} parent=59 // pred_region
          %407 = dma.done [#allocation6], 3072
        $region68: #{tpu_custom_call.1} parent=59 // pred_fallthru
          _
        // Predicated region
        $region69: #{tpu_custom_call.1} parent=59 // pred_check
          %p408 = pneg %p139
        $region70: #{tpu_custom_call.1} parent=59 // pred_check_branch
          %410 = sbr.rel (%p408) target = $region72
        $region71: #{tpu_custom_call.1} parent=59 // pred_region
          %412 = dma.done [#allocation6], 1024
        $region72: #{tpu_custom_call.1} parent=59 // pred_fallthru
          _
        // Predicated region
        $region73: #{tpu_custom_call.1} parent=59 // pred_check
          %p413 = pneg %p181
        $region74: #{tpu_custom_call.1} parent=59 // pred_check_branch
          %415 = sbr.rel (%p413) target = $region76
        $region75: #{tpu_custom_call.1} parent=59 // pred_region
          %417 = dma.done [#allocation9], 4096
        $region76: #{tpu_custom_call.1} parent=59 // pred_fallthru
          _
        // Predicated region
        $region77: #{tpu_custom_call.1} parent=59 // pred_check
          %p418 = pneg %p223
        $region78: #{tpu_custom_call.1} parent=59 // pred_check_branch
          %420 = sbr.rel (%p418) target = $region80
        $region79: #{tpu_custom_call.1} parent=59 // pred_region
          %422 = dma.done [#allocation9], 4096
        $region80: #{tpu_custom_call.1} parent=59 // pred_fallthru
          _
        %s423 = sand.u32 %s37, 1
        %s424 = scalar_lea.sflag [#allocation3], %s423
        %s425 = sand.u32 %s37, 1
        %s426 = smul.addr %s425, 128
        %s427 = scalar_lea.vmem [#allocation2], %s426
        %p428 = pneg %p50
        %p429 = pneg %p47
        %p430 = scmp.lt.s32.totalorder %s29, 1
        %s431 = scalar_select %p430, %s29, 1
        %s432 = smul.addr %s431, 8
        %s433 = scalar_lea.vmem %s1, %s432
        %p434 = pneg %p76
        %p435 = pneg %p73
        %p436 = pneg %p97
        %p437 = pneg %p94
        %p438 = pneg %p118
        %p439 = pneg %p115
        %p440 = pneg %p139
        %p441 = pneg %p136
        %p442 = pneg %p160
        %p443 = pneg %p157
        %p444 = pneg %p181
        %p445 = pneg %p178
        %p446 = pneg %p202
        %p447 = pneg %p199
        %p448 = pneg %p223
        %p449 = pneg %p220
        %p450 = pneg %p244
        %p451 = pneg %p241
        %p452 = pneg %p270
        %p453 = pneg %p267
        %s454 = sand.u32 %s257, 1
        %s455 = scalar_lea.sflag [#allocation4], %s454
        %s456 = sand.u32 %s257, 1
        %s457 = smul.addr %s456, 128
        %s458 = scalar_lea.vmem [#allocation11], %s457
        %p459 = scmp.lt.s32.totalorder %s29, 1
        %s460 = scalar_select %p459, %s29, 1
        %s461 = smul.addr %s460, 8
        %s462 = scalar_lea.vmem %s1, %s461
        %v463 = vld [vmem:[%s397] sm:$0xff]
        %v464 = vld [vmem:[%s397 + $0x8] sm:$0xff]
        %v465 = vld [vmem:[%s397 + $0x10] sm:$0xff]
        %v466 = vld [vmem:[%s397 + $0x18] sm:$0xff]
        %v467 = vld [vmem:[%s397 + $0x20] sm:$0xff]
        %v468 = vld [vmem:[%s397 + $0x28] sm:$0xff]
        %v469 = vld [vmem:[%s397 + $0x30] sm:$0xff]
        %v470 = vld [vmem:[%s397 + $0x38] sm:$0xff]
        %v471 = vld [vmem:[%s397 + $0x40] sm:$0xff]
        %v472 = vld [vmem:[%s397 + $0x48] sm:$0xff]
        %v473 = vld [vmem:[%s397 + $0x50] sm:$0xff]
        %v474 = vld [vmem:[%s397 + $0x58] sm:$0xff]
        %v475 = vld [vmem:[%s397 + $0x60] sm:$0xff]
        %v476 = vld [vmem:[%s397 + $0x68] sm:$0xff]
        %v477 = vld [vmem:[%s397 + $0x70] sm:$0xff]
        %v478 = vld [vmem:[%s397 + $0x78] sm:$0xff]
        %v479 = vld [vmem:[%s462] sm:$0x3f]
        %v480 = vadd.f32 %v463, %v464
        %v481 = vadd.f32 %v480, %v465
        %v482 = vadd.f32 %v481, %v466
        %v483 = vadd.f32 %v482, %v467
        %v484 = vadd.f32 %v483, %v468
        %v485 = vadd.f32 %v484, %v469
        %v486 = vadd.f32 %v485, %v470
        %v487 = vadd.f32 %v486, %v471
        %v488 = vadd.f32 %v487, %v472
        %v489 = vadd.f32 %v488, %v473
        %v490 = vadd.f32 %v489, %v474
        %v491 = vadd.f32 %v490, %v475
        %v492 = vadd.f32 %v491, %v476
        %v493 = vadd.f32 %v492, %v477
        %v494 = vadd.f32 %v493, %v478
        %v495 = vrot.slane %v494, 4
        %v496 = vadd.f32 %v494, %v495
        %v497 = vrot.slane %v496, 2
        %v498 = vadd.f32 %v496, %v497
        %v499 = vrot.slane %v498, 1
        %v500 = vadd.f32 %v498, %v499
        %v501 = vrcp.pop 128.0
        %v502 = vmul.f32 128.0, %v501
        %v503 = vsub.f32 1.0, %v502
        %v504 = vmul.f32 %v501, %v503
        %v505 = vadd.f32 %v501, %v504
        %vm506 = vweird.f32 %v501
        %v507 = vsel %vm506, %v501, %v505
        %v508 = vmul.f32 %v500, %v507
        %v509 = vmul.f32 %v463, %v463
        %v510 = vmul.f32 %v464, %v464
        %v511 = vmul.f32 %v465, %v465
        %v512 = vmul.f32 %v466, %v466
        %v513 = vmul.f32 %v467, %v467
        %v514 = vmul.f32 %v468, %v468
        %v515 = vmul.f32 %v469, %v469
        %v516 = vmul.f32 %v470, %v470
        %v517 = vmul.f32 %v471, %v471
        %v518 = vmul.f32 %v472, %v472
        %v519 = vmul.f32 %v473, %v473
        %v520 = vmul.f32 %v474, %v474
        %v521 = vmul.f32 %v475, %v475
        %v522 = vmul.f32 %v476, %v476
        %v523 = vmul.f32 %v477, %v477
        %v524 = vmul.f32 %v478, %v478
        %v525 = vadd.f32 %v509, %v510
        %v526 = vadd.f32 %v525, %v511
        %v527 = vadd.f32 %v526, %v512
        %v528 = vadd.f32 %v527, %v513
        %v529 = vadd.f32 %v528, %v514
        %v530 = vadd.f32 %v529, %v515
        %v531 = vadd.f32 %v530, %v516
        %v532 = vadd.f32 %v531, %v517
        %v533 = vadd.f32 %v532, %v518
        %v534 = vadd.f32 %v533, %v519
        %v535 = vadd.f32 %v534, %v520
        %v536 = vadd.f32 %v535, %v521
        %v537 = vadd.f32 %v536, %v522
        %v538 = vadd.f32 %v537, %v523
        %v539 = vadd.f32 %v538, %v524
        %v540 = vrot.slane %v539, 4
        %v541 = vadd.f32 %v539, %v540
        %v542 = vrot.slane %v541, 2
        %v543 = vadd.f32 %v541, %v542
        %v544 = vrot.slane %v543, 1
        %v545 = vadd.f32 %v543, %v544
        %v546 = vmul.f32 %v545, %v507
        %v547 = vmul.f32 %v508, %v508
        %v548 = vsub.f32 %v546, %v547
        %v549 = vmax.f32 %v548, 0.0
        %v550 = vsub.f32 %v463, %v508
        %v551 = vsub.f32 %v464, %v508
        %v552 = vsub.f32 %v465, %v508
        %v553 = vsub.f32 %v466, %v508
        %v554 = vsub.f32 %v467, %v508
        %v555 = vsub.f32 %v468, %v508
        %v556 = vsub.f32 %v469, %v508
        %v557 = vsub.f32 %v470, %v508
        %v558 = vsub.f32 %v471, %v508
        %v559 = vsub.f32 %v472, %v508
        %v560 = vsub.f32 %v473, %v508
        %v561 = vsub.f32 %v474, %v508
        %v562 = vsub.f32 %v475, %v508
        %v563 = vsub.f32 %v476, %v508
        %v564 = vsub.f32 %v477, %v508
        %v565 = vsub.f32 %v478, %v508
        %v566 = vadd.f32 %v549, 1e-12
        %v567 = vrsqrt.pop %v566
        %v568 = vmul.f32 %v567, %v566
        %v569 = vmul.f32 %v568, %v567
        %v570 = vmul.f32 0.5, %v569
        %v571 = vsub.f32 1.5, %v570
        %v572 = vmul.f32 %v567, %v571
        %vm573 = vweird.f32 %v566
        %vm574 = vweird.f32 %v567
        %vm575 = vmor %vm573, %vm574
        %v576 = vsel %vm575, %v567, %v572
        %v577 = vmul.f32 %v550, %v576
        %v578 = vmul.f32 %v551, %v576
        %v579 = vmul.f32 %v552, %v576
        %v580 = vmul.f32 %v553, %v576
        %v581 = vmul.f32 %v554, %v576
        %v582 = vmul.f32 %v555, %v576
        %v583 = vmul.f32 %v556, %v576
        %v584 = vmul.f32 %v557, %v576
        %v585 = vmul.f32 %v558, %v576
        %v586 = vmul.f32 %v559, %v576
        %v587 = vmul.f32 %v560, %v576
        %v588 = vmul.f32 %v561, %v576
        %v589 = vmul.f32 %v562, %v576
        %v590 = vmul.f32 %v563, %v576
        %v591 = vmul.f32 %v564, %v576
        %v592 = vmul.f32 %v565, %v576
        %v593 = vperm.slane %v479, 0
        %v594 = vmul.f32 %v577, %v593
        %v595 = vmul.f32 %v578, %v593
        %v596 = vmul.f32 %v579, %v593
        %v597 = vmul.f32 %v580, %v593
        %v598 = vmul.f32 %v581, %v593
        %v599 = vmul.f32 %v582, %v593
        %v600 = vmul.f32 %v583, %v593
        %v601 = vmul.f32 %v584, %v593
        %v602 = vmul.f32 %v585, %v593
        %v603 = vmul.f32 %v586, %v593
        %v604 = vmul.f32 %v587, %v593
        %v605 = vmul.f32 %v588, %v593
        %v606 = vmul.f32 %v589, %v593
        %v607 = vmul.f32 %v590, %v593
        %v608 = vmul.f32 %v591, %v593
        %v609 = vmul.f32 %v592, %v593
        %v610 = vperm.slane %v479, 1
        %v611 = vadd.f32 %v594, %v610
        %v612 = vadd.f32 %v595, %v610
        %v613 = vadd.f32 %v596, %v610
        %v614 = vadd.f32 %v597, %v610
        %v615 = vadd.f32 %v598, %v610
        %v616 = vadd.f32 %v599, %v610
        %v617 = vadd.f32 %v600, %v610
        %v618 = vadd.f32 %v601, %v610
        %v619 = vadd.f32 %v602, %v610
        %v620 = vadd.f32 %v603, %v610
        %v621 = vadd.f32 %v604, %v610
        %v622 = vadd.f32 %v605, %v610
        %v623 = vadd.f32 %v606, %v610
        %v624 = vadd.f32 %v607, %v610
        %v625 = vadd.f32 %v608, %v610
        %v626 = vadd.f32 %v609, %v610
        %v627 = vpack.c.bf16 %v611, %v611
        %v628 = vpack.c.bf16 %v612, %v612
        %v629 = vpack.c.bf16 %v613, %v613
        %v630 = vpack.c.bf16 %v614, %v614
        %v631 = vpack.c.bf16 %v615, %v615
        %v632 = vpack.c.bf16 %v616, %v616
        %v633 = vpack.c.bf16 %v617, %v617
        %v634 = vpack.c.bf16 %v618, %v618
        %v635 = vpack.c.bf16 %v619, %v619
        %v636 = vpack.c.bf16 %v620, %v620
        %v637 = vpack.c.bf16 %v621, %v621
        %v638 = vpack.c.bf16 %v622, %v622
        %v639 = vpack.c.bf16 %v623, %v623
        %v640 = vpack.c.bf16 %v624, %v624
        %v641 = vpack.c.bf16 %v625, %v625
        %v642 = vpack.c.bf16 %v626, %v626
        %v643 = vld [vmem:[#allocation5] sm:$0xff]
        %v644 = vld [vmem:[#allocation5 + $0x8] sm:$0xf]
        %v645 = vld [vmem:[#allocation5 + $0xc] sm:$0xff]
        %v646 = vld [vmem:[#allocation5 + $0x14] sm:$0xf]
        %v647 = vld [vmem:[#allocation5 + $0x18] sm:$0xff]
        %v648 = vld [vmem:[#allocation5 + $0x20] sm:$0xf]
        %v649 = vld [vmem:[#allocation5 + $0x24] sm:$0xff]
        %v650 = vld [vmem:[#allocation5 + $0x2c] sm:$0xf]
        %v651 = vld [vmem:[#allocation5 + $0x30] sm:$0xff]
        %v652 = vld [vmem:[#allocation5 + $0x38] sm:$0xf]
        %v653 = vld [vmem:[#allocation5 + $0x3c] sm:$0xff]
        %v654 = vld [vmem:[#allocation5 + $0x44] sm:$0xf]
        %v655 = vld [vmem:[#allocation5 + $0x48] sm:$0xff]
        %v656 = vld [vmem:[#allocation5 + $0x50] sm:$0xf]
        %v657 = vld [vmem:[#allocation5 + $0x54] sm:$0xff]
        %v658 = vld [vmem:[#allocation5 + $0x5c] sm:$0xf]
        %v659 = vld [vmem:[#allocation5 + $0x60] sm:$0xff]
        %v660 = vld [vmem:[#allocation5 + $0x68] sm:$0xf]
        %v661 = vld [vmem:[#allocation5 + $0x6c] sm:$0xff]
        %v662 = vld [vmem:[#allocation5 + $0x74] sm:$0xf]
        %v663 = vld [vmem:[#allocation5 + $0x78] sm:$0xff]
        %v664 = vld [vmem:[#allocation5 + $0x80] sm:$0xf]
        %v665 = vld [vmem:[#allocation5 + $0x84] sm:$0xff]
        %v666 = vld [vmem:[#allocation5 + $0x8c] sm:$0xf]
        %v667 = vld [vmem:[#allocation5 + $0x90] sm:$0xff]
        %v668 = vld [vmem:[#allocation5 + $0x98] sm:$0xf]
        %v669 = vld [vmem:[#allocation5 + $0x9c] sm:$0xff]
        %v670 = vld [vmem:[#allocation5 + $0xa4] sm:$0xf]
        %v671 = vld [vmem:[#allocation5 + $0xa8] sm:$0xff]
        %v672 = vld [vmem:[#allocation5 + $0xb0] sm:$0xf]
        %v673 = vld [vmem:[#allocation5 + $0xb4] sm:$0xff]
        %v674 = vld [vmem:[#allocation5 + $0xbc] sm:$0xf]
        %v675 = vld [vmem:[%s3] sm:$0x7]
        %v677 = vperm.slane %v675, 0
        %v678 = vperm.slane %v675, 1
        %v679 = vperm.slane %v675, 2
        %v699 = vunpack.c.l.b16 %v627
        %v700 = vunpack.c.l.b16 %v628
        %v701 = vunpack.c.l.b16 %v629
        %v702 = vunpack.c.l.b16 %v630
        %v703 = vunpack.c.l.b16 %v631
        %v704 = vunpack.c.l.b16 %v632
        %v705 = vunpack.c.l.b16 %v633
        %v706 = vunpack.c.l.b16 %v634
        %v707 = vunpack.c.l.b16 %v635
        %v708 = vunpack.c.l.b16 %v636
        %v709 = vunpack.c.l.b16 %v637
        %v710 = vunpack.c.l.b16 %v638
        %v711 = vunpack.c.l.b16 %v639
        %v712 = vunpack.c.l.b16 %v640
        %v713 = vunpack.c.l.b16 %v641
        %v714 = vunpack.c.l.b16 %v642
        %v715 = vpack.c.b16 %v700, %v699
        %v716 = vpack.c.b16 %v702, %v701
        %v717 = vpack.c.b16 %v704, %v703
        %v718 = vpack.c.b16 %v706, %v705
        %v719 = vpack.c.b16 %v708, %v707
        %v720 = vpack.c.b16 %v710, %v709
        %v721 = vpack.c.b16 %v712, %v711
        %v722 = vpack.c.b16 %v714, %v713
        %v763 = vunpack.c.l.b16 %v643
        %v764 = vunpack.c.h.b16 %v643
        %v765 = vunpack.c.l.b16 %v644
        %v766 = vunpack.c.l.b16 %v645
        %v767 = vunpack.c.h.b16 %v645
        %v768 = vunpack.c.l.b16 %v646
        %v769 = vunpack.c.l.b16 %v647
        %v770 = vunpack.c.h.b16 %v647
        %v771 = vunpack.c.l.b16 %v648
        %v772 = vunpack.c.l.b16 %v649
        %v773 = vunpack.c.h.b16 %v649
        %v774 = vunpack.c.l.b16 %v650
        %v775 = vunpack.c.l.b16 %v651
        %v776 = vunpack.c.h.b16 %v651
        %v777 = vunpack.c.l.b16 %v652
        %v778 = vunpack.c.l.b16 %v653
        %v779 = vunpack.c.h.b16 %v653
        %v780 = vunpack.c.l.b16 %v654
        %v781 = vunpack.c.l.b16 %v655
        %v782 = vunpack.c.h.b16 %v655
        %v783 = vunpack.c.l.b16 %v656
        %v784 = vunpack.c.l.b16 %v657
        %v785 = vunpack.c.h.b16 %v657
        %v786 = vunpack.c.l.b16 %v658
        %v787 = vunpack.c.l.b16 %v659
        %v788 = vunpack.c.h.b16 %v659
        %v789 = vunpack.c.l.b16 %v660
        %v790 = vunpack.c.l.b16 %v661
        %v791 = vunpack.c.h.b16 %v661
        %v792 = vunpack.c.l.b16 %v662
        %v793 = vunpack.c.l.b16 %v663
        %v794 = vunpack.c.h.b16 %v663
        %v795 = vunpack.c.l.b16 %v664
        %v796 = vunpack.c.l.b16 %v665
        %v797 = vunpack.c.h.b16 %v665
        %v798 = vunpack.c.l.b16 %v666
        %v799 = vunpack.c.l.b16 %v667
        %v800 = vunpack.c.h.b16 %v667
        %v801 = vunpack.c.l.b16 %v668
        %v802 = vunpack.c.l.b16 %v669
        %v803 = vunpack.c.h.b16 %v669
        %v804 = vunpack.c.l.b16 %v670
        %v805 = vunpack.c.l.b16 %v671
        %v806 = vunpack.c.h.b16 %v671
        %v807 = vunpack.c.l.b16 %v672
        %v808 = vunpack.c.l.b16 %v673
        %v809 = vunpack.c.h.b16 %v673
        %v810 = vunpack.c.l.b16 %v674
        %v811 = vpack.c.b16 %v766, %v763
        %v812 = vpack.c.b16 %v767, %v764
        %v813 = vpack.c.b16 %v768, %v765
        %v814 = vpack.c.b16 %v772, %v769
        %v815 = vpack.c.b16 %v773, %v770
        %v816 = vpack.c.b16 %v774, %v771
        %v817 = vpack.c.b16 %v778, %v775
        %v818 = vpack.c.b16 %v779, %v776
        %v819 = vpack.c.b16 %v780, %v777
        %v820 = vpack.c.b16 %v784, %v781
        %v821 = vpack.c.b16 %v785, %v782
        %v822 = vpack.c.b16 %v786, %v783
        %v823 = vpack.c.b16 %v790, %v787
        %v824 = vpack.c.b16 %v791, %v788
        %v825 = vpack.c.b16 %v792, %v789
        %v826 = vpack.c.b16 %v796, %v793
        %v827 = vpack.c.b16 %v797, %v794
        %v828 = vpack.c.b16 %v798, %v795
        %v829 = vpack.c.b16 %v802, %v799
        %v830 = vpack.c.b16 %v803, %v800
        %v831 = vpack.c.b16 %v804, %v801
        %v832 = vpack.c.b16 %v808, %v805
        %v833 = vpack.c.b16 %v809, %v806
        %v834 = vpack.c.b16 %v810, %v807
        %859 = vmatpush.bf16.msra.mxu0 %v832
        %860 = vmatpush.bf16.msra.mxu0 %v829
        %861 = vmatpush.bf16.msra.mxu0 %v826
        %862 = vmatpush.bf16.msra.mxu0 %v823
        %863 = vmatpush.bf16.msra.mxu0 %v820
        %864 = vmatpush.bf16.msra.mxu0 %v817
        %865 = vmatpush.bf16.msra.mxu0 %v814
        %866 = vmatpush.bf16.msra.mxu0 %v811
        %867 = vmatmul.bf16.gmra.mxu0 %v715
        %v868 = vpop.f32.mrf.mxu0
        %v869 = vadd.f32 %v677, %v868
        %v870 = vpop.f32.mrf.mxu0
        %v871 = vadd.f32 %v677, %v870
        %872 = vmatmul.bf16.gmra.mxu0 %v716
        %v873 = vpop.f32.mrf.mxu0
        %v874 = vadd.f32 %v677, %v873
        %v875 = vpop.f32.mrf.mxu0
        %v876 = vadd.f32 %v677, %v875
        %877 = vmatmul.bf16.gmra.mxu0 %v717
        %v878 = vpop.f32.mrf.mxu0
        %v879 = vadd.f32 %v677, %v878
        %v880 = vpop.f32.mrf.mxu0
        %v881 = vadd.f32 %v677, %v880
        %882 = vmatmul.bf16.gmra.mxu0 %v718
        %v883 = vpop.f32.mrf.mxu0
        %v884 = vadd.f32 %v677, %v883
        %v885 = vpop.f32.mrf.mxu0
        %v886 = vadd.f32 %v677, %v885
        %887 = vmatmul.bf16.gmra.mxu0 %v719
        %v888 = vpop.f32.mrf.mxu0
        %v889 = vadd.f32 %v677, %v888
        %v890 = vpop.f32.mrf.mxu0
        %v891 = vadd.f32 %v677, %v890
        %892 = vmatmul.bf16.gmra.mxu0 %v720
        %v893 = vpop.f32.mrf.mxu0
        %v894 = vadd.f32 %v677, %v893
        %v895 = vpop.f32.mrf.mxu0
        %v896 = vadd.f32 %v677, %v895
        %897 = vmatmul.bf16.gmra.mxu0 %v721
        %v898 = vpop.f32.mrf.mxu0
        %v899 = vadd.f32 %v677, %v898
        %v900 = vpop.f32.mrf.mxu0
        %v901 = vadd.f32 %v677, %v900
        %902 = vmatmul.bf16.gmra.mxu0 %v722
        %v903 = vpop.f32.mrf.mxu0
        %v904 = vadd.f32 %v677, %v903
        %v905 = vpop.f32.mrf.mxu0
        %v906 = vadd.f32 %v677, %v905
        %907 = vdwg.mxu0
        %908 = vmatpush.bf16.msra.mxu0 %v833
        %909 = vmatpush.bf16.msra.mxu0 %v830
        %910 = vmatpush.bf16.msra.mxu0 %v827
        %911 = vmatpush.bf16.msra.mxu0 %v824
        %912 = vmatpush.bf16.msra.mxu0 %v821
        %913 = vmatpush.bf16.msra.mxu0 %v818
        %914 = vmatpush.bf16.msra.mxu0 %v815
        %915 = vmatpush.bf16.msra.mxu0 %v812
        %916 = vmatmul.bf16.gmra.mxu0 %v715
        %v917 = vpop.f32.mrf.mxu0
        %v918 = vadd.f32 %v678, %v917
        %v919 = vpop.f32.mrf.mxu0
        %v920 = vadd.f32 %v678, %v919
        %921 = vmatmul.bf16.gmra.mxu0 %v716
        %v922 = vpop.f32.mrf.mxu0
        %v923 = vadd.f32 %v678, %v922
        %v924 = vpop.f32.mrf.mxu0
        %v925 = vadd.f32 %v678, %v924
        %926 = vmatmul.bf16.gmra.mxu0 %v717
        %v927 = vpop.f32.mrf.mxu0
        %v928 = vadd.f32 %v678, %v927
        %v929 = vpop.f32.mrf.mxu0
        %v930 = vadd.f32 %v678, %v929
        %931 = vmatmul.bf16.gmra.mxu0 %v718
        %v932 = vpop.f32.mrf.mxu0
        %v933 = vadd.f32 %v678, %v932
        %v934 = vpop.f32.mrf.mxu0
        %v935 = vadd.f32 %v678, %v934
        %936 = vmatmul.bf16.gmra.mxu0 %v719
        %v937 = vpop.f32.mrf.mxu0
        %v938 = vadd.f32 %v678, %v937
        %v939 = vpop.f32.mrf.mxu0
        %v940 = vadd.f32 %v678, %v939
        %941 = vmatmul.bf16.gmra.mxu0 %v720
        %v942 = vpop.f32.mrf.mxu0
        %v943 = vadd.f32 %v678, %v942
        %v944 = vpop.f32.mrf.mxu0
        %v945 = vadd.f32 %v678, %v944
        %946 = vmatmul.bf16.gmra.mxu0 %v721
        %v947 = vpop.f32.mrf.mxu0
        %v948 = vadd.f32 %v678, %v947
        %v949 = vpop.f32.mrf.mxu0
        %v950 = vadd.f32 %v678, %v949
        %951 = vmatmul.bf16.gmra.mxu0 %v722
        %v952 = vpop.f32.mrf.mxu0
        %v953 = vadd.f32 %v678, %v952
        %v954 = vpop.f32.mrf.mxu0
        %v955 = vadd.f32 %v678, %v954
        %956 = vdwg.mxu0
        %957 = vmatpush.bf16.msra.mxu0 %v834
        %958 = vmatpush.bf16.msra.mxu0 %v831
        %959 = vmatpush.bf16.msra.mxu0 %v828
        %960 = vmatpush.bf16.msra.mxu0 %v825
        %961 = vmatpush.bf16.msra.mxu0 %v822
        %962 = vmatpush.bf16.msra.mxu0 %v819
        %963 = vmatpush.bf16.msra.mxu0 %v816
        %964 = vmatpush.bf16.msra.mxu0 %v813
        %965 = vmatmul.bf16.gmra.mxu0 %v715
        %v966 = vpop.f32.mrf.mxu0
        %v967 = vadd.f32 %v679, %v966
        %v968 = vpop.f32.mrf.mxu0
        %v969 = vadd.f32 %v679, %v968
        %970 = vmatmul.bf16.gmra.mxu0 %v716
        %v971 = vpop.f32.mrf.mxu0
        %v972 = vadd.f32 %v679, %v971
        %v973 = vpop.f32.mrf.mxu0
        %v974 = vadd.f32 %v679, %v973
        %975 = vmatmul.bf16.gmra.mxu0 %v717
        %v976 = vpop.f32.mrf.mxu0
        %v977 = vadd.f32 %v679, %v976
        %v978 = vpop.f32.mrf.mxu0
        %v979 = vadd.f32 %v679, %v978
        %980 = vmatmul.bf16.gmra.mxu0 %v718
        %v981 = vpop.f32.mrf.mxu0
        %v982 = vadd.f32 %v679, %v981
        %v983 = vpop.f32.mrf.mxu0
        %v984 = vadd.f32 %v679, %v983
        %985 = vmatmul.bf16.gmra.mxu0 %v719
        %v986 = vpop.f32.mrf.mxu0
        %v987 = vadd.f32 %v679, %v986
        %v988 = vpop.f32.mrf.mxu0
        %v989 = vadd.f32 %v679, %v988
        %990 = vmatmul.bf16.gmra.mxu0 %v720
        %v991 = vpop.f32.mrf.mxu0
        %v992 = vadd.f32 %v679, %v991
        %v993 = vpop.f32.mrf.mxu0
        %v994 = vadd.f32 %v679, %v993
        %995 = vmatmul.bf16.gmra.mxu0 %v721
        %v996 = vpop.f32.mrf.mxu0
        %v997 = vadd.f32 %v679, %v996
        %v998 = vpop.f32.mrf.mxu0
        %v999 = vadd.f32 %v679, %v998
        %1000 = vmatmul.bf16.gmra.mxu0 %v722
        %v1001 = vpop.f32.mrf.mxu0
        %v1002 = vadd.f32 %v679, %v1001
        %v1003 = vpop.f32.mrf.mxu0
        %v1004 = vadd.f32 %v679, %v1003
        %1005 = vdwg.mxu0
        %v1006 = vpack.c.bf16 %v869, %v869
        %v1007 = vpack.c.bf16 %v871, %v871
        %v1008 = vpack.c.bf16 %v874, %v874
        %v1009 = vpack.c.bf16 %v876, %v876
        %v1010 = vpack.c.bf16 %v879, %v879
        %v1011 = vpack.c.bf16 %v881, %v881
        %v1012 = vpack.c.bf16 %v884, %v884
        %v1013 = vpack.c.bf16 %v886, %v886
        %v1014 = vpack.c.bf16 %v889, %v889
        %v1015 = vpack.c.bf16 %v891, %v891
        %v1016 = vpack.c.bf16 %v894, %v894
        %v1017 = vpack.c.bf16 %v896, %v896
        %v1018 = vpack.c.bf16 %v899, %v899
        %v1019 = vpack.c.bf16 %v901, %v901
        %v1020 = vpack.c.bf16 %v904, %v904
        %v1021 = vpack.c.bf16 %v906, %v906
        %v1022 = vpack.c.bf16 %v918, %v918
        %v1023 = vpack.c.bf16 %v920, %v920
        %v1024 = vpack.c.bf16 %v923, %v923
        %v1025 = vpack.c.bf16 %v925, %v925
        %v1026 = vpack.c.bf16 %v928, %v928
        %v1027 = vpack.c.bf16 %v930, %v930
        %v1028 = vpack.c.bf16 %v933, %v933
        %v1029 = vpack.c.bf16 %v935, %v935
        %v1030 = vpack.c.bf16 %v938, %v938
        %v1031 = vpack.c.bf16 %v940, %v940
        %v1032 = vpack.c.bf16 %v943, %v943
        %v1033 = vpack.c.bf16 %v945, %v945
        %v1034 = vpack.c.bf16 %v948, %v948
        %v1035 = vpack.c.bf16 %v950, %v950
        %v1036 = vpack.c.bf16 %v953, %v953
        %v1037 = vpack.c.bf16 %v955, %v955
        %v1038 = vpack.c.bf16 %v967, %v967
        %v1039 = vpack.c.bf16 %v969, %v969
        %v1040 = vpack.c.bf16 %v972, %v972
        %v1041 = vpack.c.bf16 %v974, %v974
        %v1042 = vpack.c.bf16 %v977, %v977
        %v1043 = vpack.c.bf16 %v979, %v979
        %v1044 = vpack.c.bf16 %v982, %v982
        %v1045 = vpack.c.bf16 %v984, %v984
        %v1046 = vpack.c.bf16 %v987, %v987
        %v1047 = vpack.c.bf16 %v989, %v989
        %v1048 = vpack.c.bf16 %v992, %v992
        %v1049 = vpack.c.bf16 %v994, %v994
        %v1050 = vpack.c.bf16 %v997, %v997
        %v1051 = vpack.c.bf16 %v999, %v999
        %v1052 = vpack.c.bf16 %v1002, %v1002
        %v1053 = vpack.c.bf16 %v1004, %v1004
        %v1070 = vunpack.c.l.b16 %v1006
        %v1071 = vunpack.c.l.b16 %v1007
        %v1072 = vunpack.c.l.b16 %v1008
        %v1073 = vunpack.c.l.b16 %v1009
        %v1074 = vunpack.c.l.b16 %v1010
        %v1075 = vunpack.c.l.b16 %v1011
        %v1076 = vunpack.c.l.b16 %v1012
        %v1077 = vunpack.c.l.b16 %v1013
        %v1078 = vunpack.c.l.b16 %v1014
        %v1079 = vunpack.c.l.b16 %v1015
        %v1080 = vunpack.c.l.b16 %v1016
        %v1081 = vunpack.c.l.b16 %v1017
        %v1082 = vunpack.c.l.b16 %v1018
        %v1083 = vunpack.c.l.b16 %v1019
        %v1084 = vunpack.c.l.b16 %v1020
        %v1085 = vunpack.c.l.b16 %v1021
        %v1086 = vpack.c.b16 %v1071, %v1070
        %v1087 = vpack.c.b16 %v1073, %v1072
        %v1088 = vpack.c.b16 %v1075, %v1074
        %v1089 = vpack.c.b16 %v1077, %v1076
        %v1090 = vpack.c.b16 %v1079, %v1078
        %v1091 = vpack.c.b16 %v1081, %v1080
        %v1092 = vpack.c.b16 %v1083, %v1082
        %v1093 = vpack.c.b16 %v1085, %v1084
        %v1110 = vunpack.c.l.b16 %v1022
        %v1111 = vunpack.c.l.b16 %v1023
        %v1112 = vunpack.c.l.b16 %v1024
        %v1113 = vunpack.c.l.b16 %v1025
        %v1114 = vunpack.c.l.b16 %v1026
        %v1115 = vunpack.c.l.b16 %v1027
        %v1116 = vunpack.c.l.b16 %v1028
        %v1117 = vunpack.c.l.b16 %v1029
        %v1118 = vunpack.c.l.b16 %v1030
        %v1119 = vunpack.c.l.b16 %v1031
        %v1120 = vunpack.c.l.b16 %v1032
        %v1121 = vunpack.c.l.b16 %v1033
        %v1122 = vunpack.c.l.b16 %v1034
        %v1123 = vunpack.c.l.b16 %v1035
        %v1124 = vunpack.c.l.b16 %v1036
        %v1125 = vunpack.c.l.b16 %v1037
        %v1126 = vpack.c.b16 %v1111, %v1110
        %v1127 = vpack.c.b16 %v1113, %v1112
        %v1128 = vpack.c.b16 %v1115, %v1114
        %v1129 = vpack.c.b16 %v1117, %v1116
        %v1130 = vpack.c.b16 %v1119, %v1118
        %v1131 = vpack.c.b16 %v1121, %v1120
        %v1132 = vpack.c.b16 %v1123, %v1122
        %v1133 = vpack.c.b16 %v1125, %v1124
        %vm1134 = vcmask 261120
        %v1136 = vsel %vm1134, %v1086, 0
        %v1139 = vsel %vm1134, %v1087, 0
        %v1142 = vsel %vm1134, %v1088, 0
        %v1145 = vsel %vm1134, %v1089, 0
        %v1148 = vsel %vm1134, %v1090, 0
        %v1151 = vsel %vm1134, %v1091, 0
        %v1154 = vsel %vm1134, %v1092, 0
        %v1157 = vsel %vm1134, %v1093, 0
        %v1160 = vsel %vm1134, %v1126, 0
        %v1163 = vsel %vm1134, %v1127, 0
        %v1166 = vsel %vm1134, %v1128, 0
        %v1169 = vsel %vm1134, %v1129, 0
        %v1172 = vsel %vm1134, %v1130, 0
        %v1175 = vsel %vm1134, %v1131, 0
        %v1178 = vsel %vm1134, %v1132, 0
        %v1181 = vsel %vm1134, %v1133, 0
        %1183 = vmatpush.bf16.xpose.msra.mxu0 %v1181
        %1184 = vmatpush.bf16.xpose.msra.mxu0 %v1178
        %1185 = vmatpush.bf16.xpose.msra.mxu0 %v1175
        %1186 = vmatpush.bf16.xpose.msra.mxu0 %v1172
        %1187 = vmatpush.bf16.xpose.msra.mxu0 %v1169
        %1188 = vmatpush.bf16.xpose.msra.mxu0 %v1166
        %1189 = vmatpush.bf16.xpose.msra.mxu0 %v1163
        %1190 = vmatpush.bf16.xpose.msra.mxu0 %v1160
        %1191 = vmatmul.bf16.gmra.mxu0 %v1136
        %v1192 = vpop.f32.mrf.mxu0
        %v1193 = vadd.f32 0.0, %v1192
        %v1194 = vpop.f32.mrf.mxu0
        %v1195 = vadd.f32 0.0, %v1194
        %1196 = vmatmul.bf16.gmra.mxu0 %v1139
        %v1197 = vpop.f32.mrf.mxu0
        %v1198 = vadd.f32 0.0, %v1197
        %v1199 = vpop.f32.mrf.mxu0
        %v1200 = vadd.f32 0.0, %v1199
        %1201 = vmatmul.bf16.gmra.mxu0 %v1142
        %v1202 = vpop.f32.mrf.mxu0
        %v1203 = vadd.f32 0.0, %v1202
        %v1204 = vpop.f32.mrf.mxu0
        %v1205 = vadd.f32 0.0, %v1204
        %1206 = vmatmul.bf16.gmra.mxu0 %v1145
        %v1207 = vpop.f32.mrf.mxu0
        %v1208 = vadd.f32 0.0, %v1207
        %v1209 = vpop.f32.mrf.mxu0
        %v1210 = vadd.f32 0.0, %v1209
        %1211 = vmatmul.bf16.gmra.mxu0 %v1148
        %v1212 = vpop.f32.mrf.mxu0
        %v1213 = vadd.f32 0.0, %v1212
        %v1214 = vpop.f32.mrf.mxu0
        %v1215 = vadd.f32 0.0, %v1214
        %1216 = vmatmul.bf16.gmra.mxu0 %v1151
        %v1217 = vpop.f32.mrf.mxu0
        %v1218 = vadd.f32 0.0, %v1217
        %v1219 = vpop.f32.mrf.mxu0
        %v1220 = vadd.f32 0.0, %v1219
        %1221 = vmatmul.bf16.gmra.mxu0 %v1154
        %v1222 = vpop.f32.mrf.mxu0
        %v1223 = vadd.f32 0.0, %v1222
        %v1224 = vpop.f32.mrf.mxu0
        %v1225 = vadd.f32 0.0, %v1224
        %1226 = vmatmul.bf16.gmra.mxu0 %v1157
        %v1227 = vpop.f32.mrf.mxu0
        %v1228 = vadd.f32 0.0, %v1227
        %v1229 = vpop.f32.mrf.mxu0
        %v1230 = vadd.f32 0.0, %v1229
        %1231 = vdwg.mxu0
        %1232 = vmax.xlane.f32.xlu0 %v1193
        %v1233 = vpop.xlane.xlu0 %1232
        %1234 = vmax.xlane.f32.xlu0 %v1195
        %v1235 = vpop.xlane.xlu0 %1234
        %1236 = vmax.xlane.f32.xlu0 %v1198
        %v1237 = vpop.xlane.xlu0 %1236
        %1238 = vmax.xlane.f32.xlu0 %v1200
        %v1239 = vpop.xlane.xlu0 %1238
        %1240 = vmax.xlane.f32.xlu0 %v1203
        %v1241 = vpop.xlane.xlu0 %1240
        %1242 = vmax.xlane.f32.xlu0 %v1205
        %v1243 = vpop.xlane.xlu0 %1242
        %1244 = vmax.xlane.f32.xlu0 %v1208
        %v1245 = vpop.xlane.xlu0 %1244
        %1246 = vmax.xlane.f32.xlu0 %v1210
        %v1247 = vpop.xlane.xlu0 %1246
        %1248 = vmax.xlane.f32.xlu0 %v1213
        %v1249 = vpop.xlane.xlu0 %1248
        %1250 = vmax.xlane.f32.xlu0 %v1215
        %v1251 = vpop.xlane.xlu0 %1250
        %1252 = vmax.xlane.f32.xlu0 %v1218
        %v1253 = vpop.xlane.xlu0 %1252
        %1254 = vmax.xlane.f32.xlu0 %v1220
        %v1255 = vpop.xlane.xlu0 %1254
        %1256 = vmax.xlane.f32.xlu0 %v1223
        %v1257 = vpop.xlane.xlu0 %1256
        %1258 = vmax.xlane.f32.xlu0 %v1225
        %v1259 = vpop.xlane.xlu0 %1258
        %1260 = vmax.xlane.f32.xlu0 %v1228
        %v1261 = vpop.xlane.xlu0 %1260
        %1262 = vmax.xlane.f32.xlu0 %v1230
        %v1263 = vpop.xlane.xlu0 %1262
        %v1264 = vsub.f32 %v1193, %v1233
        %v1265 = vsub.f32 %v1195, %v1235
        %v1266 = vsub.f32 %v1198, %v1237
        %v1267 = vsub.f32 %v1200, %v1239
        %v1268 = vsub.f32 %v1203, %v1241
        %v1269 = vsub.f32 %v1205, %v1243
        %v1270 = vsub.f32 %v1208, %v1245
        %v1271 = vsub.f32 %v1210, %v1247
        %v1272 = vsub.f32 %v1213, %v1249
        %v1273 = vsub.f32 %v1215, %v1251
        %v1274 = vsub.f32 %v1218, %v1253
        %v1275 = vsub.f32 %v1220, %v1255
        %v1276 = vsub.f32 %v1223, %v1257
        %v1277 = vsub.f32 %v1225, %v1259
        %v1278 = vsub.f32 %v1228, %v1261
        %v1279 = vsub.f32 %v1230, %v1263
        %v1280 = vmul.f32 %v1264, 1.442695
        %v1281 = vpow.pop %v1280
        %v1282 = vmul.f32 %v1265, 1.442695
        %v1283 = vpow.pop %v1282
        %v1284 = vmul.f32 %v1266, 1.442695
        %v1285 = vpow.pop %v1284
        %v1286 = vmul.f32 %v1267, 1.442695
        %v1287 = vpow.pop %v1286
        %v1288 = vmul.f32 %v1268, 1.442695
        %v1289 = vpow.pop %v1288
        %v1290 = vmul.f32 %v1269, 1.442695
        %v1291 = vpow.pop %v1290
        %v1292 = vmul.f32 %v1270, 1.442695
        %v1293 = vpow.pop %v1292
        %v1294 = vmul.f32 %v1271, 1.442695
        %v1295 = vpow.pop %v1294
        %v1296 = vmul.f32 %v1272, 1.442695
        %v1297 = vpow.pop %v1296
        %v1298 = vmul.f32 %v1273, 1.442695
        %v1299 = vpow.pop %v1298
        %v1300 = vmul.f32 %v1274, 1.442695
        %v1301 = vpow.pop %v1300
        %v1302 = vmul.f32 %v1275, 1.442695
        %v1303 = vpow.pop %v1302
        %v1304 = vmul.f32 %v1276, 1.442695
        %v1305 = vpow.pop %v1304
        %v1306 = vmul.f32 %v1277, 1.442695
        %v1307 = vpow.pop %v1306
        %v1308 = vmul.f32 %v1278, 1.442695
        %v1309 = vpow.pop %v1308
        %v1310 = vmul.f32 %v1279, 1.442695
        %v1311 = vpow.pop %v1310
        %1312 = vadd.xlane.f32.xlu0 %v1281
        %v1313 = vpop.xlane.xlu0 %1312
        %1314 = vadd.xlane.f32.xlu0 %v1283
        %v1315 = vpop.xlane.xlu0 %1314
        %1316 = vadd.xlane.f32.xlu0 %v1285
        %v1317 = vpop.xlane.xlu0 %1316
        %1318 = vadd.xlane.f32.xlu0 %v1287
        %v1319 = vpop.xlane.xlu0 %1318
        %1320 = vadd.xlane.f32.xlu0 %v1289
        %v1321 = vpop.xlane.xlu0 %1320
        %1322 = vadd.xlane.f32.xlu0 %v1291
        %v1323 = vpop.xlane.xlu0 %1322
        %1324 = vadd.xlane.f32.xlu0 %v1293
        %v1325 = vpop.xlane.xlu0 %1324
        %1326 = vadd.xlane.f32.xlu0 %v1295
        %v1327 = vpop.xlane.xlu0 %1326
        %1328 = vadd.xlane.f32.xlu0 %v1297
        %v1329 = vpop.xlane.xlu0 %1328
        %1330 = vadd.xlane.f32.xlu0 %v1299
        %v1331 = vpop.xlane.xlu0 %1330
        %1332 = vadd.xlane.f32.xlu0 %v1301
        %v1333 = vpop.xlane.xlu0 %1332
        %1334 = vadd.xlane.f32.xlu0 %v1303
        %v1335 = vpop.xlane.xlu0 %1334
        %1336 = vadd.xlane.f32.xlu0 %v1305
        %v1337 = vpop.xlane.xlu0 %1336
        %1338 = vadd.xlane.f32.xlu0 %v1307
        %v1339 = vpop.xlane.xlu0 %1338
        %1340 = vadd.xlane.f32.xlu0 %v1309
        %v1341 = vpop.xlane.xlu0 %1340
        %1342 = vadd.xlane.f32.xlu0 %v1311
        %v1343 = vpop.xlane.xlu0 %1342
        %v1344 = vrcp.pop %v1313
        %v1345 = vrcp.pop %v1315
        %v1346 = vrcp.pop %v1317
        %v1347 = vrcp.pop %v1319
        %v1348 = vrcp.pop %v1321
        %v1349 = vrcp.pop %v1323
        %v1350 = vrcp.pop %v1325
        %v1351 = vrcp.pop %v1327
        %v1352 = vrcp.pop %v1329
        %v1353 = vrcp.pop %v1331
        %v1354 = vrcp.pop %v1333
        %v1355 = vrcp.pop %v1335
        %v1356 = vrcp.pop %v1337
        %v1357 = vrcp.pop %v1339
        %v1358 = vrcp.pop %v1341
        %v1359 = vrcp.pop %v1343
        %v1360 = vmul.f32 %v1313, %v1344
        %v1361 = vmul.f32 %v1315, %v1345
        %v1362 = vmul.f32 %v1317, %v1346
        %v1363 = vmul.f32 %v1319, %v1347
        %v1364 = vmul.f32 %v1321, %v1348
        %v1365 = vmul.f32 %v1323, %v1349
        %v1366 = vmul.f32 %v1325, %v1350
        %v1367 = vmul.f32 %v1327, %v1351
        %v1368 = vmul.f32 %v1329, %v1352
        %v1369 = vmul.f32 %v1331, %v1353
        %v1370 = vmul.f32 %v1333, %v1354
        %v1371 = vmul.f32 %v1335, %v1355
        %v1372 = vmul.f32 %v1337, %v1356
        %v1373 = vmul.f32 %v1339, %v1357
        %v1374 = vmul.f32 %v1341, %v1358
        %v1375 = vmul.f32 %v1343, %v1359
        %v1376 = vsub.f32 2.0, %v1360
        %v1377 = vsub.f32 2.0, %v1361
        %v1378 = vsub.f32 2.0, %v1362
        %v1379 = vsub.f32 2.0, %v1363
        %v1380 = vsub.f32 2.0, %v1364
        %v1381 = vsub.f32 2.0, %v1365
        %v1382 = vsub.f32 2.0, %v1366
        %v1383 = vsub.f32 2.0, %v1367
        %v1384 = vsub.f32 2.0, %v1368
        %v1385 = vsub.f32 2.0, %v1369
        %v1386 = vsub.f32 2.0, %v1370
        %v1387 = vsub.f32 2.0, %v1371
        %v1388 = vsub.f32 2.0, %v1372
        %v1389 = vsub.f32 2.0, %v1373
        %v1390 = vsub.f32 2.0, %v1374
        %v1391 = vsub.f32 2.0, %v1375
        %v1392 = vmul.f32 %v1344, %v1376
        %v1393 = vmul.f32 %v1345, %v1377
        %v1394 = vmul.f32 %v1346, %v1378
        %v1395 = vmul.f32 %v1347, %v1379
        %v1396 = vmul.f32 %v1348, %v1380
        %v1397 = vmul.f32 %v1349, %v1381
        %v1398 = vmul.f32 %v1350, %v1382
        %v1399 = vmul.f32 %v1351, %v1383
        %v1400 = vmul.f32 %v1352, %v1384
        %v1401 = vmul.f32 %v1353, %v1385
        %v1402 = vmul.f32 %v1354, %v1386
        %v1403 = vmul.f32 %v1355, %v1387
        %v1404 = vmul.f32 %v1356, %v1388
        %v1405 = vmul.f32 %v1357, %v1389
        %v1406 = vmul.f32 %v1358, %v1390
        %v1407 = vmul.f32 %v1359, %v1391
        %v1408 = vmul.f32 %v1281, %v1392
        %v1409 = vmul.f32 %v1283, %v1393
        %v1410 = vmul.f32 %v1285, %v1394
        %v1411 = vmul.f32 %v1287, %v1395
        %v1412 = vmul.f32 %v1289, %v1396
        %v1413 = vmul.f32 %v1291, %v1397
        %v1414 = vmul.f32 %v1293, %v1398
        %v1415 = vmul.f32 %v1295, %v1399
        %v1416 = vmul.f32 %v1297, %v1400
        %v1417 = vmul.f32 %v1299, %v1401
        %v1418 = vmul.f32 %v1301, %v1402
        %v1419 = vmul.f32 %v1303, %v1403
        %v1420 = vmul.f32 %v1305, %v1404
        %v1421 = vmul.f32 %v1307, %v1405
        %v1422 = vmul.f32 %v1309, %v1406
        %v1423 = vmul.f32 %v1311, %v1407
        %v1424 = vpack.c.bf16 %v1408, %v1408
        %v1425 = vpack.c.bf16 %v1409, %v1409
        %v1426 = vpack.c.bf16 %v1410, %v1410
        %v1427 = vpack.c.bf16 %v1411, %v1411
        %v1428 = vpack.c.bf16 %v1412, %v1412
        %v1429 = vpack.c.bf16 %v1413, %v1413
        %v1430 = vpack.c.bf16 %v1414, %v1414
        %v1431 = vpack.c.bf16 %v1415, %v1415
        %v1432 = vpack.c.bf16 %v1416, %v1416
        %v1433 = vpack.c.bf16 %v1417, %v1417
        %v1434 = vpack.c.bf16 %v1418, %v1418
        %v1435 = vpack.c.bf16 %v1419, %v1419
        %v1436 = vpack.c.bf16 %v1420, %v1420
        %v1437 = vpack.c.bf16 %v1421, %v1421
        %v1438 = vpack.c.bf16 %v1422, %v1422
        %v1439 = vpack.c.bf16 %v1423, %v1423
        %v1456 = vunpack.c.l.b16 %v1424
        %v1457 = vunpack.c.l.b16 %v1425
        %v1458 = vunpack.c.l.b16 %v1426
        %v1459 = vunpack.c.l.b16 %v1427
        %v1460 = vunpack.c.l.b16 %v1428
        %v1461 = vunpack.c.l.b16 %v1429
        %v1462 = vunpack.c.l.b16 %v1430
        %v1463 = vunpack.c.l.b16 %v1431
        %v1464 = vunpack.c.l.b16 %v1432
        %v1465 = vunpack.c.l.b16 %v1433
        %v1466 = vunpack.c.l.b16 %v1434
        %v1467 = vunpack.c.l.b16 %v1435
        %v1468 = vunpack.c.l.b16 %v1436
        %v1469 = vunpack.c.l.b16 %v1437
        %v1470 = vunpack.c.l.b16 %v1438
        %v1471 = vunpack.c.l.b16 %v1439
        %v1472 = vpack.c.b16 %v1457, %v1456
        %v1473 = vpack.c.b16 %v1459, %v1458
        %v1474 = vpack.c.b16 %v1461, %v1460
        %v1475 = vpack.c.b16 %v1463, %v1462
        %v1476 = vpack.c.b16 %v1465, %v1464
        %v1477 = vpack.c.b16 %v1467, %v1466
        %v1478 = vpack.c.b16 %v1469, %v1468
        %v1479 = vpack.c.b16 %v1471, %v1470
        %v1504 = vunpack.c.l.b16 %v1038
        %v1505 = vunpack.c.l.b16 %v1039
        %v1506 = vunpack.c.l.b16 %v1040
        %v1507 = vunpack.c.l.b16 %v1041
        %v1508 = vunpack.c.l.b16 %v1042
        %v1509 = vunpack.c.l.b16 %v1043
        %v1510 = vunpack.c.l.b16 %v1044
        %v1511 = vunpack.c.l.b16 %v1045
        %v1512 = vunpack.c.l.b16 %v1046
        %v1513 = vunpack.c.l.b16 %v1047
        %v1514 = vunpack.c.l.b16 %v1048
        %v1515 = vunpack.c.l.b16 %v1049
        %v1516 = vunpack.c.l.b16 %v1050
        %v1517 = vunpack.c.l.b16 %v1051
        %v1518 = vunpack.c.l.b16 %v1052
        %v1519 = vunpack.c.l.b16 %v1053
        %v1520 = vpack.c.b16 %v1505, %v1504
        %v1521 = vpack.c.b16 %v1507, %v1506
        %v1522 = vpack.c.b16 %v1509, %v1508
        %v1523 = vpack.c.b16 %v1511, %v1510
        %v1524 = vpack.c.b16 %v1513, %v1512
        %v1525 = vpack.c.b16 %v1515, %v1514
        %v1526 = vpack.c.b16 %v1517, %v1516
        %v1527 = vpack.c.b16 %v1519, %v1518
        %1536 = vmatpush.bf16.msra.mxu0 %v1527
        %1537 = vmatpush.bf16.msra.mxu0 %v1526
        %1538 = vmatpush.bf16.msra.mxu0 %v1525
        %1539 = vmatpush.bf16.msra.mxu0 %v1524
        %1540 = vmatpush.bf16.msra.mxu0 %v1523
        %1541 = vmatpush.bf16.msra.mxu0 %v1522
        %1542 = vmatpush.bf16.msra.mxu0 %v1521
        %1543 = vmatpush.bf16.msra.mxu0 %v1520
        %1544 = vmatmul.bf16.gmra.mxu0 %v1472
        %v1545 = vpop.f32.mrf.mxu0
        %v1546 = vadd.f32 0.0, %v1545
        %v1547 = vpop.f32.mrf.mxu0
        %v1548 = vadd.f32 0.0, %v1547
        %1549 = vmatmul.bf16.gmra.mxu0 %v1473
        %v1550 = vpop.f32.mrf.mxu0
        %v1551 = vadd.f32 0.0, %v1550
        %v1552 = vpop.f32.mrf.mxu0
        %v1553 = vadd.f32 0.0, %v1552
        %1554 = vmatmul.bf16.gmra.mxu0 %v1474
        %v1555 = vpop.f32.mrf.mxu0
        %v1556 = vadd.f32 0.0, %v1555
        %v1557 = vpop.f32.mrf.mxu0
        %v1558 = vadd.f32 0.0, %v1557
        %1559 = vmatmul.bf16.gmra.mxu0 %v1475
        %v1560 = vpop.f32.mrf.mxu0
        %v1561 = vadd.f32 0.0, %v1560
        %v1562 = vpop.f32.mrf.mxu0
        %v1563 = vadd.f32 0.0, %v1562
        %1564 = vmatmul.bf16.gmra.mxu0 %v1476
        %v1565 = vpop.f32.mrf.mxu0
        %v1566 = vadd.f32 0.0, %v1565
        %v1567 = vpop.f32.mrf.mxu0
        %v1568 = vadd.f32 0.0, %v1567
        %1569 = vmatmul.bf16.gmra.mxu0 %v1477
        %v1570 = vpop.f32.mrf.mxu0
        %v1571 = vadd.f32 0.0, %v1570
        %v1572 = vpop.f32.mrf.mxu0
        %v1573 = vadd.f32 0.0, %v1572
        %1574 = vmatmul.bf16.gmra.mxu0 %v1478
        %v1575 = vpop.f32.mrf.mxu0
        %v1576 = vadd.f32 0.0, %v1575
        %v1577 = vpop.f32.mrf.mxu0
        %v1578 = vadd.f32 0.0, %v1577
        %1579 = vmatmul.bf16.gmra.mxu0 %v1479
        %v1580 = vpop.f32.mrf.mxu0
        %v1581 = vadd.f32 0.0, %v1580
        %v1582 = vpop.f32.mrf.mxu0
        %v1583 = vadd.f32 0.0, %v1582
        %1584 = vdwg.mxu0
        %v1585 = vpack.c.bf16 %v1546, %v1546
        %v1586 = vpack.c.bf16 %v1548, %v1548
        %v1587 = vpack.c.bf16 %v1551, %v1551
        %v1588 = vpack.c.bf16 %v1553, %v1553
        %v1589 = vpack.c.bf16 %v1556, %v1556
        %v1590 = vpack.c.bf16 %v1558, %v1558
        %v1591 = vpack.c.bf16 %v1561, %v1561
        %v1592 = vpack.c.bf16 %v1563, %v1563
        %v1593 = vpack.c.bf16 %v1566, %v1566
        %v1594 = vpack.c.bf16 %v1568, %v1568
        %v1595 = vpack.c.bf16 %v1571, %v1571
        %v1596 = vpack.c.bf16 %v1573, %v1573
        %v1597 = vpack.c.bf16 %v1576, %v1576
        %v1598 = vpack.c.bf16 %v1578, %v1578
        %v1599 = vpack.c.bf16 %v1581, %v1581
        %v1600 = vpack.c.bf16 %v1583, %v1583
        %1601 = vrot.lane.b32.xlu0 %v1086, 96
        %v1602 = vpop.permute.xlu0 %1601
        %1603 = vrot.lane.b32.xlu0 %v1087, 96
        %v1604 = vpop.permute.xlu0 %1603
        %1605 = vrot.lane.b32.xlu0 %v1088, 96
        %v1606 = vpop.permute.xlu0 %1605
        %1607 = vrot.lane.b32.xlu0 %v1089, 96
        %v1608 = vpop.permute.xlu0 %1607
        %1609 = vrot.lane.b32.xlu0 %v1090, 96
        %v1610 = vpop.permute.xlu0 %1609
        %1611 = vrot.lane.b32.xlu0 %v1091, 96
        %v1612 = vpop.permute.xlu0 %1611
        %1613 = vrot.lane.b32.xlu0 %v1092, 96
        %v1614 = vpop.permute.xlu0 %1613
        %1615 = vrot.lane.b32.xlu0 %v1093, 96
        %v1616 = vpop.permute.xlu0 %1615
        %1617 = vrot.lane.b32.xlu0 %v1126, 96
        %v1618 = vpop.permute.xlu0 %1617
        %1619 = vrot.lane.b32.xlu0 %v1127, 96
        %v1620 = vpop.permute.xlu0 %1619
        %1621 = vrot.lane.b32.xlu0 %v1128, 96
        %v1622 = vpop.permute.xlu0 %1621
        %1623 = vrot.lane.b32.xlu0 %v1129, 96
        %v1624 = vpop.permute.xlu0 %1623
        %1625 = vrot.lane.b32.xlu0 %v1130, 96
        %v1626 = vpop.permute.xlu0 %1625
        %1627 = vrot.lane.b32.xlu0 %v1131, 96
        %v1628 = vpop.permute.xlu0 %1627
        %1629 = vrot.lane.b32.xlu0 %v1132, 96
        %v1630 = vpop.permute.xlu0 %1629
        %1631 = vrot.lane.b32.xlu0 %v1133, 96
        %v1632 = vpop.permute.xlu0 %1631
        %v1634 = vsel %vm1134, %v1602, 0
        %v1637 = vsel %vm1134, %v1604, 0
        %v1640 = vsel %vm1134, %v1606, 0
        %v1643 = vsel %vm1134, %v1608, 0
        %v1646 = vsel %vm1134, %v1610, 0
        %v1649 = vsel %vm1134, %v1612, 0
        %v1652 = vsel %vm1134, %v1614, 0
        %v1655 = vsel %vm1134, %v1616, 0
        %v1658 = vsel %vm1134, %v1618, 0
        %v1661 = vsel %vm1134, %v1620, 0
        %v1664 = vsel %vm1134, %v1622, 0
        %v1667 = vsel %vm1134, %v1624, 0
        %v1670 = vsel %vm1134, %v1626, 0
        %v1673 = vsel %vm1134, %v1628, 0
        %v1676 = vsel %vm1134, %v1630, 0
        %v1679 = vsel %vm1134, %v1632, 0
        %1681 = vmatpush.bf16.xpose.msra.mxu0 %v1679
        %1682 = vmatpush.bf16.xpose.msra.mxu0 %v1676
        %1683 = vmatpush.bf16.xpose.msra.mxu0 %v1673
        %1684 = vmatpush.bf16.xpose.msra.mxu0 %v1670
        %1685 = vmatpush.bf16.xpose.msra.mxu0 %v1667
        %1686 = vmatpush.bf16.xpose.msra.mxu0 %v1664
        %1687 = vmatpush.bf16.xpose.msra.mxu0 %v1661
        %1688 = vmatpush.bf16.xpose.msra.mxu0 %v1658
        %1689 = vmatmul.bf16.gmra.mxu0 %v1634
        %v1690 = vpop.f32.mrf.mxu0
        %v1691 = vadd.f32 0.0, %v1690
        %v1692 = vpop.f32.mrf.mxu0
        %v1693 = vadd.f32 0.0, %v1692
        %1694 = vmatmul.bf16.gmra.mxu0 %v1637
        %v1695 = vpop.f32.mrf.mxu0
        %v1696 = vadd.f32 0.0, %v1695
        %v1697 = vpop.f32.mrf.mxu0
        %v1698 = vadd.f32 0.0, %v1697
        %1699 = vmatmul.bf16.gmra.mxu0 %v1640
        %v1700 = vpop.f32.mrf.mxu0
        %v1701 = vadd.f32 0.0, %v1700
        %v1702 = vpop.f32.mrf.mxu0
        %v1703 = vadd.f32 0.0, %v1702
        %1704 = vmatmul.bf16.gmra.mxu0 %v1643
        %v1705 = vpop.f32.mrf.mxu0
        %v1706 = vadd.f32 0.0, %v1705
        %v1707 = vpop.f32.mrf.mxu0
        %v1708 = vadd.f32 0.0, %v1707
        %1709 = vmatmul.bf16.gmra.mxu0 %v1646
        %v1710 = vpop.f32.mrf.mxu0
        %v1711 = vadd.f32 0.0, %v1710
        %v1712 = vpop.f32.mrf.mxu0
        %v1713 = vadd.f32 0.0, %v1712
        %1714 = vmatmul.bf16.gmra.mxu0 %v1649
        %v1715 = vpop.f32.mrf.mxu0
        %v1716 = vadd.f32 0.0, %v1715
        %v1717 = vpop.f32.mrf.mxu0
        %v1718 = vadd.f32 0.0, %v1717
        %1719 = vmatmul.bf16.gmra.mxu0 %v1652
        %v1720 = vpop.f32.mrf.mxu0
        %v1721 = vadd.f32 0.0, %v1720
        %v1722 = vpop.f32.mrf.mxu0
        %v1723 = vadd.f32 0.0, %v1722
        %1724 = vmatmul.bf16.gmra.mxu0 %v1655
        %v1725 = vpop.f32.mrf.mxu0
        %v1726 = vadd.f32 0.0, %v1725
        %v1727 = vpop.f32.mrf.mxu0
        %v1728 = vadd.f32 0.0, %v1727
        %1729 = vdwg.mxu0
        %1730 = vmax.xlane.f32.xlu0 %v1691
        %v1731 = vpop.xlane.xlu0 %1730
        %1732 = vmax.xlane.f32.xlu0 %v1693
        %v1733 = vpop.xlane.xlu0 %1732
        %1734 = vmax.xlane.f32.xlu0 %v1696
        %v1735 = vpop.xlane.xlu0 %1734
        %1736 = vmax.xlane.f32.xlu0 %v1698
        %v1737 = vpop.xlane.xlu0 %1736
        %1738 = vmax.xlane.f32.xlu0 %v1701
        %v1739 = vpop.xlane.xlu0 %1738
        %1740 = vmax.xlane.f32.xlu0 %v1703
        %v1741 = vpop.xlane.xlu0 %1740
        %1742 = vmax.xlane.f32.xlu0 %v1706
        %v1743 = vpop.xlane.xlu0 %1742
        %1744 = vmax.xlane.f32.xlu0 %v1708
        %v1745 = vpop.xlane.xlu0 %1744
        %1746 = vmax.xlane.f32.xlu0 %v1711
        %v1747 = vpop.xlane.xlu0 %1746
        %1748 = vmax.xlane.f32.xlu0 %v1713
        %v1749 = vpop.xlane.xlu0 %1748
        %1750 = vmax.xlane.f32.xlu0 %v1716
        %v1751 = vpop.xlane.xlu0 %1750
        %1752 = vmax.xlane.f32.xlu0 %v1718
        %v1753 = vpop.xlane.xlu0 %1752
        %1754 = vmax.xlane.f32.xlu0 %v1721
        %v1755 = vpop.xlane.xlu0 %1754
        %1756 = vmax.xlane.f32.xlu0 %v1723
        %v1757 = vpop.xlane.xlu0 %1756
        %1758 = vmax.xlane.f32.xlu0 %v1726
        %v1759 = vpop.xlane.xlu0 %1758
        %1760 = vmax.xlane.f32.xlu0 %v1728
        %v1761 = vpop.xlane.xlu0 %1760
        %v1762 = vsub.f32 %v1691, %v1731
        %v1763 = vsub.f32 %v1693, %v1733
        %v1764 = vsub.f32 %v1696, %v1735
        %v1765 = vsub.f32 %v1698, %v1737
        %v1766 = vsub.f32 %v1701, %v1739
        %v1767 = vsub.f32 %v1703, %v1741
        %v1768 = vsub.f32 %v1706, %v1743
        %v1769 = vsub.f32 %v1708, %v1745
        %v1770 = vsub.f32 %v1711, %v1747
        %v1771 = vsub.f32 %v1713, %v1749
        %v1772 = vsub.f32 %v1716, %v1751
        %v1773 = vsub.f32 %v1718, %v1753
        %v1774 = vsub.f32 %v1721, %v1755
        %v1775 = vsub.f32 %v1723, %v1757
        %v1776 = vsub.f32 %v1726, %v1759
        %v1777 = vsub.f32 %v1728, %v1761
        %v1778 = vmul.f32 %v1762, 1.442695
        %v1779 = vpow.pop %v1778
        %v1780 = vmul.f32 %v1763, 1.442695
        %v1781 = vpow.pop %v1780
        %v1782 = vmul.f32 %v1764, 1.442695
        %v1783 = vpow.pop %v1782
        %v1784 = vmul.f32 %v1765, 1.442695
        %v1785 = vpow.pop %v1784
        %v1786 = vmul.f32 %v1766, 1.442695
        %v1787 = vpow.pop %v1786
        %v1788 = vmul.f32 %v1767, 1.442695
        %v1789 = vpow.pop %v1788
        %v1790 = vmul.f32 %v1768, 1.442695
        %v1791 = vpow.pop %v1790
        %v1792 = vmul.f32 %v1769, 1.442695
        %v1793 = vpow.pop %v1792
        %v1794 = vmul.f32 %v1770, 1.442695
        %v1795 = vpow.pop %v1794
        %v1796 = vmul.f32 %v1771, 1.442695
        %v1797 = vpow.pop %v1796
        %v1798 = vmul.f32 %v1772, 1.442695
        %v1799 = vpow.pop %v1798
        %v1800 = vmul.f32 %v1773, 1.442695
        %v1801 = vpow.pop %v1800
        %v1802 = vmul.f32 %v1774, 1.442695
        %v1803 = vpow.pop %v1802
        %v1804 = vmul.f32 %v1775, 1.442695
        %v1805 = vpow.pop %v1804
        %v1806 = vmul.f32 %v1776, 1.442695
        %v1807 = vpow.pop %v1806
        %v1808 = vmul.f32 %v1777, 1.442695
        %v1809 = vpow.pop %v1808
        %1810 = vadd.xlane.f32.xlu0 %v1779
        %v1811 = vpop.xlane.xlu0 %1810
        %1812 = vadd.xlane.f32.xlu0 %v1781
        %v1813 = vpop.xlane.xlu0 %1812
        %1814 = vadd.xlane.f32.xlu0 %v1783
        %v1815 = vpop.xlane.xlu0 %1814
        %1816 = vadd.xlane.f32.xlu0 %v1785
        %v1817 = vpop.xlane.xlu0 %1816
        %1818 = vadd.xlane.f32.xlu0 %v1787
        %v1819 = vpop.xlane.xlu0 %1818
        %1820 = vadd.xlane.f32.xlu0 %v1789
        %v1821 = vpop.xlane.xlu0 %1820
        %1822 = vadd.xlane.f32.xlu0 %v1791
        %v1823 = vpop.xlane.xlu0 %1822
        %1824 = vadd.xlane.f32.xlu0 %v1793
        %v1825 = vpop.xlane.xlu0 %1824
        %1826 = vadd.xlane.f32.xlu0 %v1795
        %v1827 = vpop.xlane.xlu0 %1826
        %1828 = vadd.xlane.f32.xlu0 %v1797
        %v1829 = vpop.xlane.xlu0 %1828
        %1830 = vadd.xlane.f32.xlu0 %v1799
        %v1831 = vpop.xlane.xlu0 %1830
        %1832 = vadd.xlane.f32.xlu0 %v1801
        %v1833 = vpop.xlane.xlu0 %1832
        %1834 = vadd.xlane.f32.xlu0 %v1803
        %v1835 = vpop.xlane.xlu0 %1834
        %1836 = vadd.xlane.f32.xlu0 %v1805
        %v1837 = vpop.xlane.xlu0 %1836
        %1838 = vadd.xlane.f32.xlu0 %v1807
        %v1839 = vpop.xlane.xlu0 %1838
        %1840 = vadd.xlane.f32.xlu0 %v1809
        %v1841 = vpop.xlane.xlu0 %1840
        %v1842 = vrcp.pop %v1811
        %v1843 = vrcp.pop %v1813
        %v1844 = vrcp.pop %v1815
        %v1845 = vrcp.pop %v1817
        %v1846 = vrcp.pop %v1819
        %v1847 = vrcp.pop %v1821
        %v1848 = vrcp.pop %v1823
        %v1849 = vrcp.pop %v1825
        %v1850 = vrcp.pop %v1827
        %v1851 = vrcp.pop %v1829
        %v1852 = vrcp.pop %v1831
        %v1853 = vrcp.pop %v1833
        %v1854 = vrcp.pop %v1835
        %v1855 = vrcp.pop %v1837
        %v1856 = vrcp.pop %v1839
        %v1857 = vrcp.pop %v1841
        %v1858 = vmul.f32 %v1811, %v1842
        %v1859 = vmul.f32 %v1813, %v1843
        %v1860 = vmul.f32 %v1815, %v1844
        %v1861 = vmul.f32 %v1817, %v1845
        %v1862 = vmul.f32 %v1819, %v1846
        %v1863 = vmul.f32 %v1821, %v1847
        %v1864 = vmul.f32 %v1823, %v1848
        %v1865 = vmul.f32 %v1825, %v1849
        %v1866 = vmul.f32 %v1827, %v1850
        %v1867 = vmul.f32 %v1829, %v1851
        %v1868 = vmul.f32 %v1831, %v1852
        %v1869 = vmul.f32 %v1833, %v1853
        %v1870 = vmul.f32 %v1835, %v1854
        %v1871 = vmul.f32 %v1837, %v1855
        %v1872 = vmul.f32 %v1839, %v1856
        %v1873 = vmul.f32 %v1841, %v1857
        %v1874 = vsub.f32 2.0, %v1858
        %v1875 = vsub.f32 2.0, %v1859
        %v1876 = vsub.f32 2.0, %v1860
        %v1877 = vsub.f32 2.0, %v1861
        %v1878 = vsub.f32 2.0, %v1862
        %v1879 = vsub.f32 2.0, %v1863
        %v1880 = vsub.f32 2.0, %v1864
        %v1881 = vsub.f32 2.0, %v1865
        %v1882 = vsub.f32 2.0, %v1866
        %v1883 = vsub.f32 2.0, %v1867
        %v1884 = vsub.f32 2.0, %v1868
        %v1885 = vsub.f32 2.0, %v1869
        %v1886 = vsub.f32 2.0, %v1870
        %v1887 = vsub.f32 2.0, %v1871
        %v1888 = vsub.f32 2.0, %v1872
        %v1889 = vsub.f32 2.0, %v1873
        %v1890 = vmul.f32 %v1842, %v1874
        %v1891 = vmul.f32 %v1843, %v1875
        %v1892 = vmul.f32 %v1844, %v1876
        %v1893 = vmul.f32 %v1845, %v1877
        %v1894 = vmul.f32 %v1846, %v1878
        %v1895 = vmul.f32 %v1847, %v1879
        %v1896 = vmul.f32 %v1848, %v1880
        %v1897 = vmul.f32 %v1849, %v1881
        %v1898 = vmul.f32 %v1850, %v1882
        %v1899 = vmul.f32 %v1851, %v1883
        %v1900 = vmul.f32 %v1852, %v1884
        %v1901 = vmul.f32 %v1853, %v1885
        %v1902 = vmul.f32 %v1854, %v1886
        %v1903 = vmul.f32 %v1855, %v1887
        %v1904 = vmul.f32 %v1856, %v1888
        %v1905 = vmul.f32 %v1857, %v1889
        %v1906 = vmul.f32 %v1779, %v1890
        %v1907 = vmul.f32 %v1781, %v1891
        %v1908 = vmul.f32 %v1783, %v1892
        %v1909 = vmul.f32 %v1785, %v1893
        %v1910 = vmul.f32 %v1787, %v1894
        %v1911 = vmul.f32 %v1789, %v1895
        %v1912 = vmul.f32 %v1791, %v1896
        %v1913 = vmul.f32 %v1793, %v1897
        %v1914 = vmul.f32 %v1795, %v1898
        %v1915 = vmul.f32 %v1797, %v1899
        %v1916 = vmul.f32 %v1799, %v1900
        %v1917 = vmul.f32 %v1801, %v1901
        %v1918 = vmul.f32 %v1803, %v1902
        %v1919 = vmul.f32 %v1805, %v1903
        %v1920 = vmul.f32 %v1807, %v1904
        %v1921 = vmul.f32 %v1809, %v1905
        %v1922 = vpack.c.bf16 %v1906, %v1906
        %v1923 = vpack.c.bf16 %v1907, %v1907
        %v1924 = vpack.c.bf16 %v1908, %v1908
        %v1925 = vpack.c.bf16 %v1909, %v1909
        %v1926 = vpack.c.bf16 %v1910, %v1910
        %v1927 = vpack.c.bf16 %v1911, %v1911
        %v1928 = vpack.c.bf16 %v1912, %v1912
        %v1929 = vpack.c.bf16 %v1913, %v1913
        %v1930 = vpack.c.bf16 %v1914, %v1914
        %v1931 = vpack.c.bf16 %v1915, %v1915
        %v1932 = vpack.c.bf16 %v1916, %v1916
        %v1933 = vpack.c.bf16 %v1917, %v1917
        %v1934 = vpack.c.bf16 %v1918, %v1918
        %v1935 = vpack.c.bf16 %v1919, %v1919
        %v1936 = vpack.c.bf16 %v1920, %v1920
        %v1937 = vpack.c.bf16 %v1921, %v1921
        %v1954 = vunpack.c.l.b16 %v1922
        %v1955 = vunpack.c.l.b16 %v1923
        %v1956 = vunpack.c.l.b16 %v1924
        %v1957 = vunpack.c.l.b16 %v1925
        %v1958 = vunpack.c.l.b16 %v1926
        %v1959 = vunpack.c.l.b16 %v1927
        %v1960 = vunpack.c.l.b16 %v1928
        %v1961 = vunpack.c.l.b16 %v1929
        %v1962 = vunpack.c.l.b16 %v1930
        %v1963 = vunpack.c.l.b16 %v1931
        %v1964 = vunpack.c.l.b16 %v1932
        %v1965 = vunpack.c.l.b16 %v1933
        %v1966 = vunpack.c.l.b16 %v1934
        %v1967 = vunpack.c.l.b16 %v1935
        %v1968 = vunpack.c.l.b16 %v1936
        %v1969 = vunpack.c.l.b16 %v1937
        %v1970 = vpack.c.b16 %v1955, %v1954
        %v1971 = vpack.c.b16 %v1957, %v1956
        %v1972 = vpack.c.b16 %v1959, %v1958
        %v1973 = vpack.c.b16 %v1961, %v1960
        %v1974 = vpack.c.b16 %v1963, %v1962
        %v1975 = vpack.c.b16 %v1965, %v1964
        %v1976 = vpack.c.b16 %v1967, %v1966
        %v1977 = vpack.c.b16 %v1969, %v1968
        %1986 = vrot.lane.b32.xlu0 %v1520, 96
        %v1987 = vpop.permute.xlu0 %1986
        %1988 = vrot.lane.b32.xlu0 %v1521, 96
        %v1989 = vpop.permute.xlu0 %1988
        %1990 = vrot.lane.b32.xlu0 %v1522, 96
        %v1991 = vpop.permute.xlu0 %1990
        %1992 = vrot.lane.b32.xlu0 %v1523, 96
        %v1993 = vpop.permute.xlu0 %1992
        %1994 = vrot.lane.b32.xlu0 %v1524, 96
        %v1995 = vpop.permute.xlu0 %1994
        %1996 = vrot.lane.b32.xlu0 %v1525, 96
        %v1997 = vpop.permute.xlu0 %1996
        %1998 = vrot.lane.b32.xlu0 %v1526, 96
        %v1999 = vpop.permute.xlu0 %1998
        %2000 = vrot.lane.b32.xlu0 %v1527, 96
        %v2001 = vpop.permute.xlu0 %2000
        %2010 = vmatpush.bf16.msra.mxu0 %v2001
        %2011 = vmatpush.bf16.msra.mxu0 %v1999
        %2012 = vmatpush.bf16.msra.mxu0 %v1997
        %2013 = vmatpush.bf16.msra.mxu0 %v1995
        %2014 = vmatpush.bf16.msra.mxu0 %v1993
        %2015 = vmatpush.bf16.msra.mxu0 %v1991
        %2016 = vmatpush.bf16.msra.mxu0 %v1989
        %2017 = vmatpush.bf16.msra.mxu0 %v1987
        %2018 = vmatmul.bf16.gmra.mxu0 %v1970
        %v2019 = vpop.f32.mrf.mxu0
        %v2020 = vadd.f32 0.0, %v2019
        %v2021 = vpop.f32.mrf.mxu0
        %v2022 = vadd.f32 0.0, %v2021
        %2023 = vmatmul.bf16.gmra.mxu0 %v1971
        %v2024 = vpop.f32.mrf.mxu0
        %v2025 = vadd.f32 0.0, %v2024
        %v2026 = vpop.f32.mrf.mxu0
        %v2027 = vadd.f32 0.0, %v2026
        %2028 = vmatmul.bf16.gmra.mxu0 %v1972
        %v2029 = vpop.f32.mrf.mxu0
        %v2030 = vadd.f32 0.0, %v2029
        %v2031 = vpop.f32.mrf.mxu0
        %v2032 = vadd.f32 0.0, %v2031
        %2033 = vmatmul.bf16.gmra.mxu0 %v1973
        %v2034 = vpop.f32.mrf.mxu0
        %v2035 = vadd.f32 0.0, %v2034
        %v2036 = vpop.f32.mrf.mxu0
        %v2037 = vadd.f32 0.0, %v2036
        %2038 = vmatmul.bf16.gmra.mxu0 %v1974
        %v2039 = vpop.f32.mrf.mxu0
        %v2040 = vadd.f32 0.0, %v2039
        %v2041 = vpop.f32.mrf.mxu0
        %v2042 = vadd.f32 0.0, %v2041
        %2043 = vmatmul.bf16.gmra.mxu0 %v1975
        %v2044 = vpop.f32.mrf.mxu0
        %v2045 = vadd.f32 0.0, %v2044
        %v2046 = vpop.f32.mrf.mxu0
        %v2047 = vadd.f32 0.0, %v2046
        %2048 = vmatmul.bf16.gmra.mxu0 %v1976
        %v2049 = vpop.f32.mrf.mxu0
        %v2050 = vadd.f32 0.0, %v2049
        %v2051 = vpop.f32.mrf.mxu0
        %v2052 = vadd.f32 0.0, %v2051
        %2053 = vmatmul.bf16.gmra.mxu0 %v1977
        %v2054 = vpop.f32.mrf.mxu0
        %v2055 = vadd.f32 0.0, %v2054
        %v2056 = vpop.f32.mrf.mxu0
        %v2057 = vadd.f32 0.0, %v2056
        %2058 = vdwg.mxu0
        %v2059 = vpack.c.bf16 %v2020, %v2020
        %v2060 = vpack.c.bf16 %v2022, %v2022
        %v2061 = vpack.c.bf16 %v2025, %v2025
        %v2062 = vpack.c.bf16 %v2027, %v2027
        %v2063 = vpack.c.bf16 %v2030, %v2030
        %v2064 = vpack.c.bf16 %v2032, %v2032
        %v2065 = vpack.c.bf16 %v2035, %v2035
        %v2066 = vpack.c.bf16 %v2037, %v2037
        %v2067 = vpack.c.bf16 %v2040, %v2040
        %v2068 = vpack.c.bf16 %v2042, %v2042
        %v2069 = vpack.c.bf16 %v2045, %v2045
        %v2070 = vpack.c.bf16 %v2047, %v2047
        %v2071 = vpack.c.bf16 %v2050, %v2050
        %v2072 = vpack.c.bf16 %v2052, %v2052
        %v2073 = vpack.c.bf16 %v2055, %v2055
        %v2074 = vpack.c.bf16 %v2057, %v2057
        %2075 = vrot.lane.b32.xlu0 %v1086, 64
        %v2076 = vpop.permute.xlu0 %2075
        %2077 = vrot.lane.b32.xlu0 %v1087, 64
        %v2078 = vpop.permute.xlu0 %2077
        %2079 = vrot.lane.b32.xlu0 %v1088, 64
        %v2080 = vpop.permute.xlu0 %2079
        %2081 = vrot.lane.b32.xlu0 %v1089, 64
        %v2082 = vpop.permute.xlu0 %2081
        %2083 = vrot.lane.b32.xlu0 %v1090, 64
        %v2084 = vpop.permute.xlu0 %2083
        %2085 = vrot.lane.b32.xlu0 %v1091, 64
        %v2086 = vpop.permute.xlu0 %2085
        %2087 = vrot.lane.b32.xlu0 %v1092, 64
        %v2088 = vpop.permute.xlu0 %2087
        %2089 = vrot.lane.b32.xlu0 %v1093, 64
        %v2090 = vpop.permute.xlu0 %2089
        %2091 = vrot.lane.b32.xlu0 %v1126, 64
        %v2092 = vpop.permute.xlu0 %2091
        %2093 = vrot.lane.b32.xlu0 %v1127, 64
        %v2094 = vpop.permute.xlu0 %2093
        %2095 = vrot.lane.b32.xlu0 %v1128, 64
        %v2096 = vpop.permute.xlu0 %2095
        %2097 = vrot.lane.b32.xlu0 %v1129, 64
        %v2098 = vpop.permute.xlu0 %2097
        %2099 = vrot.lane.b32.xlu0 %v1130, 64
        %v2100 = vpop.permute.xlu0 %2099
        %2101 = vrot.lane.b32.xlu0 %v1131, 64
        %v2102 = vpop.permute.xlu0 %2101
        %2103 = vrot.lane.b32.xlu0 %v1132, 64
        %v2104 = vpop.permute.xlu0 %2103
        %2105 = vrot.lane.b32.xlu0 %v1133, 64
        %v2106 = vpop.permute.xlu0 %2105
        %v2108 = vsel %vm1134, %v2076, 0
        %v2111 = vsel %vm1134, %v2078, 0
        %v2114 = vsel %vm1134, %v2080, 0
        %v2117 = vsel %vm1134, %v2082, 0
        %v2120 = vsel %vm1134, %v2084, 0
        %v2123 = vsel %vm1134, %v2086, 0
        %v2126 = vsel %vm1134, %v2088, 0
        %v2129 = vsel %vm1134, %v2090, 0
        %v2132 = vsel %vm1134, %v2092, 0
        %v2135 = vsel %vm1134, %v2094, 0
        %v2138 = vsel %vm1134, %v2096, 0
        %v2141 = vsel %vm1134, %v2098, 0
        %v2144 = vsel %vm1134, %v2100, 0
        %v2147 = vsel %vm1134, %v2102, 0
        %v2150 = vsel %vm1134, %v2104, 0
        %v2153 = vsel %vm1134, %v2106, 0
        %2155 = vmatpush.bf16.xpose.msra.mxu0 %v2153
        %2156 = vmatpush.bf16.xpose.msra.mxu0 %v2150
        %2157 = vmatpush.bf16.xpose.msra.mxu0 %v2147
        %2158 = vmatpush.bf16.xpose.msra.mxu0 %v2144
        %2159 = vmatpush.bf16.xpose.msra.mxu0 %v2141
        %2160 = vmatpush.bf16.xpose.msra.mxu0 %v2138
        %2161 = vmatpush.bf16.xpose.msra.mxu0 %v2135
        %2162 = vmatpush.bf16.xpose.msra.mxu0 %v2132
        %2163 = vmatmul.bf16.gmra.mxu0 %v2108
        %v2164 = vpop.f32.mrf.mxu0
        %v2165 = vadd.f32 0.0, %v2164
        %v2166 = vpop.f32.mrf.mxu0
        %v2167 = vadd.f32 0.0, %v2166
        %2168 = vmatmul.bf16.gmra.mxu0 %v2111
        %v2169 = vpop.f32.mrf.mxu0
        %v2170 = vadd.f32 0.0, %v2169
        %v2171 = vpop.f32.mrf.mxu0
        %v2172 = vadd.f32 0.0, %v2171
        %2173 = vmatmul.bf16.gmra.mxu0 %v2114
        %v2174 = vpop.f32.mrf.mxu0
        %v2175 = vadd.f32 0.0, %v2174
        %v2176 = vpop.f32.mrf.mxu0
        %v2177 = vadd.f32 0.0, %v2176
        %2178 = vmatmul.bf16.gmra.mxu0 %v2117
        %v2179 = vpop.f32.mrf.mxu0
        %v2180 = vadd.f32 0.0, %v2179
        %v2181 = vpop.f32.mrf.mxu0
        %v2182 = vadd.f32 0.0, %v2181
        %2183 = vmatmul.bf16.gmra.mxu0 %v2120
        %v2184 = vpop.f32.mrf.mxu0
        %v2185 = vadd.f32 0.0, %v2184
        %v2186 = vpop.f32.mrf.mxu0
        %v2187 = vadd.f32 0.0, %v2186
        %2188 = vmatmul.bf16.gmra.mxu0 %v2123
        %v2189 = vpop.f32.mrf.mxu0
        %v2190 = vadd.f32 0.0, %v2189
        %v2191 = vpop.f32.mrf.mxu0
        %v2192 = vadd.f32 0.0, %v2191
        %2193 = vmatmul.bf16.gmra.mxu0 %v2126
        %v2194 = vpop.f32.mrf.mxu0
        %v2195 = vadd.f32 0.0, %v2194
        %v2196 = vpop.f32.mrf.mxu0
        %v2197 = vadd.f32 0.0, %v2196
        %2198 = vmatmul.bf16.gmra.mxu0 %v2129
        %v2199 = vpop.f32.mrf.mxu0
        %v2200 = vadd.f32 0.0, %v2199
        %v2201 = vpop.f32.mrf.mxu0
        %v2202 = vadd.f32 0.0, %v2201
        %2203 = vdwg.mxu0
        %2204 = vmax.xlane.f32.xlu0 %v2165
        %v2205 = vpop.xlane.xlu0 %2204
        %2206 = vmax.xlane.f32.xlu0 %v2167
        %v2207 = vpop.xlane.xlu0 %2206
        %2208 = vmax.xlane.f32.xlu0 %v2170
        %v2209 = vpop.xlane.xlu0 %2208
        %2210 = vmax.xlane.f32.xlu0 %v2172
        %v2211 = vpop.xlane.xlu0 %2210
        %2212 = vmax.xlane.f32.xlu0 %v2175
        %v2213 = vpop.xlane.xlu0 %2212
        %2214 = vmax.xlane.f32.xlu0 %v2177
        %v2215 = vpop.xlane.xlu0 %2214
        %2216 = vmax.xlane.f32.xlu0 %v2180
        %v2217 = vpop.xlane.xlu0 %2216
        %2218 = vmax.xlane.f32.xlu0 %v2182
        %v2219 = vpop.xlane.xlu0 %2218
        %2220 = vmax.xlane.f32.xlu0 %v2185
        %v2221 = vpop.xlane.xlu0 %2220
        %2222 = vmax.xlane.f32.xlu0 %v2187
        %v2223 = vpop.xlane.xlu0 %2222
        %2224 = vmax.xlane.f32.xlu0 %v2190
        %v2225 = vpop.xlane.xlu0 %2224
        %2226 = vmax.xlane.f32.xlu0 %v2192
        %v2227 = vpop.xlane.xlu0 %2226
        %2228 = vmax.xlane.f32.xlu0 %v2195
        %v2229 = vpop.xlane.xlu0 %2228
        %2230 = vmax.xlane.f32.xlu0 %v2197
        %v2231 = vpop.xlane.xlu0 %2230
        %2232 = vmax.xlane.f32.xlu0 %v2200
        %v2233 = vpop.xlane.xlu0 %2232
        %2234 = vmax.xlane.f32.xlu0 %v2202
        %v2235 = vpop.xlane.xlu0 %2234
        %v2236 = vsub.f32 %v2165, %v2205
        %v2237 = vsub.f32 %v2167, %v2207
        %v2238 = vsub.f32 %v2170, %v2209
        %v2239 = vsub.f32 %v2172, %v2211
        %v2240 = vsub.f32 %v2175, %v2213
        %v2241 = vsub.f32 %v2177, %v2215
        %v2242 = vsub.f32 %v2180, %v2217
        %v2243 = vsub.f32 %v2182, %v2219
        %v2244 = vsub.f32 %v2185, %v2221
        %v2245 = vsub.f32 %v2187, %v2223
        %v2246 = vsub.f32 %v2190, %v2225
        %v2247 = vsub.f32 %v2192, %v2227
        %v2248 = vsub.f32 %v2195, %v2229
        %v2249 = vsub.f32 %v2197, %v2231
        %v2250 = vsub.f32 %v2200, %v2233
        %v2251 = vsub.f32 %v2202, %v2235
        %v2252 = vmul.f32 %v2236, 1.442695
        %v2253 = vpow.pop %v2252
        %v2254 = vmul.f32 %v2237, 1.442695
        %v2255 = vpow.pop %v2254
        %v2256 = vmul.f32 %v2238, 1.442695
        %v2257 = vpow.pop %v2256
        %v2258 = vmul.f32 %v2239, 1.442695
        %v2259 = vpow.pop %v2258
        %v2260 = vmul.f32 %v2240, 1.442695
        %v2261 = vpow.pop %v2260
        %v2262 = vmul.f32 %v2241, 1.442695
        %v2263 = vpow.pop %v2262
        %v2264 = vmul.f32 %v2242, 1.442695
        %v2265 = vpow.pop %v2264
        %v2266 = vmul.f32 %v2243, 1.442695
        %v2267 = vpow.pop %v2266
        %v2268 = vmul.f32 %v2244, 1.442695
        %v2269 = vpow.pop %v2268
        %v2270 = vmul.f32 %v2245, 1.442695
        %v2271 = vpow.pop %v2270
        %v2272 = vmul.f32 %v2246, 1.442695
        %v2273 = vpow.pop %v2272
        %v2274 = vmul.f32 %v2247, 1.442695
        %v2275 = vpow.pop %v2274
        %v2276 = vmul.f32 %v2248, 1.442695
        %v2277 = vpow.pop %v2276
        %v2278 = vmul.f32 %v2249, 1.442695
        %v2279 = vpow.pop %v2278
        %v2280 = vmul.f32 %v2250, 1.442695
        %v2281 = vpow.pop %v2280
        %v2282 = vmul.f32 %v2251, 1.442695
        %v2283 = vpow.pop %v2282
        %2284 = vadd.xlane.f32.xlu0 %v2253
        %v2285 = vpop.xlane.xlu0 %2284
        %2286 = vadd.xlane.f32.xlu0 %v2255
        %v2287 = vpop.xlane.xlu0 %2286
        %2288 = vadd.xlane.f32.xlu0 %v2257
        %v2289 = vpop.xlane.xlu0 %2288
        %2290 = vadd.xlane.f32.xlu0 %v2259
        %v2291 = vpop.xlane.xlu0 %2290
        %2292 = vadd.xlane.f32.xlu0 %v2261
        %v2293 = vpop.xlane.xlu0 %2292
        %2294 = vadd.xlane.f32.xlu0 %v2263
        %v2295 = vpop.xlane.xlu0 %2294
        %2296 = vadd.xlane.f32.xlu0 %v2265
        %v2297 = vpop.xlane.xlu0 %2296
        %2298 = vadd.xlane.f32.xlu0 %v2267
        %v2299 = vpop.xlane.xlu0 %2298
        %2300 = vadd.xlane.f32.xlu0 %v2269
        %v2301 = vpop.xlane.xlu0 %2300
        %2302 = vadd.xlane.f32.xlu0 %v2271
        %v2303 = vpop.xlane.xlu0 %2302
        %2304 = vadd.xlane.f32.xlu0 %v2273
        %v2305 = vpop.xlane.xlu0 %2304
        %2306 = vadd.xlane.f32.xlu0 %v2275
        %v2307 = vpop.xlane.xlu0 %2306
        %2308 = vadd.xlane.f32.xlu0 %v2277
        %v2309 = vpop.xlane.xlu0 %2308
        %2310 = vadd.xlane.f32.xlu0 %v2279
        %v2311 = vpop.xlane.xlu0 %2310
        %2312 = vadd.xlane.f32.xlu0 %v2281
        %v2313 = vpop.xlane.xlu0 %2312
        %2314 = vadd.xlane.f32.xlu0 %v2283
        %v2315 = vpop.xlane.xlu0 %2314
        %v2316 = vrcp.pop %v2285
        %v2317 = vrcp.pop %v2287
        %v2318 = vrcp.pop %v2289
        %v2319 = vrcp.pop %v2291
        %v2320 = vrcp.pop %v2293
        %v2321 = vrcp.pop %v2295
        %v2322 = vrcp.pop %v2297
        %v2323 = vrcp.pop %v2299
        %v2324 = vrcp.pop %v2301
        %v2325 = vrcp.pop %v2303
        %v2326 = vrcp.pop %v2305
        %v2327 = vrcp.pop %v2307
        %v2328 = vrcp.pop %v2309
        %v2329 = vrcp.pop %v2311
        %v2330 = vrcp.pop %v2313
        %v2331 = vrcp.pop %v2315
        %v2332 = vmul.f32 %v2285, %v2316
        %v2333 = vmul.f32 %v2287, %v2317
        %v2334 = vmul.f32 %v2289, %v2318
        %v2335 = vmul.f32 %v2291, %v2319
        %v2336 = vmul.f32 %v2293, %v2320
        %v2337 = vmul.f32 %v2295, %v2321
        %v2338 = vmul.f32 %v2297, %v2322
        %v2339 = vmul.f32 %v2299, %v2323
        %v2340 = vmul.f32 %v2301, %v2324
        %v2341 = vmul.f32 %v2303, %v2325
        %v2342 = vmul.f32 %v2305, %v2326
        %v2343 = vmul.f32 %v2307, %v2327
        %v2344 = vmul.f32 %v2309, %v2328
        %v2345 = vmul.f32 %v2311, %v2329
        %v2346 = vmul.f32 %v2313, %v2330
        %v2347 = vmul.f32 %v2315, %v2331
        %v2348 = vsub.f32 2.0, %v2332
        %v2349 = vsub.f32 2.0, %v2333
        %v2350 = vsub.f32 2.0, %v2334
        %v2351 = vsub.f32 2.0, %v2335
        %v2352 = vsub.f32 2.0, %v2336
        %v2353 = vsub.f32 2.0, %v2337
        %v2354 = vsub.f32 2.0, %v2338
        %v2355 = vsub.f32 2.0, %v2339
        %v2356 = vsub.f32 2.0, %v2340
        %v2357 = vsub.f32 2.0, %v2341
        %v2358 = vsub.f32 2.0, %v2342
        %v2359 = vsub.f32 2.0, %v2343
        %v2360 = vsub.f32 2.0, %v2344
        %v2361 = vsub.f32 2.0, %v2345
        %v2362 = vsub.f32 2.0, %v2346
        %v2363 = vsub.f32 2.0, %v2347
        %v2364 = vmul.f32 %v2316, %v2348
        %v2365 = vmul.f32 %v2317, %v2349
        %v2366 = vmul.f32 %v2318, %v2350
        %v2367 = vmul.f32 %v2319, %v2351
        %v2368 = vmul.f32 %v2320, %v2352
        %v2369 = vmul.f32 %v2321, %v2353
        %v2370 = vmul.f32 %v2322, %v2354
        %v2371 = vmul.f32 %v2323, %v2355
        %v2372 = vmul.f32 %v2324, %v2356
        %v2373 = vmul.f32 %v2325, %v2357
        %v2374 = vmul.f32 %v2326, %v2358
        %v2375 = vmul.f32 %v2327, %v2359
        %v2376 = vmul.f32 %v2328, %v2360
        %v2377 = vmul.f32 %v2329, %v2361
        %v2378 = vmul.f32 %v2330, %v2362
        %v2379 = vmul.f32 %v2331, %v2363
        %v2380 = vmul.f32 %v2253, %v2364
        %v2381 = vmul.f32 %v2255, %v2365
        %v2382 = vmul.f32 %v2257, %v2366
        %v2383 = vmul.f32 %v2259, %v2367
        %v2384 = vmul.f32 %v2261, %v2368
        %v2385 = vmul.f32 %v2263, %v2369
        %v2386 = vmul.f32 %v2265, %v2370
        %v2387 = vmul.f32 %v2267, %v2371
        %v2388 = vmul.f32 %v2269, %v2372
        %v2389 = vmul.f32 %v2271, %v2373
        %v2390 = vmul.f32 %v2273, %v2374
        %v2391 = vmul.f32 %v2275, %v2375
        %v2392 = vmul.f32 %v2277, %v2376
        %v2393 = vmul.f32 %v2279, %v2377
        %v2394 = vmul.f32 %v2281, %v2378
        %v2395 = vmul.f32 %v2283, %v2379
        %v2396 = vpack.c.bf16 %v2380, %v2380
        %v2397 = vpack.c.bf16 %v2381, %v2381
        %v2398 = vpack.c.bf16 %v2382, %v2382
        %v2399 = vpack.c.bf16 %v2383, %v2383
        %v2400 = vpack.c.bf16 %v2384, %v2384
        %v2401 = vpack.c.bf16 %v2385, %v2385
        %v2402 = vpack.c.bf16 %v2386, %v2386
        %v2403 = vpack.c.bf16 %v2387, %v2387
        %v2404 = vpack.c.bf16 %v2388, %v2388
        %v2405 = vpack.c.bf16 %v2389, %v2389
        %v2406 = vpack.c.bf16 %v2390, %v2390
        %v2407 = vpack.c.bf16 %v2391, %v2391
        %v2408 = vpack.c.bf16 %v2392, %v2392
        %v2409 = vpack.c.bf16 %v2393, %v2393
        %v2410 = vpack.c.bf16 %v2394, %v2394
        %v2411 = vpack.c.bf16 %v2395, %v2395
        %v2428 = vunpack.c.l.b16 %v2396
        %v2429 = vunpack.c.l.b16 %v2397
        %v2430 = vunpack.c.l.b16 %v2398
        %v2431 = vunpack.c.l.b16 %v2399
        %v2432 = vunpack.c.l.b16 %v2400
        %v2433 = vunpack.c.l.b16 %v2401
        %v2434 = vunpack.c.l.b16 %v2402
        %v2435 = vunpack.c.l.b16 %v2403
        %v2436 = vunpack.c.l.b16 %v2404
        %v2437 = vunpack.c.l.b16 %v2405
        %v2438 = vunpack.c.l.b16 %v2406
        %v2439 = vunpack.c.l.b16 %v2407
        %v2440 = vunpack.c.l.b16 %v2408
        %v2441 = vunpack.c.l.b16 %v2409
        %v2442 = vunpack.c.l.b16 %v2410
        %v2443 = vunpack.c.l.b16 %v2411
        %v2444 = vpack.c.b16 %v2429, %v2428
        %v2445 = vpack.c.b16 %v2431, %v2430
        %v2446 = vpack.c.b16 %v2433, %v2432
        %v2447 = vpack.c.b16 %v2435, %v2434
        %v2448 = vpack.c.b16 %v2437, %v2436
        %v2449 = vpack.c.b16 %v2439, %v2438
        %v2450 = vpack.c.b16 %v2441, %v2440
        %v2451 = vpack.c.b16 %v2443, %v2442
        %2460 = vrot.lane.b32.xlu0 %v1520, 64
        %v2461 = vpop.permute.xlu0 %2460
        %2462 = vrot.lane.b32.xlu0 %v1521, 64
        %v2463 = vpop.permute.xlu0 %2462
        %2464 = vrot.lane.b32.xlu0 %v1522, 64
        %v2465 = vpop.permute.xlu0 %2464
        %2466 = vrot.lane.b32.xlu0 %v1523, 64
        %v2467 = vpop.permute.xlu0 %2466
        %2468 = vrot.lane.b32.xlu0 %v1524, 64
        %v2469 = vpop.permute.xlu0 %2468
        %2470 = vrot.lane.b32.xlu0 %v1525, 64
        %v2471 = vpop.permute.xlu0 %2470
        %2472 = vrot.lane.b32.xlu0 %v1526, 64
        %v2473 = vpop.permute.xlu0 %2472
        %2474 = vrot.lane.b32.xlu0 %v1527, 64
        %v2475 = vpop.permute.xlu0 %2474
        %2484 = vmatpush.bf16.msra.mxu0 %v2475
        %2485 = vmatpush.bf16.msra.mxu0 %v2473
        %2486 = vmatpush.bf16.msra.mxu0 %v2471
        %2487 = vmatpush.bf16.msra.mxu0 %v2469
        %2488 = vmatpush.bf16.msra.mxu0 %v2467
        %2489 = vmatpush.bf16.msra.mxu0 %v2465
        %2490 = vmatpush.bf16.msra.mxu0 %v2463
        %2491 = vmatpush.bf16.msra.mxu0 %v2461
        %2492 = vmatmul.bf16.gmra.mxu0 %v2444
        %v2493 = vpop.f32.mrf.mxu0
        %v2494 = vadd.f32 0.0, %v2493
        %v2495 = vpop.f32.mrf.mxu0
        %v2496 = vadd.f32 0.0, %v2495
        %2497 = vmatmul.bf16.gmra.mxu0 %v2445
        %v2498 = vpop.f32.mrf.mxu0
        %v2499 = vadd.f32 0.0, %v2498
        %v2500 = vpop.f32.mrf.mxu0
        %v2501 = vadd.f32 0.0, %v2500
        %2502 = vmatmul.bf16.gmra.mxu0 %v2446
        %v2503 = vpop.f32.mrf.mxu0
        %v2504 = vadd.f32 0.0, %v2503
        %v2505 = vpop.f32.mrf.mxu0
        %v2506 = vadd.f32 0.0, %v2505
        %2507 = vmatmul.bf16.gmra.mxu0 %v2447
        %v2508 = vpop.f32.mrf.mxu0
        %v2509 = vadd.f32 0.0, %v2508
        %v2510 = vpop.f32.mrf.mxu0
        %v2511 = vadd.f32 0.0, %v2510
        %2512 = vmatmul.bf16.gmra.mxu0 %v2448
        %v2513 = vpop.f32.mrf.mxu0
        %v2514 = vadd.f32 0.0, %v2513
        %v2515 = vpop.f32.mrf.mxu0
        %v2516 = vadd.f32 0.0, %v2515
        %2517 = vmatmul.bf16.gmra.mxu0 %v2449
        %v2518 = vpop.f32.mrf.mxu0
        %v2519 = vadd.f32 0.0, %v2518
        %v2520 = vpop.f32.mrf.mxu0
        %v2521 = vadd.f32 0.0, %v2520
        %2522 = vmatmul.bf16.gmra.mxu0 %v2450
        %v2523 = vpop.f32.mrf.mxu0
        %v2524 = vadd.f32 0.0, %v2523
        %v2525 = vpop.f32.mrf.mxu0
        %v2526 = vadd.f32 0.0, %v2525
        %2527 = vmatmul.bf16.gmra.mxu0 %v2451
        %v2528 = vpop.f32.mrf.mxu0
        %v2529 = vadd.f32 0.0, %v2528
        %v2530 = vpop.f32.mrf.mxu0
        %v2531 = vadd.f32 0.0, %v2530
        %2532 = vdwg.mxu0
        %v2533 = vpack.c.bf16 %v2494, %v2494
        %v2534 = vpack.c.bf16 %v2496, %v2496
        %v2535 = vpack.c.bf16 %v2499, %v2499
        %v2536 = vpack.c.bf16 %v2501, %v2501
        %v2537 = vpack.c.bf16 %v2504, %v2504
        %v2538 = vpack.c.bf16 %v2506, %v2506
        %v2539 = vpack.c.bf16 %v2509, %v2509
        %v2540 = vpack.c.bf16 %v2511, %v2511
        %v2541 = vpack.c.bf16 %v2514, %v2514
        %v2542 = vpack.c.bf16 %v2516, %v2516
        %v2543 = vpack.c.bf16 %v2519, %v2519
        %v2544 = vpack.c.bf16 %v2521, %v2521
        %v2545 = vpack.c.bf16 %v2524, %v2524
        %v2546 = vpack.c.bf16 %v2526, %v2526
        %v2547 = vpack.c.bf16 %v2529, %v2529
        %v2548 = vpack.c.bf16 %v2531, %v2531
        %2549 = vrot.lane.b32.xlu0 %v1086, 32
        %v2550 = vpop.permute.xlu0 %2549
        %2551 = vrot.lane.b32.xlu0 %v1087, 32
        %v2552 = vpop.permute.xlu0 %2551
        %2553 = vrot.lane.b32.xlu0 %v1088, 32
        %v2554 = vpop.permute.xlu0 %2553
        %2555 = vrot.lane.b32.xlu0 %v1089, 32
        %v2556 = vpop.permute.xlu0 %2555
        %2557 = vrot.lane.b32.xlu0 %v1090, 32
        %v2558 = vpop.permute.xlu0 %2557
        %2559 = vrot.lane.b32.xlu0 %v1091, 32
        %v2560 = vpop.permute.xlu0 %2559
        %2561 = vrot.lane.b32.xlu0 %v1092, 32
        %v2562 = vpop.permute.xlu0 %2561
        %2563 = vrot.lane.b32.xlu0 %v1093, 32
        %v2564 = vpop.permute.xlu0 %2563
        %2565 = vrot.lane.b32.xlu0 %v1126, 32
        %v2566 = vpop.permute.xlu0 %2565
        %2567 = vrot.lane.b32.xlu0 %v1127, 32
        %v2568 = vpop.permute.xlu0 %2567
        %2569 = vrot.lane.b32.xlu0 %v1128, 32
        %v2570 = vpop.permute.xlu0 %2569
        %2571 = vrot.lane.b32.xlu0 %v1129, 32
        %v2572 = vpop.permute.xlu0 %2571
        %2573 = vrot.lane.b32.xlu0 %v1130, 32
        %v2574 = vpop.permute.xlu0 %2573
        %2575 = vrot.lane.b32.xlu0 %v1131, 32
        %v2576 = vpop.permute.xlu0 %2575
        %2577 = vrot.lane.b32.xlu0 %v1132, 32
        %v2578 = vpop.permute.xlu0 %2577
        %2579 = vrot.lane.b32.xlu0 %v1133, 32
        %v2580 = vpop.permute.xlu0 %2579
        %v2582 = vsel %vm1134, %v2550, 0
        %v2585 = vsel %vm1134, %v2552, 0
        %v2588 = vsel %vm1134, %v2554, 0
        %v2591 = vsel %vm1134, %v2556, 0
        %v2594 = vsel %vm1134, %v2558, 0
        %v2597 = vsel %vm1134, %v2560, 0
        %v2600 = vsel %vm1134, %v2562, 0
        %v2603 = vsel %vm1134, %v2564, 0
        %v2606 = vsel %vm1134, %v2566, 0
        %v2609 = vsel %vm1134, %v2568, 0
        %v2612 = vsel %vm1134, %v2570, 0
        %v2615 = vsel %vm1134, %v2572, 0
        %v2618 = vsel %vm1134, %v2574, 0
        %v2621 = vsel %vm1134, %v2576, 0
        %v2624 = vsel %vm1134, %v2578, 0
        %v2627 = vsel %vm1134, %v2580, 0
        %2629 = vmatpush.bf16.xpose.msra.mxu0 %v2627
        %2630 = vmatpush.bf16.xpose.msra.mxu0 %v2624
        %2631 = vmatpush.bf16.xpose.msra.mxu0 %v2621
        %2632 = vmatpush.bf16.xpose.msra.mxu0 %v2618
        %2633 = vmatpush.bf16.xpose.msra.mxu0 %v2615
        %2634 = vmatpush.bf16.xpose.msra.mxu0 %v2612
        %2635 = vmatpush.bf16.xpose.msra.mxu0 %v2609
        %2636 = vmatpush.bf16.xpose.msra.mxu0 %v2606
        %2637 = vmatmul.bf16.gmra.mxu0 %v2582
        %v2638 = vpop.f32.mrf.mxu0
        %v2639 = vadd.f32 0.0, %v2638
        %v2640 = vpop.f32.mrf.mxu0
        %v2641 = vadd.f32 0.0, %v2640
        %2642 = vmatmul.bf16.gmra.mxu0 %v2585
        %v2643 = vpop.f32.mrf.mxu0
        %v2644 = vadd.f32 0.0, %v2643
        %v2645 = vpop.f32.mrf.mxu0
        %v2646 = vadd.f32 0.0, %v2645
        %2647 = vmatmul.bf16.gmra.mxu0 %v2588
        %v2648 = vpop.f32.mrf.mxu0
        %v2649 = vadd.f32 0.0, %v2648
        %v2650 = vpop.f32.mrf.mxu0
        %v2651 = vadd.f32 0.0, %v2650
        %2652 = vmatmul.bf16.gmra.mxu0 %v2591
        %v2653 = vpop.f32.mrf.mxu0
        %v2654 = vadd.f32 0.0, %v2653
        %v2655 = vpop.f32.mrf.mxu0
        %v2656 = vadd.f32 0.0, %v2655
        %2657 = vmatmul.bf16.gmra.mxu0 %v2594
        %v2658 = vpop.f32.mrf.mxu0
        %v2659 = vadd.f32 0.0, %v2658
        %v2660 = vpop.f32.mrf.mxu0
        %v2661 = vadd.f32 0.0, %v2660
        %2662 = vmatmul.bf16.gmra.mxu0 %v2597
        %v2663 = vpop.f32.mrf.mxu0
        %v2664 = vadd.f32 0.0, %v2663
        %v2665 = vpop.f32.mrf.mxu0
        %v2666 = vadd.f32 0.0, %v2665
        %2667 = vmatmul.bf16.gmra.mxu0 %v2600
        %v2668 = vpop.f32.mrf.mxu0
        %v2669 = vadd.f32 0.0, %v2668
        %v2670 = vpop.f32.mrf.mxu0
        %v2671 = vadd.f32 0.0, %v2670
        %2672 = vmatmul.bf16.gmra.mxu0 %v2603
        %v2673 = vpop.f32.mrf.mxu0
        %v2674 = vadd.f32 0.0, %v2673
        %v2675 = vpop.f32.mrf.mxu0
        %v2676 = vadd.f32 0.0, %v2675
        %2677 = vdwg.mxu0
        %2678 = vmax.xlane.f32.xlu0 %v2639
        %v2679 = vpop.xlane.xlu0 %2678
        %2680 = vmax.xlane.f32.xlu0 %v2641
        %v2681 = vpop.xlane.xlu0 %2680
        %2682 = vmax.xlane.f32.xlu0 %v2644
        %v2683 = vpop.xlane.xlu0 %2682
        %2684 = vmax.xlane.f32.xlu0 %v2646
        %v2685 = vpop.xlane.xlu0 %2684
        %2686 = vmax.xlane.f32.xlu0 %v2649
        %v2687 = vpop.xlane.xlu0 %2686
        %2688 = vmax.xlane.f32.xlu0 %v2651
        %v2689 = vpop.xlane.xlu0 %2688
        %2690 = vmax.xlane.f32.xlu0 %v2654
        %v2691 = vpop.xlane.xlu0 %2690
        %2692 = vmax.xlane.f32.xlu0 %v2656
        %v2693 = vpop.xlane.xlu0 %2692
        %2694 = vmax.xlane.f32.xlu0 %v2659
        %v2695 = vpop.xlane.xlu0 %2694
        %2696 = vmax.xlane.f32.xlu0 %v2661
        %v2697 = vpop.xlane.xlu0 %2696
        %2698 = vmax.xlane.f32.xlu0 %v2664
        %v2699 = vpop.xlane.xlu0 %2698
        %2700 = vmax.xlane.f32.xlu0 %v2666
        %v2701 = vpop.xlane.xlu0 %2700
        %2702 = vmax.xlane.f32.xlu0 %v2669
        %v2703 = vpop.xlane.xlu0 %2702
        %2704 = vmax.xlane.f32.xlu0 %v2671
        %v2705 = vpop.xlane.xlu0 %2704
        %2706 = vmax.xlane.f32.xlu0 %v2674
        %v2707 = vpop.xlane.xlu0 %2706
        %2708 = vmax.xlane.f32.xlu0 %v2676
        %v2709 = vpop.xlane.xlu0 %2708
        %v2710 = vsub.f32 %v2639, %v2679
        %v2711 = vsub.f32 %v2641, %v2681
        %v2712 = vsub.f32 %v2644, %v2683
        %v2713 = vsub.f32 %v2646, %v2685
        %v2714 = vsub.f32 %v2649, %v2687
        %v2715 = vsub.f32 %v2651, %v2689
        %v2716 = vsub.f32 %v2654, %v2691
        %v2717 = vsub.f32 %v2656, %v2693
        %v2718 = vsub.f32 %v2659, %v2695
        %v2719 = vsub.f32 %v2661, %v2697
        %v2720 = vsub.f32 %v2664, %v2699
        %v2721 = vsub.f32 %v2666, %v2701
        %v2722 = vsub.f32 %v2669, %v2703
        %v2723 = vsub.f32 %v2671, %v2705
        %v2724 = vsub.f32 %v2674, %v2707
        %v2725 = vsub.f32 %v2676, %v2709
        %v2726 = vmul.f32 %v2710, 1.442695
        %v2727 = vpow.pop %v2726
        %v2728 = vmul.f32 %v2711, 1.442695
        %v2729 = vpow.pop %v2728
        %v2730 = vmul.f32 %v2712, 1.442695
        %v2731 = vpow.pop %v2730
        %v2732 = vmul.f32 %v2713, 1.442695
        %v2733 = vpow.pop %v2732
        %v2734 = vmul.f32 %v2714, 1.442695
        %v2735 = vpow.pop %v2734
        %v2736 = vmul.f32 %v2715, 1.442695
        %v2737 = vpow.pop %v2736
        %v2738 = vmul.f32 %v2716, 1.442695
        %v2739 = vpow.pop %v2738
        %v2740 = vmul.f32 %v2717, 1.442695
        %v2741 = vpow.pop %v2740
        %v2742 = vmul.f32 %v2718, 1.442695
        %v2743 = vpow.pop %v2742
        %v2744 = vmul.f32 %v2719, 1.442695
        %v2745 = vpow.pop %v2744
        %v2746 = vmul.f32 %v2720, 1.442695
        %v2747 = vpow.pop %v2746
        %v2748 = vmul.f32 %v2721, 1.442695
        %v2749 = vpow.pop %v2748
        %v2750 = vmul.f32 %v2722, 1.442695
        %v2751 = vpow.pop %v2750
        %v2752 = vmul.f32 %v2723, 1.442695
        %v2753 = vpow.pop %v2752
        %v2754 = vmul.f32 %v2724, 1.442695
        %v2755 = vpow.pop %v2754
        %v2756 = vmul.f32 %v2725, 1.442695
        %v2757 = vpow.pop %v2756
        %2758 = vadd.xlane.f32.xlu0 %v2727
        %v2759 = vpop.xlane.xlu0 %2758
        %2760 = vadd.xlane.f32.xlu0 %v2729
        %v2761 = vpop.xlane.xlu0 %2760
        %2762 = vadd.xlane.f32.xlu0 %v2731
        %v2763 = vpop.xlane.xlu0 %2762
        %2764 = vadd.xlane.f32.xlu0 %v2733
        %v2765 = vpop.xlane.xlu0 %2764
        %2766 = vadd.xlane.f32.xlu0 %v2735
        %v2767 = vpop.xlane.xlu0 %2766
        %2768 = vadd.xlane.f32.xlu0 %v2737
        %v2769 = vpop.xlane.xlu0 %2768
        %2770 = vadd.xlane.f32.xlu0 %v2739
        %v2771 = vpop.xlane.xlu0 %2770
        %2772 = vadd.xlane.f32.xlu0 %v2741
        %v2773 = vpop.xlane.xlu0 %2772
        %2774 = vadd.xlane.f32.xlu0 %v2743
        %v2775 = vpop.xlane.xlu0 %2774
        %2776 = vadd.xlane.f32.xlu0 %v2745
        %v2777 = vpop.xlane.xlu0 %2776
        %2778 = vadd.xlane.f32.xlu0 %v2747
        %v2779 = vpop.xlane.xlu0 %2778
        %2780 = vadd.xlane.f32.xlu0 %v2749
        %v2781 = vpop.xlane.xlu0 %2780
        %2782 = vadd.xlane.f32.xlu0 %v2751
        %v2783 = vpop.xlane.xlu0 %2782
        %2784 = vadd.xlane.f32.xlu0 %v2753
        %v2785 = vpop.xlane.xlu0 %2784
        %2786 = vadd.xlane.f32.xlu0 %v2755
        %v2787 = vpop.xlane.xlu0 %2786
        %2788 = vadd.xlane.f32.xlu0 %v2757
        %v2789 = vpop.xlane.xlu0 %2788
        %v2790 = vrcp.pop %v2759
        %v2791 = vrcp.pop %v2761
        %v2792 = vrcp.pop %v2763
        %v2793 = vrcp.pop %v2765
        %v2794 = vrcp.pop %v2767
        %v2795 = vrcp.pop %v2769
        %v2796 = vrcp.pop %v2771
        %v2797 = vrcp.pop %v2773
        %v2798 = vrcp.pop %v2775
        %v2799 = vrcp.pop %v2777
        %v2800 = vrcp.pop %v2779
        %v2801 = vrcp.pop %v2781
        %v2802 = vrcp.pop %v2783
        %v2803 = vrcp.pop %v2785
        %v2804 = vrcp.pop %v2787
        %v2805 = vrcp.pop %v2789
        %v2806 = vmul.f32 %v2759, %v2790
        %v2807 = vmul.f32 %v2761, %v2791
        %v2808 = vmul.f32 %v2763, %v2792
        %v2809 = vmul.f32 %v2765, %v2793
        %v2810 = vmul.f32 %v2767, %v2794
        %v2811 = vmul.f32 %v2769, %v2795
        %v2812 = vmul.f32 %v2771, %v2796
        %v2813 = vmul.f32 %v2773, %v2797
        %v2814 = vmul.f32 %v2775, %v2798
        %v2815 = vmul.f32 %v2777, %v2799
        %v2816 = vmul.f32 %v2779, %v2800
        %v2817 = vmul.f32 %v2781, %v2801
        %v2818 = vmul.f32 %v2783, %v2802
        %v2819 = vmul.f32 %v2785, %v2803
        %v2820 = vmul.f32 %v2787, %v2804
        %v2821 = vmul.f32 %v2789, %v2805
        %v2822 = vsub.f32 2.0, %v2806
        %v2823 = vsub.f32 2.0, %v2807
        %v2824 = vsub.f32 2.0, %v2808
        %v2825 = vsub.f32 2.0, %v2809
        %v2826 = vsub.f32 2.0, %v2810
        %v2827 = vsub.f32 2.0, %v2811
        %v2828 = vsub.f32 2.0, %v2812
        %v2829 = vsub.f32 2.0, %v2813
        %v2830 = vsub.f32 2.0, %v2814
        %v2831 = vsub.f32 2.0, %v2815
        %v2832 = vsub.f32 2.0, %v2816
        %v2833 = vsub.f32 2.0, %v2817
        %v2834 = vsub.f32 2.0, %v2818
        %v2835 = vsub.f32 2.0, %v2819
        %v2836 = vsub.f32 2.0, %v2820
        %v2837 = vsub.f32 2.0, %v2821
        %v2838 = vmul.f32 %v2790, %v2822
        %v2839 = vmul.f32 %v2791, %v2823
        %v2840 = vmul.f32 %v2792, %v2824
        %v2841 = vmul.f32 %v2793, %v2825
        %v2842 = vmul.f32 %v2794, %v2826
        %v2843 = vmul.f32 %v2795, %v2827
        %v2844 = vmul.f32 %v2796, %v2828
        %v2845 = vmul.f32 %v2797, %v2829
        %v2846 = vmul.f32 %v2798, %v2830
        %v2847 = vmul.f32 %v2799, %v2831
        %v2848 = vmul.f32 %v2800, %v2832
        %v2849 = vmul.f32 %v2801, %v2833
        %v2850 = vmul.f32 %v2802, %v2834
        %v2851 = vmul.f32 %v2803, %v2835
        %v2852 = vmul.f32 %v2804, %v2836
        %v2853 = vmul.f32 %v2805, %v2837
        %v2854 = vmul.f32 %v2727, %v2838
        %v2855 = vmul.f32 %v2729, %v2839
        %v2856 = vmul.f32 %v2731, %v2840
        %v2857 = vmul.f32 %v2733, %v2841
        %v2858 = vmul.f32 %v2735, %v2842
        %v2859 = vmul.f32 %v2737, %v2843
        %v2860 = vmul.f32 %v2739, %v2844
        %v2861 = vmul.f32 %v2741, %v2845
        %v2862 = vmul.f32 %v2743, %v2846
        %v2863 = vmul.f32 %v2745, %v2847
        %v2864 = vmul.f32 %v2747, %v2848
        %v2865 = vmul.f32 %v2749, %v2849
        %v2866 = vmul.f32 %v2751, %v2850
        %v2867 = vmul.f32 %v2753, %v2851
        %v2868 = vmul.f32 %v2755, %v2852
        %v2869 = vmul.f32 %v2757, %v2853
        %v2870 = vpack.c.bf16 %v2854, %v2854
        %v2871 = vpack.c.bf16 %v2855, %v2855
        %v2872 = vpack.c.bf16 %v2856, %v2856
        %v2873 = vpack.c.bf16 %v2857, %v2857
        %v2874 = vpack.c.bf16 %v2858, %v2858
        %v2875 = vpack.c.bf16 %v2859, %v2859
        %v2876 = vpack.c.bf16 %v2860, %v2860
        %v2877 = vpack.c.bf16 %v2861, %v2861
        %v2878 = vpack.c.bf16 %v2862, %v2862
        %v2879 = vpack.c.bf16 %v2863, %v2863
        %v2880 = vpack.c.bf16 %v2864, %v2864
        %v2881 = vpack.c.bf16 %v2865, %v2865
        %v2882 = vpack.c.bf16 %v2866, %v2866
        %v2883 = vpack.c.bf16 %v2867, %v2867
        %v2884 = vpack.c.bf16 %v2868, %v2868
        %v2885 = vpack.c.bf16 %v2869, %v2869
        %v2902 = vunpack.c.l.b16 %v2870
        %v2903 = vunpack.c.l.b16 %v2871
        %v2904 = vunpack.c.l.b16 %v2872
        %v2905 = vunpack.c.l.b16 %v2873
        %v2906 = vunpack.c.l.b16 %v2874
        %v2907 = vunpack.c.l.b16 %v2875
        %v2908 = vunpack.c.l.b16 %v2876
        %v2909 = vunpack.c.l.b16 %v2877
        %v2910 = vunpack.c.l.b16 %v2878
        %v2911 = vunpack.c.l.b16 %v2879
        %v2912 = vunpack.c.l.b16 %v2880
        %v2913 = vunpack.c.l.b16 %v2881
        %v2914 = vunpack.c.l.b16 %v2882
        %v2915 = vunpack.c.l.b16 %v2883
        %v2916 = vunpack.c.l.b16 %v2884
        %v2917 = vunpack.c.l.b16 %v2885
        %v2918 = vpack.c.b16 %v2903, %v2902
        %v2919 = vpack.c.b16 %v2905, %v2904
        %v2920 = vpack.c.b16 %v2907, %v2906
        %v2921 = vpack.c.b16 %v2909, %v2908
        %v2922 = vpack.c.b16 %v2911, %v2910
        %v2923 = vpack.c.b16 %v2913, %v2912
        %v2924 = vpack.c.b16 %v2915, %v2914
        %v2925 = vpack.c.b16 %v2917, %v2916
        %2934 = vrot.lane.b32.xlu0 %v1520, 32
        %v2935 = vpop.permute.xlu0 %2934
        %2936 = vrot.lane.b32.xlu0 %v1521, 32
        %v2937 = vpop.permute.xlu0 %2936
        %2938 = vrot.lane.b32.xlu0 %v1522, 32
        %v2939 = vpop.permute.xlu0 %2938
        %2940 = vrot.lane.b32.xlu0 %v1523, 32
        %v2941 = vpop.permute.xlu0 %2940
        %2942 = vrot.lane.b32.xlu0 %v1524, 32
        %v2943 = vpop.permute.xlu0 %2942
        %2944 = vrot.lane.b32.xlu0 %v1525, 32
        %v2945 = vpop.permute.xlu0 %2944
        %2946 = vrot.lane.b32.xlu0 %v1526, 32
        %v2947 = vpop.permute.xlu0 %2946
        %2948 = vrot.lane.b32.xlu0 %v1527, 32
        %v2949 = vpop.permute.xlu0 %2948
        %2958 = vmatpush.bf16.msra.mxu0 %v2949
        %2959 = vmatpush.bf16.msra.mxu0 %v2947
        %2960 = vmatpush.bf16.msra.mxu0 %v2945
        %2961 = vmatpush.bf16.msra.mxu0 %v2943
        %2962 = vmatpush.bf16.msra.mxu0 %v2941
        %2963 = vmatpush.bf16.msra.mxu0 %v2939
        %2964 = vmatpush.bf16.msra.mxu0 %v2937
        %2965 = vmatpush.bf16.msra.mxu0 %v2935
        %2966 = vmatmul.bf16.gmra.mxu0 %v2918
        %v2967 = vpop.f32.mrf.mxu0
        %v2968 = vadd.f32 0.0, %v2967
        %v2969 = vpop.f32.mrf.mxu0
        %v2970 = vadd.f32 0.0, %v2969
        %2971 = vmatmul.bf16.gmra.mxu0 %v2919
        %v2972 = vpop.f32.mrf.mxu0
        %v2973 = vadd.f32 0.0, %v2972
        %v2974 = vpop.f32.mrf.mxu0
        %v2975 = vadd.f32 0.0, %v2974
        %2976 = vmatmul.bf16.gmra.mxu0 %v2920
        %v2977 = vpop.f32.mrf.mxu0
        %v2978 = vadd.f32 0.0, %v2977
        %v2979 = vpop.f32.mrf.mxu0
        %v2980 = vadd.f32 0.0, %v2979
        %2981 = vmatmul.bf16.gmra.mxu0 %v2921
        %v2982 = vpop.f32.mrf.mxu0
        %v2983 = vadd.f32 0.0, %v2982
        %v2984 = vpop.f32.mrf.mxu0
        %v2985 = vadd.f32 0.0, %v2984
        %2986 = vmatmul.bf16.gmra.mxu0 %v2922
        %v2987 = vpop.f32.mrf.mxu0
        %v2988 = vadd.f32 0.0, %v2987
        %v2989 = vpop.f32.mrf.mxu0
        %v2990 = vadd.f32 0.0, %v2989
        %2991 = vmatmul.bf16.gmra.mxu0 %v2923
        %v2992 = vpop.f32.mrf.mxu0
        %v2993 = vadd.f32 0.0, %v2992
        %v2994 = vpop.f32.mrf.mxu0
        %v2995 = vadd.f32 0.0, %v2994
        %2996 = vmatmul.bf16.gmra.mxu0 %v2924
        %v2997 = vpop.f32.mrf.mxu0
        %v2998 = vadd.f32 0.0, %v2997
        %v2999 = vpop.f32.mrf.mxu0
        %v3000 = vadd.f32 0.0, %v2999
        %3001 = vmatmul.bf16.gmra.mxu0 %v2925
        %v3002 = vpop.f32.mrf.mxu0
        %v3003 = vadd.f32 0.0, %v3002
        %v3004 = vpop.f32.mrf.mxu0
        %v3005 = vadd.f32 0.0, %v3004
        %3006 = vdwg.mxu0
        %v3007 = vpack.c.bf16 %v2968, %v2968
        %v3008 = vpack.c.bf16 %v2970, %v2970
        %v3009 = vpack.c.bf16 %v2973, %v2973
        %v3010 = vpack.c.bf16 %v2975, %v2975
        %v3011 = vpack.c.bf16 %v2978, %v2978
        %v3012 = vpack.c.bf16 %v2980, %v2980
        %v3013 = vpack.c.bf16 %v2983, %v2983
        %v3014 = vpack.c.bf16 %v2985, %v2985
        %v3015 = vpack.c.bf16 %v2988, %v2988
        %v3016 = vpack.c.bf16 %v2990, %v2990
        %v3017 = vpack.c.bf16 %v2993, %v2993
        %v3018 = vpack.c.bf16 %v2995, %v2995
        %v3019 = vpack.c.bf16 %v2998, %v2998
        %v3020 = vpack.c.bf16 %v3000, %v3000
        %v3021 = vpack.c.bf16 %v3003, %v3003
        %v3022 = vpack.c.bf16 %v3005, %v3005
        %v3039 = vunpack.c.l.b16 %v1585
        %v3040 = vunpack.c.l.b16 %v1586
        %v3041 = vunpack.c.l.b16 %v1587
        %v3042 = vunpack.c.l.b16 %v1588
        %v3043 = vunpack.c.l.b16 %v1589
        %v3044 = vunpack.c.l.b16 %v1590
        %v3045 = vunpack.c.l.b16 %v1591
        %v3046 = vunpack.c.l.b16 %v1592
        %v3047 = vunpack.c.l.b16 %v1593
        %v3048 = vunpack.c.l.b16 %v1594
        %v3049 = vunpack.c.l.b16 %v1595
        %v3050 = vunpack.c.l.b16 %v1596
        %v3051 = vunpack.c.l.b16 %v1597
        %v3052 = vunpack.c.l.b16 %v1598
        %v3053 = vunpack.c.l.b16 %v1599
        %v3054 = vunpack.c.l.b16 %v1600
        %v3055 = vpack.c.b16 %v3040, %v3039
        %v3056 = vpack.c.b16 %v3042, %v3041
        %v3057 = vpack.c.b16 %v3044, %v3043
        %v3058 = vpack.c.b16 %v3046, %v3045
        %v3059 = vpack.c.b16 %v3048, %v3047
        %v3060 = vpack.c.b16 %v3050, %v3049
        %v3061 = vpack.c.b16 %v3052, %v3051
        %v3062 = vpack.c.b16 %v3054, %v3053
        %v3079 = vunpack.c.l.b16 %v2059
        %v3080 = vunpack.c.l.b16 %v2060
        %v3081 = vunpack.c.l.b16 %v2061
        %v3082 = vunpack.c.l.b16 %v2062
        %v3083 = vunpack.c.l.b16 %v2063
        %v3084 = vunpack.c.l.b16 %v2064
        %v3085 = vunpack.c.l.b16 %v2065
        %v3086 = vunpack.c.l.b16 %v2066
        %v3087 = vunpack.c.l.b16 %v2067
        %v3088 = vunpack.c.l.b16 %v2068
        %v3089 = vunpack.c.l.b16 %v2069
        %v3090 = vunpack.c.l.b16 %v2070
        %v3091 = vunpack.c.l.b16 %v2071
        %v3092 = vunpack.c.l.b16 %v2072
        %v3093 = vunpack.c.l.b16 %v2073
        %v3094 = vunpack.c.l.b16 %v2074
        %v3095 = vpack.c.b16 %v3080, %v3079
        %v3096 = vpack.c.b16 %v3082, %v3081
        %v3097 = vpack.c.b16 %v3084, %v3083
        %v3098 = vpack.c.b16 %v3086, %v3085
        %v3099 = vpack.c.b16 %v3088, %v3087
        %v3100 = vpack.c.b16 %v3090, %v3089
        %v3101 = vpack.c.b16 %v3092, %v3091
        %v3102 = vpack.c.b16 %v3094, %v3093
        %3103 = vrot.lane.b32.xlu0 %v3095, 32
        %v3104 = vpop.permute.xlu0 %3103
        %3105 = vrot.lane.b32.xlu0 %v3096, 32
        %v3106 = vpop.permute.xlu0 %3105
        %3107 = vrot.lane.b32.xlu0 %v3097, 32
        %v3108 = vpop.permute.xlu0 %3107
        %3109 = vrot.lane.b32.xlu0 %v3098, 32
        %v3110 = vpop.permute.xlu0 %3109
        %3111 = vrot.lane.b32.xlu0 %v3099, 32
        %v3112 = vpop.permute.xlu0 %3111
        %3113 = vrot.lane.b32.xlu0 %v3100, 32
        %v3114 = vpop.permute.xlu0 %3113
        %3115 = vrot.lane.b32.xlu0 %v3101, 32
        %v3116 = vpop.permute.xlu0 %3115
        %3117 = vrot.lane.b32.xlu0 %v3102, 32
        %v3118 = vpop.permute.xlu0 %3117
        %v3135 = vunpack.c.l.b16 %v2533
        %v3136 = vunpack.c.l.b16 %v2534
        %v3137 = vunpack.c.l.b16 %v2535
        %v3138 = vunpack.c.l.b16 %v2536
        %v3139 = vunpack.c.l.b16 %v2537
        %v3140 = vunpack.c.l.b16 %v2538
        %v3141 = vunpack.c.l.b16 %v2539
        %v3142 = vunpack.c.l.b16 %v2540
        %v3143 = vunpack.c.l.b16 %v2541
        %v3144 = vunpack.c.l.b16 %v2542
        %v3145 = vunpack.c.l.b16 %v2543
        %v3146 = vunpack.c.l.b16 %v2544
        %v3147 = vunpack.c.l.b16 %v2545
        %v3148 = vunpack.c.l.b16 %v2546
        %v3149 = vunpack.c.l.b16 %v2547
        %v3150 = vunpack.c.l.b16 %v2548
        %v3151 = vpack.c.b16 %v3136, %v3135
        %v3152 = vpack.c.b16 %v3138, %v3137
        %v3153 = vpack.c.b16 %v3140, %v3139
        %v3154 = vpack.c.b16 %v3142, %v3141
        %v3155 = vpack.c.b16 %v3144, %v3143
        %v3156 = vpack.c.b16 %v3146, %v3145
        %v3157 = vpack.c.b16 %v3148, %v3147
        %v3158 = vpack.c.b16 %v3150, %v3149
        %3159 = vrot.lane.b32.xlu0 %v3151, 64
        %v3160 = vpop.permute.xlu0 %3159
        %3161 = vrot.lane.b32.xlu0 %v3152, 64
        %v3162 = vpop.permute.xlu0 %3161
        %3163 = vrot.lane.b32.xlu0 %v3153, 64
        %v3164 = vpop.permute.xlu0 %3163
        %3165 = vrot.lane.b32.xlu0 %v3154, 64
        %v3166 = vpop.permute.xlu0 %3165
        %3167 = vrot.lane.b32.xlu0 %v3155, 64
        %v3168 = vpop.permute.xlu0 %3167
        %3169 = vrot.lane.b32.xlu0 %v3156, 64
        %v3170 = vpop.permute.xlu0 %3169
        %3171 = vrot.lane.b32.xlu0 %v3157, 64
        %v3172 = vpop.permute.xlu0 %3171
        %3173 = vrot.lane.b32.xlu0 %v3158, 64
        %v3174 = vpop.permute.xlu0 %3173
        %v3191 = vunpack.c.l.b16 %v3007
        %v3192 = vunpack.c.l.b16 %v3008
        %v3193 = vunpack.c.l.b16 %v3009
        %v3194 = vunpack.c.l.b16 %v3010
        %v3195 = vunpack.c.l.b16 %v3011
        %v3196 = vunpack.c.l.b16 %v3012
        %v3197 = vunpack.c.l.b16 %v3013
        %v3198 = vunpack.c.l.b16 %v3014
        %v3199 = vunpack.c.l.b16 %v3015
        %v3200 = vunpack.c.l.b16 %v3016
        %v3201 = vunpack.c.l.b16 %v3017
        %v3202 = vunpack.c.l.b16 %v3018
        %v3203 = vunpack.c.l.b16 %v3019
        %v3204 = vunpack.c.l.b16 %v3020
        %v3205 = vunpack.c.l.b16 %v3021
        %v3206 = vunpack.c.l.b16 %v3022
        %v3207 = vpack.c.b16 %v3192, %v3191
        %v3208 = vpack.c.b16 %v3194, %v3193
        %v3209 = vpack.c.b16 %v3196, %v3195
        %v3210 = vpack.c.b16 %v3198, %v3197
        %v3211 = vpack.c.b16 %v3200, %v3199
        %v3212 = vpack.c.b16 %v3202, %v3201
        %v3213 = vpack.c.b16 %v3204, %v3203
        %v3214 = vpack.c.b16 %v3206, %v3205
        %3215 = vrot.lane.b32.xlu0 %v3207, 96
        %v3216 = vpop.permute.xlu0 %3215
        %3217 = vrot.lane.b32.xlu0 %v3208, 96
        %v3218 = vpop.permute.xlu0 %3217
        %3219 = vrot.lane.b32.xlu0 %v3209, 96
        %v3220 = vpop.permute.xlu0 %3219
        %3221 = vrot.lane.b32.xlu0 %v3210, 96
        %v3222 = vpop.permute.xlu0 %3221
        %3223 = vrot.lane.b32.xlu0 %v3211, 96
        %v3224 = vpop.permute.xlu0 %3223
        %3225 = vrot.lane.b32.xlu0 %v3212, 96
        %v3226 = vpop.permute.xlu0 %3225
        %3227 = vrot.lane.b32.xlu0 %v3213, 96
        %v3228 = vpop.permute.xlu0 %3227
        %3229 = vrot.lane.b32.xlu0 %v3214, 96
        %v3230 = vpop.permute.xlu0 %3229
        %v3233 = vsel %vm1134, %v3055, %v3104
        %v3236 = vsel %vm1134, %v3056, %v3106
        %v3239 = vsel %vm1134, %v3057, %v3108
        %v3242 = vsel %vm1134, %v3058, %v3110
        %v3245 = vsel %vm1134, %v3059, %v3112
        %v3248 = vsel %vm1134, %v3060, %v3114
        %v3251 = vsel %vm1134, %v3061, %v3116
        %v3254 = vsel %vm1134, %v3062, %v3118
        %vm3255 = vcmask 523264
        %v3257 = vsel %vm3255, %v3233, %v3160
        %v3259 = vsel %vm3255, %v3236, %v3162
        %v3261 = vsel %vm3255, %v3239, %v3164
        %v3263 = vsel %vm3255, %v3242, %v3166
        %v3265 = vsel %vm3255, %v3245, %v3168
        %v3267 = vsel %vm3255, %v3248, %v3170
        %v3269 = vsel %vm3255, %v3251, %v3172
        %v3271 = vsel %vm3255, %v3254, %v3174
        %vm3272 = vcmask 785408
        %v3274 = vsel %vm3272, %v3257, %v3216
        %v3277 = vsel %vm3272, %v3259, %v3218
        %v3280 = vsel %vm3272, %v3261, %v3220
        %v3283 = vsel %vm3272, %v3263, %v3222
        %v3286 = vsel %vm3272, %v3265, %v3224
        %v3289 = vsel %vm3272, %v3267, %v3226
        %v3292 = vsel %vm3272, %v3269, %v3228
        %v3295 = vsel %vm3272, %v3271, %v3230
        %v3297 = vld [vmem:[#allocation7] sm:$0xf]
        %v3298 = vld [vmem:[#allocation7 + $0x4] sm:$0xf]
        %v3299 = vld [vmem:[#allocation7 + $0x8] sm:$0xf]
        %v3300 = vld [vmem:[#allocation7 + $0xc] sm:$0xf]
        %v3301 = vld [vmem:[#allocation7 + $0x10] sm:$0xf]
        %v3302 = vld [vmem:[#allocation7 + $0x14] sm:$0xf]
        %v3303 = vld [vmem:[#allocation7 + $0x18] sm:$0xf]
        %v3304 = vld [vmem:[#allocation7 + $0x1c] sm:$0xf]
        %v3305 = vld [vmem:[#allocation7 + $0x20] sm:$0xf]
        %v3306 = vld [vmem:[#allocation7 + $0x24] sm:$0xf]
        %v3307 = vld [vmem:[#allocation7 + $0x28] sm:$0xf]
        %v3308 = vld [vmem:[#allocation7 + $0x2c] sm:$0xf]
        %v3309 = vld [vmem:[#allocation7 + $0x30] sm:$0xf]
        %v3310 = vld [vmem:[#allocation7 + $0x34] sm:$0xf]
        %v3311 = vld [vmem:[#allocation7 + $0x38] sm:$0xf]
        %v3312 = vld [vmem:[#allocation7 + $0x3c] sm:$0xf]
        %v3313 = vld [vmem:[%s5] sm:$0x1]
        %v3315 = vperm.slane %v3313, 0
        %v3333 = vunpack.c.l.b16 %v3297
        %v3334 = vunpack.c.l.b16 %v3298
        %v3335 = vunpack.c.l.b16 %v3299
        %v3336 = vunpack.c.l.b16 %v3300
        %v3337 = vunpack.c.l.b16 %v3301
        %v3338 = vunpack.c.l.b16 %v3302
        %v3339 = vunpack.c.l.b16 %v3303
        %v3340 = vunpack.c.l.b16 %v3304
        %v3341 = vunpack.c.l.b16 %v3305
        %v3342 = vunpack.c.l.b16 %v3306
        %v3343 = vunpack.c.l.b16 %v3307
        %v3344 = vunpack.c.l.b16 %v3308
        %v3345 = vunpack.c.l.b16 %v3309
        %v3346 = vunpack.c.l.b16 %v3310
        %v3347 = vunpack.c.l.b16 %v3311
        %v3348 = vunpack.c.l.b16 %v3312
        %v3349 = vpack.c.b16 %v3334, %v3333
        %v3350 = vpack.c.b16 %v3336, %v3335
        %v3351 = vpack.c.b16 %v3338, %v3337
        %v3352 = vpack.c.b16 %v3340, %v3339
        %v3353 = vpack.c.b16 %v3342, %v3341
        %v3354 = vpack.c.b16 %v3344, %v3343
        %v3355 = vpack.c.b16 %v3346, %v3345
        %v3356 = vpack.c.b16 %v3348, %v3347
        %3365 = vmatpush.bf16.msra.mxu0 %v3356
        %3366 = vmatpush.bf16.msra.mxu0 %v3355
        %3367 = vmatpush.bf16.msra.mxu0 %v3354
        %3368 = vmatpush.bf16.msra.mxu0 %v3353
        %3369 = vmatpush.bf16.msra.mxu0 %v3352
        %3370 = vmatpush.bf16.msra.mxu0 %v3351
        %3371 = vmatpush.bf16.msra.mxu0 %v3350
        %3372 = vmatpush.bf16.msra.mxu0 %v3349
        %3373 = vmatmul.bf16.gmra.mxu0 %v3274
        %v3374 = vpop.f32.mrf.mxu0
        %v3375 = vadd.f32 %v3315, %v3374
        %v3376 = vpop.f32.mrf.mxu0
        %v3377 = vadd.f32 %v3315, %v3376
        %3378 = vmatmul.bf16.gmra.mxu0 %v3277
        %v3379 = vpop.f32.mrf.mxu0
        %v3380 = vadd.f32 %v3315, %v3379
        %v3381 = vpop.f32.mrf.mxu0
        %v3382 = vadd.f32 %v3315, %v3381
        %3383 = vmatmul.bf16.gmra.mxu0 %v3280
        %v3384 = vpop.f32.mrf.mxu0
        %v3385 = vadd.f32 %v3315, %v3384
        %v3386 = vpop.f32.mrf.mxu0
        %v3387 = vadd.f32 %v3315, %v3386
        %3388 = vmatmul.bf16.gmra.mxu0 %v3283
        %v3389 = vpop.f32.mrf.mxu0
        %v3390 = vadd.f32 %v3315, %v3389
        %v3391 = vpop.f32.mrf.mxu0
        %v3392 = vadd.f32 %v3315, %v3391
        %3393 = vmatmul.bf16.gmra.mxu0 %v3286
        %v3394 = vpop.f32.mrf.mxu0
        %v3395 = vadd.f32 %v3315, %v3394
        %v3396 = vpop.f32.mrf.mxu0
        %v3397 = vadd.f32 %v3315, %v3396
        %3398 = vmatmul.bf16.gmra.mxu0 %v3289
        %v3399 = vpop.f32.mrf.mxu0
        %v3400 = vadd.f32 %v3315, %v3399
        %v3401 = vpop.f32.mrf.mxu0
        %v3402 = vadd.f32 %v3315, %v3401
        %3403 = vmatmul.bf16.gmra.mxu0 %v3292
        %v3404 = vpop.f32.mrf.mxu0
        %v3405 = vadd.f32 %v3315, %v3404
        %v3406 = vpop.f32.mrf.mxu0
        %v3407 = vadd.f32 %v3315, %v3406
        %3408 = vmatmul.bf16.gmra.mxu0 %v3295
        %v3409 = vpop.f32.mrf.mxu0
        %v3410 = vadd.f32 %v3315, %v3409
        %v3411 = vpop.f32.mrf.mxu0
        %v3412 = vadd.f32 %v3315, %v3411
        %3413 = vdwg.mxu0
        %v3414 = vperm.slane %v479, 2
        %v3415 = vmul.f32 %v3375, %v3414
        %v3416 = vmul.f32 %v3377, %v3414
        %v3417 = vmul.f32 %v3380, %v3414
        %v3418 = vmul.f32 %v3382, %v3414
        %v3419 = vmul.f32 %v3385, %v3414
        %v3420 = vmul.f32 %v3387, %v3414
        %v3421 = vmul.f32 %v3390, %v3414
        %v3422 = vmul.f32 %v3392, %v3414
        %v3423 = vmul.f32 %v3395, %v3414
        %v3424 = vmul.f32 %v3397, %v3414
        %v3425 = vmul.f32 %v3400, %v3414
        %v3426 = vmul.f32 %v3402, %v3414
        %v3427 = vmul.f32 %v3405, %v3414
        %v3428 = vmul.f32 %v3407, %v3414
        %v3429 = vmul.f32 %v3410, %v3414
        %v3430 = vmul.f32 %v3412, %v3414
        %v3431 = vadd.f32 %v463, %v3415
        %v3432 = vadd.f32 %v464, %v3416
        %v3433 = vadd.f32 %v465, %v3417
        %v3434 = vadd.f32 %v466, %v3418
        %v3435 = vadd.f32 %v467, %v3419
        %v3436 = vadd.f32 %v468, %v3420
        %v3437 = vadd.f32 %v469, %v3421
        %v3438 = vadd.f32 %v470, %v3422
        %v3439 = vadd.f32 %v471, %v3423
        %v3440 = vadd.f32 %v472, %v3424
        %v3441 = vadd.f32 %v473, %v3425
        %v3442 = vadd.f32 %v474, %v3426
        %v3443 = vadd.f32 %v475, %v3427
        %v3444 = vadd.f32 %v476, %v3428
        %v3445 = vadd.f32 %v477, %v3429
        %v3446 = vadd.f32 %v478, %v3430
        %v3447 = vadd.f32 %v3431, %v3432
        %v3448 = vadd.f32 %v3447, %v3433
        %v3449 = vadd.f32 %v3448, %v3434
        %v3450 = vadd.f32 %v3449, %v3435
        %v3451 = vadd.f32 %v3450, %v3436
        %v3452 = vadd.f32 %v3451, %v3437
        %v3453 = vadd.f32 %v3452, %v3438
        %v3454 = vadd.f32 %v3453, %v3439
        %v3455 = vadd.f32 %v3454, %v3440
        %v3456 = vadd.f32 %v3455, %v3441
        %v3457 = vadd.f32 %v3456, %v3442
        %v3458 = vadd.f32 %v3457, %v3443
        %v3459 = vadd.f32 %v3458, %v3444
        %v3460 = vadd.f32 %v3459, %v3445
        %v3461 = vadd.f32 %v3460, %v3446
        %v3462 = vrot.slane %v3461, 4
        %v3463 = vadd.f32 %v3461, %v3462
        %v3464 = vrot.slane %v3463, 2
        %v3465 = vadd.f32 %v3463, %v3464
        %v3466 = vrot.slane %v3465, 1
        %v3467 = vadd.f32 %v3465, %v3466
        %v3468 = vmul.f32 %v3467, %v507
        %v3469 = vmul.f32 %v3431, %v3431
        %v3470 = vmul.f32 %v3432, %v3432
        %v3471 = vmul.f32 %v3433, %v3433
        %v3472 = vmul.f32 %v3434, %v3434
        %v3473 = vmul.f32 %v3435, %v3435
        %v3474 = vmul.f32 %v3436, %v3436
        %v3475 = vmul.f32 %v3437, %v3437
        %v3476 = vmul.f32 %v3438, %v3438
        %v3477 = vmul.f32 %v3439, %v3439
        %v3478 = vmul.f32 %v3440, %v3440
        %v3479 = vmul.f32 %v3441, %v3441
        %v3480 = vmul.f32 %v3442, %v3442
        %v3481 = vmul.f32 %v3443, %v3443
        %v3482 = vmul.f32 %v3444, %v3444
        %v3483 = vmul.f32 %v3445, %v3445
        %v3484 = vmul.f32 %v3446, %v3446
        %v3485 = vadd.f32 %v3469, %v3470
        %v3486 = vadd.f32 %v3485, %v3471
        %v3487 = vadd.f32 %v3486, %v3472
        %v3488 = vadd.f32 %v3487, %v3473
        %v3489 = vadd.f32 %v3488, %v3474
        %v3490 = vadd.f32 %v3489, %v3475
        %v3491 = vadd.f32 %v3490, %v3476
        %v3492 = vadd.f32 %v3491, %v3477
        %v3493 = vadd.f32 %v3492, %v3478
        %v3494 = vadd.f32 %v3493, %v3479
        %v3495 = vadd.f32 %v3494, %v3480
        %v3496 = vadd.f32 %v3495, %v3481
        %v3497 = vadd.f32 %v3496, %v3482
        %v3498 = vadd.f32 %v3497, %v3483
        %v3499 = vadd.f32 %v3498, %v3484
        %v3500 = vrot.slane %v3499, 4
        %v3501 = vadd.f32 %v3499, %v3500
        %v3502 = vrot.slane %v3501, 2
        %v3503 = vadd.f32 %v3501, %v3502
        %v3504 = vrot.slane %v3503, 1
        %v3505 = vadd.f32 %v3503, %v3504
        %v3506 = vmul.f32 %v3505, %v507
        %v3507 = vmul.f32 %v3468, %v3468
        %v3508 = vsub.f32 %v3506, %v3507
        %v3509 = vmax.f32 %v3508, 0.0
        %v3510 = vsub.f32 %v3431, %v3468
        %v3511 = vsub.f32 %v3432, %v3468
        %v3512 = vsub.f32 %v3433, %v3468
        %v3513 = vsub.f32 %v3434, %v3468
        %v3514 = vsub.f32 %v3435, %v3468
        %v3515 = vsub.f32 %v3436, %v3468
        %v3516 = vsub.f32 %v3437, %v3468
        %v3517 = vsub.f32 %v3438, %v3468
        %v3518 = vsub.f32 %v3439, %v3468
        %v3519 = vsub.f32 %v3440, %v3468
        %v3520 = vsub.f32 %v3441, %v3468
        %v3521 = vsub.f32 %v3442, %v3468
        %v3522 = vsub.f32 %v3443, %v3468
        %v3523 = vsub.f32 %v3444, %v3468
        %v3524 = vsub.f32 %v3445, %v3468
        %v3525 = vsub.f32 %v3446, %v3468
        %v3526 = vadd.f32 %v3509, 1e-12
        %v3527 = vrsqrt.pop %v3526
        %v3528 = vmul.f32 %v3527, %v3526
        %v3529 = vmul.f32 %v3528, %v3527
        %v3530 = vmul.f32 0.5, %v3529
        %v3531 = vsub.f32 1.5, %v3530
        %v3532 = vmul.f32 %v3527, %v3531
        %vm3533 = vweird.f32 %v3526
        %vm3534 = vweird.f32 %v3527
        %vm3535 = vmor %vm3533, %vm3534
        %v3536 = vsel %vm3535, %v3527, %v3532
        %v3537 = vmul.f32 %v3510, %v3536
        %v3538 = vmul.f32 %v3511, %v3536
        %v3539 = vmul.f32 %v3512, %v3536
        %v3540 = vmul.f32 %v3513, %v3536
        %v3541 = vmul.f32 %v3514, %v3536
        %v3542 = vmul.f32 %v3515, %v3536
        %v3543 = vmul.f32 %v3516, %v3536
        %v3544 = vmul.f32 %v3517, %v3536
        %v3545 = vmul.f32 %v3518, %v3536
        %v3546 = vmul.f32 %v3519, %v3536
        %v3547 = vmul.f32 %v3520, %v3536
        %v3548 = vmul.f32 %v3521, %v3536
        %v3549 = vmul.f32 %v3522, %v3536
        %v3550 = vmul.f32 %v3523, %v3536
        %v3551 = vmul.f32 %v3524, %v3536
        %v3552 = vmul.f32 %v3525, %v3536
        %v3553 = vperm.slane %v479, 3
        %v3554 = vmul.f32 %v3537, %v3553
        %v3555 = vmul.f32 %v3538, %v3553
        %v3556 = vmul.f32 %v3539, %v3553
        %v3557 = vmul.f32 %v3540, %v3553
        %v3558 = vmul.f32 %v3541, %v3553
        %v3559 = vmul.f32 %v3542, %v3553
        %v3560 = vmul.f32 %v3543, %v3553
        %v3561 = vmul.f32 %v3544, %v3553
        %v3562 = vmul.f32 %v3545, %v3553
        %v3563 = vmul.f32 %v3546, %v3553
        %v3564 = vmul.f32 %v3547, %v3553
        %v3565 = vmul.f32 %v3548, %v3553
        %v3566 = vmul.f32 %v3549, %v3553
        %v3567 = vmul.f32 %v3550, %v3553
        %v3568 = vmul.f32 %v3551, %v3553
        %v3569 = vmul.f32 %v3552, %v3553
        %v3570 = vperm.slane %v479, 4
        %v3571 = vadd.f32 %v3554, %v3570
        %v3572 = vadd.f32 %v3555, %v3570
        %v3573 = vadd.f32 %v3556, %v3570
        %v3574 = vadd.f32 %v3557, %v3570
        %v3575 = vadd.f32 %v3558, %v3570
        %v3576 = vadd.f32 %v3559, %v3570
        %v3577 = vadd.f32 %v3560, %v3570
        %v3578 = vadd.f32 %v3561, %v3570
        %v3579 = vadd.f32 %v3562, %v3570
        %v3580 = vadd.f32 %v3563, %v3570
        %v3581 = vadd.f32 %v3564, %v3570
        %v3582 = vadd.f32 %v3565, %v3570
        %v3583 = vadd.f32 %v3566, %v3570
        %v3584 = vadd.f32 %v3567, %v3570
        %v3585 = vadd.f32 %v3568, %v3570
        %v3586 = vadd.f32 %v3569, %v3570
        %v3587 = vpack.c.bf16 %v3571, %v3571
        %v3588 = vpack.c.bf16 %v3572, %v3572
        %v3589 = vpack.c.bf16 %v3573, %v3573
        %v3590 = vpack.c.bf16 %v3574, %v3574
        %v3591 = vpack.c.bf16 %v3575, %v3575
        %v3592 = vpack.c.bf16 %v3576, %v3576
        %v3593 = vpack.c.bf16 %v3577, %v3577
        %v3594 = vpack.c.bf16 %v3578, %v3578
        %v3595 = vpack.c.bf16 %v3579, %v3579
        %v3596 = vpack.c.bf16 %v3580, %v3580
        %v3597 = vpack.c.bf16 %v3581, %v3581
        %v3598 = vpack.c.bf16 %v3582, %v3582
        %v3599 = vpack.c.bf16 %v3583, %v3583
        %v3600 = vpack.c.bf16 %v3584, %v3584
        %v3601 = vpack.c.bf16 %v3585, %v3585
        %v3602 = vpack.c.bf16 %v3586, %v3586
        %v3603 = vld [vmem:[#allocation8] sm:$0xff]
        %v3604 = vld [vmem:[#allocation8 + $0x8] sm:$0xff]
        %v3605 = vld [vmem:[#allocation8 + $0x10] sm:$0xff]
        %v3606 = vld [vmem:[#allocation8 + $0x18] sm:$0xff]
        %v3607 = vld [vmem:[#allocation8 + $0x20] sm:$0xff]
        %v3608 = vld [vmem:[#allocation8 + $0x28] sm:$0xff]
        %v3609 = vld [vmem:[#allocation8 + $0x30] sm:$0xff]
        %v3610 = vld [vmem:[#allocation8 + $0x38] sm:$0xff]
        %v3611 = vld [vmem:[#allocation8 + $0x40] sm:$0xff]
        %v3612 = vld [vmem:[#allocation8 + $0x48] sm:$0xff]
        %v3613 = vld [vmem:[#allocation8 + $0x50] sm:$0xff]
        %v3614 = vld [vmem:[#allocation8 + $0x58] sm:$0xff]
        %v3615 = vld [vmem:[#allocation8 + $0x60] sm:$0xff]
        %v3616 = vld [vmem:[#allocation8 + $0x68] sm:$0xff]
        %v3617 = vld [vmem:[#allocation8 + $0x70] sm:$0xff]
        %v3618 = vld [vmem:[#allocation8 + $0x78] sm:$0xff]
        %v3619 = vld [vmem:[#allocation8 + $0x80] sm:$0xff]
        %v3620 = vld [vmem:[#allocation8 + $0x88] sm:$0xff]
        %v3621 = vld [vmem:[#allocation8 + $0x90] sm:$0xff]
        %v3622 = vld [vmem:[#allocation8 + $0x98] sm:$0xff]
        %v3623 = vld [vmem:[#allocation8 + $0xa0] sm:$0xff]
        %v3624 = vld [vmem:[#allocation8 + $0xa8] sm:$0xff]
        %v3625 = vld [vmem:[#allocation8 + $0xb0] sm:$0xff]
        %v3626 = vld [vmem:[#allocation8 + $0xb8] sm:$0xff]
        %v3627 = vld [vmem:[#allocation8 + $0xc0] sm:$0xff]
        %v3628 = vld [vmem:[#allocation8 + $0xc8] sm:$0xff]
        %v3629 = vld [vmem:[#allocation8 + $0xd0] sm:$0xff]
        %v3630 = vld [vmem:[#allocation8 + $0xd8] sm:$0xff]
        %v3631 = vld [vmem:[#allocation8 + $0xe0] sm:$0xff]
        %v3632 = vld [vmem:[#allocation8 + $0xe8] sm:$0xff]
        %v3633 = vld [vmem:[#allocation8 + $0xf0] sm:$0xff]
        %v3634 = vld [vmem:[#allocation8 + $0xf8] sm:$0xff]
        %v3635 = vld [vmem:[%s7] sm:$0xf]
        %v3637 = vperm.slane %v3635, 0
        %v3638 = vperm.slane %v3635, 1
        %v3639 = vperm.slane %v3635, 2
        %v3640 = vperm.slane %v3635, 3
        %v3661 = vunpack.c.l.b16 %v3587
        %v3662 = vunpack.c.l.b16 %v3588
        %v3663 = vunpack.c.l.b16 %v3589
        %v3664 = vunpack.c.l.b16 %v3590
        %v3665 = vunpack.c.l.b16 %v3591
        %v3666 = vunpack.c.l.b16 %v3592
        %v3667 = vunpack.c.l.b16 %v3593
        %v3668 = vunpack.c.l.b16 %v3594
        %v3669 = vunpack.c.l.b16 %v3595
        %v3670 = vunpack.c.l.b16 %v3596
        %v3671 = vunpack.c.l.b16 %v3597
        %v3672 = vunpack.c.l.b16 %v3598
        %v3673 = vunpack.c.l.b16 %v3599
        %v3674 = vunpack.c.l.b16 %v3600
        %v3675 = vunpack.c.l.b16 %v3601
        %v3676 = vunpack.c.l.b16 %v3602
        %v3677 = vpack.c.b16 %v3662, %v3661
        %v3678 = vpack.c.b16 %v3664, %v3663
        %v3679 = vpack.c.b16 %v3666, %v3665
        %v3680 = vpack.c.b16 %v3668, %v3667
        %v3681 = vpack.c.b16 %v3670, %v3669
        %v3682 = vpack.c.b16 %v3672, %v3671
        %v3683 = vpack.c.b16 %v3674, %v3673
        %v3684 = vpack.c.b16 %v3676, %v3675
        %v3725 = vunpack.c.l.b16 %v3603
        %v3726 = vunpack.c.h.b16 %v3603
        %v3727 = vunpack.c.l.b16 %v3604
        %v3728 = vunpack.c.h.b16 %v3604
        %v3729 = vunpack.c.l.b16 %v3605
        %v3730 = vunpack.c.h.b16 %v3605
        %v3731 = vunpack.c.l.b16 %v3606
        %v3732 = vunpack.c.h.b16 %v3606
        %v3733 = vunpack.c.l.b16 %v3607
        %v3734 = vunpack.c.h.b16 %v3607
        %v3735 = vunpack.c.l.b16 %v3608
        %v3736 = vunpack.c.h.b16 %v3608
        %v3737 = vunpack.c.l.b16 %v3609
        %v3738 = vunpack.c.h.b16 %v3609
        %v3739 = vunpack.c.l.b16 %v3610
        %v3740 = vunpack.c.h.b16 %v3610
        %v3741 = vunpack.c.l.b16 %v3611
        %v3742 = vunpack.c.h.b16 %v3611
        %v3743 = vunpack.c.l.b16 %v3612
        %v3744 = vunpack.c.h.b16 %v3612
        %v3745 = vunpack.c.l.b16 %v3613
        %v3746 = vunpack.c.h.b16 %v3613
        %v3747 = vunpack.c.l.b16 %v3614
        %v3748 = vunpack.c.h.b16 %v3614
        %v3749 = vunpack.c.l.b16 %v3615
        %v3750 = vunpack.c.h.b16 %v3615
        %v3751 = vunpack.c.l.b16 %v3616
        %v3752 = vunpack.c.h.b16 %v3616
        %v3753 = vunpack.c.l.b16 %v3617
        %v3754 = vunpack.c.h.b16 %v3617
        %v3755 = vunpack.c.l.b16 %v3618
        %v3756 = vunpack.c.h.b16 %v3618
        %v3757 = vunpack.c.l.b16 %v3619
        %v3758 = vunpack.c.h.b16 %v3619
        %v3759 = vunpack.c.l.b16 %v3620
        %v3760 = vunpack.c.h.b16 %v3620
        %v3761 = vunpack.c.l.b16 %v3621
        %v3762 = vunpack.c.h.b16 %v3621
        %v3763 = vunpack.c.l.b16 %v3622
        %v3764 = vunpack.c.h.b16 %v3622
        %v3765 = vunpack.c.l.b16 %v3623
        %v3766 = vunpack.c.h.b16 %v3623
        %v3767 = vunpack.c.l.b16 %v3624
        %v3768 = vunpack.c.h.b16 %v3624
        %v3769 = vunpack.c.l.b16 %v3625
        %v3770 = vunpack.c.h.b16 %v3625
        %v3771 = vunpack.c.l.b16 %v3626
        %v3772 = vunpack.c.h.b16 %v3626
        %v3773 = vunpack.c.l.b16 %v3627
        %v3774 = vunpack.c.h.b16 %v3627
        %v3775 = vunpack.c.l.b16 %v3628
        %v3776 = vunpack.c.h.b16 %v3628
        %v3777 = vunpack.c.l.b16 %v3629
        %v3778 = vunpack.c.h.b16 %v3629
        %v3779 = vunpack.c.l.b16 %v3630
        %v3780 = vunpack.c.h.b16 %v3630
        %v3781 = vunpack.c.l.b16 %v3631
        %v3782 = vunpack.c.h.b16 %v3631
        %v3783 = vunpack.c.l.b16 %v3632
        %v3784 = vunpack.c.h.b16 %v3632
        %v3785 = vunpack.c.l.b16 %v3633
        %v3786 = vunpack.c.h.b16 %v3633
        %v3787 = vunpack.c.l.b16 %v3634
        %v3788 = vunpack.c.h.b16 %v3634
        %v3789 = vpack.c.b16 %v3729, %v3725
        %v3790 = vpack.c.b16 %v3730, %v3726
        %v3791 = vpack.c.b16 %v3731, %v3727
        %v3792 = vpack.c.b16 %v3732, %v3728
        %v3793 = vpack.c.b16 %v3737, %v3733
        %v3794 = vpack.c.b16 %v3738, %v3734
        %v3795 = vpack.c.b16 %v3739, %v3735
        %v3796 = vpack.c.b16 %v3740, %v3736
        %v3797 = vpack.c.b16 %v3745, %v3741
        %v3798 = vpack.c.b16 %v3746, %v3742
        %v3799 = vpack.c.b16 %v3747, %v3743
        %v3800 = vpack.c.b16 %v3748, %v3744
        %v3801 = vpack.c.b16 %v3753, %v3749
        %v3802 = vpack.c.b16 %v3754, %v3750
        %v3803 = vpack.c.b16 %v3755, %v3751
        %v3804 = vpack.c.b16 %v3756, %v3752
        %v3805 = vpack.c.b16 %v3761, %v3757
        %v3806 = vpack.c.b16 %v3762, %v3758
        %v3807 = vpack.c.b16 %v3763, %v3759
        %v3808 = vpack.c.b16 %v3764, %v3760
        %v3809 = vpack.c.b16 %v3769, %v3765
        %v3810 = vpack.c.b16 %v3770, %v3766
        %v3811 = vpack.c.b16 %v3771, %v3767
        %v3812 = vpack.c.b16 %v3772, %v3768
        %v3813 = vpack.c.b16 %v3777, %v3773
        %v3814 = vpack.c.b16 %v3778, %v3774
        %v3815 = vpack.c.b16 %v3779, %v3775
        %v3816 = vpack.c.b16 %v3780, %v3776
        %v3817 = vpack.c.b16 %v3785, %v3781
        %v3818 = vpack.c.b16 %v3786, %v3782
        %v3819 = vpack.c.b16 %v3787, %v3783
        %v3820 = vpack.c.b16 %v3788, %v3784
        %3853 = vmatpush.bf16.msra.mxu0 %v3817
        %3854 = vmatpush.bf16.msra.mxu0 %v3813
        %3855 = vmatpush.bf16.msra.mxu0 %v3809
        %3856 = vmatpush.bf16.msra.mxu0 %v3805
        %3857 = vmatpush.bf16.msra.mxu0 %v3801
        %3858 = vmatpush.bf16.msra.mxu0 %v3797
        %3859 = vmatpush.bf16.msra.mxu0 %v3793
        %3860 = vmatpush.bf16.msra.mxu0 %v3789
        %3861 = vmatmul.bf16.gmra.mxu0 %v3677
        %v3862 = vpop.f32.mrf.mxu0
        %v3863 = vadd.f32 %v3637, %v3862
        %v3864 = vpop.f32.mrf.mxu0
        %v3865 = vadd.f32 %v3637, %v3864
        %3866 = vmatmul.bf16.gmra.mxu0 %v3678
        %v3867 = vpop.f32.mrf.mxu0
        %v3868 = vadd.f32 %v3637, %v3867
        %v3869 = vpop.f32.mrf.mxu0
        %v3870 = vadd.f32 %v3637, %v3869
        %3871 = vmatmul.bf16.gmra.mxu0 %v3679
        %v3872 = vpop.f32.mrf.mxu0
        %v3873 = vadd.f32 %v3637, %v3872
        %v3874 = vpop.f32.mrf.mxu0
        %v3875 = vadd.f32 %v3637, %v3874
        %3876 = vmatmul.bf16.gmra.mxu0 %v3680
        %v3877 = vpop.f32.mrf.mxu0
        %v3878 = vadd.f32 %v3637, %v3877
        %v3879 = vpop.f32.mrf.mxu0
        %v3880 = vadd.f32 %v3637, %v3879
        %3881 = vmatmul.bf16.gmra.mxu0 %v3681
        %v3882 = vpop.f32.mrf.mxu0
        %v3883 = vadd.f32 %v3637, %v3882
        %v3884 = vpop.f32.mrf.mxu0
        %v3885 = vadd.f32 %v3637, %v3884
        %3886 = vmatmul.bf16.gmra.mxu0 %v3682
        %v3887 = vpop.f32.mrf.mxu0
        %v3888 = vadd.f32 %v3637, %v3887
        %v3889 = vpop.f32.mrf.mxu0
        %v3890 = vadd.f32 %v3637, %v3889
        %3891 = vmatmul.bf16.gmra.mxu0 %v3683
        %v3892 = vpop.f32.mrf.mxu0
        %v3893 = vadd.f32 %v3637, %v3892
        %v3894 = vpop.f32.mrf.mxu0
        %v3895 = vadd.f32 %v3637, %v3894
        %3896 = vmatmul.bf16.gmra.mxu0 %v3684
        %v3897 = vpop.f32.mrf.mxu0
        %v3898 = vadd.f32 %v3637, %v3897
        %v3899 = vpop.f32.mrf.mxu0
        %v3900 = vadd.f32 %v3637, %v3899
        %3901 = vdwg.mxu0
        %3902 = vmatpush.bf16.msra.mxu0 %v3818
        %3903 = vmatpush.bf16.msra.mxu0 %v3814
        %3904 = vmatpush.bf16.msra.mxu0 %v3810
        %3905 = vmatpush.bf16.msra.mxu0 %v3806
        %3906 = vmatpush.bf16.msra.mxu0 %v3802
        %3907 = vmatpush.bf16.msra.mxu0 %v3798
        %3908 = vmatpush.bf16.msra.mxu0 %v3794
        %3909 = vmatpush.bf16.msra.mxu0 %v3790
        %3910 = vmatmul.bf16.gmra.mxu0 %v3677
        %v3911 = vpop.f32.mrf.mxu0
        %v3912 = vadd.f32 %v3638, %v3911
        %v3913 = vpop.f32.mrf.mxu0
        %v3914 = vadd.f32 %v3638, %v3913
        %3915 = vmatmul.bf16.gmra.mxu0 %v3678
        %v3916 = vpop.f32.mrf.mxu0
        %v3917 = vadd.f32 %v3638, %v3916
        %v3918 = vpop.f32.mrf.mxu0
        %v3919 = vadd.f32 %v3638, %v3918
        %3920 = vmatmul.bf16.gmra.mxu0 %v3679
        %v3921 = vpop.f32.mrf.mxu0
        %v3922 = vadd.f32 %v3638, %v3921
        %v3923 = vpop.f32.mrf.mxu0
        %v3924 = vadd.f32 %v3638, %v3923
        %3925 = vmatmul.bf16.gmra.mxu0 %v3680
        %v3926 = vpop.f32.mrf.mxu0
        %v3927 = vadd.f32 %v3638, %v3926
        %v3928 = vpop.f32.mrf.mxu0
        %v3929 = vadd.f32 %v3638, %v3928
        %3930 = vmatmul.bf16.gmra.mxu0 %v3681
        %v3931 = vpop.f32.mrf.mxu0
        %v3932 = vadd.f32 %v3638, %v3931
        %v3933 = vpop.f32.mrf.mxu0
        %v3934 = vadd.f32 %v3638, %v3933
        %3935 = vmatmul.bf16.gmra.mxu0 %v3682
        %v3936 = vpop.f32.mrf.mxu0
        %v3937 = vadd.f32 %v3638, %v3936
        %v3938 = vpop.f32.mrf.mxu0
        %v3939 = vadd.f32 %v3638, %v3938
        %3940 = vmatmul.bf16.gmra.mxu0 %v3683
        %v3941 = vpop.f32.mrf.mxu0
        %v3942 = vadd.f32 %v3638, %v3941
        %v3943 = vpop.f32.mrf.mxu0
        %v3944 = vadd.f32 %v3638, %v3943
        %3945 = vmatmul.bf16.gmra.mxu0 %v3684
        %v3946 = vpop.f32.mrf.mxu0
        %v3947 = vadd.f32 %v3638, %v3946
        %v3948 = vpop.f32.mrf.mxu0
        %v3949 = vadd.f32 %v3638, %v3948
        %3950 = vdwg.mxu0
        %3951 = vmatpush.bf16.msra.mxu0 %v3819
        %3952 = vmatpush.bf16.msra.mxu0 %v3815
        %3953 = vmatpush.bf16.msra.mxu0 %v3811
        %3954 = vmatpush.bf16.msra.mxu0 %v3807
        %3955 = vmatpush.bf16.msra.mxu0 %v3803
        %3956 = vmatpush.bf16.msra.mxu0 %v3799
        %3957 = vmatpush.bf16.msra.mxu0 %v3795
        %3958 = vmatpush.bf16.msra.mxu0 %v3791
        %3959 = vmatmul.bf16.gmra.mxu0 %v3677
        %v3960 = vpop.f32.mrf.mxu0
        %v3961 = vadd.f32 %v3639, %v3960
        %v3962 = vpop.f32.mrf.mxu0
        %v3963 = vadd.f32 %v3639, %v3962
        %3964 = vmatmul.bf16.gmra.mxu0 %v3678
        %v3965 = vpop.f32.mrf.mxu0
        %v3966 = vadd.f32 %v3639, %v3965
        %v3967 = vpop.f32.mrf.mxu0
        %v3968 = vadd.f32 %v3639, %v3967
        %3969 = vmatmul.bf16.gmra.mxu0 %v3679
        %v3970 = vpop.f32.mrf.mxu0
        %v3971 = vadd.f32 %v3639, %v3970
        %v3972 = vpop.f32.mrf.mxu0
        %v3973 = vadd.f32 %v3639, %v3972
        %3974 = vmatmul.bf16.gmra.mxu0 %v3680
        %v3975 = vpop.f32.mrf.mxu0
        %v3976 = vadd.f32 %v3639, %v3975
        %v3977 = vpop.f32.mrf.mxu0
        %v3978 = vadd.f32 %v3639, %v3977
        %3979 = vmatmul.bf16.gmra.mxu0 %v3681
        %v3980 = vpop.f32.mrf.mxu0
        %v3981 = vadd.f32 %v3639, %v3980
        %v3982 = vpop.f32.mrf.mxu0
        %v3983 = vadd.f32 %v3639, %v3982
        %3984 = vmatmul.bf16.gmra.mxu0 %v3682
        %v3985 = vpop.f32.mrf.mxu0
        %v3986 = vadd.f32 %v3639, %v3985
        %v3987 = vpop.f32.mrf.mxu0
        %v3988 = vadd.f32 %v3639, %v3987
        %3989 = vmatmul.bf16.gmra.mxu0 %v3683
        %v3990 = vpop.f32.mrf.mxu0
        %v3991 = vadd.f32 %v3639, %v3990
        %v3992 = vpop.f32.mrf.mxu0
        %v3993 = vadd.f32 %v3639, %v3992
        %3994 = vmatmul.bf16.gmra.mxu0 %v3684
        %v3995 = vpop.f32.mrf.mxu0
        %v3996 = vadd.f32 %v3639, %v3995
        %v3997 = vpop.f32.mrf.mxu0
        %v3998 = vadd.f32 %v3639, %v3997
        %3999 = vdwg.mxu0
        %4000 = vmatpush.bf16.msra.mxu0 %v3820
        %4001 = vmatpush.bf16.msra.mxu0 %v3816
        %4002 = vmatpush.bf16.msra.mxu0 %v3812
        %4003 = vmatpush.bf16.msra.mxu0 %v3808
        %4004 = vmatpush.bf16.msra.mxu0 %v3804
        %4005 = vmatpush.bf16.msra.mxu0 %v3800
        %4006 = vmatpush.bf16.msra.mxu0 %v3796
        %4007 = vmatpush.bf16.msra.mxu0 %v3792
        %4008 = vmatmul.bf16.gmra.mxu0 %v3677
        %v4009 = vpop.f32.mrf.mxu0
        %v4010 = vadd.f32 %v3640, %v4009
        %v4011 = vpop.f32.mrf.mxu0
        %v4012 = vadd.f32 %v3640, %v4011
        %4013 = vmatmul.bf16.gmra.mxu0 %v3678
        %v4014 = vpop.f32.mrf.mxu0
        %v4015 = vadd.f32 %v3640, %v4014
        %v4016 = vpop.f32.mrf.mxu0
        %v4017 = vadd.f32 %v3640, %v4016
        %4018 = vmatmul.bf16.gmra.mxu0 %v3679
        %v4019 = vpop.f32.mrf.mxu0
        %v4020 = vadd.f32 %v3640, %v4019
        %v4021 = vpop.f32.mrf.mxu0
        %v4022 = vadd.f32 %v3640, %v4021
        %4023 = vmatmul.bf16.gmra.mxu0 %v3680
        %v4024 = vpop.f32.mrf.mxu0
        %v4025 = vadd.f32 %v3640, %v4024
        %v4026 = vpop.f32.mrf.mxu0
        %v4027 = vadd.f32 %v3640, %v4026
        %4028 = vmatmul.bf16.gmra.mxu0 %v3681
        %v4029 = vpop.f32.mrf.mxu0
        %v4030 = vadd.f32 %v3640, %v4029
        %v4031 = vpop.f32.mrf.mxu0
        %v4032 = vadd.f32 %v3640, %v4031
        %4033 = vmatmul.bf16.gmra.mxu0 %v3682
        %v4034 = vpop.f32.mrf.mxu0
        %v4035 = vadd.f32 %v3640, %v4034
        %v4036 = vpop.f32.mrf.mxu0
        %v4037 = vadd.f32 %v3640, %v4036
        %4038 = vmatmul.bf16.gmra.mxu0 %v3683
        %v4039 = vpop.f32.mrf.mxu0
        %v4040 = vadd.f32 %v3640, %v4039
        %v4041 = vpop.f32.mrf.mxu0
        %v4042 = vadd.f32 %v3640, %v4041
        %4043 = vmatmul.bf16.gmra.mxu0 %v3684
        %v4044 = vpop.f32.mrf.mxu0
        %v4045 = vadd.f32 %v3640, %v4044
        %v4046 = vpop.f32.mrf.mxu0
        %v4047 = vadd.f32 %v3640, %v4046
        %4048 = vdwg.mxu0
        %v4049 = vmul.f32 %v3863, 0.5
        %v4050 = vmul.f32 %v3912, 0.5
        %v4051 = vmul.f32 %v3961, 0.5
        %v4052 = vmul.f32 %v4010, 0.5
        %v4053 = vmul.f32 %v3865, 0.5
        %v4054 = vmul.f32 %v3914, 0.5
        %v4055 = vmul.f32 %v3963, 0.5
        %v4056 = vmul.f32 %v4012, 0.5
        %v4057 = vmul.f32 %v3868, 0.5
        %v4058 = vmul.f32 %v3917, 0.5
        %v4059 = vmul.f32 %v3966, 0.5
        %v4060 = vmul.f32 %v4015, 0.5
        %v4061 = vmul.f32 %v3870, 0.5
        %v4062 = vmul.f32 %v3919, 0.5
        %v4063 = vmul.f32 %v3968, 0.5
        %v4064 = vmul.f32 %v4017, 0.5
        %v4065 = vmul.f32 %v3873, 0.5
        %v4066 = vmul.f32 %v3922, 0.5
        %v4067 = vmul.f32 %v3971, 0.5
        %v4068 = vmul.f32 %v4020, 0.5
        %v4069 = vmul.f32 %v3875, 0.5
        %v4070 = vmul.f32 %v3924, 0.5
        %v4071 = vmul.f32 %v3973, 0.5
        %v4072 = vmul.f32 %v4022, 0.5
        %v4073 = vmul.f32 %v3878, 0.5
        %v4074 = vmul.f32 %v3927, 0.5
        %v4075 = vmul.f32 %v3976, 0.5
        %v4076 = vmul.f32 %v4025, 0.5
        %v4077 = vmul.f32 %v3880, 0.5
        %v4078 = vmul.f32 %v3929, 0.5
        %v4079 = vmul.f32 %v3978, 0.5
        %v4080 = vmul.f32 %v4027, 0.5
        %v4081 = vmul.f32 %v3883, 0.5
        %v4082 = vmul.f32 %v3932, 0.5
        %v4083 = vmul.f32 %v3981, 0.5
        %v4084 = vmul.f32 %v4030, 0.5
        %v4085 = vmul.f32 %v3885, 0.5
        %v4086 = vmul.f32 %v3934, 0.5
        %v4087 = vmul.f32 %v3983, 0.5
        %v4088 = vmul.f32 %v4032, 0.5
        %v4089 = vmul.f32 %v3888, 0.5
        %v4090 = vmul.f32 %v3937, 0.5
        %v4091 = vmul.f32 %v3986, 0.5
        %v4092 = vmul.f32 %v4035, 0.5
        %v4093 = vmul.f32 %v3890, 0.5
        %v4094 = vmul.f32 %v3939, 0.5
        %v4095 = vmul.f32 %v3988, 0.5
        %v4096 = vmul.f32 %v4037, 0.5
        %v4097 = vmul.f32 %v3893, 0.5
        %v4098 = vmul.f32 %v3942, 0.5
        %v4099 = vmul.f32 %v3991, 0.5
        %v4100 = vmul.f32 %v4040, 0.5
        %v4101 = vmul.f32 %v3895, 0.5
        %v4102 = vmul.f32 %v3944, 0.5
        %v4103 = vmul.f32 %v3993, 0.5
        %v4104 = vmul.f32 %v4042, 0.5
        %v4105 = vmul.f32 %v3898, 0.5
        %v4106 = vmul.f32 %v3947, 0.5
        %v4107 = vmul.f32 %v3996, 0.5
        %v4108 = vmul.f32 %v4045, 0.5
        %v4109 = vmul.f32 %v3900, 0.5
        %v4110 = vmul.f32 %v3949, 0.5
        %v4111 = vmul.f32 %v3998, 0.5
        %v4112 = vmul.f32 %v4047, 0.5
        %v4113 = vmul.f32 %v3863, %v3863
        %v4114 = vmul.f32 %v3912, %v3912
        %v4115 = vmul.f32 %v3961, %v3961
        %v4116 = vmul.f32 %v4010, %v4010
        %v4117 = vmul.f32 %v3865, %v3865
        %v4118 = vmul.f32 %v3914, %v3914
        %v4119 = vmul.f32 %v3963, %v3963
        %v4120 = vmul.f32 %v4012, %v4012
        %v4121 = vmul.f32 %v3868, %v3868
        %v4122 = vmul.f32 %v3917, %v3917
        %v4123 = vmul.f32 %v3966, %v3966
        %v4124 = vmul.f32 %v4015, %v4015
        %v4125 = vmul.f32 %v3870, %v3870
        %v4126 = vmul.f32 %v3919, %v3919
        %v4127 = vmul.f32 %v3968, %v3968
        %v4128 = vmul.f32 %v4017, %v4017
        %v4129 = vmul.f32 %v3873, %v3873
        %v4130 = vmul.f32 %v3922, %v3922
        %v4131 = vmul.f32 %v3971, %v3971
        %v4132 = vmul.f32 %v4020, %v4020
        %v4133 = vmul.f32 %v3875, %v3875
        %v4134 = vmul.f32 %v3924, %v3924
        %v4135 = vmul.f32 %v3973, %v3973
        %v4136 = vmul.f32 %v4022, %v4022
        %v4137 = vmul.f32 %v3878, %v3878
        %v4138 = vmul.f32 %v3927, %v3927
        %v4139 = vmul.f32 %v3976, %v3976
        %v4140 = vmul.f32 %v4025, %v4025
        %v4141 = vmul.f32 %v3880, %v3880
        %v4142 = vmul.f32 %v3929, %v3929
        %v4143 = vmul.f32 %v3978, %v3978
        %v4144 = vmul.f32 %v4027, %v4027
        %v4145 = vmul.f32 %v3883, %v3883
        %v4146 = vmul.f32 %v3932, %v3932
        %v4147 = vmul.f32 %v3981, %v3981
        %v4148 = vmul.f32 %v4030, %v4030
        %v4149 = vmul.f32 %v3885, %v3885
        %v4150 = vmul.f32 %v3934, %v3934
        %v4151 = vmul.f32 %v3983, %v3983
        %v4152 = vmul.f32 %v4032, %v4032
        %v4153 = vmul.f32 %v3888, %v3888
        %v4154 = vmul.f32 %v3937, %v3937
        %v4155 = vmul.f32 %v3986, %v3986
        %v4156 = vmul.f32 %v4035, %v4035
        %v4157 = vmul.f32 %v3890, %v3890
        %v4158 = vmul.f32 %v3939, %v3939
        %v4159 = vmul.f32 %v3988, %v3988
        %v4160 = vmul.f32 %v4037, %v4037
        %v4161 = vmul.f32 %v3893, %v3893
        %v4162 = vmul.f32 %v3942, %v3942
        %v4163 = vmul.f32 %v3991, %v3991
        %v4164 = vmul.f32 %v4040, %v4040
        %v4165 = vmul.f32 %v3895, %v3895
        %v4166 = vmul.f32 %v3944, %v3944
        %v4167 = vmul.f32 %v3993, %v3993
        %v4168 = vmul.f32 %v4042, %v4042
        %v4169 = vmul.f32 %v3898, %v3898
        %v4170 = vmul.f32 %v3947, %v3947
        %v4171 = vmul.f32 %v3996, %v3996
        %v4172 = vmul.f32 %v4045, %v4045
        %v4173 = vmul.f32 %v3900, %v3900
        %v4174 = vmul.f32 %v3949, %v3949
        %v4175 = vmul.f32 %v3998, %v3998
        %v4176 = vmul.f32 %v4047, %v4047
        %v4177 = vmul.f32 %v4113, %v3863
        %v4178 = vmul.f32 %v4114, %v3912
        %v4179 = vmul.f32 %v4115, %v3961
        %v4180 = vmul.f32 %v4116, %v4010
        %v4181 = vmul.f32 %v4117, %v3865
        %v4182 = vmul.f32 %v4118, %v3914
        %v4183 = vmul.f32 %v4119, %v3963
        %v4184 = vmul.f32 %v4120, %v4012
        %v4185 = vmul.f32 %v4121, %v3868
        %v4186 = vmul.f32 %v4122, %v3917
        %v4187 = vmul.f32 %v4123, %v3966
        %v4188 = vmul.f32 %v4124, %v4015
        %v4189 = vmul.f32 %v4125, %v3870
        %v4190 = vmul.f32 %v4126, %v3919
        %v4191 = vmul.f32 %v4127, %v3968
        %v4192 = vmul.f32 %v4128, %v4017
        %v4193 = vmul.f32 %v4129, %v3873
        %v4194 = vmul.f32 %v4130, %v3922
        %v4195 = vmul.f32 %v4131, %v3971
        %v4196 = vmul.f32 %v4132, %v4020
        %v4197 = vmul.f32 %v4133, %v3875
        %v4198 = vmul.f32 %v4134, %v3924
        %v4199 = vmul.f32 %v4135, %v3973
        %v4200 = vmul.f32 %v4136, %v4022
        %v4201 = vmul.f32 %v4137, %v3878
        %v4202 = vmul.f32 %v4138, %v3927
        %v4203 = vmul.f32 %v4139, %v3976
        %v4204 = vmul.f32 %v4140, %v4025
        %v4205 = vmul.f32 %v4141, %v3880
        %v4206 = vmul.f32 %v4142, %v3929
        %v4207 = vmul.f32 %v4143, %v3978
        %v4208 = vmul.f32 %v4144, %v4027
        %v4209 = vmul.f32 %v4145, %v3883
        %v4210 = vmul.f32 %v4146, %v3932
        %v4211 = vmul.f32 %v4147, %v3981
        %v4212 = vmul.f32 %v4148, %v4030
        %v4213 = vmul.f32 %v4149, %v3885
        %v4214 = vmul.f32 %v4150, %v3934
        %v4215 = vmul.f32 %v4151, %v3983
        %v4216 = vmul.f32 %v4152, %v4032
        %v4217 = vmul.f32 %v4153, %v3888
        %v4218 = vmul.f32 %v4154, %v3937
        %v4219 = vmul.f32 %v4155, %v3986
        %v4220 = vmul.f32 %v4156, %v4035
        %v4221 = vmul.f32 %v4157, %v3890
        %v4222 = vmul.f32 %v4158, %v3939
        %v4223 = vmul.f32 %v4159, %v3988
        %v4224 = vmul.f32 %v4160, %v4037
        %v4225 = vmul.f32 %v4161, %v3893
        %v4226 = vmul.f32 %v4162, %v3942
        %v4227 = vmul.f32 %v4163, %v3991
        %v4228 = vmul.f32 %v4164, %v4040
        %v4229 = vmul.f32 %v4165, %v3895
        %v4230 = vmul.f32 %v4166, %v3944
        %v4231 = vmul.f32 %v4167, %v3993
        %v4232 = vmul.f32 %v4168, %v4042
        %v4233 = vmul.f32 %v4169, %v3898
        %v4234 = vmul.f32 %v4170, %v3947
        %v4235 = vmul.f32 %v4171, %v3996
        %v4236 = vmul.f32 %v4172, %v4045
        %v4237 = vmul.f32 %v4173, %v3900
        %v4238 = vmul.f32 %v4174, %v3949
        %v4239 = vmul.f32 %v4175, %v3998
        %v4240 = vmul.f32 %v4176, %v4047
        %v4241 = vmul.f32 %v4177, 0.044715
        %v4242 = vmul.f32 %v4178, 0.044715
        %v4243 = vmul.f32 %v4179, 0.044715
        %v4244 = vmul.f32 %v4180, 0.044715
        %v4245 = vmul.f32 %v4181, 0.044715
        %v4246 = vmul.f32 %v4182, 0.044715
        %v4247 = vmul.f32 %v4183, 0.044715
        %v4248 = vmul.f32 %v4184, 0.044715
        %v4249 = vmul.f32 %v4185, 0.044715
        %v4250 = vmul.f32 %v4186, 0.044715
        %v4251 = vmul.f32 %v4187, 0.044715
        %v4252 = vmul.f32 %v4188, 0.044715
        %v4253 = vmul.f32 %v4189, 0.044715
        %v4254 = vmul.f32 %v4190, 0.044715
        %v4255 = vmul.f32 %v4191, 0.044715
        %v4256 = vmul.f32 %v4192, 0.044715
        %v4257 = vmul.f32 %v4193, 0.044715
        %v4258 = vmul.f32 %v4194, 0.044715
        %v4259 = vmul.f32 %v4195, 0.044715
        %v4260 = vmul.f32 %v4196, 0.044715
        %v4261 = vmul.f32 %v4197, 0.044715
        %v4262 = vmul.f32 %v4198, 0.044715
        %v4263 = vmul.f32 %v4199, 0.044715
        %v4264 = vmul.f32 %v4200, 0.044715
        %v4265 = vmul.f32 %v4201, 0.044715
        %v4266 = vmul.f32 %v4202, 0.044715
        %v4267 = vmul.f32 %v4203, 0.044715
        %v4268 = vmul.f32 %v4204, 0.044715
        %v4269 = vmul.f32 %v4205, 0.044715
        %v4270 = vmul.f32 %v4206, 0.044715
        %v4271 = vmul.f32 %v4207, 0.044715
        %v4272 = vmul.f32 %v4208, 0.044715
        %v4273 = vmul.f32 %v4209, 0.044715
        %v4274 = vmul.f32 %v4210, 0.044715
        %v4275 = vmul.f32 %v4211, 0.044715
        %v4276 = vmul.f32 %v4212, 0.044715
        %v4277 = vmul.f32 %v4213, 0.044715
        %v4278 = vmul.f32 %v4214, 0.044715
        %v4279 = vmul.f32 %v4215, 0.044715
        %v4280 = vmul.f32 %v4216, 0.044715
        %v4281 = vmul.f32 %v4217, 0.044715
        %v4282 = vmul.f32 %v4218, 0.044715
        %v4283 = vmul.f32 %v4219, 0.044715
        %v4284 = vmul.f32 %v4220, 0.044715
        %v4285 = vmul.f32 %v4221, 0.044715
        %v4286 = vmul.f32 %v4222, 0.044715
        %v4287 = vmul.f32 %v4223, 0.044715
        %v4288 = vmul.f32 %v4224, 0.044715
        %v4289 = vmul.f32 %v4225, 0.044715
        %v4290 = vmul.f32 %v4226, 0.044715
        %v4291 = vmul.f32 %v4227, 0.044715
        %v4292 = vmul.f32 %v4228, 0.044715
        %v4293 = vmul.f32 %v4229, 0.044715
        %v4294 = vmul.f32 %v4230, 0.044715
        %v4295 = vmul.f32 %v4231, 0.044715
        %v4296 = vmul.f32 %v4232, 0.044715
        %v4297 = vmul.f32 %v4233, 0.044715
        %v4298 = vmul.f32 %v4234, 0.044715
        %v4299 = vmul.f32 %v4235, 0.044715
        %v4300 = vmul.f32 %v4236, 0.044715
        %v4301 = vmul.f32 %v4237, 0.044715
        %v4302 = vmul.f32 %v4238, 0.044715
        %v4303 = vmul.f32 %v4239, 0.044715
        %v4304 = vmul.f32 %v4240, 0.044715
        %v4305 = vadd.f32 %v3863, %v4241
        %v4306 = vadd.f32 %v3912, %v4242
        %v4307 = vadd.f32 %v3961, %v4243
        %v4308 = vadd.f32 %v4010, %v4244
        %v4309 = vadd.f32 %v3865, %v4245
        %v4310 = vadd.f32 %v3914, %v4246
        %v4311 = vadd.f32 %v3963, %v4247
        %v4312 = vadd.f32 %v4012, %v4248
        %v4313 = vadd.f32 %v3868, %v4249
        %v4314 = vadd.f32 %v3917, %v4250
        %v4315 = vadd.f32 %v3966, %v4251
        %v4316 = vadd.f32 %v4015, %v4252
        %v4317 = vadd.f32 %v3870, %v4253
        %v4318 = vadd.f32 %v3919, %v4254
        %v4319 = vadd.f32 %v3968, %v4255
        %v4320 = vadd.f32 %v4017, %v4256
        %v4321 = vadd.f32 %v3873, %v4257
        %v4322 = vadd.f32 %v3922, %v4258
        %v4323 = vadd.f32 %v3971, %v4259
        %v4324 = vadd.f32 %v4020, %v4260
        %v4325 = vadd.f32 %v3875, %v4261
        %v4326 = vadd.f32 %v3924, %v4262
        %v4327 = vadd.f32 %v3973, %v4263
        %v4328 = vadd.f32 %v4022, %v4264
        %v4329 = vadd.f32 %v3878, %v4265
        %v4330 = vadd.f32 %v3927, %v4266
        %v4331 = vadd.f32 %v3976, %v4267
        %v4332 = vadd.f32 %v4025, %v4268
        %v4333 = vadd.f32 %v3880, %v4269
        %v4334 = vadd.f32 %v3929, %v4270
        %v4335 = vadd.f32 %v3978, %v4271
        %v4336 = vadd.f32 %v4027, %v4272
        %v4337 = vadd.f32 %v3883, %v4273
        %v4338 = vadd.f32 %v3932, %v4274
        %v4339 = vadd.f32 %v3981, %v4275
        %v4340 = vadd.f32 %v4030, %v4276
        %v4341 = vadd.f32 %v3885, %v4277
        %v4342 = vadd.f32 %v3934, %v4278
        %v4343 = vadd.f32 %v3983, %v4279
        %v4344 = vadd.f32 %v4032, %v4280
        %v4345 = vadd.f32 %v3888, %v4281
        %v4346 = vadd.f32 %v3937, %v4282
        %v4347 = vadd.f32 %v3986, %v4283
        %v4348 = vadd.f32 %v4035, %v4284
        %v4349 = vadd.f32 %v3890, %v4285
        %v4350 = vadd.f32 %v3939, %v4286
        %v4351 = vadd.f32 %v3988, %v4287
        %v4352 = vadd.f32 %v4037, %v4288
        %v4353 = vadd.f32 %v3893, %v4289
        %v4354 = vadd.f32 %v3942, %v4290
        %v4355 = vadd.f32 %v3991, %v4291
        %v4356 = vadd.f32 %v4040, %v4292
        %v4357 = vadd.f32 %v3895, %v4293
        %v4358 = vadd.f32 %v3944, %v4294
        %v4359 = vadd.f32 %v3993, %v4295
        %v4360 = vadd.f32 %v4042, %v4296
        %v4361 = vadd.f32 %v3898, %v4297
        %v4362 = vadd.f32 %v3947, %v4298
        %v4363 = vadd.f32 %v3996, %v4299
        %v4364 = vadd.f32 %v4045, %v4300
        %v4365 = vadd.f32 %v3900, %v4301
        %v4366 = vadd.f32 %v3949, %v4302
        %v4367 = vadd.f32 %v3998, %v4303
        %v4368 = vadd.f32 %v4047, %v4304
        %v4369 = vmul.f32 %v4305, 0.7978846
        %v4370 = vmul.f32 %v4306, 0.7978846
        %v4371 = vmul.f32 %v4307, 0.7978846
        %v4372 = vmul.f32 %v4308, 0.7978846
        %v4373 = vmul.f32 %v4309, 0.7978846
        %v4374 = vmul.f32 %v4310, 0.7978846
        %v4375 = vmul.f32 %v4311, 0.7978846
        %v4376 = vmul.f32 %v4312, 0.7978846
        %v4377 = vmul.f32 %v4313, 0.7978846
        %v4378 = vmul.f32 %v4314, 0.7978846
        %v4379 = vmul.f32 %v4315, 0.7978846
        %v4380 = vmul.f32 %v4316, 0.7978846
        %v4381 = vmul.f32 %v4317, 0.7978846
        %v4382 = vmul.f32 %v4318, 0.7978846
        %v4383 = vmul.f32 %v4319, 0.7978846
        %v4384 = vmul.f32 %v4320, 0.7978846
        %v4385 = vmul.f32 %v4321, 0.7978846
        %v4386 = vmul.f32 %v4322, 0.7978846
        %v4387 = vmul.f32 %v4323, 0.7978846
        %v4388 = vmul.f32 %v4324, 0.7978846
        %v4389 = vmul.f32 %v4325, 0.7978846
        %v4390 = vmul.f32 %v4326, 0.7978846
        %v4391 = vmul.f32 %v4327, 0.7978846
        %v4392 = vmul.f32 %v4328, 0.7978846
        %v4393 = vmul.f32 %v4329, 0.7978846
        %v4394 = vmul.f32 %v4330, 0.7978846
        %v4395 = vmul.f32 %v4331, 0.7978846
        %v4396 = vmul.f32 %v4332, 0.7978846
        %v4397 = vmul.f32 %v4333, 0.7978846
        %v4398 = vmul.f32 %v4334, 0.7978846
        %v4399 = vmul.f32 %v4335, 0.7978846
        %v4400 = vmul.f32 %v4336, 0.7978846
        %v4401 = vmul.f32 %v4337, 0.7978846
        %v4402 = vmul.f32 %v4338, 0.7978846
        %v4403 = vmul.f32 %v4339, 0.7978846
        %v4404 = vmul.f32 %v4340, 0.7978846
        %v4405 = vmul.f32 %v4341, 0.7978846
        %v4406 = vmul.f32 %v4342, 0.7978846
        %v4407 = vmul.f32 %v4343, 0.7978846
        %v4408 = vmul.f32 %v4344, 0.7978846
        %v4409 = vmul.f32 %v4345, 0.7978846
        %v4410 = vmul.f32 %v4346, 0.7978846
        %v4411 = vmul.f32 %v4347, 0.7978846
        %v4412 = vmul.f32 %v4348, 0.7978846
        %v4413 = vmul.f32 %v4349, 0.7978846
        %v4414 = vmul.f32 %v4350, 0.7978846
        %v4415 = vmul.f32 %v4351, 0.7978846
        %v4416 = vmul.f32 %v4352, 0.7978846
        %v4417 = vmul.f32 %v4353, 0.7978846
        %v4418 = vmul.f32 %v4354, 0.7978846
        %v4419 = vmul.f32 %v4355, 0.7978846
        %v4420 = vmul.f32 %v4356, 0.7978846
        %v4421 = vmul.f32 %v4357, 0.7978846
        %v4422 = vmul.f32 %v4358, 0.7978846
        %v4423 = vmul.f32 %v4359, 0.7978846
        %v4424 = vmul.f32 %v4360, 0.7978846
        %v4425 = vmul.f32 %v4361, 0.7978846
        %v4426 = vmul.f32 %v4362, 0.7978846
        %v4427 = vmul.f32 %v4363, 0.7978846
        %v4428 = vmul.f32 %v4364, 0.7978846
        %v4429 = vmul.f32 %v4365, 0.7978846
        %v4430 = vmul.f32 %v4366, 0.7978846
        %v4431 = vmul.f32 %v4367, 0.7978846
        %v4432 = vmul.f32 %v4368, 0.7978846
        %v4433 = vtanh.pop %v4369
        %v4434 = vtanh.pop %v4370
        %v4435 = vtanh.pop %v4371
        %v4436 = vtanh.pop %v4372
        %v4437 = vtanh.pop %v4373
        %v4438 = vtanh.pop %v4374
        %v4439 = vtanh.pop %v4375
        %v4440 = vtanh.pop %v4376
        %v4441 = vtanh.pop %v4377
        %v4442 = vtanh.pop %v4378
        %v4443 = vtanh.pop %v4379
        %v4444 = vtanh.pop %v4380
        %v4445 = vtanh.pop %v4381
        %v4446 = vtanh.pop %v4382
        %v4447 = vtanh.pop %v4383
        %v4448 = vtanh.pop %v4384
        %v4449 = vtanh.pop %v4385
        %v4450 = vtanh.pop %v4386
        %v4451 = vtanh.pop %v4387
        %v4452 = vtanh.pop %v4388
        %v4453 = vtanh.pop %v4389
        %v4454 = vtanh.pop %v4390
        %v4455 = vtanh.pop %v4391
        %v4456 = vtanh.pop %v4392
        %v4457 = vtanh.pop %v4393
        %v4458 = vtanh.pop %v4394
        %v4459 = vtanh.pop %v4395
        %v4460 = vtanh.pop %v4396
        %v4461 = vtanh.pop %v4397
        %v4462 = vtanh.pop %v4398
        %v4463 = vtanh.pop %v4399
        %v4464 = vtanh.pop %v4400
        %v4465 = vtanh.pop %v4401
        %v4466 = vtanh.pop %v4402
        %v4467 = vtanh.pop %v4403
        %v4468 = vtanh.pop %v4404
        %v4469 = vtanh.pop %v4405
        %v4470 = vtanh.pop %v4406
        %v4471 = vtanh.pop %v4407
        %v4472 = vtanh.pop %v4408
        %v4473 = vtanh.pop %v4409
        %v4474 = vtanh.pop %v4410
        %v4475 = vtanh.pop %v4411
        %v4476 = vtanh.pop %v4412
        %v4477 = vtanh.pop %v4413
        %v4478 = vtanh.pop %v4414
        %v4479 = vtanh.pop %v4415
        %v4480 = vtanh.pop %v4416
        %v4481 = vtanh.pop %v4417
        %v4482 = vtanh.pop %v4418
        %v4483 = vtanh.pop %v4419
        %v4484 = vtanh.pop %v4420
        %v4485 = vtanh.pop %v4421
        %v4486 = vtanh.pop %v4422
        %v4487 = vtanh.pop %v4423
        %v4488 = vtanh.pop %v4424
        %v4489 = vtanh.pop %v4425
        %v4490 = vtanh.pop %v4426
        %v4491 = vtanh.pop %v4427
        %v4492 = vtanh.pop %v4428
        %v4493 = vtanh.pop %v4429
        %v4494 = vtanh.pop %v4430
        %v4495 = vtanh.pop %v4431
        %v4496 = vtanh.pop %v4432
        %v4497 = vadd.f32 %v4433, 1.0
        %v4498 = vadd.f32 %v4434, 1.0
        %v4499 = vadd.f32 %v4435, 1.0
        %v4500 = vadd.f32 %v4436, 1.0
        %v4501 = vadd.f32 %v4437, 1.0
        %v4502 = vadd.f32 %v4438, 1.0
        %v4503 = vadd.f32 %v4439, 1.0
        %v4504 = vadd.f32 %v4440, 1.0
        %v4505 = vadd.f32 %v4441, 1.0
        %v4506 = vadd.f32 %v4442, 1.0
        %v4507 = vadd.f32 %v4443, 1.0
        %v4508 = vadd.f32 %v4444, 1.0
        %v4509 = vadd.f32 %v4445, 1.0
        %v4510 = vadd.f32 %v4446, 1.0
        %v4511 = vadd.f32 %v4447, 1.0
        %v4512 = vadd.f32 %v4448, 1.0
        %v4513 = vadd.f32 %v4449, 1.0
        %v4514 = vadd.f32 %v4450, 1.0
        %v4515 = vadd.f32 %v4451, 1.0
        %v4516 = vadd.f32 %v4452, 1.0
        %v4517 = vadd.f32 %v4453, 1.0
        %v4518 = vadd.f32 %v4454, 1.0
        %v4519 = vadd.f32 %v4455, 1.0
        %v4520 = vadd.f32 %v4456, 1.0
        %v4521 = vadd.f32 %v4457, 1.0
        %v4522 = vadd.f32 %v4458, 1.0
        %v4523 = vadd.f32 %v4459, 1.0
        %v4524 = vadd.f32 %v4460, 1.0
        %v4525 = vadd.f32 %v4461, 1.0
        %v4526 = vadd.f32 %v4462, 1.0
        %v4527 = vadd.f32 %v4463, 1.0
        %v4528 = vadd.f32 %v4464, 1.0
        %v4529 = vadd.f32 %v4465, 1.0
        %v4530 = vadd.f32 %v4466, 1.0
        %v4531 = vadd.f32 %v4467, 1.0
        %v4532 = vadd.f32 %v4468, 1.0
        %v4533 = vadd.f32 %v4469, 1.0
        %v4534 = vadd.f32 %v4470, 1.0
        %v4535 = vadd.f32 %v4471, 1.0
        %v4536 = vadd.f32 %v4472, 1.0
        %v4537 = vadd.f32 %v4473, 1.0
        %v4538 = vadd.f32 %v4474, 1.0
        %v4539 = vadd.f32 %v4475, 1.0
        %v4540 = vadd.f32 %v4476, 1.0
        %v4541 = vadd.f32 %v4477, 1.0
        %v4542 = vadd.f32 %v4478, 1.0
        %v4543 = vadd.f32 %v4479, 1.0
        %v4544 = vadd.f32 %v4480, 1.0
        %v4545 = vadd.f32 %v4481, 1.0
        %v4546 = vadd.f32 %v4482, 1.0
        %v4547 = vadd.f32 %v4483, 1.0
        %v4548 = vadd.f32 %v4484, 1.0
        %v4549 = vadd.f32 %v4485, 1.0
        %v4550 = vadd.f32 %v4486, 1.0
        %v4551 = vadd.f32 %v4487, 1.0
        %v4552 = vadd.f32 %v4488, 1.0
        %v4553 = vadd.f32 %v4489, 1.0
        %v4554 = vadd.f32 %v4490, 1.0
        %v4555 = vadd.f32 %v4491, 1.0
        %v4556 = vadd.f32 %v4492, 1.0
        %v4557 = vadd.f32 %v4493, 1.0
        %v4558 = vadd.f32 %v4494, 1.0
        %v4559 = vadd.f32 %v4495, 1.0
        %v4560 = vadd.f32 %v4496, 1.0
        %v4561 = vmul.f32 %v4049, %v4497
        %v4562 = vmul.f32 %v4050, %v4498
        %v4563 = vmul.f32 %v4051, %v4499
        %v4564 = vmul.f32 %v4052, %v4500
        %v4565 = vmul.f32 %v4053, %v4501
        %v4566 = vmul.f32 %v4054, %v4502
        %v4567 = vmul.f32 %v4055, %v4503
        %v4568 = vmul.f32 %v4056, %v4504
        %v4569 = vmul.f32 %v4057, %v4505
        %v4570 = vmul.f32 %v4058, %v4506
        %v4571 = vmul.f32 %v4059, %v4507
        %v4572 = vmul.f32 %v4060, %v4508
        %v4573 = vmul.f32 %v4061, %v4509
        %v4574 = vmul.f32 %v4062, %v4510
        %v4575 = vmul.f32 %v4063, %v4511
        %v4576 = vmul.f32 %v4064, %v4512
        %v4577 = vmul.f32 %v4065, %v4513
        %v4578 = vmul.f32 %v4066, %v4514
        %v4579 = vmul.f32 %v4067, %v4515
        %v4580 = vmul.f32 %v4068, %v4516
        %v4581 = vmul.f32 %v4069, %v4517
        %v4582 = vmul.f32 %v4070, %v4518
        %v4583 = vmul.f32 %v4071, %v4519
        %v4584 = vmul.f32 %v4072, %v4520
        %v4585 = vmul.f32 %v4073, %v4521
        %v4586 = vmul.f32 %v4074, %v4522
        %v4587 = vmul.f32 %v4075, %v4523
        %v4588 = vmul.f32 %v4076, %v4524
        %v4589 = vmul.f32 %v4077, %v4525
        %v4590 = vmul.f32 %v4078, %v4526
        %v4591 = vmul.f32 %v4079, %v4527
        %v4592 = vmul.f32 %v4080, %v4528
        %v4593 = vmul.f32 %v4081, %v4529
        %v4594 = vmul.f32 %v4082, %v4530
        %v4595 = vmul.f32 %v4083, %v4531
        %v4596 = vmul.f32 %v4084, %v4532
        %v4597 = vmul.f32 %v4085, %v4533
        %v4598 = vmul.f32 %v4086, %v4534
        %v4599 = vmul.f32 %v4087, %v4535
        %v4600 = vmul.f32 %v4088, %v4536
        %v4601 = vmul.f32 %v4089, %v4537
        %v4602 = vmul.f32 %v4090, %v4538
        %v4603 = vmul.f32 %v4091, %v4539
        %v4604 = vmul.f32 %v4092, %v4540
        %v4605 = vmul.f32 %v4093, %v4541
        %v4606 = vmul.f32 %v4094, %v4542
        %v4607 = vmul.f32 %v4095, %v4543
        %v4608 = vmul.f32 %v4096, %v4544
        %v4609 = vmul.f32 %v4097, %v4545
        %v4610 = vmul.f32 %v4098, %v4546
        %v4611 = vmul.f32 %v4099, %v4547
        %v4612 = vmul.f32 %v4100, %v4548
        %v4613 = vmul.f32 %v4101, %v4549
        %v4614 = vmul.f32 %v4102, %v4550
        %v4615 = vmul.f32 %v4103, %v4551
        %v4616 = vmul.f32 %v4104, %v4552
        %v4617 = vmul.f32 %v4105, %v4553
        %v4618 = vmul.f32 %v4106, %v4554
        %v4619 = vmul.f32 %v4107, %v4555
        %v4620 = vmul.f32 %v4108, %v4556
        %v4621 = vmul.f32 %v4109, %v4557
        %v4622 = vmul.f32 %v4110, %v4558
        %v4623 = vmul.f32 %v4111, %v4559
        %v4624 = vmul.f32 %v4112, %v4560
        %v4625 = vpack.c.bf16 %v4565, %v4561
        %v4626 = vpack.c.bf16 %v4566, %v4562
        %v4627 = vpack.c.bf16 %v4567, %v4563
        %v4628 = vpack.c.bf16 %v4568, %v4564
        %v4629 = vpack.c.bf16 %v4573, %v4569
        %v4630 = vpack.c.bf16 %v4574, %v4570
        %v4631 = vpack.c.bf16 %v4575, %v4571
        %v4632 = vpack.c.bf16 %v4576, %v4572
        %v4633 = vpack.c.bf16 %v4581, %v4577
        %v4634 = vpack.c.bf16 %v4582, %v4578
        %v4635 = vpack.c.bf16 %v4583, %v4579
        %v4636 = vpack.c.bf16 %v4584, %v4580
        %v4637 = vpack.c.bf16 %v4589, %v4585
        %v4638 = vpack.c.bf16 %v4590, %v4586
        %v4639 = vpack.c.bf16 %v4591, %v4587
        %v4640 = vpack.c.bf16 %v4592, %v4588
        %v4641 = vpack.c.bf16 %v4597, %v4593
        %v4642 = vpack.c.bf16 %v4598, %v4594
        %v4643 = vpack.c.bf16 %v4599, %v4595
        %v4644 = vpack.c.bf16 %v4600, %v4596
        %v4645 = vpack.c.bf16 %v4605, %v4601
        %v4646 = vpack.c.bf16 %v4606, %v4602
        %v4647 = vpack.c.bf16 %v4607, %v4603
        %v4648 = vpack.c.bf16 %v4608, %v4604
        %v4649 = vpack.c.bf16 %v4613, %v4609
        %v4650 = vpack.c.bf16 %v4614, %v4610
        %v4651 = vpack.c.bf16 %v4615, %v4611
        %v4652 = vpack.c.bf16 %v4616, %v4612
        %v4653 = vpack.c.bf16 %v4621, %v4617
        %v4654 = vpack.c.bf16 %v4622, %v4618
        %v4655 = vpack.c.bf16 %v4623, %v4619
        %v4656 = vpack.c.bf16 %v4624, %v4620
        %v4657 = vld [vmem:[#allocation10] sm:$0xf]
        %v4658 = vld [vmem:[#allocation10 + $0x4] sm:$0xf]
        %v4659 = vld [vmem:[#allocation10 + $0x8] sm:$0xf]
        %v4660 = vld [vmem:[#allocation10 + $0xc] sm:$0xf]
        %v4661 = vld [vmem:[#allocation10 + $0x10] sm:$0xf]
        %v4662 = vld [vmem:[#allocation10 + $0x14] sm:$0xf]
        %v4663 = vld [vmem:[#allocation10 + $0x18] sm:$0xf]
        %v4664 = vld [vmem:[#allocation10 + $0x1c] sm:$0xf]
        %v4665 = vld [vmem:[#allocation10 + $0x20] sm:$0xf]
        %v4666 = vld [vmem:[#allocation10 + $0x24] sm:$0xf]
        %v4667 = vld [vmem:[#allocation10 + $0x28] sm:$0xf]
        %v4668 = vld [vmem:[#allocation10 + $0x2c] sm:$0xf]
        %v4669 = vld [vmem:[#allocation10 + $0x30] sm:$0xf]
        %v4670 = vld [vmem:[#allocation10 + $0x34] sm:$0xf]
        %v4671 = vld [vmem:[#allocation10 + $0x38] sm:$0xf]
        %v4672 = vld [vmem:[#allocation10 + $0x3c] sm:$0xf]
        %v4673 = vld [vmem:[#allocation10 + $0x40] sm:$0xf]
        %v4674 = vld [vmem:[#allocation10 + $0x44] sm:$0xf]
        %v4675 = vld [vmem:[#allocation10 + $0x48] sm:$0xf]
        %v4676 = vld [vmem:[#allocation10 + $0x4c] sm:$0xf]
        %v4677 = vld [vmem:[#allocation10 + $0x50] sm:$0xf]
        %v4678 = vld [vmem:[#allocation10 + $0x54] sm:$0xf]
        %v4679 = vld [vmem:[#allocation10 + $0x58] sm:$0xf]
        %v4680 = vld [vmem:[#allocation10 + $0x5c] sm:$0xf]
        %v4681 = vld [vmem:[#allocation10 + $0x60] sm:$0xf]
        %v4682 = vld [vmem:[#allocation10 + $0x64] sm:$0xf]
        %v4683 = vld [vmem:[#allocation10 + $0x68] sm:$0xf]
        %v4684 = vld [vmem:[#allocation10 + $0x6c] sm:$0xf]
        %v4685 = vld [vmem:[#allocation10 + $0x70] sm:$0xf]
        %v4686 = vld [vmem:[#allocation10 + $0x74] sm:$0xf]
        %v4687 = vld [vmem:[#allocation10 + $0x78] sm:$0xf]
        %v4688 = vld [vmem:[#allocation10 + $0x7c] sm:$0xf]
        %v4689 = vld [vmem:[#allocation10 + $0x80] sm:$0xf]
        %v4690 = vld [vmem:[#allocation10 + $0x84] sm:$0xf]
        %v4691 = vld [vmem:[#allocation10 + $0x88] sm:$0xf]
        %v4692 = vld [vmem:[#allocation10 + $0x8c] sm:$0xf]
        %v4693 = vld [vmem:[#allocation10 + $0x90] sm:$0xf]
        %v4694 = vld [vmem:[#allocation10 + $0x94] sm:$0xf]
        %v4695 = vld [vmem:[#allocation10 + $0x98] sm:$0xf]
        %v4696 = vld [vmem:[#allocation10 + $0x9c] sm:$0xf]
        %v4697 = vld [vmem:[#allocation10 + $0xa0] sm:$0xf]
        %v4698 = vld [vmem:[#allocation10 + $0xa4] sm:$0xf]
        %v4699 = vld [vmem:[#allocation10 + $0xa8] sm:$0xf]
        %v4700 = vld [vmem:[#allocation10 + $0xac] sm:$0xf]
        %v4701 = vld [vmem:[#allocation10 + $0xb0] sm:$0xf]
        %v4702 = vld [vmem:[#allocation10 + $0xb4] sm:$0xf]
        %v4703 = vld [vmem:[#allocation10 + $0xb8] sm:$0xf]
        %v4704 = vld [vmem:[#allocation10 + $0xbc] sm:$0xf]
        %v4705 = vld [vmem:[#allocation10 + $0xc0] sm:$0xf]
        %v4706 = vld [vmem:[#allocation10 + $0xc4] sm:$0xf]
        %v4707 = vld [vmem:[#allocation10 + $0xc8] sm:$0xf]
        %v4708 = vld [vmem:[#allocation10 + $0xcc] sm:$0xf]
        %v4709 = vld [vmem:[#allocation10 + $0xd0] sm:$0xf]
        %v4710 = vld [vmem:[#allocation10 + $0xd4] sm:$0xf]
        %v4711 = vld [vmem:[#allocation10 + $0xd8] sm:$0xf]
        %v4712 = vld [vmem:[#allocation10 + $0xdc] sm:$0xf]
        %v4713 = vld [vmem:[#allocation10 + $0xe0] sm:$0xf]
        %v4714 = vld [vmem:[#allocation10 + $0xe4] sm:$0xf]
        %v4715 = vld [vmem:[#allocation10 + $0xe8] sm:$0xf]
        %v4716 = vld [vmem:[#allocation10 + $0xec] sm:$0xf]
        %v4717 = vld [vmem:[#allocation10 + $0xf0] sm:$0xf]
        %v4718 = vld [vmem:[#allocation10 + $0xf4] sm:$0xf]
        %v4719 = vld [vmem:[#allocation10 + $0xf8] sm:$0xf]
        %v4720 = vld [vmem:[#allocation10 + $0xfc] sm:$0xf]
        %v4721 = vld [vmem:[%s9] sm:$0x1]
        %v4723 = vperm.slane %v4721, 0
        %v4789 = vunpack.c.l.b16 %v4657
        %v4790 = vunpack.c.l.b16 %v4658
        %v4791 = vunpack.c.l.b16 %v4659
        %v4792 = vunpack.c.l.b16 %v4660
        %v4793 = vunpack.c.l.b16 %v4661
        %v4794 = vunpack.c.l.b16 %v4662
        %v4795 = vunpack.c.l.b16 %v4663
        %v4796 = vunpack.c.l.b16 %v4664
        %v4797 = vunpack.c.l.b16 %v4665
        %v4798 = vunpack.c.l.b16 %v4666
        %v4799 = vunpack.c.l.b16 %v4667
        %v4800 = vunpack.c.l.b16 %v4668
        %v4801 = vunpack.c.l.b16 %v4669
        %v4802 = vunpack.c.l.b16 %v4670
        %v4803 = vunpack.c.l.b16 %v4671
        %v4804 = vunpack.c.l.b16 %v4672
        %v4805 = vunpack.c.l.b16 %v4673
        %v4806 = vunpack.c.l.b16 %v4674
        %v4807 = vunpack.c.l.b16 %v4675
        %v4808 = vunpack.c.l.b16 %v4676
        %v4809 = vunpack.c.l.b16 %v4677
        %v4810 = vunpack.c.l.b16 %v4678
        %v4811 = vunpack.c.l.b16 %v4679
        %v4812 = vunpack.c.l.b16 %v4680
        %v4813 = vunpack.c.l.b16 %v4681
        %v4814 = vunpack.c.l.b16 %v4682
        %v4815 = vunpack.c.l.b16 %v4683
        %v4816 = vunpack.c.l.b16 %v4684
        %v4817 = vunpack.c.l.b16 %v4685
        %v4818 = vunpack.c.l.b16 %v4686
        %v4819 = vunpack.c.l.b16 %v4687
        %v4820 = vunpack.c.l.b16 %v4688
        %v4821 = vunpack.c.l.b16 %v4689
        %v4822 = vunpack.c.l.b16 %v4690
        %v4823 = vunpack.c.l.b16 %v4691
        %v4824 = vunpack.c.l.b16 %v4692
        %v4825 = vunpack.c.l.b16 %v4693
        %v4826 = vunpack.c.l.b16 %v4694
        %v4827 = vunpack.c.l.b16 %v4695
        %v4828 = vunpack.c.l.b16 %v4696
        %v4829 = vunpack.c.l.b16 %v4697
        %v4830 = vunpack.c.l.b16 %v4698
        %v4831 = vunpack.c.l.b16 %v4699
        %v4832 = vunpack.c.l.b16 %v4700
        %v4833 = vunpack.c.l.b16 %v4701
        %v4834 = vunpack.c.l.b16 %v4702
        %v4835 = vunpack.c.l.b16 %v4703
        %v4836 = vunpack.c.l.b16 %v4704
        %v4837 = vunpack.c.l.b16 %v4705
        %v4838 = vunpack.c.l.b16 %v4706
        %v4839 = vunpack.c.l.b16 %v4707
        %v4840 = vunpack.c.l.b16 %v4708
        %v4841 = vunpack.c.l.b16 %v4709
        %v4842 = vunpack.c.l.b16 %v4710
        %v4843 = vunpack.c.l.b16 %v4711
        %v4844 = vunpack.c.l.b16 %v4712
        %v4845 = vunpack.c.l.b16 %v4713
        %v4846 = vunpack.c.l.b16 %v4714
        %v4847 = vunpack.c.l.b16 %v4715
        %v4848 = vunpack.c.l.b16 %v4716
        %v4849 = vunpack.c.l.b16 %v4717
        %v4850 = vunpack.c.l.b16 %v4718
        %v4851 = vunpack.c.l.b16 %v4719
        %v4852 = vunpack.c.l.b16 %v4720
        %v4853 = vpack.c.b16 %v4790, %v4789
        %v4854 = vpack.c.b16 %v4792, %v4791
        %v4855 = vpack.c.b16 %v4794, %v4793
        %v4856 = vpack.c.b16 %v4796, %v4795
        %v4857 = vpack.c.b16 %v4798, %v4797
        %v4858 = vpack.c.b16 %v4800, %v4799
        %v4859 = vpack.c.b16 %v4802, %v4801
        %v4860 = vpack.c.b16 %v4804, %v4803
        %v4861 = vpack.c.b16 %v4806, %v4805
        %v4862 = vpack.c.b16 %v4808, %v4807
        %v4863 = vpack.c.b16 %v4810, %v4809
        %v4864 = vpack.c.b16 %v4812, %v4811
        %v4865 = vpack.c.b16 %v4814, %v4813
        %v4866 = vpack.c.b16 %v4816, %v4815
        %v4867 = vpack.c.b16 %v4818, %v4817
        %v4868 = vpack.c.b16 %v4820, %v4819
        %v4869 = vpack.c.b16 %v4822, %v4821
        %v4870 = vpack.c.b16 %v4824, %v4823
        %v4871 = vpack.c.b16 %v4826, %v4825
        %v4872 = vpack.c.b16 %v4828, %v4827
        %v4873 = vpack.c.b16 %v4830, %v4829
        %v4874 = vpack.c.b16 %v4832, %v4831
        %v4875 = vpack.c.b16 %v4834, %v4833
        %v4876 = vpack.c.b16 %v4836, %v4835
        %v4877 = vpack.c.b16 %v4838, %v4837
        %v4878 = vpack.c.b16 %v4840, %v4839
        %v4879 = vpack.c.b16 %v4842, %v4841
        %v4880 = vpack.c.b16 %v4844, %v4843
        %v4881 = vpack.c.b16 %v4846, %v4845
        %v4882 = vpack.c.b16 %v4848, %v4847
        %v4883 = vpack.c.b16 %v4850, %v4849
        %v4884 = vpack.c.b16 %v4852, %v4851
        %4917 = vmatpush.bf16.msra.mxu0 %v4860
        %4918 = vmatpush.bf16.msra.mxu0 %v4859
        %4919 = vmatpush.bf16.msra.mxu0 %v4858
        %4920 = vmatpush.bf16.msra.mxu0 %v4857
        %4921 = vmatpush.bf16.msra.mxu0 %v4856
        %4922 = vmatpush.bf16.msra.mxu0 %v4855
        %4923 = vmatpush.bf16.msra.mxu0 %v4854
        %4924 = vmatpush.bf16.msra.mxu0 %v4853
        %4925 = vmatmul.bf16.gmra.mxu0 %v4625
        %v4926 = vpop.f32.mrf.mxu0
        %v4927 = vadd.f32 %v4723, %v4926
        %v4928 = vpop.f32.mrf.mxu0
        %v4929 = vadd.f32 %v4723, %v4928
        %4930 = vmatmul.bf16.gmra.mxu0 %v4629
        %v4931 = vpop.f32.mrf.mxu0
        %v4932 = vadd.f32 %v4723, %v4931
        %v4933 = vpop.f32.mrf.mxu0
        %v4934 = vadd.f32 %v4723, %v4933
        %4935 = vmatmul.bf16.gmra.mxu0 %v4633
        %v4936 = vpop.f32.mrf.mxu0
        %v4937 = vadd.f32 %v4723, %v4936
        %v4938 = vpop.f32.mrf.mxu0
        %v4939 = vadd.f32 %v4723, %v4938
        %4940 = vmatmul.bf16.gmra.mxu0 %v4637
        %v4941 = vpop.f32.mrf.mxu0
        %v4942 = vadd.f32 %v4723, %v4941
        %v4943 = vpop.f32.mrf.mxu0
        %v4944 = vadd.f32 %v4723, %v4943
        %4945 = vmatmul.bf16.gmra.mxu0 %v4641
        %v4946 = vpop.f32.mrf.mxu0
        %v4947 = vadd.f32 %v4723, %v4946
        %v4948 = vpop.f32.mrf.mxu0
        %v4949 = vadd.f32 %v4723, %v4948
        %4950 = vmatmul.bf16.gmra.mxu0 %v4645
        %v4951 = vpop.f32.mrf.mxu0
        %v4952 = vadd.f32 %v4723, %v4951
        %v4953 = vpop.f32.mrf.mxu0
        %v4954 = vadd.f32 %v4723, %v4953
        %4955 = vmatmul.bf16.gmra.mxu0 %v4649
        %v4956 = vpop.f32.mrf.mxu0
        %v4957 = vadd.f32 %v4723, %v4956
        %v4958 = vpop.f32.mrf.mxu0
        %v4959 = vadd.f32 %v4723, %v4958
        %4960 = vmatmul.bf16.gmra.mxu0 %v4653
        %v4961 = vpop.f32.mrf.mxu0
        %v4962 = vadd.f32 %v4723, %v4961
        %v4963 = vpop.f32.mrf.mxu0
        %v4964 = vadd.f32 %v4723, %v4963
        %4965 = vdwg.mxu0
        %4966 = vmatpush.bf16.msra.mxu0 %v4868
        %4967 = vmatpush.bf16.msra.mxu0 %v4867
        %4968 = vmatpush.bf16.msra.mxu0 %v4866
        %4969 = vmatpush.bf16.msra.mxu0 %v4865
        %4970 = vmatpush.bf16.msra.mxu0 %v4864
        %4971 = vmatpush.bf16.msra.mxu0 %v4863
        %4972 = vmatpush.bf16.msra.mxu0 %v4862
        %4973 = vmatpush.bf16.msra.mxu0 %v4861
        %4974 = vmatmul.bf16.gmra.mxu0 %v4626
        %v4975 = vpop.f32.mrf.mxu0
        %v4976 = vadd.f32 %v4927, %v4975
        %v4977 = vpop.f32.mrf.mxu0
        %v4978 = vadd.f32 %v4929, %v4977
        %4979 = vmatmul.bf16.gmra.mxu0 %v4630
        %v4980 = vpop.f32.mrf.mxu0
        %v4981 = vadd.f32 %v4932, %v4980
        %v4982 = vpop.f32.mrf.mxu0
        %v4983 = vadd.f32 %v4934, %v4982
        %4984 = vmatmul.bf16.gmra.mxu0 %v4634
        %v4985 = vpop.f32.mrf.mxu0
        %v4986 = vadd.f32 %v4937, %v4985
        %v4987 = vpop.f32.mrf.mxu0
        %v4988 = vadd.f32 %v4939, %v4987
        %4989 = vmatmul.bf16.gmra.mxu0 %v4638
        %v4990 = vpop.f32.mrf.mxu0
        %v4991 = vadd.f32 %v4942, %v4990
        %v4992 = vpop.f32.mrf.mxu0
        %v4993 = vadd.f32 %v4944, %v4992
        %4994 = vmatmul.bf16.gmra.mxu0 %v4642
        %v4995 = vpop.f32.mrf.mxu0
        %v4996 = vadd.f32 %v4947, %v4995
        %v4997 = vpop.f32.mrf.mxu0
        %v4998 = vadd.f32 %v4949, %v4997
        %4999 = vmatmul.bf16.gmra.mxu0 %v4646
        %v5000 = vpop.f32.mrf.mxu0
        %v5001 = vadd.f32 %v4952, %v5000
        %v5002 = vpop.f32.mrf.mxu0
        %v5003 = vadd.f32 %v4954, %v5002
        %5004 = vmatmul.bf16.gmra.mxu0 %v4650
        %v5005 = vpop.f32.mrf.mxu0
        %v5006 = vadd.f32 %v4957, %v5005
        %v5007 = vpop.f32.mrf.mxu0
        %v5008 = vadd.f32 %v4959, %v5007
        %5009 = vmatmul.bf16.gmra.mxu0 %v4654
        %v5010 = vpop.f32.mrf.mxu0
        %v5011 = vadd.f32 %v4962, %v5010
        %v5012 = vpop.f32.mrf.mxu0
        %v5013 = vadd.f32 %v4964, %v5012
        %5014 = vdwg.mxu0
        %5015 = vmatpush.bf16.msra.mxu0 %v4876
        %5016 = vmatpush.bf16.msra.mxu0 %v4875
        %5017 = vmatpush.bf16.msra.mxu0 %v4874
        %5018 = vmatpush.bf16.msra.mxu0 %v4873
        %5019 = vmatpush.bf16.msra.mxu0 %v4872
        %5020 = vmatpush.bf16.msra.mxu0 %v4871
        %5021 = vmatpush.bf16.msra.mxu0 %v4870
        %5022 = vmatpush.bf16.msra.mxu0 %v4869
        %5023 = vmatmul.bf16.gmra.mxu0 %v4627
        %v5024 = vpop.f32.mrf.mxu0
        %v5025 = vadd.f32 %v4976, %v5024
        %v5026 = vpop.f32.mrf.mxu0
        %v5027 = vadd.f32 %v4978, %v5026
        %5028 = vmatmul.bf16.gmra.mxu0 %v4631
        %v5029 = vpop.f32.mrf.mxu0
        %v5030 = vadd.f32 %v4981, %v5029
        %v5031 = vpop.f32.mrf.mxu0
        %v5032 = vadd.f32 %v4983, %v5031
        %5033 = vmatmul.bf16.gmra.mxu0 %v4635
        %v5034 = vpop.f32.mrf.mxu0
        %v5035 = vadd.f32 %v4986, %v5034
        %v5036 = vpop.f32.mrf.mxu0
        %v5037 = vadd.f32 %v4988, %v5036
        %5038 = vmatmul.bf16.gmra.mxu0 %v4639
        %v5039 = vpop.f32.mrf.mxu0
        %v5040 = vadd.f32 %v4991, %v5039
        %v5041 = vpop.f32.mrf.mxu0
        %v5042 = vadd.f32 %v4993, %v5041
        %5043 = vmatmul.bf16.gmra.mxu0 %v4643
        %v5044 = vpop.f32.mrf.mxu0
        %v5045 = vadd.f32 %v4996, %v5044
        %v5046 = vpop.f32.mrf.mxu0
        %v5047 = vadd.f32 %v4998, %v5046
        %5048 = vmatmul.bf16.gmra.mxu0 %v4647
        %v5049 = vpop.f32.mrf.mxu0
        %v5050 = vadd.f32 %v5001, %v5049
        %v5051 = vpop.f32.mrf.mxu0
        %v5052 = vadd.f32 %v5003, %v5051
        %5053 = vmatmul.bf16.gmra.mxu0 %v4651
        %v5054 = vpop.f32.mrf.mxu0
        %v5055 = vadd.f32 %v5006, %v5054
        %v5056 = vpop.f32.mrf.mxu0
        %v5057 = vadd.f32 %v5008, %v5056
        %5058 = vmatmul.bf16.gmra.mxu0 %v4655
        %v5059 = vpop.f32.mrf.mxu0
        %v5060 = vadd.f32 %v5011, %v5059
        %v5061 = vpop.f32.mrf.mxu0
        %v5062 = vadd.f32 %v5013, %v5061
        %5063 = vdwg.mxu0
        %5064 = vmatpush.bf16.msra.mxu0 %v4884
        %5065 = vmatpush.bf16.msra.mxu0 %v4883
        %5066 = vmatpush.bf16.msra.mxu0 %v4882
        %5067 = vmatpush.bf16.msra.mxu0 %v4881
        %5068 = vmatpush.bf16.msra.mxu0 %v4880
        %5069 = vmatpush.bf16.msra.mxu0 %v4879
        %5070 = vmatpush.bf16.msra.mxu0 %v4878
        %5071 = vmatpush.bf16.msra.mxu0 %v4877
        %5072 = vmatmul.bf16.gmra.mxu0 %v4628
        %v5073 = vpop.f32.mrf.mxu0
        %v5074 = vadd.f32 %v5025, %v5073
        %v5075 = vpop.f32.mrf.mxu0
        %v5076 = vadd.f32 %v5027, %v5075
        %5077 = vmatmul.bf16.gmra.mxu0 %v4632
        %v5078 = vpop.f32.mrf.mxu0
        %v5079 = vadd.f32 %v5030, %v5078
        %v5080 = vpop.f32.mrf.mxu0
        %v5081 = vadd.f32 %v5032, %v5080
        %5082 = vmatmul.bf16.gmra.mxu0 %v4636
        %v5083 = vpop.f32.mrf.mxu0
        %v5084 = vadd.f32 %v5035, %v5083
        %v5085 = vpop.f32.mrf.mxu0
        %v5086 = vadd.f32 %v5037, %v5085
        %5087 = vmatmul.bf16.gmra.mxu0 %v4640
        %v5088 = vpop.f32.mrf.mxu0
        %v5089 = vadd.f32 %v5040, %v5088
        %v5090 = vpop.f32.mrf.mxu0
        %v5091 = vadd.f32 %v5042, %v5090
        %5092 = vmatmul.bf16.gmra.mxu0 %v4644
        %v5093 = vpop.f32.mrf.mxu0
        %v5094 = vadd.f32 %v5045, %v5093
        %v5095 = vpop.f32.mrf.mxu0
        %v5096 = vadd.f32 %v5047, %v5095
        %5097 = vmatmul.bf16.gmra.mxu0 %v4648
        %v5098 = vpop.f32.mrf.mxu0
        %v5099 = vadd.f32 %v5050, %v5098
        %v5100 = vpop.f32.mrf.mxu0
        %v5101 = vadd.f32 %v5052, %v5100
        %5102 = vmatmul.bf16.gmra.mxu0 %v4652
        %v5103 = vpop.f32.mrf.mxu0
        %v5104 = vadd.f32 %v5055, %v5103
        %v5105 = vpop.f32.mrf.mxu0
        %v5106 = vadd.f32 %v5057, %v5105
        %5107 = vmatmul.bf16.gmra.mxu0 %v4656
        %v5108 = vpop.f32.mrf.mxu0
        %v5109 = vadd.f32 %v5060, %v5108
        %v5110 = vpop.f32.mrf.mxu0
        %v5111 = vadd.f32 %v5062, %v5110
        %5112 = vdwg.mxu0
        %v5113 = vperm.slane %v479, 5
        %v5114 = vmul.f32 %v5074, %v5113
        %v5115 = vmul.f32 %v5076, %v5113
        %v5116 = vmul.f32 %v5079, %v5113
        %v5117 = vmul.f32 %v5081, %v5113
        %v5118 = vmul.f32 %v5084, %v5113
        %v5119 = vmul.f32 %v5086, %v5113
        %v5120 = vmul.f32 %v5089, %v5113
        %v5121 = vmul.f32 %v5091, %v5113
        %v5122 = vmul.f32 %v5094, %v5113
        %v5123 = vmul.f32 %v5096, %v5113
        %v5124 = vmul.f32 %v5099, %v5113
        %v5125 = vmul.f32 %v5101, %v5113
        %v5126 = vmul.f32 %v5104, %v5113
        %v5127 = vmul.f32 %v5106, %v5113
        %v5128 = vmul.f32 %v5109, %v5113
        %v5129 = vmul.f32 %v5111, %v5113
        %v5130 = vadd.f32 %v3431, %v5114
        %v5131 = vadd.f32 %v3432, %v5115
        %v5132 = vadd.f32 %v3433, %v5116
        %v5133 = vadd.f32 %v3434, %v5117
        %v5134 = vadd.f32 %v3435, %v5118
        %v5135 = vadd.f32 %v3436, %v5119
        %v5136 = vadd.f32 %v3437, %v5120
        %v5137 = vadd.f32 %v3438, %v5121
        %v5138 = vadd.f32 %v3439, %v5122
        %v5139 = vadd.f32 %v3440, %v5123
        %v5140 = vadd.f32 %v3441, %v5124
        %v5141 = vadd.f32 %v3442, %v5125
        %v5142 = vadd.f32 %v3443, %v5126
        %v5143 = vadd.f32 %v3444, %v5127
        %v5144 = vadd.f32 %v3445, %v5128
        %v5145 = vadd.f32 %v3446, %v5129
        %5146 = vst [vmem:[%s458] sm:$0xff] %v5130
        %5147 = vst [vmem:[%s458 + $0x8] sm:$0xff] %v5131
        %5148 = vst [vmem:[%s458 + $0x10] sm:$0xff] %v5132
        %5149 = vst [vmem:[%s458 + $0x18] sm:$0xff] %v5133
        %5150 = vst [vmem:[%s458 + $0x20] sm:$0xff] %v5134
        %5151 = vst [vmem:[%s458 + $0x28] sm:$0xff] %v5135
        %5152 = vst [vmem:[%s458 + $0x30] sm:$0xff] %v5136
        %5153 = vst [vmem:[%s458 + $0x38] sm:$0xff] %v5137
        %5154 = vst [vmem:[%s458 + $0x40] sm:$0xff] %v5138
        %5155 = vst [vmem:[%s458 + $0x48] sm:$0xff] %v5139
        %5156 = vst [vmem:[%s458 + $0x50] sm:$0xff] %v5140
        %5157 = vst [vmem:[%s458 + $0x58] sm:$0xff] %v5141
        %5158 = vst [vmem:[%s458 + $0x60] sm:$0xff] %v5142
        %5159 = vst [vmem:[%s458 + $0x68] sm:$0xff] %v5143
        %5160 = vst [vmem:[%s458 + $0x70] sm:$0xff] %v5144
        %5161 = vst [vmem:[%s458 + $0x78] sm:$0xff] %v5145
        %s5162 = sand.u32 %s257, 1
        %s5163 = scalar_lea.sflag [#allocation4], %s5162
        %s5164 = sand.u32 %s257, 1
        %s5165 = smul.addr %s5164, 128
        %s5166 = scalar_lea.vmem [#allocation11], %s5165
        // Predicated region
        $region81: #{tpu_custom_call.1} parent=59 // pred_check
          %p5167 = pneg %p267
        $region82: #{tpu_custom_call.1} parent=59 // pred_check_branch
          %5169 = sbr.rel (%p5167) target = $region84
        $region83: #{tpu_custom_call.1} parent=59 // pred_region
          %5171 = vsyncadd %s5163, 0
          %s5172 = smul.addr %s29, 16
          %s5173 = smul.addr %s5172, 8
          %s5174 = scalar_lea.hbm %s10, %s5173
          %s5175 = sshll.u32 %s5166, 4
          %s5176 = int_to_ptr.vmem [resolvable:$true] %s5175
          %s5177 = sshll.u32 %s5174, 4
          %s5178 = int_to_ptr.hbm [resolvable:$true] %s5177
          %5183 = dma.vmem_to_hbm [thread:$0]  %s5176, 2048, %s5178, %s5163, 128, 128, 8
        $region84: #{tpu_custom_call.1} parent=59 // pred_fallthru
          _
      $region60: #{tpu_custom_call.1} parent=5 // pred_fallthru
        _
      %p5184 = scmp.le.s32.totalorder 2, %s24
      // Predicated region
      $region85: #{tpu_custom_call.1} parent=5 // pred_check
        %p5185 = pneg %p5184
      $region86: #{tpu_custom_call.1} parent=5 // pred_check_branch
        %5187 = sbr.rel (%p5185) target = $region88
      $region87: #{tpu_custom_call.1} parent=5 // pred_region
        %s5188 = ssub.s32 %s24, 2
        // Predicated region
        $region89: #{tpu_custom_call.1} parent=87 // pred_check
          %p5189 = pneg %p273
        $region90: #{tpu_custom_call.1} parent=87 // pred_check_branch
          %5191 = sbr.rel (%p5189) target = $region92
        $region91: #{tpu_custom_call.1} parent=87 // pred_region
          %s5192 = sand.u32 %s258, 1
          %s5193 = scalar_lea.sflag [#allocation4], %s5192
          %s5194 = sand.u32 %s258, 1
          %s5195 = smul.addr %s5194, 128
          %s5196 = scalar_lea.vmem [#allocation11], %s5195
          %5198 = dma.done %s5193, 2048
        $region92: #{tpu_custom_call.1} parent=87 // pred_fallthru
          _
      $region88: #{tpu_custom_call.1} parent=5 // pred_fallthru
        _
    $region6: #{tpu_custom_call.1} parent=1 // loop_footer
      %s28 = sadd.s32 1, %s24
    $region7: #{tpu_custom_call.1} parent=1 // loop_footer_branch
      %23 = sbr.rel target = $region3
    $region8: #{tpu_custom_call.1} parent=1 // loop_exit
      _
    %5199 = vsyncpa [#allocation3], 1
    %s5200 = scalar_lea.sflag [#allocation3], 1
    %5201 = vsyncpa %s5200, 1
    %5202 = vsyncpa [#allocation6], 1
    %5203 = vsyncpa [#allocation9], 1
    %5204 = vsyncpa [#allocation4], 1
    %s5205 = scalar_lea.sflag [#allocation4], 1
    %5206 = vsyncpa %s5205, 1

</llo_original>
